<compile_context>
chip_gen: v6e
topology: v6e:2x2x1
jax: 0.10.0
libtpu: 0.0.40
codegen_flags: <defaults>
</compile_context>

<pallas_src>
import functools

import jax
import jax.numpy as jnp
from jax.experimental import pallas as pl
from jax.experimental.pallas import tpu as pltpu

EPS = 1e-5
LANE = 128


def _round_up(x, m):
    return (x + m - 1) // m * m


# --------------------------------------------------------------------------
# in-kernel helpers
# --------------------------------------------------------------------------
def _conv3x3(x, w_ref, b_ref):
    """3x3 'SAME' conv of an (Nb, H, W, C) bf16 block.

    w_ref: (3, 3*C, Cout) bf16 (kh-major, then kw, then ci); b_ref: (1, Cout)
    f32.  Returns (Nb*H*W, Cout) f32.  Three per-kh MXU matmuls (K = 3*C)
    accumulate in f32 -- no 9*C im2col patch is materialized.
    """
    Nb, H, W, C = x.shape
    Cout = w_ref.shape[-1]
    dt = x.dtype
    zrow = jnp.zeros((Nb, 1, W, C), dt)
    zcol = jnp.zeros((Nb, H, 1, C), dt)
    acc = jnp.zeros((Nb * H * W, Cout), jnp.float32)
    for kh in range(3):
        if kh == 0:        # rows read x[h-1]
            xh = jnp.concatenate([zrow, x[:, :H - 1]], axis=1)
        elif kh == 1:
            xh = x
        else:              # rows read x[h+1]
            xh = jnp.concatenate([x[:, 1:], zrow], axis=1)
        left = jnp.concatenate([zcol, xh[:, :, :W - 1]], axis=2)    # x[., w-1]
        right = jnp.concatenate([xh[:, :, 1:], zcol], axis=2)       # x[., w+1]
        patch = jnp.concatenate([left, xh, right], axis=-1)         # (Nb,H,W,3C)
        acc = acc + jnp.dot(patch.reshape(Nb * H * W, 3 * C), w_ref[kh],
                            preferred_element_type=jnp.float32)
    return acc + b_ref[...]


def _write_stats(st_ref, y, nb_count):
    """Per-block BN partials: channel sum and *centered* sum of squares."""
    s = jnp.sum(y, axis=0, keepdims=True)                     # (1, C)
    d = y - s * (1.0 / nb_count)
    st_ref[0, 0:1, :] = s
    st_ref[0, 1:2, :] = jnp.sum(d * d, axis=0, keepdims=True)


def _scale_shift(st, gamma, beta, nb_count, count):
    """Combine per-block partials -> per-channel BN scale/shift (biased var)."""
    c = st.shape[-1]
    tot = jnp.sum(st, axis=0)                                 # (2, C)
    gmean = tot[0:1, :] * (1.0 / count)                       # (1, C)
    bmean = st[:, 0:1, :] * (1.0 / nb_count)                  # (G, 1, C)
    dm = bmean - gmean.reshape(1, 1, c)
    var = (tot[1:2, :]
           + nb_count * jnp.sum(dm * dm, axis=0)) * (1.0 / count)
    scale = gamma * jax.lax.rsqrt(var + EPS)
    shift = beta - gmean * scale
    return scale, shift                                       # (1, C) each


# --------------------------------------------------------------------------
# kernels (one batch block of Nb images per grid step)
# --------------------------------------------------------------------------
def _conv1_kernel(*refs, with_ds, nb_count):
    if with_ds:
        (x_ref, w1_ref, b1_ref, wd_ref, bd_ref,
         y1_ref, yd_ref, st1_ref, std_ref) = refs
    else:
        x_ref, w1_ref, b1_ref, y1_ref, st1_ref = refs
    Nb, H, W, Cin = x_ref.shape
    Cout = y1_ref.shape[-1]
    M = Nb * H * W
    x = x_ref[...]                                            # bf16

    y1 = _conv3x3(x, w1_ref, b1_ref)                          # (M, Cout) f32
    y1_ref[...] = y1.reshape(Nb, H, W, Cout).astype(y1_ref.dtype)
    _write_stats(st1_ref, y1, nb_count)

    if with_ds:                                               # residual 1x1 conv
        yd = jnp.dot(x.reshape(M, Cin), wd_ref[...],
                     preferred_element_type=jnp.float32) + bd_ref[...]
        yd_ref[...] = yd.reshape(Nb, H, W, Cout).astype(yd_ref.dtype)
        _write_stats(std_ref, yd, nb_count)


def _bn_relu_conv2_kernel(y1_ref, st1_ref, g1_ref, be1_ref, w2_ref, b2_ref,
                          y2_ref, st2_ref, *, nb_count, count):
    Nb, H, W, C = y1_ref.shape
    Cout = y2_ref.shape[-1]
    M = Nb * H * W
    sc1, sh1 = _scale_shift(st1_ref[...], g1_ref[...], be1_ref[...],
                            nb_count, count)
    a = jnp.maximum(y1_ref[...].astype(jnp.float32).reshape(M, C) * sc1 + sh1,
                    0.0)
    a = a.astype(jnp.bfloat16).reshape(Nb, H, W, C)
    y2 = _conv3x3(a, w2_ref, b2_ref)
    y2_ref[...] = y2.reshape(Nb, H, W, Cout).astype(y2_ref.dtype)
    _write_stats(st2_ref, y2, nb_count)


def _bn2_out_kernel(*refs, mode, nb_count, count):
    if mode == "ds":
        (y2_ref, res_ref, st2_ref, std_ref, g2_ref, be2_ref,
         gd_ref, bed_ref, out_ref) = refs
    elif mode == "identity":
        y2_ref, res_ref, st2_ref, g2_ref, be2_ref, out_ref = refs
    else:                                   # no skip connection
        y2_ref, st2_ref, g2_ref, be2_ref, out_ref = refs
    Nb, H, W, C = y2_ref.shape
    M = Nb * H * W
    sc2, sh2 = _scale_shift(st2_ref[...], g2_ref[...], be2_ref[...],
                            nb_count, count)
    out = y2_ref[...].astype(jnp.float32).reshape(M, C) * sc2 + sh2
    if mode == "ds":
        scr, shr = _scale_shift(std_ref[...], gd_ref[...], bed_ref[...],
                                nb_count, count)
        out = out + (res_ref[...].astype(jnp.float32).reshape(M, C) * scr + shr)
    elif mode == "identity":
        out = out + res_ref[...].astype(jnp.float32).reshape(M, C)
    out_ref[...] = jnp.maximum(out, 0.0).reshape(Nb, H, W, C).astype(out_ref.dtype)


# --------------------------------------------------------------------------
# wrapper
# --------------------------------------------------------------------------
def _pad_last(a, target):
    if a.shape[-1] == target:
        return a
    pads = [(0, 0)] * (a.ndim - 1) + [(0, target - a.shape[-1])]
    return jnp.pad(a, pads)


def _row(v, c_pad):
    return _pad_last(jnp.asarray(v, jnp.float32).reshape(1, -1), c_pad)


def _pick_nb(n, h, w, c, budget_bytes=8 << 20):
    """Largest per-step batch block that keeps the parallel grid axis >= 2
    (so both v7x TensorCores get work) within a VMEM activation budget."""
    if n <= 1:
        return 1
    best = 1
    for nb in range(1, n // 2 + 1):
        if n % nb == 0 and nb * h * w * c * 2 <= budget_bytes:   # bf16 bytes
            best = nb
    return best


def _vmem_limit_bytes():
    """Generation-aware scoped-VMEM budget (~3/4 physical: ~48MiB v7x, ~96MiB v5e/v6e)."""
    try:
        cap = int(pltpu.get_tpu_info().vmem_capacity_bytes)
    except Exception:
        cap = 128 * 1024 * 1024
    return min((cap * 3) // 4, 100 * 1024 * 1024)


@functools.partial(jax.jit, static_argnames=("downsample", "skip_connect"))
def resblock_forward(x, params, *, downsample=True, skip_connect=True):
    """x: (N, H, W, Cin) float32 NHWC.  Returns (N, H, W, Cout) float32."""
    N, H, W, Cin = x.shape
    Cout = params["w1"].shape[-1]
    need_ds = bool(downsample) and bool(skip_connect)
    if skip_connect and not downsample:
        assert Cin == Cout, "identity skip connection requires in_ch == block_ch"

    # lane-dense channel padding (multiples of 128; real ResNet widths on
    # v6e/v7x benefit from multiples of 256 on the output-channel tile).
    Cin_p = _round_up(Cin, LANE)
    Cout_p = _round_up(Cout, LANE)
    Nb = _pick_nb(N, H, W, max(Cin_p, Cout_p))
    G = N // Nb
    nb_count = float(Nb * H * W)
    count = float(N * H * W)

    x_p = _pad_last(x.astype(jnp.bfloat16), Cin_p)

    def conv_w(w, cin_p):
        w = jnp.asarray(w, jnp.float32)
        w = jnp.pad(w, ((0, 0), (0, 0), (0, cin_p - w.shape[2]),
                        (0, Cout_p - w.shape[3])))
        return w.reshape(3, 3 * cin_p, Cout_p).astype(jnp.bfloat16)

    w1 = conv_w(params["w1"], Cin_p)
    w2 = conv_w(params["w2"], Cout_p)
    b1 = _row(params["b1"], Cout_p)
    b2 = _row(params["b2"], Cout_p)
    g1 = _row(params["g1"], Cout_p)
    be1 = _row(params["be1"], Cout_p)
    g2 = _row(params["g2"], Cout_p)
    be2 = _row(params["be2"], Cout_p)

    cparams = pltpu.CompilerParams(
        dimension_semantics=("parallel",),      # batch blocks split across TCs
        vmem_limit_bytes=_vmem_limit_bytes(),
    )

    def img(c):     # one block of Nb images per grid step
        return pl.BlockSpec((Nb, H, W, c), lambda n: (n, 0, 0, 0))

    def full(a):    # resident every step (constant index_map)
        # TODO(synk): for real ResNet widths single-buffer these resident
        # weights (pipeline_mode=pl.Buffered(1)) to reclaim VMEM on v7x.
        nd = a.ndim
        return pl.BlockSpec(a.shape, lambda n, _nd=nd: (0,) * _nd)

    st_spec = pl.BlockSpec((1, 2, Cout_p), lambda n: (n, 0, 0))
    img_bf16 = jax.ShapeDtypeStruct((N, H, W, Cout_p), jnp.bfloat16)
    st_shape = jax.ShapeDtypeStruct((G, 2, Cout_p), jnp.float32)

    # ---- pass 1: conv1 (+ 1x1 downsample conv), per-block BN partials -------
    if need_ds:
        wd = jnp.pad(jnp.asarray(params["wd"], jnp.float32),
                     ((0, Cin_p - Cin), (0, Cout_p - Cout))).astype(jnp.bfloat16)
        bd = _row(params["bd"], Cout_p)
        gd = _row(params["gd"], Cout_p)
        bed = _row(params["bed"], Cout_p)
        y1, yd, st1, std = pl.pallas_call(
            functools.partial(_conv1_kernel, with_ds=True, nb_count=nb_count),
            grid=(G,),
            in_specs=[img(Cin_p), full(w1), full(b1), full(wd), full(bd)],
            out_specs=(img(Cout_p), img(Cout_p), st_spec, st_spec),
            out_shape=(img_bf16, img_bf16, st_shape, st_shape),
            compiler_params=cparams,
        )(x_p, w1, b1, wd, bd)
    else:
        y1, st1 = pl.pallas_call(
            functools.partial(_conv1_kernel, with_ds=False, nb_count=nb_count),
            grid=(G,),
            in_specs=[img(Cin_p), full(w1), full(b1)],
            out_specs=(img(Cout_p), st_spec),
            out_shape=(img_bf16, st_shape),
            compiler_params=cparams,
        )(x_p, w1, b1)

    # ---- pass 2: BN1 + ReLU + conv2, per-block BN partials -------------------
    y2, st2 = pl.pallas_call(
        functools.partial(_bn_relu_conv2_kernel, nb_count=nb_count, count=count),
        grid=(G,),
        in_specs=[img(Cout_p), full(st1), full(g1), full(be1),
                  full(w2), full(b2)],
        out_specs=(img(Cout_p), st_spec),
        out_shape=(img_bf16, st_shape),
        compiler_params=cparams,
    )(y1, st1, g1, be1, w2, b2)

    # ---- pass 3: BN2 + skip add + final ReLU ---------------------------------
    out_shape = jax.ShapeDtypeStruct((N, H, W, Cout_p), jnp.float32)
    if need_ds:
        out = pl.pallas_call(
            functools.partial(_bn2_out_kernel, mode="ds",
                              nb_count=nb_count, count=count),
            grid=(G,),
            in_specs=[img(Cout_p), img(Cout_p), full(st2), full(std),
                      full(g2), full(be2), full(gd), full(bed)],
            out_specs=img(Cout_p),
            out_shape=out_shape,
            compiler_params=cparams,
        )(y2, yd, st2, std, g2, be2, gd, bed)
    elif skip_connect:
        out = pl.pallas_call(
            functools.partial(_bn2_out_kernel, mode="identity",
                              nb_count=nb_count, count=count),
            grid=(G,),
            in_specs=[img(Cout_p), img(Cout_p), full(st2), full(g2), full(be2)],
            out_specs=img(Cout_p),
            out_shape=out_shape,
            compiler_params=cparams,
        )(y2, x_p, st2, g2, be2)
    else:
        out = pl.pallas_call(
            functools.partial(_bn2_out_kernel, mode="none",
                              nb_count=nb_count, count=count),
            grid=(G,),
            in_specs=[img(Cout_p), full(st2), full(g2), full(be2)],
            out_specs=img(Cout_p),
            out_shape=out_shape,
            compiler_params=cparams,
        )(y2, st2, g2, be2)

    return out[..., :Cout]


# --------------------------------------------------------------------------
# pure-JAX f32 reference (correctness check)
# --------------------------------------------------------------------------
def _ref_conv(x, w, b):
    y = jax.lax.conv_general_dilated(
        x, w, window_strides=(1, 1), padding="SAME",
        dimension_numbers=("NHWC", "HWIO", "NHWC"))
    return y + b


def _ref_bn(y, g, be):
    mu = y.mean(axis=(0, 1, 2), keepdims=True)
    var = ((y - mu) ** 2).mean(axis=(0, 1, 2), keepdims=True)
    return (y - mu) * jax.lax.rsqrt(var + EPS) * g + be


def ref_forward(x, p, *, downsample=True, skip_connect=True):
    orig = x
    y = jnp.maximum(_ref_bn(_ref_conv(x, p["w1"], p["b1"]), p["g1"], p["be1"]), 0.0)
    y = _ref_bn(_ref_conv(y, p["w2"], p["b2"]), p["g2"], p["be2"])
    if downsample and skip_connect:
        orig = _ref_bn(_ref_conv(x, p["wd"][None, None], p["bd"]), p["gd"], p["bed"])
    out = y + orig if skip_connect else y
    return jnp.maximum(out, 0.0)


if __name__ == "__main__":
    N, H, W = 2, 16, 16
    in_ch, block_ch = 4, 8

    key = jax.random.PRNGKey(0)
    keys = jax.random.split(key, 8)

    params = {
        # conv weights in HWIO layout
        "w1": 0.3 * jax.random.normal(keys[0], (3, 3, in_ch, block_ch), jnp.float32),
        "b1": 0.1 * jax.random.normal(keys[1], (block_ch,), jnp.float32),
        "g1": jnp.ones((block_ch,), jnp.float32),
        "be1": jnp.zeros((block_ch,), jnp.float32),
        "w2": 0.3 * jax.random.normal(keys[2], (3, 3, block_ch, block_ch), jnp.float32),
        "b2": 0.1 * jax.random.normal(keys[3], (block_ch,), jnp.float32),
        "g2": jnp.ones((block_ch,), jnp.float32),
        "be2": jnp.zeros((block_ch,), jnp.float32),
        # 1x1 downsample conv + BN
        "wd": 0.3 * jax.random.normal(keys[4], (in_ch, block_ch), jnp.float32),
        "bd": 0.1 * jax.random.normal(keys[5], (block_ch,), jnp.float32),
        "gd": jnp.ones((block_ch,), jnp.float32),
        "bed": jnp.zeros((block_ch,), jnp.float32),
    }

    x_nchw = jax.random.normal(keys[6], (N, in_ch, H, W), jnp.float32)
    x = jnp.transpose(x_nchw, (0, 2, 3, 1))        # NCHW -> NHWC

    out = jax.block_until_ready(
        resblock_forward(x, params, downsample=True, skip_connect=True))
    ref = jax.block_until_ready(
        ref_forward(x, params, downsample=True, skip_connect=True))

    assert out.shape == (N, H, W, block_ch)
    # tolerance accounts for bf16 MXU matmuls + bf16 inter-pass intermediates
    err = jnp.max(jnp.abs(out - ref))
    assert jnp.allclose(out, ref, rtol=3e-2, atol=6e-2), f"max abs err {err}"

    print("KERNEL_OK")
</pallas_src>

<mosaic_0001>
module attributes {stable_mosaic.version = 11 : i64} {
  func.func @_conv1_kernel(%arg0: i32, %arg1: memref<1x16x16x128xbf16, #tpu.memory_space<vmem>>, %arg2: memref<3x384x128xbf16, #tpu.memory_space<vmem>>, %arg3: memref<1x128xf32, #tpu.memory_space<vmem>>, %arg4: memref<128x128xbf16, #tpu.memory_space<vmem>>, %arg5: memref<1x128xf32, #tpu.memory_space<vmem>>, %arg6: memref<1x16x16x128xbf16, #tpu.memory_space<vmem>>, %arg7: memref<1x16x16x128xbf16, #tpu.memory_space<vmem>>, %arg8: memref<1x2x128xf32, #tpu.memory_space<vmem>>, %arg9: memref<1x2x128xf32, #tpu.memory_space<vmem>>) attributes {dimension_semantics = [#tpu.dimension_semantics<parallel>], iteration_bounds = array<i64: 2>, scalar_prefetch = 0 : i64, scratch_operands = 0 : i64, tpu.core_type = #tpu.core_type<tc>, window_params = [{transform_indices = @transform_0, window_bounds = array<i64: 1, 16, 16, 128>}, {pipeline_mode = #tpu.pipeline_mode<synchronous>, transform_indices = @transform_1, window_bounds = array<i64: 3, 384, 128>}, {pipeline_mode = #tpu.pipeline_mode<synchronous>, transform_indices = @transform_2, window_bounds = array<i64: 1, 128>}, {pipeline_mode = #tpu.pipeline_mode<synchronous>, transform_indices = @transform_3, window_bounds = array<i64: 128, 128>}, {pipeline_mode = #tpu.pipeline_mode<synchronous>, transform_indices = @transform_4, window_bounds = array<i64: 1, 128>}, {transform_indices = @transform_5, window_bounds = array<i64: 1, 16, 16, 128>}, {transform_indices = @transform_6, window_bounds = array<i64: 1, 16, 16, 128>}, {transform_indices = @transform_7, window_bounds = array<i64: 1, 2, 128>}, {transform_indices = @transform_8, window_bounds = array<i64: 1, 2, 128>}]} {
    %c0 = arith.constant 0 : index
    %c0_0 = arith.constant 0 : index
    %c0_1 = arith.constant 0 : index
    %c0_2 = arith.constant 0 : index
    %0 = vector.load %arg1[%c0, %c0_0, %c0_1, %c0_2] : memref<1x16x16x128xbf16, #tpu.memory_space<vmem>>, vector<1x16x16x128xbf16>
    %cst = arith.constant 0.000000e+00 : bf16
    %1 = vector.broadcast %cst : bf16 to vector<1x1x16x128xbf16>
    %cst_3 = arith.constant 0.000000e+00 : bf16
    %2 = vector.broadcast %cst_3 : bf16 to vector<1x16x1x128xbf16>
    %cst_4 = arith.constant 0.000000e+00 : f32
    %3 = vector.broadcast %cst_4 : f32 to vector<256x128xf32>
    %4 = vector.extract_strided_slice %0 {offsets = [0, 0, 0, 0], sizes = [1, 15, 16, 128], strides = [1, 1, 1, 1]} : vector<1x16x16x128xbf16> to vector<1x15x16x128xbf16>
    %5 = tpu.concatenate %1, %4 in 1 : vector<1x1x16x128xbf16>, vector<1x15x16x128xbf16> -> vector<1x16x16x128xbf16>
    %6 = vector.extract_strided_slice %5 {offsets = [0, 0, 0, 0], sizes = [1, 16, 15, 128], strides = [1, 1, 1, 1]} : vector<1x16x16x128xbf16> to vector<1x16x15x128xbf16>
    %7 = tpu.concatenate %2, %6 in 2 : vector<1x16x1x128xbf16>, vector<1x16x15x128xbf16> -> vector<1x16x16x128xbf16>
    %8 = vector.extract_strided_slice %5 {offsets = [0, 0, 1, 0], sizes = [1, 16, 15, 128], strides = [1, 1, 1, 1]} : vector<1x16x16x128xbf16> to vector<1x16x15x128xbf16>
    %9 = tpu.concatenate %8, %2 in 2 : vector<1x16x15x128xbf16>, vector<1x16x1x128xbf16> -> vector<1x16x16x128xbf16>
    %10 = tpu.concatenate %7, %5, %9 in 3 : vector<1x16x16x128xbf16>, vector<1x16x16x128xbf16>, vector<1x16x16x128xbf16> -> vector<1x16x16x384xbf16>
    %11 = vector.shape_cast %10 : vector<1x16x16x384xbf16> to vector<256x384xbf16>
    %c0_5 = arith.constant 0 : index
    %c0_6 = arith.constant 0 : index
    %c0_7 = arith.constant 0 : index
    %12 = vector.load %arg2[%c0_5, %c0_6, %c0_7] : memref<3x384x128xbf16, #tpu.memory_space<vmem>>, vector<1x384x128xbf16>
    %13 = vector.shape_cast %12 : vector<1x384x128xbf16> to vector<384x128xbf16>
    %cst_8 = arith.constant dense<0.000000e+00> : vector<256x128xf32>
    %14 = tpu.matmul %11, %13, %cst_8 {dimension_numbers = #tpu.dot_dimension_numbers<[1], [0], [0], [1], [0, 0, 1, 1], [], []>} : vector<256x384xbf16>, vector<384x128xbf16>, vector<256x128xf32> -> vector<256x128xf32>
    %15 = arith.addf %3, %14 : vector<256x128xf32>
    %16 = vector.extract_strided_slice %0 {offsets = [0, 0, 0, 0], sizes = [1, 16, 15, 128], strides = [1, 1, 1, 1]} : vector<1x16x16x128xbf16> to vector<1x16x15x128xbf16>
    %17 = tpu.concatenate %2, %16 in 2 : vector<1x16x1x128xbf16>, vector<1x16x15x128xbf16> -> vector<1x16x16x128xbf16>
    %18 = vector.extract_strided_slice %0 {offsets = [0, 0, 1, 0], sizes = [1, 16, 15, 128], strides = [1, 1, 1, 1]} : vector<1x16x16x128xbf16> to vector<1x16x15x128xbf16>
    %19 = tpu.concatenate %18, %2 in 2 : vector<1x16x15x128xbf16>, vector<1x16x1x128xbf16> -> vector<1x16x16x128xbf16>
    %20 = tpu.concatenate %17, %0, %19 in 3 : vector<1x16x16x128xbf16>, vector<1x16x16x128xbf16>, vector<1x16x16x128xbf16> -> vector<1x16x16x384xbf16>
    %21 = vector.shape_cast %20 : vector<1x16x16x384xbf16> to vector<256x384xbf16>
    %c1 = arith.constant 1 : index
    %c0_9 = arith.constant 0 : index
    %c0_10 = arith.constant 0 : index
    %22 = vector.load %arg2[%c1, %c0_9, %c0_10] : memref<3x384x128xbf16, #tpu.memory_space<vmem>>, vector<1x384x128xbf16>
    %23 = vector.shape_cast %22 : vector<1x384x128xbf16> to vector<384x128xbf16>
    %cst_11 = arith.constant dense<0.000000e+00> : vector<256x128xf32>
    %24 = tpu.matmul %21, %23, %cst_11 {dimension_numbers = #tpu.dot_dimension_numbers<[1], [0], [0], [1], [0, 0, 1, 1], [], []>} : vector<256x384xbf16>, vector<384x128xbf16>, vector<256x128xf32> -> vector<256x128xf32>
    %25 = arith.addf %15, %24 : vector<256x128xf32>
    %26 = vector.extract_strided_slice %0 {offsets = [0, 1, 0, 0], sizes = [1, 15, 16, 128], strides = [1, 1, 1, 1]} : vector<1x16x16x128xbf16> to vector<1x15x16x128xbf16>
    %27 = tpu.concatenate %26, %1 in 1 : vector<1x15x16x128xbf16>, vector<1x1x16x128xbf16> -> vector<1x16x16x128xbf16>
    %28 = vector.extract_strided_slice %27 {offsets = [0, 0, 0, 0], sizes = [1, 16, 15, 128], strides = [1, 1, 1, 1]} : vector<1x16x16x128xbf16> to vector<1x16x15x128xbf16>
    %29 = tpu.concatenate %2, %28 in 2 : vector<1x16x1x128xbf16>, vector<1x16x15x128xbf16> -> vector<1x16x16x128xbf16>
    %30 = vector.extract_strided_slice %27 {offsets = [0, 0, 1, 0], sizes = [1, 16, 15, 128], strides = [1, 1, 1, 1]} : vector<1x16x16x128xbf16> to vector<1x16x15x128xbf16>
    %31 = tpu.concatenate %30, %2 in 2 : vector<1x16x15x128xbf16>, vector<1x16x1x128xbf16> -> vector<1x16x16x128xbf16>
    %32 = tpu.concatenate %29, %27, %31 in 3 : vector<1x16x16x128xbf16>, vector<1x16x16x128xbf16>, vector<1x16x16x128xbf16> -> vector<1x16x16x384xbf16>
    %33 = vector.shape_cast %32 : vector<1x16x16x384xbf16> to vector<256x384xbf16>
    %c2 = arith.constant 2 : index
    %c0_12 = arith.constant 0 : index
    %c0_13 = arith.constant 0 : index
    %34 = vector.load %arg2[%c2, %c0_12, %c0_13] : memref<3x384x128xbf16, #tpu.memory_space<vmem>>, vector<1x384x128xbf16>
    %35 = vector.shape_cast %34 : vector<1x384x128xbf16> to vector<384x128xbf16>
    %cst_14 = arith.constant dense<0.000000e+00> : vector<256x128xf32>
    %36 = tpu.matmul %33, %35, %cst_14 {dimension_numbers = #tpu.dot_dimension_numbers<[1], [0], [0], [1], [0, 0, 1, 1], [], []>} : vector<256x384xbf16>, vector<384x128xbf16>, vector<256x128xf32> -> vector<256x128xf32>
    %37 = arith.addf %25, %36 : vector<256x128xf32>
    %c0_15 = arith.constant 0 : index
    %c0_16 = arith.constant 0 : index
    %38 = vector.load %arg3[%c0_15, %c0_16] : memref<1x128xf32, #tpu.memory_space<vmem>>, vector<1x128xf32>
    %39 = vector.broadcast %38 : vector<1x128xf32> to vector<256x128xf32>
    %40 = arith.addf %37, %39 : vector<256x128xf32>
    %41 = vector.shape_cast %40 : vector<256x128xf32> to vector<1x16x16x128xf32>
    %42 = arith.truncf %41 : vector<1x16x16x128xf32> to vector<1x16x16x128xbf16>
    %c0_17 = arith.constant 0 : index
    %c0_18 = arith.constant 0 : index
    %c0_19 = arith.constant 0 : index
    %c0_20 = arith.constant 0 : index
    %43 = vector.load %arg6[%c0_17, %c0_18, %c0_19, %c0_20] : memref<1x16x16x128xbf16, #tpu.memory_space<vmem>>, vector<1x16x16x128xbf16>
    tpu.vector_store %arg6[%c0_17, %c0_18, %c0_19, %c0_20], %42 {strides = array<i32>} : memref<1x16x16x128xbf16, #tpu.memory_space<vmem>>, vector<1x16x16x128xbf16>,
    %cst_21 = arith.constant dense<0.000000e+00> : vector<128xf32>
    %44 = vector.multi_reduction <add>, %40, %cst_21 [0] : vector<256x128xf32> to vector<128xf32>
    %45 = vector.shape_cast %44 : vector<128xf32> to vector<1x128xf32>
    %cst_22 = arith.constant 3.906250e-03 : f32
    %46 = vector.broadcast %cst_22 : f32 to vector<1x128xf32>
    %47 = arith.mulf %45, %46 : vector<1x128xf32>
    %48 = vector.broadcast %47 : vector<1x128xf32> to vector<256x128xf32>
    %49 = arith.subf %40, %48 : vector<256x128xf32>
    %c0_23 = arith.constant 0 : index
    %c0_24 = arith.constant 0 : index
    %c0_25 = arith.constant 0 : index
    %50 = vector.load %arg8[%c0_23, %c0_24, %c0_25] : memref<1x2x128xf32, #tpu.memory_space<vmem>>, vector<1x1x128xf32>
    %51 = vector.shape_cast %50 : vector<1x1x128xf32> to vector<1x128xf32>
    %52 = vector.shape_cast %45 : vector<1x128xf32> to vector<1x1x128xf32>
    tpu.vector_store %arg8[%c0_23, %c0_24, %c0_25], %52 {strides = array<i32>} : memref<1x2x128xf32, #tpu.memory_space<vmem>>, vector<1x1x128xf32>,
    %53 = arith.mulf %49, %49 : vector<256x128xf32>
    %cst_26 = arith.constant dense<0.000000e+00> : vector<128xf32>
    %54 = vector.multi_reduction <add>, %53, %cst_26 [0] : vector<256x128xf32> to vector<128xf32>
    %55 = vector.shape_cast %54 : vector<128xf32> to vector<1x128xf32>
    %c0_27 = arith.constant 0 : index
    %c1_28 = arith.constant 1 : index
    %c0_29 = arith.constant 0 : index
    %56 = vector.load %arg8[%c0_27, %c1_28, %c0_29] : memref<1x2x128xf32, #tpu.memory_space<vmem>>, vector<1x1x128xf32>
    %57 = vector.shape_cast %56 : vector<1x1x128xf32> to vector<1x128xf32>
    %58 = vector.shape_cast %55 : vector<1x128xf32> to vector<1x1x128xf32>
    tpu.vector_store %arg8[%c0_27, %c1_28, %c0_29], %58 {strides = array<i32>} : memref<1x2x128xf32, #tpu.memory_space<vmem>>, vector<1x1x128xf32>,
    %59 = vector.shape_cast %0 : vector<1x16x16x128xbf16> to vector<256x128xbf16>
    %c0_30 = arith.constant 0 : index
    %c0_31 = arith.constant 0 : index
    %60 = vector.load %arg4[%c0_30, %c0_31] : memref<128x128xbf16, #tpu.memory_space<vmem>>, vector<128x128xbf16>
    %cst_32 = arith.constant dense<0.000000e+00> : vector<256x128xf32>
    %61 = tpu.matmul %59, %60, %cst_32 {dimension_numbers = #tpu.dot_dimension_numbers<[1], [0], [0], [1], [0, 0, 1, 1], [], []>} : vector<256x128xbf16>, vector<128x128xbf16>, vector<256x128xf32> -> vector<256x128xf32>
    %c0_33 = arith.constant 0 : index
    %c0_34 = arith.constant 0 : index
    %62 = vector.load %arg5[%c0_33, %c0_34] : memref<1x128xf32, #tpu.memory_space<vmem>>, vector<1x128xf32>
    %63 = vector.broadcast %62 : vector<1x128xf32> to vector<256x128xf32>
    %64 = arith.addf %61, %63 : vector<256x128xf32>
    %65 = vector.shape_cast %64 : vector<256x128xf32> to vector<1x16x16x128xf32>
    %66 = arith.truncf %65 : vector<1x16x16x128xf32> to vector<1x16x16x128xbf16>
    %c0_35 = arith.constant 0 : index
    %c0_36 = arith.constant 0 : index
    %c0_37 = arith.constant 0 : index
    %c0_38 = arith.constant 0 : index
    %67 = vector.load %arg7[%c0_35, %c0_36, %c0_37, %c0_38] : memref<1x16x16x128xbf16, #tpu.memory_space<vmem>>, vector<1x16x16x128xbf16>
    tpu.vector_store %arg7[%c0_35, %c0_36, %c0_37, %c0_38], %66 {strides = array<i32>} : memref<1x16x16x128xbf16, #tpu.memory_space<vmem>>, vector<1x16x16x128xbf16>,
    %cst_39 = arith.constant dense<0.000000e+00> : vector<128xf32>
    %68 = vector.multi_reduction <add>, %64, %cst_39 [0] : vector<256x128xf32> to vector<128xf32>
    %69 = vector.shape_cast %68 : vector<128xf32> to vector<1x128xf32>
    %cst_40 = arith.constant 3.906250e-03 : f32
    %70 = vector.broadcast %cst_40 : f32 to vector<1x128xf32>
    %71 = arith.mulf %69, %70 : vector<1x128xf32>
    %72 = vector.broadcast %71 : vector<1x128xf32> to vector<256x128xf32>
    %73 = arith.subf %64, %72 : vector<256x128xf32>
    %c0_41 = arith.constant 0 : index
    %c0_42 = arith.constant 0 : index
    %c0_43 = arith.constant 0 : index
    %74 = vector.load %arg9[%c0_41, %c0_42, %c0_43] : memref<1x2x128xf32, #tpu.memory_space<vmem>>, vector<1x1x128xf32>
    %75 = vector.shape_cast %74 : vector<1x1x128xf32> to vector<1x128xf32>
    %76 = vector.shape_cast %69 : vector<1x128xf32> to vector<1x1x128xf32>
    tpu.vector_store %arg9[%c0_41, %c0_42, %c0_43], %76 {strides = array<i32>} : memref<1x2x128xf32, #tpu.memory_space<vmem>>, vector<1x1x128xf32>,
    %77 = arith.mulf %73, %73 : vector<256x128xf32>
    %cst_44 = arith.constant dense<0.000000e+00> : vector<128xf32>
    %78 = vector.multi_reduction <add>, %77, %cst_44 [0] : vector<256x128xf32> to vector<128xf32>
    %79 = vector.shape_cast %78 : vector<128xf32> to vector<1x128xf32>
    %c0_45 = arith.constant 0 : index
    %c1_46 = arith.constant 1 : index
    %c0_47 = arith.constant 0 : index
    %80 = vector.load %arg9[%c0_45, %c1_46, %c0_47] : memref<1x2x128xf32, #tpu.memory_space<vmem>>, vector<1x1x128xf32>
    %81 = vector.shape_cast %80 : vector<1x1x128xf32> to vector<1x128xf32>
    %82 = vector.shape_cast %79 : vector<1x128xf32> to vector<1x1x128xf32>
    tpu.vector_store %arg9[%c0_45, %c1_46, %c0_47], %82 {strides = array<i32>} : memref<1x2x128xf32, #tpu.memory_space<vmem>>, vector<1x1x128xf32>,
    return
  }
  func.func @transform_0(%arg0: i32) -> (i32, i32, i32, i32) {
    %c0_i32 = arith.constant 0 : i32
    %c0_i32_0 = arith.constant 0 : i32
    %c0_i32_1 = arith.constant 0 : i32
    %c0_i32_2 = arith.constant 0 : i32
    return %arg0, %c0_i32, %c0_i32_0, %c0_i32_1 : i32, i32, i32, i32
  }
  func.func @transform_1(%arg0: i32) -> (i32, i32, i32) {
    %c0_i32 = arith.constant 0 : i32
    %c0_i32_0 = arith.constant 0 : i32
    %c0_i32_1 = arith.constant 0 : i32
    %c0_i32_2 = arith.constant 0 : i32
    return %c0_i32, %c0_i32_0, %c0_i32_1 : i32, i32, i32
  }
  func.func @transform_2(%arg0: i32) -> (i32, i32) {
    %c0_i32 = arith.constant 0 : i32
    %c0_i32_0 = arith.constant 0 : i32
    %c0_i32_1 = arith.constant 0 : i32
    return %c0_i32, %c0_i32_0 : i32, i32
  }
  func.func @transform_3(%arg0: i32) -> (i32, i32) {
    %c0_i32 = arith.constant 0 : i32
    %c0_i32_0 = arith.constant 0 : i32
    %c0_i32_1 = arith.constant 0 : i32
    return %c0_i32, %c0_i32_0 : i32, i32
  }
  func.func @transform_4(%arg0: i32) -> (i32, i32) {
    %c0_i32 = arith.constant 0 : i32
    %c0_i32_0 = arith.constant 0 : i32
    %c0_i32_1 = arith.constant 0 : i32
    return %c0_i32, %c0_i32_0 : i32, i32
  }
  func.func @transform_5(%arg0: i32) -> (i32, i32, i32, i32) {
    %c0_i32 = arith.constant 0 : i32
    %c0_i32_0 = arith.constant 0 : i32
    %c0_i32_1 = arith.constant 0 : i32
    %c0_i32_2 = arith.constant 0 : i32
    return %arg0, %c0_i32, %c0_i32_0, %c0_i32_1 : i32, i32, i32, i32
  }
  func.func @transform_6(%arg0: i32) -> (i32, i32, i32, i32) {
    %c0_i32 = arith.constant 0 : i32
    %c0_i32_0 = arith.constant 0 : i32
    %c0_i32_1 = arith.constant 0 : i32
    %c0_i32_2 = arith.constant 0 : i32
    return %arg0, %c0_i32, %c0_i32_0, %c0_i32_1 : i32, i32, i32, i32
  }
  func.func @transform_7(%arg0: i32) -> (i32, i32, i32) {
    %c0_i32 = arith.constant 0 : i32
    %c0_i32_0 = arith.constant 0 : i32
    %c0_i32_1 = arith.constant 0 : i32
    return %arg0, %c0_i32, %c0_i32_0 : i32, i32, i32
  }
  func.func @transform_8(%arg0: i32) -> (i32, i32, i32) {
    %c0_i32 = arith.constant 0 : i32
    %c0_i32_0 = arith.constant 0 : i32
    %c0_i32_1 = arith.constant 0 : i32
    return %arg0, %c0_i32, %c0_i32_0 : i32, i32, i32
  }
}

module attributes {stable_mosaic.version = 11 : i64} {
  func.func @_bn_relu_conv2_kernel(%arg0: i32, %arg1: memref<1x16x16x128xbf16, #tpu.memory_space<vmem>>, %arg2: memref<2x2x128xf32, #tpu.memory_space<vmem>>, %arg3: memref<1x128xf32, #tpu.memory_space<vmem>>, %arg4: memref<1x128xf32, #tpu.memory_space<vmem>>, %arg5: memref<3x384x128xbf16, #tpu.memory_space<vmem>>, %arg6: memref<1x128xf32, #tpu.memory_space<vmem>>, %arg7: memref<1x16x16x128xbf16, #tpu.memory_space<vmem>>, %arg8: memref<1x2x128xf32, #tpu.memory_space<vmem>>) attributes {dimension_semantics = [#tpu.dimension_semantics<parallel>], iteration_bounds = array<i64: 2>, scalar_prefetch = 0 : i64, scratch_operands = 0 : i64, tpu.core_type = #tpu.core_type<tc>, window_params = [{transform_indices = @transform_0, window_bounds = array<i64: 1, 16, 16, 128>}, {pipeline_mode = #tpu.pipeline_mode<synchronous>, transform_indices = @transform_1, window_bounds = array<i64: 2, 2, 128>}, {pipeline_mode = #tpu.pipeline_mode<synchronous>, transform_indices = @transform_2, window_bounds = array<i64: 1, 128>}, {pipeline_mode = #tpu.pipeline_mode<synchronous>, transform_indices = @transform_3, window_bounds = array<i64: 1, 128>}, {pipeline_mode = #tpu.pipeline_mode<synchronous>, transform_indices = @transform_4, window_bounds = array<i64: 3, 384, 128>}, {pipeline_mode = #tpu.pipeline_mode<synchronous>, transform_indices = @transform_5, window_bounds = array<i64: 1, 128>}, {transform_indices = @transform_6, window_bounds = array<i64: 1, 16, 16, 128>}, {transform_indices = @transform_7, window_bounds = array<i64: 1, 2, 128>}]} {
    %c0 = arith.constant 0 : index
    %c0_0 = arith.constant 0 : index
    %c0_1 = arith.constant 0 : index
    %0 = vector.load %arg2[%c0, %c0_0, %c0_1] : memref<2x2x128xf32, #tpu.memory_space<vmem>>, vector<2x2x128xf32>
    %c0_2 = arith.constant 0 : index
    %c0_3 = arith.constant 0 : index
    %1 = vector.load %arg3[%c0_2, %c0_3] : memref<1x128xf32, #tpu.memory_space<vmem>>, vector<1x128xf32>
    %c0_4 = arith.constant 0 : index
    %c0_5 = arith.constant 0 : index
    %2 = vector.load %arg4[%c0_4, %c0_5] : memref<1x128xf32, #tpu.memory_space<vmem>>, vector<1x128xf32>
    %cst = arith.constant dense<0.000000e+00> : vector<2x128xf32>
    %3 = vector.multi_reduction <add>, %0, %cst [0] : vector<2x2x128xf32> to vector<2x128xf32>
    %4 = vector.extract_strided_slice %3 {offsets = [0, 0], sizes = [1, 128], strides = [1, 1]} : vector<2x128xf32> to vector<1x128xf32>
    %cst_6 = arith.constant 0.001953125 : f32
    %5 = vector.broadcast %cst_6 : f32 to vector<1x128xf32>
    %6 = arith.mulf %4, %5 : vector<1x128xf32>
    %7 = vector.extract_strided_slice %0 {offsets = [0, 0, 0], sizes = [2, 1, 128], strides = [1, 1, 1]} : vector<2x2x128xf32> to vector<2x1x128xf32>
    %cst_7 = arith.constant 3.906250e-03 : f32
    %8 = vector.broadcast %cst_7 : f32 to vector<2x1x128xf32>
    %9 = arith.mulf %7, %8 : vector<2x1x128xf32>
    %10 = vector.shape_cast %6 : vector<1x128xf32> to vector<1x1x128xf32>
    %11 = vector.broadcast %10 : vector<1x1x128xf32> to vector<2x1x128xf32>
    %12 = arith.subf %9, %11 : vector<2x1x128xf32>
    %13 = vector.extract_strided_slice %3 {offsets = [1, 0], sizes = [1, 128], strides = [1, 1]} : vector<2x128xf32> to vector<1x128xf32>
    %14 = arith.mulf %12, %12 : vector<2x1x128xf32>
    %cst_8 = arith.constant dense<0.000000e+00> : vector<1x128xf32>
    %15 = vector.multi_reduction <add>, %14, %cst_8 [0] : vector<2x1x128xf32> to vector<1x128xf32>
    %cst_9 = arith.constant 2.560000e+02 : f32
    %16 = vector.broadcast %cst_9 : f32 to vector<1x128xf32>
    %17 = arith.mulf %16, %15 : vector<1x128xf32>
    %18 = arith.addf %13, %17 : vector<1x128xf32>
    %cst_10 = arith.constant 0.001953125 : f32
    %19 = vector.broadcast %cst_10 : f32 to vector<1x128xf32>
    %20 = arith.mulf %18, %19 : vector<1x128xf32>
    %cst_11 = arith.constant 9.99999974E-6 : f32
    %21 = vector.broadcast %cst_11 : f32 to vector<1x128xf32>
    %22 = arith.addf %20, %21 : vector<1x128xf32>
    %23 = math.rsqrt %22 : vector<1x128xf32>
    %24 = arith.mulf %1, %23 : vector<1x128xf32>
    %25 = arith.mulf %6, %24 : vector<1x128xf32>
    %26 = arith.subf %2, %25 : vector<1x128xf32>
    %c0_12 = arith.constant 0 : index
    %c0_13 = arith.constant 0 : index
    %c0_14 = arith.constant 0 : index
    %c0_15 = arith.constant 0 : index
    %27 = vector.load %arg1[%c0_12, %c0_13, %c0_14, %c0_15] : memref<1x16x16x128xbf16, #tpu.memory_space<vmem>>, vector<1x16x16x128xbf16>
    %28 = arith.extf %27 : vector<1x16x16x128xbf16> to vector<1x16x16x128xf32>
    %29 = vector.shape_cast %28 : vector<1x16x16x128xf32> to vector<256x128xf32>
    %30 = vector.broadcast %24 : vector<1x128xf32> to vector<256x128xf32>
    %31 = arith.mulf %29, %30 : vector<256x128xf32>
    %32 = vector.broadcast %26 : vector<1x128xf32> to vector<256x128xf32>
    %33 = arith.addf %31, %32 : vector<256x128xf32>
    %cst_16 = arith.constant 0.000000e+00 : f32
    %34 = vector.broadcast %cst_16 : f32 to vector<256x128xf32>
    %35 = arith.maximumf %33, %34 : vector<256x128xf32>
    %36 = arith.truncf %35 : vector<256x128xf32> to vector<256x128xbf16>
    %37 = vector.shape_cast %36 : vector<256x128xbf16> to vector<1x16x16x128xbf16>
    %cst_17 = arith.constant 0.000000e+00 : bf16
    %38 = vector.broadcast %cst_17 : bf16 to vector<1x1x16x128xbf16>
    %cst_18 = arith.constant 0.000000e+00 : bf16
    %39 = vector.broadcast %cst_18 : bf16 to vector<1x16x1x128xbf16>
    %cst_19 = arith.constant 0.000000e+00 : f32
    %40 = vector.broadcast %cst_19 : f32 to vector<256x128xf32>
    %41 = vector.extract_strided_slice %37 {offsets = [0, 0, 0, 0], sizes = [1, 15, 16, 128], strides = [1, 1, 1, 1]} : vector<1x16x16x128xbf16> to vector<1x15x16x128xbf16>
    %42 = tpu.concatenate %38, %41 in 1 : vector<1x1x16x128xbf16>, vector<1x15x16x128xbf16> -> vector<1x16x16x128xbf16>
    %43 = vector.extract_strided_slice %42 {offsets = [0, 0, 0, 0], sizes = [1, 16, 15, 128], strides = [1, 1, 1, 1]} : vector<1x16x16x128xbf16> to vector<1x16x15x128xbf16>
    %44 = tpu.concatenate %39, %43 in 2 : vector<1x16x1x128xbf16>, vector<1x16x15x128xbf16> -> vector<1x16x16x128xbf16>
    %45 = vector.extract_strided_slice %42 {offsets = [0, 0, 1, 0], sizes = [1, 16, 15, 128], strides = [1, 1, 1, 1]} : vector<1x16x16x128xbf16> to vector<1x16x15x128xbf16>
    %46 = tpu.concatenate %45, %39 in 2 : vector<1x16x15x128xbf16>, vector<1x16x1x128xbf16> -> vector<1x16x16x128xbf16>
    %47 = tpu.concatenate %44, %42, %46 in 3 : vector<1x16x16x128xbf16>, vector<1x16x16x128xbf16>, vector<1x16x16x128xbf16> -> vector<1x16x16x384xbf16>
    %48 = vector.shape_cast %47 : vector<1x16x16x384xbf16> to vector<256x384xbf16>
    %c0_20 = arith.constant 0 : index
    %c0_21 = arith.constant 0 : index
    %c0_22 = arith.constant 0 : index
    %49 = vector.load %arg5[%c0_20, %c0_21, %c0_22] : memref<3x384x128xbf16, #tpu.memory_space<vmem>>, vector<1x384x128xbf16>
    %50 = vector.shape_cast %49 : vector<1x384x128xbf16> to vector<384x128xbf16>
    %cst_23 = arith.constant dense<0.000000e+00> : vector<256x128xf32>
    %51 = tpu.matmul %48, %50, %cst_23 {dimension_numbers = #tpu.dot_dimension_numbers<[1], [0], [0], [1], [0, 0, 1, 1], [], []>} : vector<256x384xbf16>, vector<384x128xbf16>, vector<256x128xf32> -> vector<256x128xf32>
    %52 = arith.addf %40, %51 : vector<256x128xf32>
    %53 = vector.extract_strided_slice %37 {offsets = [0, 0, 0, 0], sizes = [1, 16, 15, 128], strides = [1, 1, 1, 1]} : vector<1x16x16x128xbf16> to vector<1x16x15x128xbf16>
    %54 = tpu.concatenate %39, %53 in 2 : vector<1x16x1x128xbf16>, vector<1x16x15x128xbf16> -> vector<1x16x16x128xbf16>
    %55 = vector.extract_strided_slice %37 {offsets = [0, 0, 1, 0], sizes = [1, 16, 15, 128], strides = [1, 1, 1, 1]} : vector<1x16x16x128xbf16> to vector<1x16x15x128xbf16>
    %56 = tpu.concatenate %55, %39 in 2 : vector<1x16x15x128xbf16>, vector<1x16x1x128xbf16> -> vector<1x16x16x128xbf16>
    %57 = tpu.concatenate %54, %37, %56 in 3 : vector<1x16x16x128xbf16>, vector<1x16x16x128xbf16>, vector<1x16x16x128xbf16> -> vector<1x16x16x384xbf16>
    %58 = vector.shape_cast %57 : vector<1x16x16x384xbf16> to vector<256x384xbf16>
    %c1 = arith.constant 1 : index
    %c0_24 = arith.constant 0 : index
    %c0_25 = arith.constant 0 : index
    %59 = vector.load %arg5[%c1, %c0_24, %c0_25] : memref<3x384x128xbf16, #tpu.memory_space<vmem>>, vector<1x384x128xbf16>
    %60 = vector.shape_cast %59 : vector<1x384x128xbf16> to vector<384x128xbf16>
    %cst_26 = arith.constant dense<0.000000e+00> : vector<256x128xf32>
    %61 = tpu.matmul %58, %60, %cst_26 {dimension_numbers = #tpu.dot_dimension_numbers<[1], [0], [0], [1], [0, 0, 1, 1], [], []>} : vector<256x384xbf16>, vector<384x128xbf16>, vector<256x128xf32> -> vector<256x128xf32>
    %62 = arith.addf %52, %61 : vector<256x128xf32>
    %63 = vector.extract_strided_slice %37 {offsets = [0, 1, 0, 0], sizes = [1, 15, 16, 128], strides = [1, 1, 1, 1]} : vector<1x16x16x128xbf16> to vector<1x15x16x128xbf16>
    %64 = tpu.concatenate %63, %38 in 1 : vector<1x15x16x128xbf16>, vector<1x1x16x128xbf16> -> vector<1x16x16x128xbf16>
    %65 = vector.extract_strided_slice %64 {offsets = [0, 0, 0, 0], sizes = [1, 16, 15, 128], strides = [1, 1, 1, 1]} : vector<1x16x16x128xbf16> to vector<1x16x15x128xbf16>
    %66 = tpu.concatenate %39, %65 in 2 : vector<1x16x1x128xbf16>, vector<1x16x15x128xbf16> -> vector<1x16x16x128xbf16>
    %67 = vector.extract_strided_slice %64 {offsets = [0, 0, 1, 0], sizes = [1, 16, 15, 128], strides = [1, 1, 1, 1]} : vector<1x16x16x128xbf16> to vector<1x16x15x128xbf16>
    %68 = tpu.concatenate %67, %39 in 2 : vector<1x16x15x128xbf16>, vector<1x16x1x128xbf16> -> vector<1x16x16x128xbf16>
    %69 = tpu.concatenate %66, %64, %68 in 3 : vector<1x16x16x128xbf16>, vector<1x16x16x128xbf16>, vector<1x16x16x128xbf16> -> vector<1x16x16x384xbf16>
    %70 = vector.shape_cast %69 : vector<1x16x16x384xbf16> to vector<256x384xbf16>
    %c2 = arith.constant 2 : index
    %c0_27 = arith.constant 0 : index
    %c0_28 = arith.constant 0 : index
    %71 = vector.load %arg5[%c2, %c0_27, %c0_28] : memref<3x384x128xbf16, #tpu.memory_space<vmem>>, vector<1x384x128xbf16>
    %72 = vector.shape_cast %71 : vector<1x384x128xbf16> to vector<384x128xbf16>
    %cst_29 = arith.constant dense<0.000000e+00> : vector<256x128xf32>
    %73 = tpu.matmul %70, %72, %cst_29 {dimension_numbers = #tpu.dot_dimension_numbers<[1], [0], [0], [1], [0, 0, 1, 1], [], []>} : vector<256x384xbf16>, vector<384x128xbf16>, vector<256x128xf32> -> vector<256x128xf32>
    %74 = arith.addf %62, %73 : vector<256x128xf32>
    %c0_30 = arith.constant 0 : index
    %c0_31 = arith.constant 0 : index
    %75 = vector.load %arg6[%c0_30, %c0_31] : memref<1x128xf32, #tpu.memory_space<vmem>>, vector<1x128xf32>
    %76 = vector.broadcast %75 : vector<1x128xf32> to vector<256x128xf32>
    %77 = arith.addf %74, %76 : vector<256x128xf32>
    %78 = vector.shape_cast %77 : vector<256x128xf32> to vector<1x16x16x128xf32>
    %79 = arith.truncf %78 : vector<1x16x16x128xf32> to vector<1x16x16x128xbf16>
    %c0_32 = arith.constant 0 : index
    %c0_33 = arith.constant 0 : index
    %c0_34 = arith.constant 0 : index
    %c0_35 = arith.constant 0 : index
    %80 = vector.load %arg7[%c0_32, %c0_33, %c0_34, %c0_35] : memref<1x16x16x128xbf16, #tpu.memory_space<vmem>>, vector<1x16x16x128xbf16>
    tpu.vector_store %arg7[%c0_32, %c0_33, %c0_34, %c0_35], %79 {strides = array<i32>} : memref<1x16x16x128xbf16, #tpu.memory_space<vmem>>, vector<1x16x16x128xbf16>,
    %cst_36 = arith.constant dense<0.000000e+00> : vector<128xf32>
    %81 = vector.multi_reduction <add>, %77, %cst_36 [0] : vector<256x128xf32> to vector<128xf32>
    %82 = vector.shape_cast %81 : vector<128xf32> to vector<1x128xf32>
    %cst_37 = arith.constant 3.906250e-03 : f32
    %83 = vector.broadcast %cst_37 : f32 to vector<1x128xf32>
    %84 = arith.mulf %82, %83 : vector<1x128xf32>
    %85 = vector.broadcast %84 : vector<1x128xf32> to vector<256x128xf32>
    %86 = arith.subf %77, %85 : vector<256x128xf32>
    %c0_38 = arith.constant 0 : index
    %c0_39 = arith.constant 0 : index
    %c0_40 = arith.constant 0 : index
    %87 = vector.load %arg8[%c0_38, %c0_39, %c0_40] : memref<1x2x128xf32, #tpu.memory_space<vmem>>, vector<1x1x128xf32>
    %88 = vector.shape_cast %87 : vector<1x1x128xf32> to vector<1x128xf32>
    %89 = vector.shape_cast %82 : vector<1x128xf32> to vector<1x1x128xf32>
    tpu.vector_store %arg8[%c0_38, %c0_39, %c0_40], %89 {strides = array<i32>} : memref<1x2x128xf32, #tpu.memory_space<vmem>>, vector<1x1x128xf32>,
    %90 = arith.mulf %86, %86 : vector<256x128xf32>
    %cst_41 = arith.constant dense<0.000000e+00> : vector<128xf32>
    %91 = vector.multi_reduction <add>, %90, %cst_41 [0] : vector<256x128xf32> to vector<128xf32>
    %92 = vector.shape_cast %91 : vector<128xf32> to vector<1x128xf32>
    %c0_42 = arith.constant 0 : index
    %c1_43 = arith.constant 1 : index
    %c0_44 = arith.constant 0 : index
    %93 = vector.load %arg8[%c0_42, %c1_43, %c0_44] : memref<1x2x128xf32, #tpu.memory_space<vmem>>, vector<1x1x128xf32>
    %94 = vector.shape_cast %93 : vector<1x1x128xf32> to vector<1x128xf32>
    %95 = vector.shape_cast %92 : vector<1x128xf32> to vector<1x1x128xf32>
    tpu.vector_store %arg8[%c0_42, %c1_43, %c0_44], %95 {strides = array<i32>} : memref<1x2x128xf32, #tpu.memory_space<vmem>>, vector<1x1x128xf32>,
    return
  }
  func.func @transform_0(%arg0: i32) -> (i32, i32, i32, i32) {
    %c0_i32 = arith.constant 0 : i32
    %c0_i32_0 = arith.constant 0 : i32
    %c0_i32_1 = arith.constant 0 : i32
    %c0_i32_2 = arith.constant 0 : i32
    return %arg0, %c0_i32, %c0_i32_0, %c0_i32_1 : i32, i32, i32, i32
  }
  func.func @transform_1(%arg0: i32) -> (i32, i32, i32) {
    %c0_i32 = arith.constant 0 : i32
    %c0_i32_0 = arith.constant 0 : i32
    %c0_i32_1 = arith.constant 0 : i32
    %c0_i32_2 = arith.constant 0 : i32
    return %c0_i32, %c0_i32_0, %c0_i32_1 : i32, i32, i32
  }
  func.func @transform_2(%arg0: i32) -> (i32, i32) {
    %c0_i32 = arith.constant 0 : i32
    %c0_i32_0 = arith.constant 0 : i32
    %c0_i32_1 = arith.constant 0 : i32
    return %c0_i32, %c0_i32_0 : i32, i32
  }
  func.func @transform_3(%arg0: i32) -> (i32, i32) {
    %c0_i32 = arith.constant 0 : i32
    %c0_i32_0 = arith.constant 0 : i32
    %c0_i32_1 = arith.constant 0 : i32
    return %c0_i32, %c0_i32_0 : i32, i32
  }
  func.func @transform_4(%arg0: i32) -> (i32, i32, i32) {
    %c0_i32 = arith.constant 0 : i32
    %c0_i32_0 = arith.constant 0 : i32
    %c0_i32_1 = arith.constant 0 : i32
    %c0_i32_2 = arith.constant 0 : i32
    return %c0_i32, %c0_i32_0, %c0_i32_1 : i32, i32, i32
  }
  func.func @transform_5(%arg0: i32) -> (i32, i32) {
    %c0_i32 = arith.constant 0 : i32
    %c0_i32_0 = arith.constant 0 : i32
    %c0_i32_1 = arith.constant 0 : i32
    return %c0_i32, %c0_i32_0 : i32, i32
  }
  func.func @transform_6(%arg0: i32) -> (i32, i32, i32, i32) {
    %c0_i32 = arith.constant 0 : i32
    %c0_i32_0 = arith.constant 0 : i32
    %c0_i32_1 = arith.constant 0 : i32
    %c0_i32_2 = arith.constant 0 : i32
    return %arg0, %c0_i32, %c0_i32_0, %c0_i32_1 : i32, i32, i32, i32
  }
  func.func @transform_7(%arg0: i32) -> (i32, i32, i32) {
    %c0_i32 = arith.constant 0 : i32
    %c0_i32_0 = arith.constant 0 : i32
    %c0_i32_1 = arith.constant 0 : i32
    return %arg0, %c0_i32, %c0_i32_0 : i32, i32, i32
  }
}

module attributes {stable_mosaic.version = 11 : i64} {
  func.func @_bn2_out_kernel(%arg0: i32, %arg1: memref<1x16x16x128xbf16, #tpu.memory_space<vmem>>, %arg2: memref<1x16x16x128xbf16, #tpu.memory_space<vmem>>, %arg3: memref<2x2x128xf32, #tpu.memory_space<vmem>>, %arg4: memref<2x2x128xf32, #tpu.memory_space<vmem>>, %arg5: memref<1x128xf32, #tpu.memory_space<vmem>>, %arg6: memref<1x128xf32, #tpu.memory_space<vmem>>, %arg7: memref<1x128xf32, #tpu.memory_space<vmem>>, %arg8: memref<1x128xf32, #tpu.memory_space<vmem>>, %arg9: memref<1x16x16x128xf32, #tpu.memory_space<vmem>>) attributes {dimension_semantics = [#tpu.dimension_semantics<parallel>], iteration_bounds = array<i64: 2>, scalar_prefetch = 0 : i64, scratch_operands = 0 : i64, tpu.core_type = #tpu.core_type<tc>, window_params = [{transform_indices = @transform_0, window_bounds = array<i64: 1, 16, 16, 128>}, {transform_indices = @transform_1, window_bounds = array<i64: 1, 16, 16, 128>}, {pipeline_mode = #tpu.pipeline_mode<synchronous>, transform_indices = @transform_2, window_bounds = array<i64: 2, 2, 128>}, {pipeline_mode = #tpu.pipeline_mode<synchronous>, transform_indices = @transform_3, window_bounds = array<i64: 2, 2, 128>}, {pipeline_mode = #tpu.pipeline_mode<synchronous>, transform_indices = @transform_4, window_bounds = array<i64: 1, 128>}, {pipeline_mode = #tpu.pipeline_mode<synchronous>, transform_indices = @transform_5, window_bounds = array<i64: 1, 128>}, {pipeline_mode = #tpu.pipeline_mode<synchronous>, transform_indices = @transform_6, window_bounds = array<i64: 1, 128>}, {pipeline_mode = #tpu.pipeline_mode<synchronous>, transform_indices = @transform_7, window_bounds = array<i64: 1, 128>}, {transform_indices = @transform_8, window_bounds = array<i64: 1, 16, 16, 128>}]} {
    %c0 = arith.constant 0 : index
    %c0_0 = arith.constant 0 : index
    %c0_1 = arith.constant 0 : index
    %0 = vector.load %arg3[%c0, %c0_0, %c0_1] : memref<2x2x128xf32, #tpu.memory_space<vmem>>, vector<2x2x128xf32>
    %c0_2 = arith.constant 0 : index
    %c0_3 = arith.constant 0 : index
    %1 = vector.load %arg5[%c0_2, %c0_3] : memref<1x128xf32, #tpu.memory_space<vmem>>, vector<1x128xf32>
    %c0_4 = arith.constant 0 : index
    %c0_5 = arith.constant 0 : index
    %2 = vector.load %arg6[%c0_4, %c0_5] : memref<1x128xf32, #tpu.memory_space<vmem>>, vector<1x128xf32>
    %cst = arith.constant dense<0.000000e+00> : vector<2x128xf32>
    %3 = vector.multi_reduction <add>, %0, %cst [0] : vector<2x2x128xf32> to vector<2x128xf32>
    %4 = vector.extract_strided_slice %3 {offsets = [0, 0], sizes = [1, 128], strides = [1, 1]} : vector<2x128xf32> to vector<1x128xf32>
    %cst_6 = arith.constant 0.001953125 : f32
    %5 = vector.broadcast %cst_6 : f32 to vector<1x128xf32>
    %6 = arith.mulf %4, %5 : vector<1x128xf32>
    %7 = vector.extract_strided_slice %0 {offsets = [0, 0, 0], sizes = [2, 1, 128], strides = [1, 1, 1]} : vector<2x2x128xf32> to vector<2x1x128xf32>
    %cst_7 = arith.constant 3.906250e-03 : f32
    %8 = vector.broadcast %cst_7 : f32 to vector<2x1x128xf32>
    %9 = arith.mulf %7, %8 : vector<2x1x128xf32>
    %10 = vector.shape_cast %6 : vector<1x128xf32> to vector<1x1x128xf32>
    %11 = vector.broadcast %10 : vector<1x1x128xf32> to vector<2x1x128xf32>
    %12 = arith.subf %9, %11 : vector<2x1x128xf32>
    %13 = vector.extract_strided_slice %3 {offsets = [1, 0], sizes = [1, 128], strides = [1, 1]} : vector<2x128xf32> to vector<1x128xf32>
    %14 = arith.mulf %12, %12 : vector<2x1x128xf32>
    %cst_8 = arith.constant dense<0.000000e+00> : vector<1x128xf32>
    %15 = vector.multi_reduction <add>, %14, %cst_8 [0] : vector<2x1x128xf32> to vector<1x128xf32>
    %cst_9 = arith.constant 2.560000e+02 : f32
    %16 = vector.broadcast %cst_9 : f32 to vector<1x128xf32>
    %17 = arith.mulf %16, %15 : vector<1x128xf32>
    %18 = arith.addf %13, %17 : vector<1x128xf32>
    %cst_10 = arith.constant 0.001953125 : f32
    %19 = vector.broadcast %cst_10 : f32 to vector<1x128xf32>
    %20 = arith.mulf %18, %19 : vector<1x128xf32>
    %cst_11 = arith.constant 9.99999974E-6 : f32
    %21 = vector.broadcast %cst_11 : f32 to vector<1x128xf32>
    %22 = arith.addf %20, %21 : vector<1x128xf32>
    %23 = math.rsqrt %22 : vector<1x128xf32>
    %24 = arith.mulf %1, %23 : vector<1x128xf32>
    %25 = arith.mulf %6, %24 : vector<1x128xf32>
    %26 = arith.subf %2, %25 : vector<1x128xf32>
    %c0_12 = arith.constant 0 : index
    %c0_13 = arith.constant 0 : index
    %c0_14 = arith.constant 0 : index
    %c0_15 = arith.constant 0 : index
    %27 = vector.load %arg1[%c0_12, %c0_13, %c0_14, %c0_15] : memref<1x16x16x128xbf16, #tpu.memory_space<vmem>>, vector<1x16x16x128xbf16>
    %28 = arith.extf %27 : vector<1x16x16x128xbf16> to vector<1x16x16x128xf32>
    %29 = vector.shape_cast %28 : vector<1x16x16x128xf32> to vector<256x128xf32>
    %30 = vector.broadcast %24 : vector<1x128xf32> to vector<256x128xf32>
    %31 = arith.mulf %29, %30 : vector<256x128xf32>
    %32 = vector.broadcast %26 : vector<1x128xf32> to vector<256x128xf32>
    %33 = arith.addf %31, %32 : vector<256x128xf32>
    %c0_16 = arith.constant 0 : index
    %c0_17 = arith.constant 0 : index
    %c0_18 = arith.constant 0 : index
    %34 = vector.load %arg4[%c0_16, %c0_17, %c0_18] : memref<2x2x128xf32, #tpu.memory_space<vmem>>, vector<2x2x128xf32>
    %c0_19 = arith.constant 0 : index
    %c0_20 = arith.constant 0 : index
    %35 = vector.load %arg7[%c0_19, %c0_20] : memref<1x128xf32, #tpu.memory_space<vmem>>, vector<1x128xf32>
    %c0_21 = arith.constant 0 : index
    %c0_22 = arith.constant 0 : index
    %36 = vector.load %arg8[%c0_21, %c0_22] : memref<1x128xf32, #tpu.memory_space<vmem>>, vector<1x128xf32>
    %cst_23 = arith.constant dense<0.000000e+00> : vector<2x128xf32>
    %37 = vector.multi_reduction <add>, %34, %cst_23 [0] : vector<2x2x128xf32> to vector<2x128xf32>
    %38 = vector.extract_strided_slice %37 {offsets = [0, 0], sizes = [1, 128], strides = [1, 1]} : vector<2x128xf32> to vector<1x128xf32>
    %cst_24 = arith.constant 0.001953125 : f32
    %39 = vector.broadcast %cst_24 : f32 to vector<1x128xf32>
    %40 = arith.mulf %38, %39 : vector<1x128xf32>
    %41 = vector.extract_strided_slice %34 {offsets = [0, 0, 0], sizes = [2, 1, 128], strides = [1, 1, 1]} : vector<2x2x128xf32> to vector<2x1x128xf32>
    %cst_25 = arith.constant 3.906250e-03 : f32
    %42 = vector.broadcast %cst_25 : f32 to vector<2x1x128xf32>
    %43 = arith.mulf %41, %42 : vector<2x1x128xf32>
    %44 = vector.shape_cast %40 : vector<1x128xf32> to vector<1x1x128xf32>
    %45 = vector.broadcast %44 : vector<1x1x128xf32> to vector<2x1x128xf32>
    %46 = arith.subf %43, %45 : vector<2x1x128xf32>
    %47 = vector.extract_strided_slice %37 {offsets = [1, 0], sizes = [1, 128], strides = [1, 1]} : vector<2x128xf32> to vector<1x128xf32>
    %48 = arith.mulf %46, %46 : vector<2x1x128xf32>
    %cst_26 = arith.constant dense<0.000000e+00> : vector<1x128xf32>
    %49 = vector.multi_reduction <add>, %48, %cst_26 [0] : vector<2x1x128xf32> to vector<1x128xf32>
    %cst_27 = arith.constant 2.560000e+02 : f32
    %50 = vector.broadcast %cst_27 : f32 to vector<1x128xf32>
    %51 = arith.mulf %50, %49 : vector<1x128xf32>
    %52 = arith.addf %47, %51 : vector<1x128xf32>
    %cst_28 = arith.constant 0.001953125 : f32
    %53 = vector.broadcast %cst_28 : f32 to vector<1x128xf32>
    %54 = arith.mulf %52, %53 : vector<1x128xf32>
    %cst_29 = arith.constant 9.99999974E-6 : f32
    %55 = vector.broadcast %cst_29 : f32 to vector<1x128xf32>
    %56 = arith.addf %54, %55 : vector<1x128xf32>
    %57 = math.rsqrt %56 : vector<1x128xf32>
    %58 = arith.mulf %35, %57 : vector<1x128xf32>
    %59 = arith.mulf %40, %58 : vector<1x128xf32>
    %60 = arith.subf %36, %59 : vector<1x128xf32>
    %c0_30 = arith.constant 0 : index
    %c0_31 = arith.constant 0 : index
    %c0_32 = arith.constant 0 : index
    %c0_33 = arith.constant 0 : index
    %61 = vector.load %arg2[%c0_30, %c0_31, %c0_32, %c0_33] : memref<1x16x16x128xbf16, #tpu.memory_space<vmem>>, vector<1x16x16x128xbf16>
    %62 = arith.extf %61 : vector<1x16x16x128xbf16> to vector<1x16x16x128xf32>
    %63 = vector.shape_cast %62 : vector<1x16x16x128xf32> to vector<256x128xf32>
    %64 = vector.broadcast %58 : vector<1x128xf32> to vector<256x128xf32>
    %65 = arith.mulf %63, %64 : vector<256x128xf32>
    %66 = vector.broadcast %60 : vector<1x128xf32> to vector<256x128xf32>
    %67 = arith.addf %65, %66 : vector<256x128xf32>
    %68 = arith.addf %33, %67 : vector<256x128xf32>
    %cst_34 = arith.constant 0.000000e+00 : f32
    %69 = vector.broadcast %cst_34 : f32 to vector<256x128xf32>
    %70 = arith.maximumf %68, %69 : vector<256x128xf32>
    %71 = vector.shape_cast %70 : vector<256x128xf32> to vector<1x16x16x128xf32>
    %c0_35 = arith.constant 0 : index
    %c0_36 = arith.constant 0 : index
    %c0_37 = arith.constant 0 : index
    %c0_38 = arith.constant 0 : index
    %72 = vector.load %arg9[%c0_35, %c0_36, %c0_37, %c0_38] : memref<1x16x16x128xf32, #tpu.memory_space<vmem>>, vector<1x16x16x128xf32>
    tpu.vector_store %arg9[%c0_35, %c0_36, %c0_37, %c0_38], %71 {strides = array<i32>} : memref<1x16x16x128xf32, #tpu.memory_space<vmem>>, vector<1x16x16x128xf32>,
    return
  }
  func.func @transform_0(%arg0: i32) -> (i32, i32, i32, i32) {
    %c0_i32 = arith.constant 0 : i32
    %c0_i32_0 = arith.constant 0 : i32
    %c0_i32_1 = arith.constant 0 : i32
    %c0_i32_2 = arith.constant 0 : i32
    return %arg0, %c0_i32, %c0_i32_0, %c0_i32_1 : i32, i32, i32, i32
  }
  func.func @transform_1(%arg0: i32) -> (i32, i32, i32, i32) {
    %c0_i32 = arith.constant 0 : i32
    %c0_i32_0 = arith.constant 0 : i32
    %c0_i32_1 = arith.constant 0 : i32
    %c0_i32_2 = arith.constant 0 : i32
    return %arg0, %c0_i32, %c0_i32_0, %c0_i32_1 : i32, i32, i32, i32
  }
  func.func @transform_2(%arg0: i32) -> (i32, i32, i32) {
    %c0_i32 = arith.constant 0 : i32
    %c0_i32_0 = arith.constant 0 : i32
    %c0_i32_1 = arith.constant 0 : i32
    %c0_i32_2 = arith.constant 0 : i32
    return %c0_i32, %c0_i32_0, %c0_i32_1 : i32, i32, i32
  }
  func.func @transform_3(%arg0: i32) -> (i32, i32, i32) {
    %c0_i32 = arith.constant 0 : i32
    %c0_i32_0 = arith.constant 0 : i32
    %c0_i32_1 = arith.constant 0 : i32
    %c0_i32_2 = arith.constant 0 : i32
    return %c0_i32, %c0_i32_0, %c0_i32_1 : i32, i32, i32
  }
  func.func @transform_4(%arg0: i32) -> (i32, i32) {
    %c0_i32 = arith.constant 0 : i32
    %c0_i32_0 = arith.constant 0 : i32
    %c0_i32_1 = arith.constant 0 : i32
    return %c0_i32, %c0_i32_0 : i32, i32
  }
  func.func @transform_5(%arg0: i32) -> (i32, i32) {
    %c0_i32 = arith.constant 0 : i32
    %c0_i32_0 = arith.constant 0 : i32
    %c0_i32_1 = arith.constant 0 : i32
    return %c0_i32, %c0_i32_0 : i32, i32
  }
  func.func @transform_6(%arg0: i32) -> (i32, i32) {
    %c0_i32 = arith.constant 0 : i32
    %c0_i32_0 = arith.constant 0 : i32
    %c0_i32_1 = arith.constant 0 : i32
    return %c0_i32, %c0_i32_0 : i32, i32
  }
  func.func @transform_7(%arg0: i32) -> (i32, i32) {
    %c0_i32 = arith.constant 0 : i32
    %c0_i32_0 = arith.constant 0 : i32
    %c0_i32_1 = arith.constant 0 : i32
    return %c0_i32, %c0_i32_0 : i32, i32
  }
  func.func @transform_8(%arg0: i32) -> (i32, i32, i32, i32) {
    %c0_i32 = arith.constant 0 : i32
    %c0_i32_0 = arith.constant 0 : i32
    %c0_i32_1 = arith.constant 0 : i32
    %c0_i32_2 = arith.constant 0 : i32
    return %arg0, %c0_i32, %c0_i32_0, %c0_i32_1 : i32, i32, i32, i32
  }
}

</mosaic_0001>

<llo_original>
// kernel: resblock_forward.5
$region0: #{resblock_forward.5}
  #allocation0 [shape = 'u32[]', space=smem, size = 0x4, offset = 0x4, fixed_abs, tag = 'smem constant byte address 0x4 - core index']
  #allocation1 [shape = 'u32[144,128]{1,0:T(1,128)}', space=vmem, size = 0x12000, scoped, tag = 'internal scratch']
  %s0 = inlined_call_operand.vmem [shape: bf16[2,16,16,128], index: 0, kind: input, shape index: {}]
  %s1 = inlined_call_operand.vmem [shape: bf16[2,16,16,128], index: 1, kind: input, shape index: {}]
  %s2 = inlined_call_operand.vmem [shape: f32[2,2,128], index: 2, kind: input, shape index: {}]
  %s3 = inlined_call_operand.vmem [shape: f32[2,2,128], index: 3, kind: input, shape index: {}]
  %s4 = inlined_call_operand.vmem [shape: f32[1,128], index: 4, kind: input, shape index: {}]
  %s5 = inlined_call_operand.vmem [shape: f32[1,128], index: 5, kind: input, shape index: {}]
  %s6 = inlined_call_operand.vmem [shape: f32[1,128], index: 6, kind: input, shape index: {}]
  %s7 = inlined_call_operand.vmem [shape: f32[1,128], index: 7, kind: input, shape index: {}]
  %s8 = inlined_call_operand.vmem [shape: f32[2,16,16,128], index: 8, kind: output, shape index: {}]
  %s9 = sld [smem:[#allocation0]]
  $region65: #{resblock_forward.5} parent=0
    _
  %s11 = ssub.s32 1, %s9
  %s12 = scalar_select 0, %s11, %s9
  loop: start=0, step=1, limit=4
  $region2: #{resblock_forward.5} parent=0 // loop_pre_header
    _
  $region3: #{resblock_forward.5} parent=0 // loop_header
    %s14 = sphi 0, %s18
    %p15 = scmp.ge.s32.totalorder %s14, 4
    %s24 = sphi 0, %s26
    %s27 = sphi 0, %s24
    %s28 = sphi 0, %s27
    %s44 = sphi 0, %s28
    %s50 = sphi 0, %s52
    %s53 = sphi 0, %s50
    %s54 = sphi 0, %s53
    %s70 = sphi 0, %s54
    %s74 = sphi 0, %s74
    %s76 = sphi 0, %s74
    %s77 = sphi 0, %s76
    %s91 = sphi 0, %s77
    %s95 = sphi 0, %s95
    %s97 = sphi 0, %s95
    %s98 = sphi 0, %s97
    %s112 = sphi 0, %s98
    %s116 = sphi 0, %s116
    %s118 = sphi 0, %s116
    %s119 = sphi 0, %s118
    %s133 = sphi 0, %s119
    %s137 = sphi 0, %s137
    %s139 = sphi 0, %s137
    %s140 = sphi 0, %s139
    %s154 = sphi 0, %s140
    %s158 = sphi 0, %s158
    %s160 = sphi 0, %s158
    %s161 = sphi 0, %s160
    %s175 = sphi 0, %s161
    %s179 = sphi 0, %s179
    %s181 = sphi 0, %s179
    %s182 = sphi 0, %s181
    %s196 = sphi 0, %s182
    %s202 = sphi 0, %s204
    %s205 = sphi 0, %s202
    %s206 = sphi 0, %s205
    %s222 = sphi 0, %s206
  $region4: #{resblock_forward.5} parent=0 // loop_header_branch
    %17 = sbr.rel (%p15) target = $region8
  $region5: #{resblock_forward.5} parent=0 // loop_body
    %s19 = ssub.s32 %s14, 1
    %s20 = ssub.s32 %s14, 2
    %s21 = sadd.s32 %s14, 1
    %s22 = ssub.s32 %s14, %s21
    %p23 = scmp.eq.s32.totalorder %s22, 0
    %s25 = sadd.s32 %s24, 1
    %s26 = scalar_select %p23, %s24, %s25
    %p29 = pneg %p23
    %p30 = scmp.eq.s32.totalorder %s14, 1
    %p31 = por %p29, %p30
    %p32 = scmp.ne.s32.totalorder %s24, %s27
    %p33 = scmp.eq.s32.totalorder %s14, 0
    %p34 = por %p32, %p33
    %p35 = scmp.ne.s32.totalorder %s24, %s27
    %p36 = scmp.eq.s32.totalorder %s19, 1
    %p37 = por %p35, %p36
    %p38 = scmp.ne.s32.totalorder %s27, %s28
    %p39 = scmp.eq.s32.totalorder %s19, 0
    %p40 = por %p38, %p39
    %p41 = scmp.ne.s32.totalorder %s27, %s28
    %p42 = scmp.eq.s32.totalorder %s20, 1
    %p43 = por %p41, %p42
    %p45 = scmp.ne.s32.totalorder %s28, %s44
    %p46 = scmp.eq.s32.totalorder %s20, 0
    %p47 = por %p45, %p46
    %s48 = ssub.s32 %s14, %s21
    %p49 = scmp.eq.s32.totalorder %s48, 0
    %s51 = sadd.s32 %s50, 1
    %s52 = scalar_select %p49, %s50, %s51
    %p55 = pneg %p49
    %p56 = scmp.eq.s32.totalorder %s14, 1
    %p57 = por %p55, %p56
    %p58 = scmp.ne.s32.totalorder %s50, %s53
    %p59 = scmp.eq.s32.totalorder %s14, 0
    %p60 = por %p58, %p59
    %p61 = scmp.ne.s32.totalorder %s50, %s53
    %p62 = scmp.eq.s32.totalorder %s19, 1
    %p63 = por %p61, %p62
    %p64 = scmp.ne.s32.totalorder %s53, %s54
    %p65 = scmp.eq.s32.totalorder %s19, 0
    %p66 = por %p64, %p65
    %p67 = scmp.ne.s32.totalorder %s53, %s54
    %p68 = scmp.eq.s32.totalorder %s20, 1
    %p69 = por %p67, %p68
    %p71 = scmp.ne.s32.totalorder %s54, %s70
    %p72 = scmp.eq.s32.totalorder %s20, 0
    %p73 = por %p71, %p72
    %s75 = sadd.s32 %s74, 1
    %p78 = scmp.eq.s32.totalorder %s14, 1
    %p79 = scmp.ne.s32.totalorder %s74, %s76
    %p80 = scmp.eq.s32.totalorder %s14, 0
    %p81 = por %p79, %p80
    %p82 = scmp.ne.s32.totalorder %s74, %s76
    %p83 = scmp.eq.s32.totalorder %s19, 1
    %p84 = por %p82, %p83
    %p85 = scmp.ne.s32.totalorder %s76, %s77
    %p86 = scmp.eq.s32.totalorder %s19, 0
    %p87 = por %p85, %p86
    %p88 = scmp.ne.s32.totalorder %s76, %s77
    %p89 = scmp.eq.s32.totalorder %s20, 1
    %p90 = por %p88, %p89
    %p92 = scmp.ne.s32.totalorder %s77, %s91
    %p93 = scmp.eq.s32.totalorder %s20, 0
    %p94 = por %p92, %p93
    %s96 = sadd.s32 %s95, 1
    %p99 = scmp.eq.s32.totalorder %s14, 1
    %p100 = scmp.ne.s32.totalorder %s95, %s97
    %p101 = scmp.eq.s32.totalorder %s14, 0
    %p102 = por %p100, %p101
    %p103 = scmp.ne.s32.totalorder %s95, %s97
    %p104 = scmp.eq.s32.totalorder %s19, 1
    %p105 = por %p103, %p104
    %p106 = scmp.ne.s32.totalorder %s97, %s98
    %p107 = scmp.eq.s32.totalorder %s19, 0
    %p108 = por %p106, %p107
    %p109 = scmp.ne.s32.totalorder %s97, %s98
    %p110 = scmp.eq.s32.totalorder %s20, 1
    %p111 = por %p109, %p110
    %p113 = scmp.ne.s32.totalorder %s98, %s112
    %p114 = scmp.eq.s32.totalorder %s20, 0
    %p115 = por %p113, %p114
    %s117 = sadd.s32 %s116, 1
    %p120 = scmp.eq.s32.totalorder %s14, 1
    %p121 = scmp.ne.s32.totalorder %s116, %s118
    %p122 = scmp.eq.s32.totalorder %s14, 0
    %p123 = por %p121, %p122
    %p124 = scmp.ne.s32.totalorder %s116, %s118
    %p125 = scmp.eq.s32.totalorder %s19, 1
    %p126 = por %p124, %p125
    %p127 = scmp.ne.s32.totalorder %s118, %s119
    %p128 = scmp.eq.s32.totalorder %s19, 0
    %p129 = por %p127, %p128
    %p130 = scmp.ne.s32.totalorder %s118, %s119
    %p131 = scmp.eq.s32.totalorder %s20, 1
    %p132 = por %p130, %p131
    %p134 = scmp.ne.s32.totalorder %s119, %s133
    %p135 = scmp.eq.s32.totalorder %s20, 0
    %p136 = por %p134, %p135
    %s138 = sadd.s32 %s137, 1
    %p141 = scmp.eq.s32.totalorder %s14, 1
    %p142 = scmp.ne.s32.totalorder %s137, %s139
    %p143 = scmp.eq.s32.totalorder %s14, 0
    %p144 = por %p142, %p143
    %p145 = scmp.ne.s32.totalorder %s137, %s139
    %p146 = scmp.eq.s32.totalorder %s19, 1
    %p147 = por %p145, %p146
    %p148 = scmp.ne.s32.totalorder %s139, %s140
    %p149 = scmp.eq.s32.totalorder %s19, 0
    %p150 = por %p148, %p149
    %p151 = scmp.ne.s32.totalorder %s139, %s140
    %p152 = scmp.eq.s32.totalorder %s20, 1
    %p153 = por %p151, %p152
    %p155 = scmp.ne.s32.totalorder %s140, %s154
    %p156 = scmp.eq.s32.totalorder %s20, 0
    %p157 = por %p155, %p156
    %s159 = sadd.s32 %s158, 1
    %p162 = scmp.eq.s32.totalorder %s14, 1
    %p163 = scmp.ne.s32.totalorder %s158, %s160
    %p164 = scmp.eq.s32.totalorder %s14, 0
    %p165 = por %p163, %p164
    %p166 = scmp.ne.s32.totalorder %s158, %s160
    %p167 = scmp.eq.s32.totalorder %s19, 1
    %p168 = por %p166, %p167
    %p169 = scmp.ne.s32.totalorder %s160, %s161
    %p170 = scmp.eq.s32.totalorder %s19, 0
    %p171 = por %p169, %p170
    %p172 = scmp.ne.s32.totalorder %s160, %s161
    %p173 = scmp.eq.s32.totalorder %s20, 1
    %p174 = por %p172, %p173
    %p176 = scmp.ne.s32.totalorder %s161, %s175
    %p177 = scmp.eq.s32.totalorder %s20, 0
    %p178 = por %p176, %p177
    %s180 = sadd.s32 %s179, 1
    %p183 = scmp.eq.s32.totalorder %s14, 1
    %p184 = scmp.ne.s32.totalorder %s179, %s181
    %p185 = scmp.eq.s32.totalorder %s14, 0
    %p186 = por %p184, %p185
    %p187 = scmp.ne.s32.totalorder %s179, %s181
    %p188 = scmp.eq.s32.totalorder %s19, 1
    %p189 = por %p187, %p188
    %p190 = scmp.ne.s32.totalorder %s181, %s182
    %p191 = scmp.eq.s32.totalorder %s19, 0
    %p192 = por %p190, %p191
    %p193 = scmp.ne.s32.totalorder %s181, %s182
    %p194 = scmp.eq.s32.totalorder %s20, 1
    %p195 = por %p193, %p194
    %p197 = scmp.ne.s32.totalorder %s182, %s196
    %p198 = scmp.eq.s32.totalorder %s20, 0
    %p199 = por %p197, %p198
    %s200 = ssub.s32 %s14, %s21
    %p201 = scmp.eq.s32.totalorder %s200, 0
    %s203 = sadd.s32 %s202, 1
    %s204 = scalar_select %p201, %s202, %s203
    %p207 = pneg %p201
    %p208 = scmp.eq.s32.totalorder %s14, 1
    %p209 = por %p207, %p208
    %p210 = scmp.ne.s32.totalorder %s202, %s205
    %p211 = scmp.eq.s32.totalorder %s14, 0
    %p212 = por %p210, %p211
    %p213 = scmp.ne.s32.totalorder %s202, %s205
    %p214 = scmp.eq.s32.totalorder %s19, 1
    %p215 = por %p213, %p214
    %p216 = scmp.ne.s32.totalorder %s205, %s206
    %p217 = scmp.eq.s32.totalorder %s19, 0
    %p218 = por %p216, %p217
    %p219 = scmp.ne.s32.totalorder %s205, %s206
    %p220 = scmp.eq.s32.totalorder %s20, 1
    %p221 = por %p219, %p220
    %p223 = scmp.ne.s32.totalorder %s206, %s222
    %p224 = scmp.eq.s32.totalorder %s20, 0
    %p225 = por %p223, %p224
    %p226 = scmp.le.s32.totalorder 1, %s14
    %p227 = scmp.lt.s32.totalorder %s14, 3
    %p228 = pnand %p226, %p227
    %p229 = pneg %p228
    // Predicated region
    $region9: #{resblock_forward.5} parent=5 // pred_check
      _
    $region10: #{resblock_forward.5} parent=5 // pred_check_branch
      %231 = sbr.rel (%p228) target = $region12
    $region11: #{resblock_forward.5} parent=5 // pred_region
      %s232 = ssub.s32 %s14, 1
      // Predicated region
      $region13: #{resblock_forward.5} parent=11 // pred_check
        %p233 = pneg %p87
      $region14: #{resblock_forward.5} parent=11 // pred_check_branch
        %235 = sbr.rel (%p233) target = $region16
      $region15: #{resblock_forward.5} parent=11 // pred_region
        _
      $region16: #{resblock_forward.5} parent=11 // pred_fallthru
        _
      // Predicated region
      $region17: #{resblock_forward.5} parent=11 // pred_check
        %p236 = pneg %p108
      $region18: #{resblock_forward.5} parent=11 // pred_check_branch
        %238 = sbr.rel (%p236) target = $region20
      $region19: #{resblock_forward.5} parent=11 // pred_region
        _
      $region20: #{resblock_forward.5} parent=11 // pred_fallthru
        _
      // Predicated region
      $region21: #{resblock_forward.5} parent=11 // pred_check
        %p239 = pneg %p129
      $region22: #{resblock_forward.5} parent=11 // pred_check_branch
        %241 = sbr.rel (%p239) target = $region24
      $region23: #{resblock_forward.5} parent=11 // pred_region
        _
      $region24: #{resblock_forward.5} parent=11 // pred_fallthru
        _
      // Predicated region
      $region25: #{resblock_forward.5} parent=11 // pred_check
        %p242 = pneg %p150
      $region26: #{resblock_forward.5} parent=11 // pred_check_branch
        %244 = sbr.rel (%p242) target = $region28
      $region27: #{resblock_forward.5} parent=11 // pred_region
        _
      $region28: #{resblock_forward.5} parent=11 // pred_fallthru
        _
      // Predicated region
      $region29: #{resblock_forward.5} parent=11 // pred_check
        %p245 = pneg %p171
      $region30: #{resblock_forward.5} parent=11 // pred_check_branch
        %247 = sbr.rel (%p245) target = $region32
      $region31: #{resblock_forward.5} parent=11 // pred_region
        _
      $region32: #{resblock_forward.5} parent=11 // pred_fallthru
        _
      // Predicated region
      $region33: #{resblock_forward.5} parent=11 // pred_check
        %p248 = pneg %p192
      $region34: #{resblock_forward.5} parent=11 // pred_check_branch
        %250 = sbr.rel (%p248) target = $region36
      $region35: #{resblock_forward.5} parent=11 // pred_region
        _
      $region36: #{resblock_forward.5} parent=11 // pred_fallthru
        _
    $region12: #{resblock_forward.5} parent=5 // pred_fallthru
      _
    %p251 = scmp.lt.s32.totalorder %s14, 2
    // Predicated region
    $region37: #{resblock_forward.5} parent=5 // pred_check
      %p252 = pneg %p251
    $region38: #{resblock_forward.5} parent=5 // pred_check_branch
      %254 = sbr.rel (%p252) target = $region40
    $region39: #{resblock_forward.5} parent=5 // pred_region
      // Predicated region
      $region41: #{resblock_forward.5} parent=39 // pred_check
        %p255 = pneg %p34
      $region42: #{resblock_forward.5} parent=39 // pred_check_branch
        %257 = sbr.rel (%p255) target = $region44
      $region43: #{resblock_forward.5} parent=39 // pred_region
        %p258 = scmp.lt.s32.totalorder %s14, 1
        %s259 = scalar_select %p258, %s14, 1
        %s260 = smul.addr %s259, 32
        %s261 = smul.addr %s260, 4
        %s262 = scalar_lea.vmem %s0, %s261
      $region44: #{resblock_forward.5} parent=39 // pred_fallthru
        _
      // Predicated region
      $region45: #{resblock_forward.5} parent=39 // pred_check
        %p263 = pneg %p60
      $region46: #{resblock_forward.5} parent=39 // pred_check_branch
        %265 = sbr.rel (%p263) target = $region48
      $region47: #{resblock_forward.5} parent=39 // pred_region
        %p266 = scmp.lt.s32.totalorder %s14, 1
        %s267 = scalar_select %p266, %s14, 1
        %s268 = smul.addr %s267, 32
        %s269 = smul.addr %s268, 4
        %s270 = scalar_lea.vmem %s1, %s269
      $region48: #{resblock_forward.5} parent=39 // pred_fallthru
        _
    $region40: #{resblock_forward.5} parent=5 // pred_fallthru
      _
    %p271 = scmp.le.s32.totalorder 1, %s14
    %p272 = scmp.lt.s32.totalorder %s14, 3
    %p273 = pnand %p271, %p272
    %p274 = pneg %p273
    // Predicated region
    $region49: #{resblock_forward.5} parent=5 // pred_check
      _
    $region50: #{resblock_forward.5} parent=5 // pred_check_branch
      %276 = sbr.rel (%p273) target = $region52
    $region51: #{resblock_forward.5} parent=5 // pred_region
      %s277 = ssub.s32 %s14, 1
      %p278 = scmp.lt.s32.totalorder %s19, 1
      %s279 = scalar_select %p278, %s19, 1
      %s280 = smul.addr %s279, 32
      %s281 = smul.addr %s280, 4
      %s282 = scalar_lea.vmem %s0, %s281
      %p283 = pneg %p40
      %p284 = pneg %p37
      %p285 = scmp.lt.s32.totalorder %s19, 1
      %s286 = scalar_select %p285, %s19, 1
      %s287 = smul.addr %s286, 32
      %s288 = smul.addr %s287, 4
      %s289 = scalar_lea.vmem %s1, %s288
      %p290 = pneg %p66
      %p291 = pneg %p63
      %p292 = pneg %p87
      %p293 = pneg %p84
      %p294 = pneg %p108
      %p295 = pneg %p105
      %p296 = pneg %p129
      %p297 = pneg %p126
      %p298 = pneg %p150
      %p299 = pneg %p147
      %p300 = pneg %p171
      %p301 = pneg %p168
      %p302 = pneg %p192
      %p303 = pneg %p189
      %p304 = pneg %p218
      %p305 = pneg %p215
      %p306 = scmp.lt.s32.totalorder %s19, 1
      %s307 = scalar_select %p306, %s19, 1
      %s308 = smul.addr %s307, 32
      %s309 = smul.addr %s308, 8
      %s310 = scalar_lea.vmem %s8, %s309
      %p311 = scmp.lt.s32.totalorder %s19, 1
      %s312 = scalar_select %p311, %s19, 1
      %s313 = smul.addr %s312, 32
      %s314 = smul.addr %s313, 4
      %s315 = scalar_lea.vmem %s0, %s314
      %p316 = scmp.lt.s32.totalorder %s19, 1
      %s317 = scalar_select %p316, %s19, 1
      %s318 = smul.addr %s317, 32
      %s319 = smul.addr %s318, 4
      %s320 = scalar_lea.vmem %s1, %s319
      %p321 = scmp.lt.s32.totalorder %s19, 1
      %s322 = scalar_select %p321, %s19, 1
      %s323 = smul.addr %s322, 32
      %s324 = smul.addr %s323, 8
      %s325 = scalar_lea.vmem %s8, %s324
      %v326 = vld [vmem:[%s2] sm:$0x3]
      %v327 = vld [vmem:[%s2 + $0x2] sm:$0x3]
      %v328 = vld [vmem:[%s4] sm:$0x1]
      %v329 = vld [vmem:[%s5] sm:$0x1]
      %vm330 = vcmask 1041408
      %v331 = vsel %vm330, %v326, 0.0
      %v332 = vsel %vm330, %v327, 0.0
      %v333 = vadd.f32 %v331, %v332
      %v334 = vmul.f32 %v333, 0.001953125
      %v335 = vmul.f32 %v326, 0.00390625
      %v336 = vmul.f32 %v327, 0.00390625
      %v337 = vsub.f32 %v335, %v334
      %v338 = vsub.f32 %v336, %v334
      %v339 = vmul.f32 %v337, %v337
      %v340 = vmul.f32 %v338, %v338
      %vm341 = vcmask 1040384
      %v342 = vsel %vm341, %v339, 0.0
      %v343 = vsel %vm341, %v340, 0.0
      %v344 = vadd.f32 %v342, %v343
      %v345 = vmul.f32 %v344, 256.0
      %v347 = vrot.slane %v345, 7
      %v349 = vadd.f32 %v333, %v347
      %v350 = vmul.f32 %v349, 0.001953125
      %v351 = vadd.f32 %v350, 1e-05
      %v352 = vrsqrt.pop %v351
      %v355 = vunpack.c.l.s4 1966171168
      %v356 = vunpack.c.0.s8 %v355
      %v357 = vlaneseq
      %v358 = vshrl.u32 %v357, 7
      %v359 = vsub.s32 %v356, %v358
      %v360 = vrot.slane %v352, %v359
      %v361 = vcombine.high %v360, %v360
      %v363 = vunpack.c.l.s4 1966171168
      %v364 = vunpack.c.0.s8 %v363
      %v365 = vlaneseq
      %v366 = vshrl.u32 %v365, 7
      %v367 = vsub.s32 %v364, %v366
      %v368 = vrot.slane %v361, %v367
      %v370 = vmul.f32 %v328, %v368
      %v371 = vmul.f32 %v334, %v370
      %v372 = vsub.f32 %v329, %v371
      %v373 = vld [vmem:[%s315] sm:$0xf]
      %v374 = vld [vmem:[%s315 + $0x4] sm:$0xf]
      %v375 = vld [vmem:[%s315 + $0x8] sm:$0xf]
      %v376 = vld [vmem:[%s315 + $0xc] sm:$0xf]
      %v377 = vld [vmem:[%s315 + $0x10] sm:$0xf]
      %v378 = vld [vmem:[%s315 + $0x14] sm:$0xf]
      %v379 = vld [vmem:[%s315 + $0x18] sm:$0xf]
      %v380 = vld [vmem:[%s315 + $0x1c] sm:$0xf]
      %v381 = vld [vmem:[%s315 + $0x20] sm:$0xf]
      %v382 = vld [vmem:[%s315 + $0x24] sm:$0xf]
      %v383 = vld [vmem:[%s315 + $0x28] sm:$0xf]
      %v384 = vld [vmem:[%s315 + $0x2c] sm:$0xf]
      %v385 = vld [vmem:[%s315 + $0x30] sm:$0xf]
      %v386 = vld [vmem:[%s315 + $0x34] sm:$0xf]
      %v387 = vld [vmem:[%s315 + $0x38] sm:$0xf]
      %v388 = vld [vmem:[%s315 + $0x3c] sm:$0xf]
      %v389 = vld [vmem:[%s315 + $0x40] sm:$0xf]
      %v390 = vld [vmem:[%s315 + $0x44] sm:$0xf]
      %v391 = vld [vmem:[%s315 + $0x48] sm:$0xf]
      %v392 = vld [vmem:[%s315 + $0x4c] sm:$0xf]
      %v393 = vld [vmem:[%s315 + $0x50] sm:$0xf]
      %v394 = vld [vmem:[%s315 + $0x54] sm:$0xf]
      %v395 = vld [vmem:[%s315 + $0x58] sm:$0xf]
      %v396 = vld [vmem:[%s315 + $0x5c] sm:$0xf]
      %v397 = vld [vmem:[%s315 + $0x60] sm:$0xf]
      %v398 = vld [vmem:[%s315 + $0x64] sm:$0xf]
      %v399 = vld [vmem:[%s315 + $0x68] sm:$0xf]
      %v400 = vld [vmem:[%s315 + $0x6c] sm:$0xf]
      %v401 = vld [vmem:[%s315 + $0x70] sm:$0xf]
      %v402 = vld [vmem:[%s315 + $0x74] sm:$0xf]
      %v403 = vld [vmem:[%s315 + $0x78] sm:$0xf]
      %v404 = vld [vmem:[%s315 + $0x7c] sm:$0xf]
      %v405 = vunpack.c.l.bf16 %v373
      %v406 = vunpack.c.l.bf16 %v374
      %v407 = vunpack.c.l.bf16 %v375
      %v408 = vunpack.c.l.bf16 %v376
      %v409 = vunpack.c.l.bf16 %v377
      %v410 = vunpack.c.l.bf16 %v378
      %v411 = vunpack.c.l.bf16 %v379
      %v412 = vunpack.c.l.bf16 %v380
      %v413 = vunpack.c.l.bf16 %v381
      %v414 = vunpack.c.l.bf16 %v382
      %v415 = vunpack.c.l.bf16 %v383
      %v416 = vunpack.c.l.bf16 %v384
      %v417 = vunpack.c.l.bf16 %v385
      %v418 = vunpack.c.l.bf16 %v386
      %v419 = vunpack.c.l.bf16 %v387
      %v420 = vunpack.c.l.bf16 %v388
      %v421 = vunpack.c.l.bf16 %v389
      %v422 = vunpack.c.l.bf16 %v390
      %v423 = vunpack.c.l.bf16 %v391
      %v424 = vunpack.c.l.bf16 %v392
      %v425 = vunpack.c.l.bf16 %v393
      %v426 = vunpack.c.l.bf16 %v394
      %v427 = vunpack.c.l.bf16 %v395
      %v428 = vunpack.c.l.bf16 %v396
      %v429 = vunpack.c.l.bf16 %v397
      %v430 = vunpack.c.l.bf16 %v398
      %v431 = vunpack.c.l.bf16 %v399
      %v432 = vunpack.c.l.bf16 %v400
      %v433 = vunpack.c.l.bf16 %v401
      %v434 = vunpack.c.l.bf16 %v402
      %v435 = vunpack.c.l.bf16 %v403
      %v436 = vunpack.c.l.bf16 %v404
      %v438 = vlaneseq
      %v439 = vshrl.u32 %v438, 7
      %v440 = vsub.s32 0, %v439
      %v441 = vrot.slane %v370, %v440
      %v443 = vmul.f32 %v405, %v441
      %v444 = vmul.f32 %v406, %v441
      %v445 = vmul.f32 %v407, %v441
      %v446 = vmul.f32 %v408, %v441
      %v447 = vmul.f32 %v409, %v441
      %v448 = vmul.f32 %v410, %v441
      %v449 = vmul.f32 %v411, %v441
      %v450 = vmul.f32 %v412, %v441
      %v451 = vmul.f32 %v413, %v441
      %v452 = vmul.f32 %v414, %v441
      %v453 = vmul.f32 %v415, %v441
      %v454 = vmul.f32 %v416, %v441
      %v455 = vmul.f32 %v417, %v441
      %v456 = vmul.f32 %v418, %v441
      %v457 = vmul.f32 %v419, %v441
      %v458 = vmul.f32 %v420, %v441
      %v459 = vmul.f32 %v421, %v441
      %v460 = vmul.f32 %v422, %v441
      %v461 = vmul.f32 %v423, %v441
      %v462 = vmul.f32 %v424, %v441
      %v463 = vmul.f32 %v425, %v441
      %v464 = vmul.f32 %v426, %v441
      %v465 = vmul.f32 %v427, %v441
      %v466 = vmul.f32 %v428, %v441
      %v467 = vmul.f32 %v429, %v441
      %v468 = vmul.f32 %v430, %v441
      %v469 = vmul.f32 %v431, %v441
      %v470 = vmul.f32 %v432, %v441
      %v471 = vmul.f32 %v433, %v441
      %v472 = vmul.f32 %v434, %v441
      %v473 = vmul.f32 %v435, %v441
      %v474 = vmul.f32 %v436, %v441
      %v476 = vlaneseq
      %v477 = vshrl.u32 %v476, 7
      %v478 = vsub.s32 0, %v477
      %v479 = vrot.slane %v372, %v478
      %v481 = vadd.f32 %v443, %v479
      %v482 = vadd.f32 %v444, %v479
      %v483 = vadd.f32 %v445, %v479
      %v484 = vadd.f32 %v446, %v479
      %v485 = vadd.f32 %v447, %v479
      %v486 = vadd.f32 %v448, %v479
      %v487 = vadd.f32 %v449, %v479
      %v488 = vadd.f32 %v450, %v479
      %v489 = vadd.f32 %v451, %v479
      %v490 = vadd.f32 %v452, %v479
      %v491 = vadd.f32 %v453, %v479
      %v492 = vadd.f32 %v454, %v479
      %v493 = vadd.f32 %v455, %v479
      %v494 = vadd.f32 %v456, %v479
      %v495 = vadd.f32 %v457, %v479
      %v496 = vadd.f32 %v458, %v479
      %v497 = vadd.f32 %v459, %v479
      %v498 = vadd.f32 %v460, %v479
      %v499 = vadd.f32 %v461, %v479
      %v500 = vadd.f32 %v462, %v479
      %v501 = vadd.f32 %v463, %v479
      %v502 = vadd.f32 %v464, %v479
      %v503 = vadd.f32 %v465, %v479
      %v504 = vadd.f32 %v466, %v479
      %v505 = vadd.f32 %v467, %v479
      %v506 = vadd.f32 %v468, %v479
      %v507 = vadd.f32 %v469, %v479
      %v508 = vadd.f32 %v470, %v479
      %v509 = vadd.f32 %v471, %v479
      %v510 = vadd.f32 %v472, %v479
      %v511 = vadd.f32 %v473, %v479
      %v512 = vadd.f32 %v474, %v479
      %v513 = vld [vmem:[%s3] sm:$0x3]
      %v514 = vld [vmem:[%s3 + $0x2] sm:$0x3]
      %v515 = vld [vmem:[%s6] sm:$0x1]
      %v516 = vld [vmem:[%s7] sm:$0x1]
      %v517 = vsel %vm330, %v513, 0.0
      %v518 = vsel %vm330, %v514, 0.0
      %v519 = vadd.f32 %v517, %v518
      %v520 = vmul.f32 %v519, 0.001953125
      %v521 = vmul.f32 %v513, 0.00390625
      %v522 = vmul.f32 %v514, 0.00390625
      %v523 = vsub.f32 %v521, %v520
      %v524 = vsub.f32 %v522, %v520
      %v525 = vmul.f32 %v523, %v523
      %v526 = vmul.f32 %v524, %v524
      %v527 = vsel %vm341, %v525, 0.0
      %v528 = vsel %vm341, %v526, 0.0
      %v529 = vadd.f32 %v527, %v528
      %v530 = vmul.f32 %v529, 256.0
      %v532 = vrot.slane %v530, 7
      %v534 = vadd.f32 %v519, %v532
      %v535 = vmul.f32 %v534, 0.001953125
      %v536 = vadd.f32 %v535, 1e-05
      %v537 = vrsqrt.pop %v536
      %v540 = vunpack.c.l.s4 1966171168
      %v541 = vunpack.c.0.s8 %v540
      %v542 = vlaneseq
      %v543 = vshrl.u32 %v542, 7
      %v544 = vsub.s32 %v541, %v543
      %v545 = vrot.slane %v537, %v544
      %v546 = vcombine.high %v545, %v545
      %v548 = vunpack.c.l.s4 1966171168
      %v549 = vunpack.c.0.s8 %v548
      %v550 = vlaneseq
      %v551 = vshrl.u32 %v550, 7
      %v552 = vsub.s32 %v549, %v551
      %v553 = vrot.slane %v546, %v552
      %v555 = vmul.f32 %v515, %v553
      %v556 = vmul.f32 %v520, %v555
      %v557 = vsub.f32 %v516, %v556
      %v558 = vld [vmem:[%s320] sm:$0xf]
      %v559 = vld [vmem:[%s320 + $0x4] sm:$0xf]
      %v560 = vld [vmem:[%s320 + $0x8] sm:$0xf]
      %v561 = vld [vmem:[%s320 + $0xc] sm:$0xf]
      %v562 = vld [vmem:[%s320 + $0x10] sm:$0xf]
      %v563 = vld [vmem:[%s320 + $0x14] sm:$0xf]
      %v564 = vld [vmem:[%s320 + $0x18] sm:$0xf]
      %v565 = vld [vmem:[%s320 + $0x1c] sm:$0xf]
      %v566 = vld [vmem:[%s320 + $0x20] sm:$0xf]
      %v567 = vld [vmem:[%s320 + $0x24] sm:$0xf]
      %v568 = vld [vmem:[%s320 + $0x28] sm:$0xf]
      %v569 = vld [vmem:[%s320 + $0x2c] sm:$0xf]
      %v570 = vld [vmem:[%s320 + $0x30] sm:$0xf]
      %v571 = vld [vmem:[%s320 + $0x34] sm:$0xf]
      %v572 = vld [vmem:[%s320 + $0x38] sm:$0xf]
      %v573 = vld [vmem:[%s320 + $0x3c] sm:$0xf]
      %v574 = vld [vmem:[%s320 + $0x40] sm:$0xf]
      %v575 = vld [vmem:[%s320 + $0x44] sm:$0xf]
      %v576 = vld [vmem:[%s320 + $0x48] sm:$0xf]
      %v577 = vld [vmem:[%s320 + $0x4c] sm:$0xf]
      %v578 = vld [vmem:[%s320 + $0x50] sm:$0xf]
      %v579 = vld [vmem:[%s320 + $0x54] sm:$0xf]
      %v580 = vld [vmem:[%s320 + $0x58] sm:$0xf]
      %v581 = vld [vmem:[%s320 + $0x5c] sm:$0xf]
      %v582 = vld [vmem:[%s320 + $0x60] sm:$0xf]
      %v583 = vld [vmem:[%s320 + $0x64] sm:$0xf]
      %v584 = vld [vmem:[%s320 + $0x68] sm:$0xf]
      %v585 = vld [vmem:[%s320 + $0x6c] sm:$0xf]
      %v586 = vld [vmem:[%s320 + $0x70] sm:$0xf]
      %v587 = vld [vmem:[%s320 + $0x74] sm:$0xf]
      %v588 = vld [vmem:[%s320 + $0x78] sm:$0xf]
      %v589 = vld [vmem:[%s320 + $0x7c] sm:$0xf]
      %v590 = vunpack.c.l.bf16 %v558
      %v591 = vunpack.c.l.bf16 %v559
      %v592 = vunpack.c.l.bf16 %v560
      %v593 = vunpack.c.l.bf16 %v561
      %v594 = vunpack.c.l.bf16 %v562
      %v595 = vunpack.c.l.bf16 %v563
      %v596 = vunpack.c.l.bf16 %v564
      %v597 = vunpack.c.l.bf16 %v565
      %v598 = vunpack.c.l.bf16 %v566
      %v599 = vunpack.c.l.bf16 %v567
      %v600 = vunpack.c.l.bf16 %v568
      %v601 = vunpack.c.l.bf16 %v569
      %v602 = vunpack.c.l.bf16 %v570
      %v603 = vunpack.c.l.bf16 %v571
      %v604 = vunpack.c.l.bf16 %v572
      %v605 = vunpack.c.l.bf16 %v573
      %v606 = vunpack.c.l.bf16 %v574
      %v607 = vunpack.c.l.bf16 %v575
      %v608 = vunpack.c.l.bf16 %v576
      %v609 = vunpack.c.l.bf16 %v577
      %v610 = vunpack.c.l.bf16 %v578
      %v611 = vunpack.c.l.bf16 %v579
      %v612 = vunpack.c.l.bf16 %v580
      %v613 = vunpack.c.l.bf16 %v581
      %v614 = vunpack.c.l.bf16 %v582
      %v615 = vunpack.c.l.bf16 %v583
      %v616 = vunpack.c.l.bf16 %v584
      %v617 = vunpack.c.l.bf16 %v585
      %v618 = vunpack.c.l.bf16 %v586
      %v619 = vunpack.c.l.bf16 %v587
      %v620 = vunpack.c.l.bf16 %v588
      %v621 = vunpack.c.l.bf16 %v589
      %v623 = vlaneseq
      %v624 = vshrl.u32 %v623, 7
      %v625 = vsub.s32 0, %v624
      %v626 = vrot.slane %v555, %v625
      %v628 = vmul.f32 %v590, %v626
      %v629 = vmul.f32 %v591, %v626
      %v630 = vmul.f32 %v592, %v626
      %v631 = vmul.f32 %v593, %v626
      %v632 = vmul.f32 %v594, %v626
      %v633 = vmul.f32 %v595, %v626
      %v634 = vmul.f32 %v596, %v626
      %v635 = vmul.f32 %v597, %v626
      %v636 = vmul.f32 %v598, %v626
      %v637 = vmul.f32 %v599, %v626
      %v638 = vmul.f32 %v600, %v626
      %v639 = vmul.f32 %v601, %v626
      %v640 = vmul.f32 %v602, %v626
      %v641 = vmul.f32 %v603, %v626
      %v642 = vmul.f32 %v604, %v626
      %v643 = vmul.f32 %v605, %v626
      %v644 = vmul.f32 %v606, %v626
      %v645 = vmul.f32 %v607, %v626
      %v646 = vmul.f32 %v608, %v626
      %v647 = vmul.f32 %v609, %v626
      %v648 = vmul.f32 %v610, %v626
      %v649 = vmul.f32 %v611, %v626
      %v650 = vmul.f32 %v612, %v626
      %v651 = vmul.f32 %v613, %v626
      %v652 = vmul.f32 %v614, %v626
      %v653 = vmul.f32 %v615, %v626
      %v654 = vmul.f32 %v616, %v626
      %v655 = vmul.f32 %v617, %v626
      %v656 = vmul.f32 %v618, %v626
      %v657 = vmul.f32 %v619, %v626
      %v658 = vmul.f32 %v620, %v626
      %v659 = vmul.f32 %v621, %v626
      %v661 = vlaneseq
      %v662 = vshrl.u32 %v661, 7
      %v663 = vsub.s32 0, %v662
      %v664 = vrot.slane %v557, %v663
      %v666 = vadd.f32 %v628, %v664
      %v667 = vadd.f32 %v629, %v664
      %v668 = vadd.f32 %v630, %v664
      %v669 = vadd.f32 %v631, %v664
      %v670 = vadd.f32 %v632, %v664
      %v671 = vadd.f32 %v633, %v664
      %v672 = vadd.f32 %v634, %v664
      %v673 = vadd.f32 %v635, %v664
      %v674 = vadd.f32 %v636, %v664
      %v675 = vadd.f32 %v637, %v664
      %v676 = vadd.f32 %v638, %v664
      %v677 = vadd.f32 %v639, %v664
      %v678 = vadd.f32 %v640, %v664
      %v679 = vadd.f32 %v641, %v664
      %v680 = vadd.f32 %v642, %v664
      %v681 = vadd.f32 %v643, %v664
      %v682 = vadd.f32 %v644, %v664
      %v683 = vadd.f32 %v645, %v664
      %v684 = vadd.f32 %v646, %v664
      %v685 = vadd.f32 %v647, %v664
      %v686 = vadd.f32 %v648, %v664
      %v687 = vadd.f32 %v649, %v664
      %v688 = vadd.f32 %v650, %v664
      %v689 = vadd.f32 %v651, %v664
      %v690 = vadd.f32 %v652, %v664
      %v691 = vadd.f32 %v653, %v664
      %v692 = vadd.f32 %v654, %v664
      %v693 = vadd.f32 %v655, %v664
      %v694 = vadd.f32 %v656, %v664
      %v695 = vadd.f32 %v657, %v664
      %v696 = vadd.f32 %v658, %v664
      %v697 = vadd.f32 %v659, %v664
      %v698 = vadd.f32 %v481, %v666
      %v699 = vadd.f32 %v482, %v667
      %v700 = vadd.f32 %v483, %v668
      %v701 = vadd.f32 %v484, %v669
      %v702 = vadd.f32 %v485, %v670
      %v703 = vadd.f32 %v486, %v671
      %v704 = vadd.f32 %v487, %v672
      %v705 = vadd.f32 %v488, %v673
      %v706 = vadd.f32 %v489, %v674
      %v707 = vadd.f32 %v490, %v675
      %v708 = vadd.f32 %v491, %v676
      %v709 = vadd.f32 %v492, %v677
      %v710 = vadd.f32 %v493, %v678
      %v711 = vadd.f32 %v494, %v679
      %v712 = vadd.f32 %v495, %v680
      %v713 = vadd.f32 %v496, %v681
      %v714 = vadd.f32 %v497, %v682
      %v715 = vadd.f32 %v498, %v683
      %v716 = vadd.f32 %v499, %v684
      %v717 = vadd.f32 %v500, %v685
      %v718 = vadd.f32 %v501, %v686
      %v719 = vadd.f32 %v502, %v687
      %v720 = vadd.f32 %v503, %v688
      %v721 = vadd.f32 %v504, %v689
      %v722 = vadd.f32 %v505, %v690
      %v723 = vadd.f32 %v506, %v691
      %v724 = vadd.f32 %v507, %v692
      %v725 = vadd.f32 %v508, %v693
      %v726 = vadd.f32 %v509, %v694
      %v727 = vadd.f32 %v510, %v695
      %v728 = vadd.f32 %v511, %v696
      %v729 = vadd.f32 %v512, %v697
      %v730 = vmax.f32 %v698, 0.0
      %v731 = vmax.f32 %v699, 0.0
      %v732 = vmax.f32 %v700, 0.0
      %v733 = vmax.f32 %v701, 0.0
      %v734 = vmax.f32 %v702, 0.0
      %v735 = vmax.f32 %v703, 0.0
      %v736 = vmax.f32 %v704, 0.0
      %v737 = vmax.f32 %v705, 0.0
      %v738 = vmax.f32 %v706, 0.0
      %v739 = vmax.f32 %v707, 0.0
      %v740 = vmax.f32 %v708, 0.0
      %v741 = vmax.f32 %v709, 0.0
      %v742 = vmax.f32 %v710, 0.0
      %v743 = vmax.f32 %v711, 0.0
      %v744 = vmax.f32 %v712, 0.0
      %v745 = vmax.f32 %v713, 0.0
      %v746 = vmax.f32 %v714, 0.0
      %v747 = vmax.f32 %v715, 0.0
      %v748 = vmax.f32 %v716, 0.0
      %v749 = vmax.f32 %v717, 0.0
      %v750 = vmax.f32 %v718, 0.0
      %v751 = vmax.f32 %v719, 0.0
      %v752 = vmax.f32 %v720, 0.0
      %v753 = vmax.f32 %v721, 0.0
      %v754 = vmax.f32 %v722, 0.0
      %v755 = vmax.f32 %v723, 0.0
      %v756 = vmax.f32 %v724, 0.0
      %v757 = vmax.f32 %v725, 0.0
      %v758 = vmax.f32 %v726, 0.0
      %v759 = vmax.f32 %v727, 0.0
      %v760 = vmax.f32 %v728, 0.0
      %v761 = vmax.f32 %v729, 0.0
      %762 = vst [vmem:[%s325] sm:$0xff] %v730
      %763 = vst [vmem:[%s325 + $0x8] sm:$0xff] %v731
      %764 = vst [vmem:[%s325 + $0x10] sm:$0xff] %v732
      %765 = vst [vmem:[%s325 + $0x18] sm:$0xff] %v733
      %766 = vst [vmem:[%s325 + $0x20] sm:$0xff] %v734
      %767 = vst [vmem:[%s325 + $0x28] sm:$0xff] %v735
      %768 = vst [vmem:[%s325 + $0x30] sm:$0xff] %v736
      %769 = vst [vmem:[%s325 + $0x38] sm:$0xff] %v737
      %770 = vst [vmem:[%s325 + $0x40] sm:$0xff] %v738
      %771 = vst [vmem:[%s325 + $0x48] sm:$0xff] %v739
      %772 = vst [vmem:[%s325 + $0x50] sm:$0xff] %v740
      %773 = vst [vmem:[%s325 + $0x58] sm:$0xff] %v741
      %774 = vst [vmem:[%s325 + $0x60] sm:$0xff] %v742
      %775 = vst [vmem:[%s325 + $0x68] sm:$0xff] %v743
      %776 = vst [vmem:[%s325 + $0x70] sm:$0xff] %v744
      %777 = vst [vmem:[%s325 + $0x78] sm:$0xff] %v745
      %778 = vst [vmem:[%s325 + $0x80] sm:$0xff] %v746
      %779 = vst [vmem:[%s325 + $0x88] sm:$0xff] %v747
      %780 = vst [vmem:[%s325 + $0x90] sm:$0xff] %v748
      %781 = vst [vmem:[%s325 + $0x98] sm:$0xff] %v749
      %782 = vst [vmem:[%s325 + $0xa0] sm:$0xff] %v750
      %783 = vst [vmem:[%s325 + $0xa8] sm:$0xff] %v751
      %784 = vst [vmem:[%s325 + $0xb0] sm:$0xff] %v752
      %785 = vst [vmem:[%s325 + $0xb8] sm:$0xff] %v753
      %786 = vst [vmem:[%s325 + $0xc0] sm:$0xff] %v754
      %787 = vst [vmem:[%s325 + $0xc8] sm:$0xff] %v755
      %788 = vst [vmem:[%s325 + $0xd0] sm:$0xff] %v756
      %789 = vst [vmem:[%s325 + $0xd8] sm:$0xff] %v757
      %790 = vst [vmem:[%s325 + $0xe0] sm:$0xff] %v758
      %791 = vst [vmem:[%s325 + $0xe8] sm:$0xff] %v759
      %792 = vst [vmem:[%s325 + $0xf0] sm:$0xff] %v760
      %793 = vst [vmem:[%s325 + $0xf8] sm:$0xff] %v761
      %p794 = scmp.lt.s32.totalorder %s19, 1
      %s795 = scalar_select %p794, %s19, 1
      %s796 = smul.addr %s795, 32
      %s797 = smul.addr %s796, 8
      %s798 = scalar_lea.vmem %s8, %s797
      // Predicated region
      $region53: #{resblock_forward.5} parent=51 // pred_check
        %p799 = pneg %p215
      $region54: #{resblock_forward.5} parent=51 // pred_check_branch
        %801 = sbr.rel (%p799) target = $region56
      $region55: #{resblock_forward.5} parent=51 // pred_region
        _
      $region56: #{resblock_forward.5} parent=51 // pred_fallthru
        _
    $region52: #{resblock_forward.5} parent=5 // pred_fallthru
      _
    %p802 = scmp.le.s32.totalorder 2, %s14
    // Predicated region
    $region57: #{resblock_forward.5} parent=5 // pred_check
      %p803 = pneg %p802
    $region58: #{resblock_forward.5} parent=5 // pred_check_branch
      %805 = sbr.rel (%p803) target = $region60
    $region59: #{resblock_forward.5} parent=5 // pred_region
      %s806 = ssub.s32 %s14, 2
      // Predicated region
      $region61: #{resblock_forward.5} parent=59 // pred_check
        %p807 = pneg %p221
      $region62: #{resblock_forward.5} parent=59 // pred_check_branch
        %809 = sbr.rel (%p807) target = $region64
      $region63: #{resblock_forward.5} parent=59 // pred_region
        %p810 = scmp.lt.s32.totalorder %s20, 1
        %s811 = scalar_select %p810, %s20, 1
        %s812 = smul.addr %s811, 32
        %s813 = smul.addr %s812, 8
        %s814 = scalar_lea.vmem %s8, %s813
      $region64: #{resblock_forward.5} parent=59 // pred_fallthru
        _
    $region60: #{resblock_forward.5} parent=5 // pred_fallthru
      _
  $region6: #{resblock_forward.5} parent=0 // loop_footer
    %s18 = sadd.s32 1, %s14
  $region7: #{resblock_forward.5} parent=0 // loop_footer_branch
    %13 = sbr.rel target = $region3
  $region8: #{resblock_forward.5} parent=0 // loop_exit
    _

// kernel: resblock_forward.4
$region0: #{resblock_forward.4}
  #allocation0 [shape = 'u32[]', space=smem, size = 0x4, offset = 0x4, fixed_abs, tag = 'smem constant byte address 0x4 - core index']
  #allocation1 [shape = 'u32[144,128]{1,0:T(1,128)}', space=vmem, size = 0x12000, scoped, tag = 'internal scratch']
  %s0 = inlined_call_operand.vmem [shape: bf16[2,16,16,128], index: 0, kind: input, shape index: {}]
  %s1 = inlined_call_operand.vmem [shape: f32[2,2,128], index: 1, kind: input, shape index: {}]
  %s2 = inlined_call_operand.vmem [shape: f32[1,128], index: 2, kind: input, shape index: {}]
  %s3 = inlined_call_operand.vmem [shape: f32[1,128], index: 3, kind: input, shape index: {}]
  %s4 = inlined_call_operand.vmem [shape: bf16[3,384,128], index: 4, kind: input, shape index: {}]
  %s5 = inlined_call_operand.vmem [shape: f32[1,128], index: 5, kind: input, shape index: {}]
  %s6 = inlined_call_operand.vmem [shape: bf16[2,16,16,128], index: 6, kind: output, shape index: {0}]
  %s7 = inlined_call_operand.vmem [shape: f32[2,2,128], index: 7, kind: output, shape index: {1}]
  %8 = xla_tuple %s6, %s7
  %s9 = sld [smem:[#allocation0]]
  $region65: #{resblock_forward.4} parent=0
    _
  %s11 = ssub.s32 1, %s9
  %s12 = scalar_select 0, %s11, %s9
  loop: start=0, step=1, limit=4
  $region2: #{resblock_forward.4} parent=0 // loop_pre_header
    _
  $region3: #{resblock_forward.4} parent=0 // loop_header
    %s14 = sphi 0, %s18
    %p15 = scmp.ge.s32.totalorder %s14, 4
    %s24 = sphi 0, %s26
    %s27 = sphi 0, %s24
    %s28 = sphi 0, %s27
    %s44 = sphi 0, %s28
    %s48 = sphi 0, %s48
    %s50 = sphi 0, %s48
    %s51 = sphi 0, %s50
    %s65 = sphi 0, %s51
    %s69 = sphi 0, %s69
    %s71 = sphi 0, %s69
    %s72 = sphi 0, %s71
    %s86 = sphi 0, %s72
    %s90 = sphi 0, %s90
    %s92 = sphi 0, %s90
    %s93 = sphi 0, %s92
    %s107 = sphi 0, %s93
    %s111 = sphi 0, %s111
    %s113 = sphi 0, %s111
    %s114 = sphi 0, %s113
    %s128 = sphi 0, %s114
    %s132 = sphi 0, %s132
    %s134 = sphi 0, %s132
    %s135 = sphi 0, %s134
    %s149 = sphi 0, %s135
    %s155 = sphi 0, %s157
    %s158 = sphi 0, %s155
    %s159 = sphi 0, %s158
    %s175 = sphi 0, %s159
    %s181 = sphi 0, %s183
    %s184 = sphi 0, %s181
    %s185 = sphi 0, %s184
    %s201 = sphi 0, %s185
  $region4: #{resblock_forward.4} parent=0 // loop_header_branch
    %17 = sbr.rel (%p15) target = $region8
  $region5: #{resblock_forward.4} parent=0 // loop_body
    %s19 = ssub.s32 %s14, 1
    %s20 = ssub.s32 %s14, 2
    %s21 = sadd.s32 %s14, 1
    %s22 = ssub.s32 %s14, %s21
    %p23 = scmp.eq.s32.totalorder %s22, 0
    %s25 = sadd.s32 %s24, 1
    %s26 = scalar_select %p23, %s24, %s25
    %p29 = pneg %p23
    %p30 = scmp.eq.s32.totalorder %s14, 1
    %p31 = por %p29, %p30
    %p32 = scmp.ne.s32.totalorder %s24, %s27
    %p33 = scmp.eq.s32.totalorder %s14, 0
    %p34 = por %p32, %p33
    %p35 = scmp.ne.s32.totalorder %s24, %s27
    %p36 = scmp.eq.s32.totalorder %s19, 1
    %p37 = por %p35, %p36
    %p38 = scmp.ne.s32.totalorder %s27, %s28
    %p39 = scmp.eq.s32.totalorder %s19, 0
    %p40 = por %p38, %p39
    %p41 = scmp.ne.s32.totalorder %s27, %s28
    %p42 = scmp.eq.s32.totalorder %s20, 1
    %p43 = por %p41, %p42
    %p45 = scmp.ne.s32.totalorder %s28, %s44
    %p46 = scmp.eq.s32.totalorder %s20, 0
    %p47 = por %p45, %p46
    %s49 = sadd.s32 %s48, 1
    %p52 = scmp.eq.s32.totalorder %s14, 1
    %p53 = scmp.ne.s32.totalorder %s48, %s50
    %p54 = scmp.eq.s32.totalorder %s14, 0
    %p55 = por %p53, %p54
    %p56 = scmp.ne.s32.totalorder %s48, %s50
    %p57 = scmp.eq.s32.totalorder %s19, 1
    %p58 = por %p56, %p57
    %p59 = scmp.ne.s32.totalorder %s50, %s51
    %p60 = scmp.eq.s32.totalorder %s19, 0
    %p61 = por %p59, %p60
    %p62 = scmp.ne.s32.totalorder %s50, %s51
    %p63 = scmp.eq.s32.totalorder %s20, 1
    %p64 = por %p62, %p63
    %p66 = scmp.ne.s32.totalorder %s51, %s65
    %p67 = scmp.eq.s32.totalorder %s20, 0
    %p68 = por %p66, %p67
    %s70 = sadd.s32 %s69, 1
    %p73 = scmp.eq.s32.totalorder %s14, 1
    %p74 = scmp.ne.s32.totalorder %s69, %s71
    %p75 = scmp.eq.s32.totalorder %s14, 0
    %p76 = por %p74, %p75
    %p77 = scmp.ne.s32.totalorder %s69, %s71
    %p78 = scmp.eq.s32.totalorder %s19, 1
    %p79 = por %p77, %p78
    %p80 = scmp.ne.s32.totalorder %s71, %s72
    %p81 = scmp.eq.s32.totalorder %s19, 0
    %p82 = por %p80, %p81
    %p83 = scmp.ne.s32.totalorder %s71, %s72
    %p84 = scmp.eq.s32.totalorder %s20, 1
    %p85 = por %p83, %p84
    %p87 = scmp.ne.s32.totalorder %s72, %s86
    %p88 = scmp.eq.s32.totalorder %s20, 0
    %p89 = por %p87, %p88
    %s91 = sadd.s32 %s90, 1
    %p94 = scmp.eq.s32.totalorder %s14, 1
    %p95 = scmp.ne.s32.totalorder %s90, %s92
    %p96 = scmp.eq.s32.totalorder %s14, 0
    %p97 = por %p95, %p96
    %p98 = scmp.ne.s32.totalorder %s90, %s92
    %p99 = scmp.eq.s32.totalorder %s19, 1
    %p100 = por %p98, %p99
    %p101 = scmp.ne.s32.totalorder %s92, %s93
    %p102 = scmp.eq.s32.totalorder %s19, 0
    %p103 = por %p101, %p102
    %p104 = scmp.ne.s32.totalorder %s92, %s93
    %p105 = scmp.eq.s32.totalorder %s20, 1
    %p106 = por %p104, %p105
    %p108 = scmp.ne.s32.totalorder %s93, %s107
    %p109 = scmp.eq.s32.totalorder %s20, 0
    %p110 = por %p108, %p109
    %s112 = sadd.s32 %s111, 1
    %p115 = scmp.eq.s32.totalorder %s14, 1
    %p116 = scmp.ne.s32.totalorder %s111, %s113
    %p117 = scmp.eq.s32.totalorder %s14, 0
    %p118 = por %p116, %p117
    %p119 = scmp.ne.s32.totalorder %s111, %s113
    %p120 = scmp.eq.s32.totalorder %s19, 1
    %p121 = por %p119, %p120
    %p122 = scmp.ne.s32.totalorder %s113, %s114
    %p123 = scmp.eq.s32.totalorder %s19, 0
    %p124 = por %p122, %p123
    %p125 = scmp.ne.s32.totalorder %s113, %s114
    %p126 = scmp.eq.s32.totalorder %s20, 1
    %p127 = por %p125, %p126
    %p129 = scmp.ne.s32.totalorder %s114, %s128
    %p130 = scmp.eq.s32.totalorder %s20, 0
    %p131 = por %p129, %p130
    %s133 = sadd.s32 %s132, 1
    %p136 = scmp.eq.s32.totalorder %s14, 1
    %p137 = scmp.ne.s32.totalorder %s132, %s134
    %p138 = scmp.eq.s32.totalorder %s14, 0
    %p139 = por %p137, %p138
    %p140 = scmp.ne.s32.totalorder %s132, %s134
    %p141 = scmp.eq.s32.totalorder %s19, 1
    %p142 = por %p140, %p141
    %p143 = scmp.ne.s32.totalorder %s134, %s135
    %p144 = scmp.eq.s32.totalorder %s19, 0
    %p145 = por %p143, %p144
    %p146 = scmp.ne.s32.totalorder %s134, %s135
    %p147 = scmp.eq.s32.totalorder %s20, 1
    %p148 = por %p146, %p147
    %p150 = scmp.ne.s32.totalorder %s135, %s149
    %p151 = scmp.eq.s32.totalorder %s20, 0
    %p152 = por %p150, %p151
    %s153 = ssub.s32 %s14, %s21
    %p154 = scmp.eq.s32.totalorder %s153, 0
    %s156 = sadd.s32 %s155, 1
    %s157 = scalar_select %p154, %s155, %s156
    %p160 = pneg %p154
    %p161 = scmp.eq.s32.totalorder %s14, 1
    %p162 = por %p160, %p161
    %p163 = scmp.ne.s32.totalorder %s155, %s158
    %p164 = scmp.eq.s32.totalorder %s14, 0
    %p165 = por %p163, %p164
    %p166 = scmp.ne.s32.totalorder %s155, %s158
    %p167 = scmp.eq.s32.totalorder %s19, 1
    %p168 = por %p166, %p167
    %p169 = scmp.ne.s32.totalorder %s158, %s159
    %p170 = scmp.eq.s32.totalorder %s19, 0
    %p171 = por %p169, %p170
    %p172 = scmp.ne.s32.totalorder %s158, %s159
    %p173 = scmp.eq.s32.totalorder %s20, 1
    %p174 = por %p172, %p173
    %p176 = scmp.ne.s32.totalorder %s159, %s175
    %p177 = scmp.eq.s32.totalorder %s20, 0
    %p178 = por %p176, %p177
    %s179 = ssub.s32 %s14, %s21
    %p180 = scmp.eq.s32.totalorder %s179, 0
    %s182 = sadd.s32 %s181, 1
    %s183 = scalar_select %p180, %s181, %s182
    %p186 = pneg %p180
    %p187 = scmp.eq.s32.totalorder %s14, 1
    %p188 = por %p186, %p187
    %p189 = scmp.ne.s32.totalorder %s181, %s184
    %p190 = scmp.eq.s32.totalorder %s14, 0
    %p191 = por %p189, %p190
    %p192 = scmp.ne.s32.totalorder %s181, %s184
    %p193 = scmp.eq.s32.totalorder %s19, 1
    %p194 = por %p192, %p193
    %p195 = scmp.ne.s32.totalorder %s184, %s185
    %p196 = scmp.eq.s32.totalorder %s19, 0
    %p197 = por %p195, %p196
    %p198 = scmp.ne.s32.totalorder %s184, %s185
    %p199 = scmp.eq.s32.totalorder %s20, 1
    %p200 = por %p198, %p199
    %p202 = scmp.ne.s32.totalorder %s185, %s201
    %p203 = scmp.eq.s32.totalorder %s20, 0
    %p204 = por %p202, %p203
    %p205 = scmp.le.s32.totalorder 1, %s14
    %p206 = scmp.lt.s32.totalorder %s14, 3
    %p207 = pnand %p205, %p206
    %p208 = pneg %p207
    // Predicated region
    $region9: #{resblock_forward.4} parent=5 // pred_check
      _
    $region10: #{resblock_forward.4} parent=5 // pred_check_branch
      %210 = sbr.rel (%p207) target = $region12
    $region11: #{resblock_forward.4} parent=5 // pred_region
      %s211 = ssub.s32 %s14, 1
      // Predicated region
      $region13: #{resblock_forward.4} parent=11 // pred_check
        %p212 = pneg %p61
      $region14: #{resblock_forward.4} parent=11 // pred_check_branch
        %214 = sbr.rel (%p212) target = $region16
      $region15: #{resblock_forward.4} parent=11 // pred_region
        _
      $region16: #{resblock_forward.4} parent=11 // pred_fallthru
        _
      // Predicated region
      $region17: #{resblock_forward.4} parent=11 // pred_check
        %p215 = pneg %p82
      $region18: #{resblock_forward.4} parent=11 // pred_check_branch
        %217 = sbr.rel (%p215) target = $region20
      $region19: #{resblock_forward.4} parent=11 // pred_region
        _
      $region20: #{resblock_forward.4} parent=11 // pred_fallthru
        _
      // Predicated region
      $region21: #{resblock_forward.4} parent=11 // pred_check
        %p218 = pneg %p103
      $region22: #{resblock_forward.4} parent=11 // pred_check_branch
        %220 = sbr.rel (%p218) target = $region24
      $region23: #{resblock_forward.4} parent=11 // pred_region
        _
      $region24: #{resblock_forward.4} parent=11 // pred_fallthru
        _
      // Predicated region
      $region25: #{resblock_forward.4} parent=11 // pred_check
        %p221 = pneg %p124
      $region26: #{resblock_forward.4} parent=11 // pred_check_branch
        %223 = sbr.rel (%p221) target = $region28
      $region27: #{resblock_forward.4} parent=11 // pred_region
        _
      $region28: #{resblock_forward.4} parent=11 // pred_fallthru
        _
      // Predicated region
      $region29: #{resblock_forward.4} parent=11 // pred_check
        %p224 = pneg %p145
      $region30: #{resblock_forward.4} parent=11 // pred_check_branch
        %226 = sbr.rel (%p224) target = $region32
      $region31: #{resblock_forward.4} parent=11 // pred_region
        _
      $region32: #{resblock_forward.4} parent=11 // pred_fallthru
        _
    $region12: #{resblock_forward.4} parent=5 // pred_fallthru
      _
    %p227 = scmp.lt.s32.totalorder %s14, 2
    // Predicated region
    $region33: #{resblock_forward.4} parent=5 // pred_check
      %p228 = pneg %p227
    $region34: #{resblock_forward.4} parent=5 // pred_check_branch
      %230 = sbr.rel (%p228) target = $region36
    $region35: #{resblock_forward.4} parent=5 // pred_region
      // Predicated region
      $region37: #{resblock_forward.4} parent=35 // pred_check
        %p231 = pneg %p34
      $region38: #{resblock_forward.4} parent=35 // pred_check_branch
        %233 = sbr.rel (%p231) target = $region40
      $region39: #{resblock_forward.4} parent=35 // pred_region
        %p234 = scmp.lt.s32.totalorder %s14, 1
        %s235 = scalar_select %p234, %s14, 1
        %s236 = smul.addr %s235, 32
        %s237 = smul.addr %s236, 4
        %s238 = scalar_lea.vmem %s0, %s237
      $region40: #{resblock_forward.4} parent=35 // pred_fallthru
        _
    $region36: #{resblock_forward.4} parent=5 // pred_fallthru
      _
    %p239 = scmp.le.s32.totalorder 1, %s14
    %p240 = scmp.lt.s32.totalorder %s14, 3
    %p241 = pnand %p239, %p240
    %p242 = pneg %p241
    // Predicated region
    $region41: #{resblock_forward.4} parent=5 // pred_check
      _
    $region42: #{resblock_forward.4} parent=5 // pred_check_branch
      %244 = sbr.rel (%p241) target = $region44
    $region43: #{resblock_forward.4} parent=5 // pred_region
      %s245 = ssub.s32 %s14, 1
      %p246 = scmp.lt.s32.totalorder %s19, 1
      %s247 = scalar_select %p246, %s19, 1
      %s248 = smul.addr %s247, 32
      %s249 = smul.addr %s248, 4
      %s250 = scalar_lea.vmem %s0, %s249
      %p251 = pneg %p40
      %p252 = pneg %p37
      %p253 = pneg %p61
      %p254 = pneg %p58
      %p255 = pneg %p82
      %p256 = pneg %p79
      %p257 = pneg %p103
      %p258 = pneg %p100
      %p259 = pneg %p124
      %p260 = pneg %p121
      %p261 = pneg %p145
      %p262 = pneg %p142
      %p263 = pneg %p171
      %p264 = pneg %p168
      %p265 = scmp.lt.s32.totalorder %s19, 1
      %s266 = scalar_select %p265, %s19, 1
      %s267 = smul.addr %s266, 32
      %s268 = smul.addr %s267, 4
      %s269 = scalar_lea.vmem %s6, %s268
      %p270 = pneg %p197
      %p271 = pneg %p194
      %p272 = scmp.lt.s32.totalorder %s19, 1
      %s273 = scalar_select %p272, %s19, 1
      %s274 = smul.addr %s273, 2
      %s275 = scalar_lea.vmem %s7, %s274
      %p276 = scmp.lt.s32.totalorder %s19, 1
      %s277 = scalar_select %p276, %s19, 1
      %s278 = smul.addr %s277, 32
      %s279 = smul.addr %s278, 4
      %s280 = scalar_lea.vmem %s0, %s279
      %p281 = scmp.lt.s32.totalorder %s19, 1
      %s282 = scalar_select %p281, %s19, 1
      %s283 = smul.addr %s282, 32
      %s284 = smul.addr %s283, 4
      %s285 = scalar_lea.vmem %s6, %s284
      %p286 = scmp.lt.s32.totalorder %s19, 1
      %s287 = scalar_select %p286, %s19, 1
      %s288 = smul.addr %s287, 2
      %s289 = scalar_lea.vmem %s7, %s288
      %v291 = vld [vmem:[%s1] sm:$0x3]
      %v292 = vld [vmem:[%s1 + $0x2] sm:$0x3]
      %v293 = vld [vmem:[%s2] sm:$0x1]
      %v294 = vld [vmem:[%s3] sm:$0x1]
      %vm295 = vcmask 1041408
      %v296 = vsel %vm295, %v291, 0.0
      %v297 = vsel %vm295, %v292, 0.0
      %v298 = vadd.f32 %v296, %v297
      %v299 = vmul.f32 %v298, 0.001953125
      %v300 = vmul.f32 %v291, 0.00390625
      %v301 = vmul.f32 %v292, 0.00390625
      %v302 = vsub.f32 %v300, %v299
      %v303 = vsub.f32 %v301, %v299
      %v304 = vmul.f32 %v302, %v302
      %v305 = vmul.f32 %v303, %v303
      %vm306 = vcmask 1040384
      %v307 = vsel %vm306, %v304, 0.0
      %v308 = vsel %vm306, %v305, 0.0
      %v309 = vadd.f32 %v307, %v308
      %v310 = vmul.f32 %v309, 256.0
      %v312 = vrot.slane %v310, 7
      %v314 = vadd.f32 %v298, %v312
      %v315 = vmul.f32 %v314, 0.001953125
      %v316 = vadd.f32 %v315, 1e-05
      %v317 = vrsqrt.pop %v316
      %v320 = vunpack.c.l.s4 1966171168
      %v321 = vunpack.c.0.s8 %v320
      %v322 = vlaneseq
      %v323 = vshrl.u32 %v322, 7
      %v324 = vsub.s32 %v321, %v323
      %v325 = vrot.slane %v317, %v324
      %v326 = vcombine.high %v325, %v325
      %v328 = vunpack.c.l.s4 1966171168
      %v329 = vunpack.c.0.s8 %v328
      %v330 = vlaneseq
      %v331 = vshrl.u32 %v330, 7
      %v332 = vsub.s32 %v329, %v331
      %v333 = vrot.slane %v326, %v332
      %v335 = vmul.f32 %v293, %v333
      %v336 = vmul.f32 %v299, %v335
      %v337 = vsub.f32 %v294, %v336
      %v338 = vld [vmem:[%s280] sm:$0xf]
      %v339 = vld [vmem:[%s280 + $0x4] sm:$0xf]
      %v340 = vld [vmem:[%s280 + $0x8] sm:$0xf]
      %v341 = vld [vmem:[%s280 + $0xc] sm:$0xf]
      %v342 = vld [vmem:[%s280 + $0x10] sm:$0xf]
      %v343 = vld [vmem:[%s280 + $0x14] sm:$0xf]
      %v344 = vld [vmem:[%s280 + $0x18] sm:$0xf]
      %v345 = vld [vmem:[%s280 + $0x1c] sm:$0xf]
      %v346 = vld [vmem:[%s280 + $0x20] sm:$0xf]
      %v347 = vld [vmem:[%s280 + $0x24] sm:$0xf]
      %v348 = vld [vmem:[%s280 + $0x28] sm:$0xf]
      %v349 = vld [vmem:[%s280 + $0x2c] sm:$0xf]
      %v350 = vld [vmem:[%s280 + $0x30] sm:$0xf]
      %v351 = vld [vmem:[%s280 + $0x34] sm:$0xf]
      %v352 = vld [vmem:[%s280 + $0x38] sm:$0xf]
      %v353 = vld [vmem:[%s280 + $0x3c] sm:$0xf]
      %v354 = vld [vmem:[%s280 + $0x40] sm:$0xf]
      %v355 = vld [vmem:[%s280 + $0x44] sm:$0xf]
      %v356 = vld [vmem:[%s280 + $0x48] sm:$0xf]
      %v357 = vld [vmem:[%s280 + $0x4c] sm:$0xf]
      %v358 = vld [vmem:[%s280 + $0x50] sm:$0xf]
      %v359 = vld [vmem:[%s280 + $0x54] sm:$0xf]
      %v360 = vld [vmem:[%s280 + $0x58] sm:$0xf]
      %v361 = vld [vmem:[%s280 + $0x5c] sm:$0xf]
      %v362 = vld [vmem:[%s280 + $0x60] sm:$0xf]
      %v363 = vld [vmem:[%s280 + $0x64] sm:$0xf]
      %v364 = vld [vmem:[%s280 + $0x68] sm:$0xf]
      %v365 = vld [vmem:[%s280 + $0x6c] sm:$0xf]
      %v366 = vld [vmem:[%s280 + $0x70] sm:$0xf]
      %v367 = vld [vmem:[%s280 + $0x74] sm:$0xf]
      %v368 = vld [vmem:[%s280 + $0x78] sm:$0xf]
      %v369 = vld [vmem:[%s280 + $0x7c] sm:$0xf]
      %v370 = vunpack.c.l.bf16 %v338
      %v371 = vunpack.c.l.bf16 %v339
      %v372 = vunpack.c.l.bf16 %v340
      %v373 = vunpack.c.l.bf16 %v341
      %v374 = vunpack.c.l.bf16 %v342
      %v375 = vunpack.c.l.bf16 %v343
      %v376 = vunpack.c.l.bf16 %v344
      %v377 = vunpack.c.l.bf16 %v345
      %v378 = vunpack.c.l.bf16 %v346
      %v379 = vunpack.c.l.bf16 %v347
      %v380 = vunpack.c.l.bf16 %v348
      %v381 = vunpack.c.l.bf16 %v349
      %v382 = vunpack.c.l.bf16 %v350
      %v383 = vunpack.c.l.bf16 %v351
      %v384 = vunpack.c.l.bf16 %v352
      %v385 = vunpack.c.l.bf16 %v353
      %v386 = vunpack.c.l.bf16 %v354
      %v387 = vunpack.c.l.bf16 %v355
      %v388 = vunpack.c.l.bf16 %v356
      %v389 = vunpack.c.l.bf16 %v357
      %v390 = vunpack.c.l.bf16 %v358
      %v391 = vunpack.c.l.bf16 %v359
      %v392 = vunpack.c.l.bf16 %v360
      %v393 = vunpack.c.l.bf16 %v361
      %v394 = vunpack.c.l.bf16 %v362
      %v395 = vunpack.c.l.bf16 %v363
      %v396 = vunpack.c.l.bf16 %v364
      %v397 = vunpack.c.l.bf16 %v365
      %v398 = vunpack.c.l.bf16 %v366
      %v399 = vunpack.c.l.bf16 %v367
      %v400 = vunpack.c.l.bf16 %v368
      %v401 = vunpack.c.l.bf16 %v369
      %v403 = vlaneseq
      %v404 = vshrl.u32 %v403, 7
      %v405 = vsub.s32 0, %v404
      %v406 = vrot.slane %v335, %v405
      %v408 = vmul.f32 %v370, %v406
      %v409 = vmul.f32 %v371, %v406
      %v410 = vmul.f32 %v372, %v406
      %v411 = vmul.f32 %v373, %v406
      %v412 = vmul.f32 %v374, %v406
      %v413 = vmul.f32 %v375, %v406
      %v414 = vmul.f32 %v376, %v406
      %v415 = vmul.f32 %v377, %v406
      %v416 = vmul.f32 %v378, %v406
      %v417 = vmul.f32 %v379, %v406
      %v418 = vmul.f32 %v380, %v406
      %v419 = vmul.f32 %v381, %v406
      %v420 = vmul.f32 %v382, %v406
      %v421 = vmul.f32 %v383, %v406
      %v422 = vmul.f32 %v384, %v406
      %v423 = vmul.f32 %v385, %v406
      %v424 = vmul.f32 %v386, %v406
      %v425 = vmul.f32 %v387, %v406
      %v426 = vmul.f32 %v388, %v406
      %v427 = vmul.f32 %v389, %v406
      %v428 = vmul.f32 %v390, %v406
      %v429 = vmul.f32 %v391, %v406
      %v430 = vmul.f32 %v392, %v406
      %v431 = vmul.f32 %v393, %v406
      %v432 = vmul.f32 %v394, %v406
      %v433 = vmul.f32 %v395, %v406
      %v434 = vmul.f32 %v396, %v406
      %v435 = vmul.f32 %v397, %v406
      %v436 = vmul.f32 %v398, %v406
      %v437 = vmul.f32 %v399, %v406
      %v438 = vmul.f32 %v400, %v406
      %v439 = vmul.f32 %v401, %v406
      %v441 = vlaneseq
      %v442 = vshrl.u32 %v441, 7
      %v443 = vsub.s32 0, %v442
      %v444 = vrot.slane %v337, %v443
      %v446 = vadd.f32 %v408, %v444
      %v447 = vadd.f32 %v409, %v444
      %v448 = vadd.f32 %v410, %v444
      %v449 = vadd.f32 %v411, %v444
      %v450 = vadd.f32 %v412, %v444
      %v451 = vadd.f32 %v413, %v444
      %v452 = vadd.f32 %v414, %v444
      %v453 = vadd.f32 %v415, %v444
      %v454 = vadd.f32 %v416, %v444
      %v455 = vadd.f32 %v417, %v444
      %v456 = vadd.f32 %v418, %v444
      %v457 = vadd.f32 %v419, %v444
      %v458 = vadd.f32 %v420, %v444
      %v459 = vadd.f32 %v421, %v444
      %v460 = vadd.f32 %v422, %v444
      %v461 = vadd.f32 %v423, %v444
      %v462 = vadd.f32 %v424, %v444
      %v463 = vadd.f32 %v425, %v444
      %v464 = vadd.f32 %v426, %v444
      %v465 = vadd.f32 %v427, %v444
      %v466 = vadd.f32 %v428, %v444
      %v467 = vadd.f32 %v429, %v444
      %v468 = vadd.f32 %v430, %v444
      %v469 = vadd.f32 %v431, %v444
      %v470 = vadd.f32 %v432, %v444
      %v471 = vadd.f32 %v433, %v444
      %v472 = vadd.f32 %v434, %v444
      %v473 = vadd.f32 %v435, %v444
      %v474 = vadd.f32 %v436, %v444
      %v475 = vadd.f32 %v437, %v444
      %v476 = vadd.f32 %v438, %v444
      %v477 = vadd.f32 %v439, %v444
      %v478 = vmax.f32 %v446, 0.0
      %v479 = vmax.f32 %v447, 0.0
      %v480 = vmax.f32 %v448, 0.0
      %v481 = vmax.f32 %v449, 0.0
      %v482 = vmax.f32 %v450, 0.0
      %v483 = vmax.f32 %v451, 0.0
      %v484 = vmax.f32 %v452, 0.0
      %v485 = vmax.f32 %v453, 0.0
      %v486 = vmax.f32 %v454, 0.0
      %v487 = vmax.f32 %v455, 0.0
      %v488 = vmax.f32 %v456, 0.0
      %v489 = vmax.f32 %v457, 0.0
      %v490 = vmax.f32 %v458, 0.0
      %v491 = vmax.f32 %v459, 0.0
      %v492 = vmax.f32 %v460, 0.0
      %v493 = vmax.f32 %v461, 0.0
      %v494 = vmax.f32 %v462, 0.0
      %v495 = vmax.f32 %v463, 0.0
      %v496 = vmax.f32 %v464, 0.0
      %v497 = vmax.f32 %v465, 0.0
      %v498 = vmax.f32 %v466, 0.0
      %v499 = vmax.f32 %v467, 0.0
      %v500 = vmax.f32 %v468, 0.0
      %v501 = vmax.f32 %v469, 0.0
      %v502 = vmax.f32 %v470, 0.0
      %v503 = vmax.f32 %v471, 0.0
      %v504 = vmax.f32 %v472, 0.0
      %v505 = vmax.f32 %v473, 0.0
      %v506 = vmax.f32 %v474, 0.0
      %v507 = vmax.f32 %v475, 0.0
      %v508 = vmax.f32 %v476, 0.0
      %v509 = vmax.f32 %v477, 0.0
      %v510 = vpack.c.bf16 %v479, %v478
      %v511 = vpack.c.bf16 %v481, %v480
      %v512 = vpack.c.bf16 %v483, %v482
      %v513 = vpack.c.bf16 %v485, %v484
      %v514 = vpack.c.bf16 %v487, %v486
      %v515 = vpack.c.bf16 %v489, %v488
      %v516 = vpack.c.bf16 %v491, %v490
      %v517 = vpack.c.bf16 %v493, %v492
      %v518 = vpack.c.bf16 %v495, %v494
      %v519 = vpack.c.bf16 %v497, %v496
      %v520 = vpack.c.bf16 %v499, %v498
      %v521 = vpack.c.bf16 %v501, %v500
      %v522 = vpack.c.bf16 %v503, %v502
      %v523 = vpack.c.bf16 %v505, %v504
      %v524 = vpack.c.bf16 %v507, %v506
      %v525 = vpack.c.bf16 %v509, %v508
      %v527 = vshrl.u32 0, 16
      %v529 = vrot.slane %v527, 7
      %v530 = vshll.u32 0, 16
      %v532 = vor.u32 %v529, %v530
      %v534 = vshrl.u32 %v510, 16
      %v536 = vrot.slane %v534, 7
      %v537 = vshll.u32 %v510, 16
      %v539 = vor.u32 %v536, %v537
      %v541 = vshrl.u32 %v511, 16
      %v543 = vrot.slane %v541, 7
      %v544 = vshll.u32 %v511, 16
      %v546 = vor.u32 %v543, %v544
      %v548 = vshrl.u32 %v512, 16
      %v550 = vrot.slane %v548, 7
      %v551 = vshll.u32 %v512, 16
      %v553 = vor.u32 %v550, %v551
      %v555 = vshrl.u32 %v513, 16
      %v557 = vrot.slane %v555, 7
      %v558 = vshll.u32 %v513, 16
      %v560 = vor.u32 %v557, %v558
      %v562 = vshrl.u32 %v514, 16
      %v564 = vrot.slane %v562, 7
      %v565 = vshll.u32 %v514, 16
      %v567 = vor.u32 %v564, %v565
      %v569 = vshrl.u32 %v515, 16
      %v571 = vrot.slane %v569, 7
      %v572 = vshll.u32 %v515, 16
      %v574 = vor.u32 %v571, %v572
      %v576 = vshrl.u32 %v516, 16
      %v578 = vrot.slane %v576, 7
      %v579 = vshll.u32 %v516, 16
      %v581 = vor.u32 %v578, %v579
      %v583 = vshrl.u32 %v517, 16
      %v585 = vrot.slane %v583, 7
      %v586 = vshll.u32 %v517, 16
      %v588 = vor.u32 %v585, %v586
      %v590 = vshrl.u32 %v518, 16
      %v592 = vrot.slane %v590, 7
      %v593 = vshll.u32 %v518, 16
      %v595 = vor.u32 %v592, %v593
      %v597 = vshrl.u32 %v519, 16
      %v599 = vrot.slane %v597, 7
      %v600 = vshll.u32 %v519, 16
      %v602 = vor.u32 %v599, %v600
      %v604 = vshrl.u32 %v520, 16
      %v606 = vrot.slane %v604, 7
      %v607 = vshll.u32 %v520, 16
      %v609 = vor.u32 %v606, %v607
      %v611 = vshrl.u32 %v521, 16
      %v613 = vrot.slane %v611, 7
      %v614 = vshll.u32 %v521, 16
      %v616 = vor.u32 %v613, %v614
      %v618 = vshrl.u32 %v522, 16
      %v620 = vrot.slane %v618, 7
      %v621 = vshll.u32 %v522, 16
      %v623 = vor.u32 %v620, %v621
      %v625 = vshrl.u32 %v523, 16
      %v627 = vrot.slane %v625, 7
      %v628 = vshll.u32 %v523, 16
      %v630 = vor.u32 %v627, %v628
      %v632 = vshrl.u32 %v524, 16
      %v634 = vrot.slane %v632, 7
      %v635 = vshll.u32 %v524, 16
      %v637 = vor.u32 %v634, %v635
      %vm654 = vcmask 1040384
      %vm655 = vsmask.f32 256
      %vm656 = vmand %vm654, %vm655
      %v657 = vsel %vm656, 0, %v532
      %v658 = vsel %vm656, 0, %v539
      %v659 = vsel %vm656, 0, %v546
      %v660 = vsel %vm656, 0, %v553
      %v661 = vsel %vm656, 0, %v560
      %v662 = vsel %vm656, 0, %v567
      %v663 = vsel %vm656, 0, %v574
      %v664 = vsel %vm656, 0, %v581
      %v665 = vsel %vm656, 0, %v588
      %v666 = vsel %vm656, 0, %v595
      %v667 = vsel %vm656, 0, %v602
      %v668 = vsel %vm656, 0, %v609
      %v669 = vsel %vm656, 0, %v616
      %v670 = vsel %vm656, 0, %v623
      %v671 = vsel %vm656, 0, %v630
      %v672 = vsel %vm656, 0, %v637
      %v673 = vrot.slane %v530, 1
      %v674 = vor.u32 %v527, %v673
      %v675 = vrot.slane %v537, 1
      %v676 = vor.u32 %v534, %v675
      %v677 = vrot.slane %v544, 1
      %v678 = vor.u32 %v541, %v677
      %v679 = vrot.slane %v551, 1
      %v680 = vor.u32 %v548, %v679
      %v681 = vrot.slane %v558, 1
      %v682 = vor.u32 %v555, %v681
      %v683 = vrot.slane %v565, 1
      %v684 = vor.u32 %v562, %v683
      %v685 = vrot.slane %v572, 1
      %v686 = vor.u32 %v569, %v685
      %v687 = vrot.slane %v579, 1
      %v688 = vor.u32 %v576, %v687
      %v689 = vrot.slane %v586, 1
      %v690 = vor.u32 %v583, %v689
      %v691 = vrot.slane %v593, 1
      %v692 = vor.u32 %v590, %v691
      %v693 = vrot.slane %v600, 1
      %v694 = vor.u32 %v597, %v693
      %v695 = vrot.slane %v607, 1
      %v696 = vor.u32 %v604, %v695
      %v697 = vrot.slane %v614, 1
      %v698 = vor.u32 %v611, %v697
      %v699 = vrot.slane %v621, 1
      %v700 = vor.u32 %v618, %v699
      %v701 = vrot.slane %v628, 1
      %v702 = vor.u32 %v625, %v701
      %v703 = vrot.slane %v635, 1
      %v704 = vor.u32 %v632, %v703
      %vm721 = vcmask 1047552
      %vm722 = vsmask.f32 7424
      %vm723 = vmand %vm721, %vm722
      %v724 = vsel %vm723, %v674, 0
      %v725 = vsel %vm723, %v676, 0
      %v726 = vsel %vm723, %v678, 0
      %v727 = vsel %vm723, %v680, 0
      %v728 = vsel %vm723, %v682, 0
      %v729 = vsel %vm723, %v684, 0
      %v730 = vsel %vm723, %v686, 0
      %v731 = vsel %vm723, %v688, 0
      %v732 = vsel %vm723, %v690, 0
      %v733 = vsel %vm723, %v692, 0
      %v734 = vsel %vm723, %v694, 0
      %v735 = vsel %vm723, %v696, 0
      %v736 = vsel %vm723, %v698, 0
      %v737 = vsel %vm723, %v700, 0
      %v738 = vsel %vm723, %v702, 0
      %v739 = vsel %vm723, %v704, 0
      %v740 = vld [vmem:[%s4] sm:$0xf]
      %v741 = vld [vmem:[%s4 + $0x4] sm:$0xf]
      %v742 = vld [vmem:[%s4 + $0x8] sm:$0xf]
      %v743 = vld [vmem:[%s4 + $0xc] sm:$0xf]
      %v744 = vld [vmem:[%s4 + $0x10] sm:$0xf]
      %v745 = vld [vmem:[%s4 + $0x14] sm:$0xf]
      %v746 = vld [vmem:[%s4 + $0x18] sm:$0xf]
      %v747 = vld [vmem:[%s4 + $0x1c] sm:$0xf]
      %v748 = vld [vmem:[%s4 + $0x20] sm:$0xf]
      %v749 = vld [vmem:[%s4 + $0x24] sm:$0xf]
      %v750 = vld [vmem:[%s4 + $0x28] sm:$0xf]
      %v751 = vld [vmem:[%s4 + $0x2c] sm:$0xf]
      %v752 = vld [vmem:[%s4 + $0x30] sm:$0xf]
      %v753 = vld [vmem:[%s4 + $0x34] sm:$0xf]
      %v754 = vld [vmem:[%s4 + $0x38] sm:$0xf]
      %v755 = vld [vmem:[%s4 + $0x3c] sm:$0xf]
      %v756 = vld [vmem:[%s4 + $0x40] sm:$0xf]
      %v757 = vld [vmem:[%s4 + $0x44] sm:$0xf]
      %v758 = vld [vmem:[%s4 + $0x48] sm:$0xf]
      %v759 = vld [vmem:[%s4 + $0x4c] sm:$0xf]
      %v760 = vld [vmem:[%s4 + $0x50] sm:$0xf]
      %v761 = vld [vmem:[%s4 + $0x54] sm:$0xf]
      %v762 = vld [vmem:[%s4 + $0x58] sm:$0xf]
      %v763 = vld [vmem:[%s4 + $0x5c] sm:$0xf]
      %v764 = vld [vmem:[%s4 + $0x60] sm:$0xf]
      %v765 = vld [vmem:[%s4 + $0x64] sm:$0xf]
      %v766 = vld [vmem:[%s4 + $0x68] sm:$0xf]
      %v767 = vld [vmem:[%s4 + $0x6c] sm:$0xf]
      %v768 = vld [vmem:[%s4 + $0x70] sm:$0xf]
      %v769 = vld [vmem:[%s4 + $0x74] sm:$0xf]
      %v770 = vld [vmem:[%s4 + $0x78] sm:$0xf]
      %v771 = vld [vmem:[%s4 + $0x7c] sm:$0xf]
      %v772 = vld [vmem:[%s4 + $0x80] sm:$0xf]
      %v773 = vld [vmem:[%s4 + $0x84] sm:$0xf]
      %v774 = vld [vmem:[%s4 + $0x88] sm:$0xf]
      %v775 = vld [vmem:[%s4 + $0x8c] sm:$0xf]
      %v776 = vld [vmem:[%s4 + $0x90] sm:$0xf]
      %v777 = vld [vmem:[%s4 + $0x94] sm:$0xf]
      %v778 = vld [vmem:[%s4 + $0x98] sm:$0xf]
      %v779 = vld [vmem:[%s4 + $0x9c] sm:$0xf]
      %v780 = vld [vmem:[%s4 + $0xa0] sm:$0xf]
      %v781 = vld [vmem:[%s4 + $0xa4] sm:$0xf]
      %v782 = vld [vmem:[%s4 + $0xa8] sm:$0xf]
      %v783 = vld [vmem:[%s4 + $0xac] sm:$0xf]
      %v784 = vld [vmem:[%s4 + $0xb0] sm:$0xf]
      %v785 = vld [vmem:[%s4 + $0xb4] sm:$0xf]
      %v786 = vld [vmem:[%s4 + $0xb8] sm:$0xf]
      %v787 = vld [vmem:[%s4 + $0xbc] sm:$0xf]
      %v789 = vshrl.u32 %v525, 16
      %v791 = vrot.slane %v789, 7
      %v792 = vshll.u32 %v525, 16
      %v794 = vor.u32 %v791, %v792
      %v796 = vsel %vm656, 0, %v794
      %v797 = vrot.slane %v792, 1
      %v798 = vor.u32 %v789, %v797
      %v800 = vsel %vm723, %v798, 0
      %s801 = scalar_lea.vmem %s4, 192
      %v802 = vld [vmem:[%s801] sm:$0xf]
      %v803 = vld [vmem:[%s801 + $0x4] sm:$0xf]
      %v804 = vld [vmem:[%s801 + $0x8] sm:$0xf]
      %v805 = vld [vmem:[%s801 + $0xc] sm:$0xf]
      %v806 = vld [vmem:[%s801 + $0x10] sm:$0xf]
      %v807 = vld [vmem:[%s801 + $0x14] sm:$0xf]
      %v808 = vld [vmem:[%s801 + $0x18] sm:$0xf]
      %v809 = vld [vmem:[%s801 + $0x1c] sm:$0xf]
      %v810 = vld [vmem:[%s801 + $0x20] sm:$0xf]
      %v811 = vld [vmem:[%s801 + $0x24] sm:$0xf]
      %v812 = vld [vmem:[%s801 + $0x28] sm:$0xf]
      %v813 = vld [vmem:[%s801 + $0x2c] sm:$0xf]
      %v814 = vld [vmem:[%s801 + $0x30] sm:$0xf]
      %v815 = vld [vmem:[%s801 + $0x34] sm:$0xf]
      %v816 = vld [vmem:[%s801 + $0x38] sm:$0xf]
      %v817 = vld [vmem:[%s801 + $0x3c] sm:$0xf]
      %v818 = vld [vmem:[%s801 + $0x40] sm:$0xf]
      %v819 = vld [vmem:[%s801 + $0x44] sm:$0xf]
      %v820 = vld [vmem:[%s801 + $0x48] sm:$0xf]
      %v821 = vld [vmem:[%s801 + $0x4c] sm:$0xf]
      %v822 = vld [vmem:[%s801 + $0x50] sm:$0xf]
      %v823 = vld [vmem:[%s801 + $0x54] sm:$0xf]
      %v824 = vld [vmem:[%s801 + $0x58] sm:$0xf]
      %v825 = vld [vmem:[%s801 + $0x5c] sm:$0xf]
      %v826 = vld [vmem:[%s801 + $0x60] sm:$0xf]
      %v827 = vld [vmem:[%s801 + $0x64] sm:$0xf]
      %v828 = vld [vmem:[%s801 + $0x68] sm:$0xf]
      %v829 = vld [vmem:[%s801 + $0x6c] sm:$0xf]
      %v830 = vld [vmem:[%s801 + $0x70] sm:$0xf]
      %v831 = vld [vmem:[%s801 + $0x74] sm:$0xf]
      %v832 = vld [vmem:[%s801 + $0x78] sm:$0xf]
      %v833 = vld [vmem:[%s801 + $0x7c] sm:$0xf]
      %v834 = vld [vmem:[%s801 + $0x80] sm:$0xf]
      %v835 = vld [vmem:[%s801 + $0x84] sm:$0xf]
      %v836 = vld [vmem:[%s801 + $0x88] sm:$0xf]
      %v837 = vld [vmem:[%s801 + $0x8c] sm:$0xf]
      %v838 = vld [vmem:[%s801 + $0x90] sm:$0xf]
      %v839 = vld [vmem:[%s801 + $0x94] sm:$0xf]
      %v840 = vld [vmem:[%s801 + $0x98] sm:$0xf]
      %v841 = vld [vmem:[%s801 + $0x9c] sm:$0xf]
      %v842 = vld [vmem:[%s801 + $0xa0] sm:$0xf]
      %v843 = vld [vmem:[%s801 + $0xa4] sm:$0xf]
      %v844 = vld [vmem:[%s801 + $0xa8] sm:$0xf]
      %v845 = vld [vmem:[%s801 + $0xac] sm:$0xf]
      %v846 = vld [vmem:[%s801 + $0xb0] sm:$0xf]
      %v847 = vld [vmem:[%s801 + $0xb4] sm:$0xf]
      %v848 = vld [vmem:[%s801 + $0xb8] sm:$0xf]
      %v849 = vld [vmem:[%s801 + $0xbc] sm:$0xf]
      %v898 = vunpack.c.l.b16 %v802
      %v899 = vunpack.c.l.b16 %v803
      %v900 = vunpack.c.l.b16 %v804
      %v901 = vunpack.c.l.b16 %v805
      %v902 = vunpack.c.l.b16 %v806
      %v903 = vunpack.c.l.b16 %v807
      %v904 = vunpack.c.l.b16 %v808
      %v905 = vunpack.c.l.b16 %v809
      %v906 = vunpack.c.l.b16 %v810
      %v907 = vunpack.c.l.b16 %v811
      %v908 = vunpack.c.l.b16 %v812
      %v909 = vunpack.c.l.b16 %v813
      %v910 = vunpack.c.l.b16 %v814
      %v911 = vunpack.c.l.b16 %v815
      %v912 = vunpack.c.l.b16 %v816
      %v913 = vunpack.c.l.b16 %v817
      %v914 = vunpack.c.l.b16 %v818
      %v915 = vunpack.c.l.b16 %v819
      %v916 = vunpack.c.l.b16 %v820
      %v917 = vunpack.c.l.b16 %v821
      %v918 = vunpack.c.l.b16 %v822
      %v919 = vunpack.c.l.b16 %v823
      %v920 = vunpack.c.l.b16 %v824
      %v921 = vunpack.c.l.b16 %v825
      %v922 = vunpack.c.l.b16 %v826
      %v923 = vunpack.c.l.b16 %v827
      %v924 = vunpack.c.l.b16 %v828
      %v925 = vunpack.c.l.b16 %v829
      %v926 = vunpack.c.l.b16 %v830
      %v927 = vunpack.c.l.b16 %v831
      %v928 = vunpack.c.l.b16 %v832
      %v929 = vunpack.c.l.b16 %v833
      %v930 = vunpack.c.l.b16 %v834
      %v931 = vunpack.c.l.b16 %v835
      %v932 = vunpack.c.l.b16 %v836
      %v933 = vunpack.c.l.b16 %v837
      %v934 = vunpack.c.l.b16 %v838
      %v935 = vunpack.c.l.b16 %v839
      %v936 = vunpack.c.l.b16 %v840
      %v937 = vunpack.c.l.b16 %v841
      %v938 = vunpack.c.l.b16 %v842
      %v939 = vunpack.c.l.b16 %v843
      %v940 = vunpack.c.l.b16 %v844
      %v941 = vunpack.c.l.b16 %v845
      %v942 = vunpack.c.l.b16 %v846
      %v943 = vunpack.c.l.b16 %v847
      %v944 = vunpack.c.l.b16 %v848
      %v945 = vunpack.c.l.b16 %v849
      %v946 = vpack.c.b16 %v899, %v898
      %v947 = vpack.c.b16 %v901, %v900
      %v948 = vpack.c.b16 %v903, %v902
      %v949 = vpack.c.b16 %v905, %v904
      %v950 = vpack.c.b16 %v907, %v906
      %v951 = vpack.c.b16 %v909, %v908
      %v952 = vpack.c.b16 %v911, %v910
      %v953 = vpack.c.b16 %v913, %v912
      %v954 = vpack.c.b16 %v915, %v914
      %v955 = vpack.c.b16 %v917, %v916
      %v956 = vpack.c.b16 %v919, %v918
      %v957 = vpack.c.b16 %v921, %v920
      %v958 = vpack.c.b16 %v923, %v922
      %v959 = vpack.c.b16 %v925, %v924
      %v960 = vpack.c.b16 %v927, %v926
      %v961 = vpack.c.b16 %v929, %v928
      %v962 = vpack.c.b16 %v931, %v930
      %v963 = vpack.c.b16 %v933, %v932
      %v964 = vpack.c.b16 %v935, %v934
      %v965 = vpack.c.b16 %v937, %v936
      %v966 = vpack.c.b16 %v939, %v938
      %v967 = vpack.c.b16 %v941, %v940
      %v968 = vpack.c.b16 %v943, %v942
      %v969 = vpack.c.b16 %v945, %v944
      %994 = vmatprep.subr.bf16.mxu0 0
      %995 = vmatpush1.bf16.msra.mxu0 %v953
      %996 = vmatprep.subr.bf16.mxu0 0
      %997 = vmatpush1.bf16.msra.mxu0 %v952
      %998 = vmatprep.subr.bf16.mxu0 0
      %999 = vmatpush1.bf16.msra.mxu0 %v951
      %1000 = vmatprep.subr.bf16.mxu0 0
      %1001 = vmatpush1.bf16.msra.mxu0 %v950
      %1002 = vmatprep.subr.bf16.mxu0 0
      %1003 = vmatpush1.bf16.msra.mxu0 %v949
      %1004 = vmatprep.subr.bf16.mxu0 0
      %1005 = vmatpush1.bf16.msra.mxu0 %v948
      %1006 = vmatprep.subr.bf16.mxu0 0
      %1007 = vmatpush1.bf16.msra.mxu0 %v947
      %1008 = vmatprep.subr.bf16.mxu0 0
      %1009 = vmatpush1.bf16.msra.mxu0 %v946
      %1010 = vmatprep.subr.bf16.mxu0 0
      %1011 = vmatpush2.bf16.msra.mxu0 %v961
      %1012 = vmatprep.subr.bf16.mxu0 0
      %1013 = vmatpush2.bf16.msra.mxu0 %v960
      %1014 = vmatprep.subr.bf16.mxu0 0
      %1015 = vmatpush2.bf16.msra.mxu0 %v959
      %1016 = vmatprep.subr.bf16.mxu0 0
      %1017 = vmatpush2.bf16.msra.mxu0 %v958
      %1018 = vmatprep.subr.bf16.mxu0 0
      %1019 = vmatpush2.bf16.msra.mxu0 %v957
      %1020 = vmatprep.subr.bf16.mxu0 0
      %1021 = vmatpush2.bf16.msra.mxu0 %v956
      %1022 = vmatprep.subr.bf16.mxu0 0
      %1023 = vmatpush2.bf16.msra.mxu0 %v955
      %1024 = vmatprep.subr.bf16.mxu0 0
      %1025 = vmatpush2.bf16.msra.mxu0 %v954
      %1026 = vmatprep.mubr.bf16.mxu0 %v510
      %1027 = vmatmul.mubr.bf16.gmra.mxu0 %v658
      %v1028 = vpop.f32.mrf.mxu0
      %v1029 = vadd.f32 0.0, %v1028
      %v1030 = vpop.f32.mrf.mxu0
      %v1031 = vpop.f32.mrf.mxu0
      %v1032 = vadd.f32 0.0, %v1031
      %v1033 = vpop.f32.mrf.mxu0
      %1034 = vmatprep.mubr.bf16.mxu0 %v511
      %1035 = vmatmul.mubr.bf16.gmra.mxu0 %v659
      %v1036 = vpop.f32.mrf.mxu0
      %v1037 = vadd.f32 0.0, %v1036
      %v1038 = vpop.f32.mrf.mxu0
      %v1039 = vpop.f32.mrf.mxu0
      %v1040 = vadd.f32 0.0, %v1039
      %v1041 = vpop.f32.mrf.mxu0
      %1042 = vmatprep.mubr.bf16.mxu0 %v512
      %1043 = vmatmul.mubr.bf16.gmra.mxu0 %v660
      %v1044 = vpop.f32.mrf.mxu0
      %v1045 = vadd.f32 0.0, %v1044
      %v1046 = vpop.f32.mrf.mxu0
      %v1047 = vpop.f32.mrf.mxu0
      %v1048 = vadd.f32 0.0, %v1047
      %v1049 = vpop.f32.mrf.mxu0
      %1050 = vmatprep.mubr.bf16.mxu0 %v513
      %1051 = vmatmul.mubr.bf16.gmra.mxu0 %v661
      %v1052 = vpop.f32.mrf.mxu0
      %v1053 = vadd.f32 0.0, %v1052
      %v1054 = vpop.f32.mrf.mxu0
      %v1055 = vpop.f32.mrf.mxu0
      %v1056 = vadd.f32 0.0, %v1055
      %v1057 = vpop.f32.mrf.mxu0
      %1058 = vmatprep.mubr.bf16.mxu0 %v514
      %1059 = vmatmul.mubr.bf16.gmra.mxu0 %v662
      %v1060 = vpop.f32.mrf.mxu0
      %v1061 = vadd.f32 0.0, %v1060
      %v1062 = vpop.f32.mrf.mxu0
      %v1063 = vpop.f32.mrf.mxu0
      %v1064 = vadd.f32 0.0, %v1063
      %v1065 = vpop.f32.mrf.mxu0
      %1066 = vmatprep.mubr.bf16.mxu0 %v515
      %1067 = vmatmul.mubr.bf16.gmra.mxu0 %v663
      %v1068 = vpop.f32.mrf.mxu0
      %v1069 = vadd.f32 0.0, %v1068
      %v1070 = vpop.f32.mrf.mxu0
      %v1071 = vpop.f32.mrf.mxu0
      %v1072 = vadd.f32 0.0, %v1071
      %v1073 = vpop.f32.mrf.mxu0
      %1074 = vmatprep.mubr.bf16.mxu0 %v516
      %1075 = vmatmul.mubr.bf16.gmra.mxu0 %v664
      %v1076 = vpop.f32.mrf.mxu0
      %v1077 = vadd.f32 0.0, %v1076
      %v1078 = vpop.f32.mrf.mxu0
      %v1079 = vpop.f32.mrf.mxu0
      %v1080 = vadd.f32 0.0, %v1079
      %v1081 = vpop.f32.mrf.mxu0
      %1082 = vmatprep.mubr.bf16.mxu0 %v517
      %1083 = vmatmul.mubr.bf16.gmra.mxu0 %v665
      %v1084 = vpop.f32.mrf.mxu0
      %v1085 = vadd.f32 0.0, %v1084
      %v1086 = vpop.f32.mrf.mxu0
      %v1087 = vpop.f32.mrf.mxu0
      %v1088 = vadd.f32 0.0, %v1087
      %v1089 = vpop.f32.mrf.mxu0
      %1090 = vmatprep.mubr.bf16.mxu0 %v518
      %1091 = vmatmul.mubr.bf16.gmra.mxu0 %v666
      %v1092 = vpop.f32.mrf.mxu0
      %v1093 = vadd.f32 0.0, %v1092
      %v1094 = vpop.f32.mrf.mxu0
      %v1095 = vpop.f32.mrf.mxu0
      %v1096 = vadd.f32 0.0, %v1095
      %v1097 = vpop.f32.mrf.mxu0
      %1098 = vmatprep.mubr.bf16.mxu0 %v519
      %1099 = vmatmul.mubr.bf16.gmra.mxu0 %v667
      %v1100 = vpop.f32.mrf.mxu0
      %v1101 = vadd.f32 0.0, %v1100
      %v1102 = vpop.f32.mrf.mxu0
      %v1103 = vpop.f32.mrf.mxu0
      %v1104 = vadd.f32 0.0, %v1103
      %v1105 = vpop.f32.mrf.mxu0
      %1106 = vmatprep.mubr.bf16.mxu0 %v520
      %1107 = vmatmul.mubr.bf16.gmra.mxu0 %v668
      %v1108 = vpop.f32.mrf.mxu0
      %v1109 = vadd.f32 0.0, %v1108
      %v1110 = vpop.f32.mrf.mxu0
      %v1111 = vpop.f32.mrf.mxu0
      %v1112 = vadd.f32 0.0, %v1111
      %v1113 = vpop.f32.mrf.mxu0
      %1114 = vmatprep.mubr.bf16.mxu0 %v521
      %1115 = vmatmul.mubr.bf16.gmra.mxu0 %v669
      %v1116 = vpop.f32.mrf.mxu0
      %v1117 = vadd.f32 0.0, %v1116
      %v1118 = vpop.f32.mrf.mxu0
      %v1119 = vpop.f32.mrf.mxu0
      %v1120 = vadd.f32 0.0, %v1119
      %v1121 = vpop.f32.mrf.mxu0
      %1122 = vmatprep.mubr.bf16.mxu0 %v522
      %1123 = vmatmul.mubr.bf16.gmra.mxu0 %v670
      %v1124 = vpop.f32.mrf.mxu0
      %v1125 = vadd.f32 0.0, %v1124
      %v1126 = vpop.f32.mrf.mxu0
      %v1127 = vpop.f32.mrf.mxu0
      %v1128 = vadd.f32 0.0, %v1127
      %v1129 = vpop.f32.mrf.mxu0
      %1130 = vmatprep.mubr.bf16.mxu0 %v523
      %1131 = vmatmul.mubr.bf16.gmra.mxu0 %v671
      %v1132 = vpop.f32.mrf.mxu0
      %v1133 = vadd.f32 0.0, %v1132
      %v1134 = vpop.f32.mrf.mxu0
      %v1135 = vpop.f32.mrf.mxu0
      %v1136 = vadd.f32 0.0, %v1135
      %v1137 = vpop.f32.mrf.mxu0
      %1138 = vmatprep.mubr.bf16.mxu0 %v524
      %1139 = vmatmul.mubr.bf16.gmra.mxu0 %v672
      %v1140 = vpop.f32.mrf.mxu0
      %v1141 = vadd.f32 0.0, %v1140
      %v1142 = vpop.f32.mrf.mxu0
      %v1143 = vpop.f32.mrf.mxu0
      %v1144 = vadd.f32 0.0, %v1143
      %v1145 = vpop.f32.mrf.mxu0
      %1146 = vmatprep.mubr.bf16.mxu0 %v525
      %1147 = vmatmul.mubr.bf16.gmra.mxu0 %v796
      %v1148 = vpop.f32.mrf.mxu0
      %v1149 = vadd.f32 0.0, %v1148
      %v1150 = vpop.f32.mrf.mxu0
      %v1151 = vpop.f32.mrf.mxu0
      %v1152 = vadd.f32 0.0, %v1151
      %v1153 = vpop.f32.mrf.mxu0
      %1154 = vdwg.mxu0
      %1155 = vmatprep.subr.bf16.mxu0 0
      %1156 = vmatpush1.bf16.msra.mxu0 %v969
      %1157 = vmatprep.subr.bf16.mxu0 0
      %1158 = vmatpush1.bf16.msra.mxu0 %v968
      %1159 = vmatprep.subr.bf16.mxu0 0
      %1160 = vmatpush1.bf16.msra.mxu0 %v967
      %1161 = vmatprep.subr.bf16.mxu0 0
      %1162 = vmatpush1.bf16.msra.mxu0 %v966
      %1163 = vmatprep.subr.bf16.mxu0 0
      %1164 = vmatpush1.bf16.msra.mxu0 %v965
      %1165 = vmatprep.subr.bf16.mxu0 0
      %1166 = vmatpush1.bf16.msra.mxu0 %v964
      %1167 = vmatprep.subr.bf16.mxu0 0
      %1168 = vmatpush1.bf16.msra.mxu0 %v963
      %1169 = vmatprep.subr.bf16.mxu0 0
      %1170 = vmatpush1.bf16.msra.mxu0 %v962
      %1171 = vmatprep.subr.bf16.mxu0 0
      %1172 = vmatpush2.bf16.msra.mxu0 0
      %1173 = vmatprep.subr.bf16.mxu0 0
      %1174 = vmatpush2.bf16.msra.mxu0 0
      %1175 = vmatprep.subr.bf16.mxu0 0
      %1176 = vmatpush2.bf16.msra.mxu0 0
      %1177 = vmatprep.subr.bf16.mxu0 0
      %1178 = vmatpush2.bf16.msra.mxu0 0
      %1179 = vmatprep.subr.bf16.mxu0 0
      %1180 = vmatpush2.bf16.msra.mxu0 0
      %1181 = vmatprep.subr.bf16.mxu0 0
      %1182 = vmatpush2.bf16.msra.mxu0 0
      %1183 = vmatprep.subr.bf16.mxu0 0
      %1184 = vmatpush2.bf16.msra.mxu0 0
      %1185 = vmatprep.subr.bf16.mxu0 0
      %1186 = vmatpush2.bf16.msra.mxu0 0
      %1187 = vmatprep.mubr.bf16.mxu0 0
      %1188 = vmatmul.mubr.bf16.gmra.mxu0 %v725
      %v1189 = vpop.f32.mrf.mxu0
      %v1190 = vadd.f32 %v1029, %v1189
      %v1191 = vpop.f32.mrf.mxu0
      %v1192 = vpop.f32.mrf.mxu0
      %v1193 = vadd.f32 %v1032, %v1192
      %v1194 = vpop.f32.mrf.mxu0
      %1195 = vmatprep.mubr.bf16.mxu0 0
      %1196 = vmatmul.mubr.bf16.gmra.mxu0 %v726
      %v1197 = vpop.f32.mrf.mxu0
      %v1198 = vadd.f32 %v1037, %v1197
      %v1199 = vpop.f32.mrf.mxu0
      %v1200 = vpop.f32.mrf.mxu0
      %v1201 = vadd.f32 %v1040, %v1200
      %v1202 = vpop.f32.mrf.mxu0
      %1203 = vmatprep.mubr.bf16.mxu0 0
      %1204 = vmatmul.mubr.bf16.gmra.mxu0 %v727
      %v1205 = vpop.f32.mrf.mxu0
      %v1206 = vadd.f32 %v1045, %v1205
      %v1207 = vpop.f32.mrf.mxu0
      %v1208 = vpop.f32.mrf.mxu0
      %v1209 = vadd.f32 %v1048, %v1208
      %v1210 = vpop.f32.mrf.mxu0
      %1211 = vmatprep.mubr.bf16.mxu0 0
      %1212 = vmatmul.mubr.bf16.gmra.mxu0 %v728
      %v1213 = vpop.f32.mrf.mxu0
      %v1214 = vadd.f32 %v1053, %v1213
      %v1215 = vpop.f32.mrf.mxu0
      %v1216 = vpop.f32.mrf.mxu0
      %v1217 = vadd.f32 %v1056, %v1216
      %v1218 = vpop.f32.mrf.mxu0
      %1219 = vmatprep.mubr.bf16.mxu0 0
      %1220 = vmatmul.mubr.bf16.gmra.mxu0 %v729
      %v1221 = vpop.f32.mrf.mxu0
      %v1222 = vadd.f32 %v1061, %v1221
      %v1223 = vpop.f32.mrf.mxu0
      %v1224 = vpop.f32.mrf.mxu0
      %v1225 = vadd.f32 %v1064, %v1224
      %v1226 = vpop.f32.mrf.mxu0
      %1227 = vmatprep.mubr.bf16.mxu0 0
      %1228 = vmatmul.mubr.bf16.gmra.mxu0 %v730
      %v1229 = vpop.f32.mrf.mxu0
      %v1230 = vadd.f32 %v1069, %v1229
      %v1231 = vpop.f32.mrf.mxu0
      %v1232 = vpop.f32.mrf.mxu0
      %v1233 = vadd.f32 %v1072, %v1232
      %v1234 = vpop.f32.mrf.mxu0
      %1235 = vmatprep.mubr.bf16.mxu0 0
      %1236 = vmatmul.mubr.bf16.gmra.mxu0 %v731
      %v1237 = vpop.f32.mrf.mxu0
      %v1238 = vadd.f32 %v1077, %v1237
      %v1239 = vpop.f32.mrf.mxu0
      %v1240 = vpop.f32.mrf.mxu0
      %v1241 = vadd.f32 %v1080, %v1240
      %v1242 = vpop.f32.mrf.mxu0
      %1243 = vmatprep.mubr.bf16.mxu0 0
      %1244 = vmatmul.mubr.bf16.gmra.mxu0 %v732
      %v1245 = vpop.f32.mrf.mxu0
      %v1246 = vadd.f32 %v1085, %v1245
      %v1247 = vpop.f32.mrf.mxu0
      %v1248 = vpop.f32.mrf.mxu0
      %v1249 = vadd.f32 %v1088, %v1248
      %v1250 = vpop.f32.mrf.mxu0
      %1251 = vmatprep.mubr.bf16.mxu0 0
      %1252 = vmatmul.mubr.bf16.gmra.mxu0 %v733
      %v1253 = vpop.f32.mrf.mxu0
      %v1254 = vadd.f32 %v1093, %v1253
      %v1255 = vpop.f32.mrf.mxu0
      %v1256 = vpop.f32.mrf.mxu0
      %v1257 = vadd.f32 %v1096, %v1256
      %v1258 = vpop.f32.mrf.mxu0
      %1259 = vmatprep.mubr.bf16.mxu0 0
      %1260 = vmatmul.mubr.bf16.gmra.mxu0 %v734
      %v1261 = vpop.f32.mrf.mxu0
      %v1262 = vadd.f32 %v1101, %v1261
      %v1263 = vpop.f32.mrf.mxu0
      %v1264 = vpop.f32.mrf.mxu0
      %v1265 = vadd.f32 %v1104, %v1264
      %v1266 = vpop.f32.mrf.mxu0
      %1267 = vmatprep.mubr.bf16.mxu0 0
      %1268 = vmatmul.mubr.bf16.gmra.mxu0 %v735
      %v1269 = vpop.f32.mrf.mxu0
      %v1270 = vadd.f32 %v1109, %v1269
      %v1271 = vpop.f32.mrf.mxu0
      %v1272 = vpop.f32.mrf.mxu0
      %v1273 = vadd.f32 %v1112, %v1272
      %v1274 = vpop.f32.mrf.mxu0
      %1275 = vmatprep.mubr.bf16.mxu0 0
      %1276 = vmatmul.mubr.bf16.gmra.mxu0 %v736
      %v1277 = vpop.f32.mrf.mxu0
      %v1278 = vadd.f32 %v1117, %v1277
      %v1279 = vpop.f32.mrf.mxu0
      %v1280 = vpop.f32.mrf.mxu0
      %v1281 = vadd.f32 %v1120, %v1280
      %v1282 = vpop.f32.mrf.mxu0
      %1283 = vmatprep.mubr.bf16.mxu0 0
      %1284 = vmatmul.mubr.bf16.gmra.mxu0 %v737
      %v1285 = vpop.f32.mrf.mxu0
      %v1286 = vadd.f32 %v1125, %v1285
      %v1287 = vpop.f32.mrf.mxu0
      %v1288 = vpop.f32.mrf.mxu0
      %v1289 = vadd.f32 %v1128, %v1288
      %v1290 = vpop.f32.mrf.mxu0
      %1291 = vmatprep.mubr.bf16.mxu0 0
      %1292 = vmatmul.mubr.bf16.gmra.mxu0 %v738
      %v1293 = vpop.f32.mrf.mxu0
      %v1294 = vadd.f32 %v1133, %v1293
      %v1295 = vpop.f32.mrf.mxu0
      %v1296 = vpop.f32.mrf.mxu0
      %v1297 = vadd.f32 %v1136, %v1296
      %v1298 = vpop.f32.mrf.mxu0
      %1299 = vmatprep.mubr.bf16.mxu0 0
      %1300 = vmatmul.mubr.bf16.gmra.mxu0 %v739
      %v1301 = vpop.f32.mrf.mxu0
      %v1302 = vadd.f32 %v1141, %v1301
      %v1303 = vpop.f32.mrf.mxu0
      %v1304 = vpop.f32.mrf.mxu0
      %v1305 = vadd.f32 %v1144, %v1304
      %v1306 = vpop.f32.mrf.mxu0
      %1307 = vmatprep.mubr.bf16.mxu0 0
      %1308 = vmatmul.mubr.bf16.gmra.mxu0 %v800
      %v1309 = vpop.f32.mrf.mxu0
      %v1310 = vadd.f32 %v1149, %v1309
      %v1311 = vpop.f32.mrf.mxu0
      %v1312 = vpop.f32.mrf.mxu0
      %v1313 = vadd.f32 %v1152, %v1312
      %v1314 = vpop.f32.mrf.mxu0
      %1315 = vdwg.mxu0
      %v1364 = vunpack.c.l.b16 %v740
      %v1365 = vunpack.c.l.b16 %v741
      %v1366 = vunpack.c.l.b16 %v742
      %v1367 = vunpack.c.l.b16 %v743
      %v1368 = vunpack.c.l.b16 %v744
      %v1369 = vunpack.c.l.b16 %v745
      %v1370 = vunpack.c.l.b16 %v746
      %v1371 = vunpack.c.l.b16 %v747
      %v1372 = vunpack.c.l.b16 %v748
      %v1373 = vunpack.c.l.b16 %v749
      %v1374 = vunpack.c.l.b16 %v750
      %v1375 = vunpack.c.l.b16 %v751
      %v1376 = vunpack.c.l.b16 %v752
      %v1377 = vunpack.c.l.b16 %v753
      %v1378 = vunpack.c.l.b16 %v754
      %v1379 = vunpack.c.l.b16 %v755
      %v1380 = vunpack.c.l.b16 %v756
      %v1381 = vunpack.c.l.b16 %v757
      %v1382 = vunpack.c.l.b16 %v758
      %v1383 = vunpack.c.l.b16 %v759
      %v1384 = vunpack.c.l.b16 %v760
      %v1385 = vunpack.c.l.b16 %v761
      %v1386 = vunpack.c.l.b16 %v762
      %v1387 = vunpack.c.l.b16 %v763
      %v1388 = vunpack.c.l.b16 %v764
      %v1389 = vunpack.c.l.b16 %v765
      %v1390 = vunpack.c.l.b16 %v766
      %v1391 = vunpack.c.l.b16 %v767
      %v1392 = vunpack.c.l.b16 %v768
      %v1393 = vunpack.c.l.b16 %v769
      %v1394 = vunpack.c.l.b16 %v770
      %v1395 = vunpack.c.l.b16 %v771
      %v1396 = vunpack.c.l.b16 %v772
      %v1397 = vunpack.c.l.b16 %v773
      %v1398 = vunpack.c.l.b16 %v774
      %v1399 = vunpack.c.l.b16 %v775
      %v1400 = vunpack.c.l.b16 %v776
      %v1401 = vunpack.c.l.b16 %v777
      %v1402 = vunpack.c.l.b16 %v778
      %v1403 = vunpack.c.l.b16 %v779
      %v1404 = vunpack.c.l.b16 %v780
      %v1405 = vunpack.c.l.b16 %v781
      %v1406 = vunpack.c.l.b16 %v782
      %v1407 = vunpack.c.l.b16 %v783
      %v1408 = vunpack.c.l.b16 %v784
      %v1409 = vunpack.c.l.b16 %v785
      %v1410 = vunpack.c.l.b16 %v786
      %v1411 = vunpack.c.l.b16 %v787
      %v1412 = vpack.c.b16 %v1365, %v1364
      %v1413 = vpack.c.b16 %v1367, %v1366
      %v1414 = vpack.c.b16 %v1369, %v1368
      %v1415 = vpack.c.b16 %v1371, %v1370
      %v1416 = vpack.c.b16 %v1373, %v1372
      %v1417 = vpack.c.b16 %v1375, %v1374
      %v1418 = vpack.c.b16 %v1377, %v1376
      %v1419 = vpack.c.b16 %v1379, %v1378
      %v1420 = vpack.c.b16 %v1381, %v1380
      %v1421 = vpack.c.b16 %v1383, %v1382
      %v1422 = vpack.c.b16 %v1385, %v1384
      %v1423 = vpack.c.b16 %v1387, %v1386
      %v1424 = vpack.c.b16 %v1389, %v1388
      %v1425 = vpack.c.b16 %v1391, %v1390
      %v1426 = vpack.c.b16 %v1393, %v1392
      %v1427 = vpack.c.b16 %v1395, %v1394
      %v1428 = vpack.c.b16 %v1397, %v1396
      %v1429 = vpack.c.b16 %v1399, %v1398
      %v1430 = vpack.c.b16 %v1401, %v1400
      %v1431 = vpack.c.b16 %v1403, %v1402
      %v1432 = vpack.c.b16 %v1405, %v1404
      %v1433 = vpack.c.b16 %v1407, %v1406
      %v1434 = vpack.c.b16 %v1409, %v1408
      %v1435 = vpack.c.b16 %v1411, %v1410
      %1460 = vmatprep.subr.bf16.mxu0 0
      %1461 = vmatpush1.bf16.msra.mxu0 %v1419
      %1462 = vmatprep.subr.bf16.mxu0 0
      %1463 = vmatpush1.bf16.msra.mxu0 %v1418
      %1464 = vmatprep.subr.bf16.mxu0 0
      %1465 = vmatpush1.bf16.msra.mxu0 %v1417
      %1466 = vmatprep.subr.bf16.mxu0 0
      %1467 = vmatpush1.bf16.msra.mxu0 %v1416
      %1468 = vmatprep.subr.bf16.mxu0 0
      %1469 = vmatpush1.bf16.msra.mxu0 %v1415
      %1470 = vmatprep.subr.bf16.mxu0 0
      %1471 = vmatpush1.bf16.msra.mxu0 %v1414
      %1472 = vmatprep.subr.bf16.mxu0 0
      %1473 = vmatpush1.bf16.msra.mxu0 %v1413
      %1474 = vmatprep.subr.bf16.mxu0 0
      %1475 = vmatpush1.bf16.msra.mxu0 %v1412
      %1476 = vmatprep.subr.bf16.mxu0 0
      %1477 = vmatpush2.bf16.msra.mxu0 %v1427
      %1478 = vmatprep.subr.bf16.mxu0 0
      %1479 = vmatpush2.bf16.msra.mxu0 %v1426
      %1480 = vmatprep.subr.bf16.mxu0 0
      %1481 = vmatpush2.bf16.msra.mxu0 %v1425
      %1482 = vmatprep.subr.bf16.mxu0 0
      %1483 = vmatpush2.bf16.msra.mxu0 %v1424
      %1484 = vmatprep.subr.bf16.mxu0 0
      %1485 = vmatpush2.bf16.msra.mxu0 %v1423
      %1486 = vmatprep.subr.bf16.mxu0 0
      %1487 = vmatpush2.bf16.msra.mxu0 %v1422
      %1488 = vmatprep.subr.bf16.mxu0 0
      %1489 = vmatpush2.bf16.msra.mxu0 %v1421
      %1490 = vmatprep.subr.bf16.mxu0 0
      %1491 = vmatpush2.bf16.msra.mxu0 %v1420
      %1492 = vmatprep.mubr.bf16.mxu0 0
      %1493 = vmatmul.mubr.bf16.gmra.mxu0 %v657
      %v1494 = vpop.f32.mrf.mxu0
      %v1495 = vadd.f32 %v1190, %v1494
      %v1496 = vpop.f32.mrf.mxu0
      %v1497 = vpop.f32.mrf.mxu0
      %v1498 = vadd.f32 %v1193, %v1497
      %v1499 = vpop.f32.mrf.mxu0
      %1500 = vmatprep.mubr.bf16.mxu0 %v510
      %1501 = vmatmul.mubr.bf16.gmra.mxu0 %v658
      %v1502 = vpop.f32.mrf.mxu0
      %v1503 = vadd.f32 %v1198, %v1502
      %v1504 = vpop.f32.mrf.mxu0
      %v1505 = vpop.f32.mrf.mxu0
      %v1506 = vadd.f32 %v1201, %v1505
      %v1507 = vpop.f32.mrf.mxu0
      %1508 = vmatprep.mubr.bf16.mxu0 %v511
      %1509 = vmatmul.mubr.bf16.gmra.mxu0 %v659
      %v1510 = vpop.f32.mrf.mxu0
      %v1511 = vadd.f32 %v1206, %v1510
      %v1512 = vpop.f32.mrf.mxu0
      %v1513 = vpop.f32.mrf.mxu0
      %v1514 = vadd.f32 %v1209, %v1513
      %v1515 = vpop.f32.mrf.mxu0
      %1516 = vmatprep.mubr.bf16.mxu0 %v512
      %1517 = vmatmul.mubr.bf16.gmra.mxu0 %v660
      %v1518 = vpop.f32.mrf.mxu0
      %v1519 = vadd.f32 %v1214, %v1518
      %v1520 = vpop.f32.mrf.mxu0
      %v1521 = vpop.f32.mrf.mxu0
      %v1522 = vadd.f32 %v1217, %v1521
      %v1523 = vpop.f32.mrf.mxu0
      %1524 = vmatprep.mubr.bf16.mxu0 %v513
      %1525 = vmatmul.mubr.bf16.gmra.mxu0 %v661
      %v1526 = vpop.f32.mrf.mxu0
      %v1527 = vadd.f32 %v1222, %v1526
      %v1528 = vpop.f32.mrf.mxu0
      %v1529 = vpop.f32.mrf.mxu0
      %v1530 = vadd.f32 %v1225, %v1529
      %v1531 = vpop.f32.mrf.mxu0
      %1532 = vmatprep.mubr.bf16.mxu0 %v514
      %1533 = vmatmul.mubr.bf16.gmra.mxu0 %v662
      %v1534 = vpop.f32.mrf.mxu0
      %v1535 = vadd.f32 %v1230, %v1534
      %v1536 = vpop.f32.mrf.mxu0
      %v1537 = vpop.f32.mrf.mxu0
      %v1538 = vadd.f32 %v1233, %v1537
      %v1539 = vpop.f32.mrf.mxu0
      %1540 = vmatprep.mubr.bf16.mxu0 %v515
      %1541 = vmatmul.mubr.bf16.gmra.mxu0 %v663
      %v1542 = vpop.f32.mrf.mxu0
      %v1543 = vadd.f32 %v1238, %v1542
      %v1544 = vpop.f32.mrf.mxu0
      %v1545 = vpop.f32.mrf.mxu0
      %v1546 = vadd.f32 %v1241, %v1545
      %v1547 = vpop.f32.mrf.mxu0
      %1548 = vmatprep.mubr.bf16.mxu0 %v516
      %1549 = vmatmul.mubr.bf16.gmra.mxu0 %v664
      %v1550 = vpop.f32.mrf.mxu0
      %v1551 = vadd.f32 %v1246, %v1550
      %v1552 = vpop.f32.mrf.mxu0
      %v1553 = vpop.f32.mrf.mxu0
      %v1554 = vadd.f32 %v1249, %v1553
      %v1555 = vpop.f32.mrf.mxu0
      %1556 = vmatprep.mubr.bf16.mxu0 %v517
      %1557 = vmatmul.mubr.bf16.gmra.mxu0 %v665
      %v1558 = vpop.f32.mrf.mxu0
      %v1559 = vadd.f32 %v1254, %v1558
      %v1560 = vpop.f32.mrf.mxu0
      %v1561 = vpop.f32.mrf.mxu0
      %v1562 = vadd.f32 %v1257, %v1561
      %v1563 = vpop.f32.mrf.mxu0
      %1564 = vmatprep.mubr.bf16.mxu0 %v518
      %1565 = vmatmul.mubr.bf16.gmra.mxu0 %v666
      %v1566 = vpop.f32.mrf.mxu0
      %v1567 = vadd.f32 %v1262, %v1566
      %v1568 = vpop.f32.mrf.mxu0
      %v1569 = vpop.f32.mrf.mxu0
      %v1570 = vadd.f32 %v1265, %v1569
      %v1571 = vpop.f32.mrf.mxu0
      %1572 = vmatprep.mubr.bf16.mxu0 %v519
      %1573 = vmatmul.mubr.bf16.gmra.mxu0 %v667
      %v1574 = vpop.f32.mrf.mxu0
      %v1575 = vadd.f32 %v1270, %v1574
      %v1576 = vpop.f32.mrf.mxu0
      %v1577 = vpop.f32.mrf.mxu0
      %v1578 = vadd.f32 %v1273, %v1577
      %v1579 = vpop.f32.mrf.mxu0
      %1580 = vmatprep.mubr.bf16.mxu0 %v520
      %1581 = vmatmul.mubr.bf16.gmra.mxu0 %v668
      %v1582 = vpop.f32.mrf.mxu0
      %v1583 = vadd.f32 %v1278, %v1582
      %v1584 = vpop.f32.mrf.mxu0
      %v1585 = vpop.f32.mrf.mxu0
      %v1586 = vadd.f32 %v1281, %v1585
      %v1587 = vpop.f32.mrf.mxu0
      %1588 = vmatprep.mubr.bf16.mxu0 %v521
      %1589 = vmatmul.mubr.bf16.gmra.mxu0 %v669
      %v1590 = vpop.f32.mrf.mxu0
      %v1591 = vadd.f32 %v1286, %v1590
      %v1592 = vpop.f32.mrf.mxu0
      %v1593 = vpop.f32.mrf.mxu0
      %v1594 = vadd.f32 %v1289, %v1593
      %v1595 = vpop.f32.mrf.mxu0
      %1596 = vmatprep.mubr.bf16.mxu0 %v522
      %1597 = vmatmul.mubr.bf16.gmra.mxu0 %v670
      %v1598 = vpop.f32.mrf.mxu0
      %v1599 = vadd.f32 %v1294, %v1598
      %v1600 = vpop.f32.mrf.mxu0
      %v1601 = vpop.f32.mrf.mxu0
      %v1602 = vadd.f32 %v1297, %v1601
      %v1603 = vpop.f32.mrf.mxu0
      %1604 = vmatprep.mubr.bf16.mxu0 %v523
      %1605 = vmatmul.mubr.bf16.gmra.mxu0 %v671
      %v1606 = vpop.f32.mrf.mxu0
      %v1607 = vadd.f32 %v1302, %v1606
      %v1608 = vpop.f32.mrf.mxu0
      %v1609 = vpop.f32.mrf.mxu0
      %v1610 = vadd.f32 %v1305, %v1609
      %v1611 = vpop.f32.mrf.mxu0
      %1612 = vmatprep.mubr.bf16.mxu0 %v524
      %1613 = vmatmul.mubr.bf16.gmra.mxu0 %v672
      %v1614 = vpop.f32.mrf.mxu0
      %v1615 = vadd.f32 %v1310, %v1614
      %v1616 = vpop.f32.mrf.mxu0
      %v1617 = vpop.f32.mrf.mxu0
      %v1618 = vadd.f32 %v1313, %v1617
      %v1619 = vpop.f32.mrf.mxu0
      %1620 = vdwg.mxu0
      %1621 = vmatprep.subr.bf16.mxu0 0
      %1622 = vmatpush1.bf16.msra.mxu0 %v1435
      %1623 = vmatprep.subr.bf16.mxu0 0
      %1624 = vmatpush1.bf16.msra.mxu0 %v1434
      %1625 = vmatprep.subr.bf16.mxu0 0
      %1626 = vmatpush1.bf16.msra.mxu0 %v1433
      %1627 = vmatprep.subr.bf16.mxu0 0
      %1628 = vmatpush1.bf16.msra.mxu0 %v1432
      %1629 = vmatprep.subr.bf16.mxu0 0
      %1630 = vmatpush1.bf16.msra.mxu0 %v1431
      %1631 = vmatprep.subr.bf16.mxu0 0
      %1632 = vmatpush1.bf16.msra.mxu0 %v1430
      %1633 = vmatprep.subr.bf16.mxu0 0
      %1634 = vmatpush1.bf16.msra.mxu0 %v1429
      %1635 = vmatprep.subr.bf16.mxu0 0
      %1636 = vmatpush1.bf16.msra.mxu0 %v1428
      %1637 = vmatprep.subr.bf16.mxu0 0
      %1638 = vmatpush2.bf16.msra.mxu0 0
      %1639 = vmatprep.subr.bf16.mxu0 0
      %1640 = vmatpush2.bf16.msra.mxu0 0
      %1641 = vmatprep.subr.bf16.mxu0 0
      %1642 = vmatpush2.bf16.msra.mxu0 0
      %1643 = vmatprep.subr.bf16.mxu0 0
      %1644 = vmatpush2.bf16.msra.mxu0 0
      %1645 = vmatprep.subr.bf16.mxu0 0
      %1646 = vmatpush2.bf16.msra.mxu0 0
      %1647 = vmatprep.subr.bf16.mxu0 0
      %1648 = vmatpush2.bf16.msra.mxu0 0
      %1649 = vmatprep.subr.bf16.mxu0 0
      %1650 = vmatpush2.bf16.msra.mxu0 0
      %1651 = vmatprep.subr.bf16.mxu0 0
      %1652 = vmatpush2.bf16.msra.mxu0 0
      %1653 = vmatprep.mubr.bf16.mxu0 0
      %1654 = vmatmul.mubr.bf16.gmra.mxu0 %v724
      %v1655 = vpop.f32.mrf.mxu0
      %v1656 = vadd.f32 %v1495, %v1655
      %v1657 = vpop.f32.mrf.mxu0
      %v1658 = vpop.f32.mrf.mxu0
      %v1659 = vadd.f32 %v1498, %v1658
      %v1660 = vpop.f32.mrf.mxu0
      %1661 = vmatprep.mubr.bf16.mxu0 0
      %1662 = vmatmul.mubr.bf16.gmra.mxu0 %v725
      %v1663 = vpop.f32.mrf.mxu0
      %v1664 = vadd.f32 %v1503, %v1663
      %v1665 = vpop.f32.mrf.mxu0
      %v1666 = vpop.f32.mrf.mxu0
      %v1667 = vadd.f32 %v1506, %v1666
      %v1668 = vpop.f32.mrf.mxu0
      %1669 = vmatprep.mubr.bf16.mxu0 0
      %1670 = vmatmul.mubr.bf16.gmra.mxu0 %v726
      %v1671 = vpop.f32.mrf.mxu0
      %v1672 = vadd.f32 %v1511, %v1671
      %v1673 = vpop.f32.mrf.mxu0
      %v1674 = vpop.f32.mrf.mxu0
      %v1675 = vadd.f32 %v1514, %v1674
      %v1676 = vpop.f32.mrf.mxu0
      %1677 = vmatprep.mubr.bf16.mxu0 0
      %1678 = vmatmul.mubr.bf16.gmra.mxu0 %v727
      %v1679 = vpop.f32.mrf.mxu0
      %v1680 = vadd.f32 %v1519, %v1679
      %v1681 = vpop.f32.mrf.mxu0
      %v1682 = vpop.f32.mrf.mxu0
      %v1683 = vadd.f32 %v1522, %v1682
      %v1684 = vpop.f32.mrf.mxu0
      %1685 = vmatprep.mubr.bf16.mxu0 0
      %1686 = vmatmul.mubr.bf16.gmra.mxu0 %v728
      %v1687 = vpop.f32.mrf.mxu0
      %v1688 = vadd.f32 %v1527, %v1687
      %v1689 = vpop.f32.mrf.mxu0
      %v1690 = vpop.f32.mrf.mxu0
      %v1691 = vadd.f32 %v1530, %v1690
      %v1692 = vpop.f32.mrf.mxu0
      %1693 = vmatprep.mubr.bf16.mxu0 0
      %1694 = vmatmul.mubr.bf16.gmra.mxu0 %v729
      %v1695 = vpop.f32.mrf.mxu0
      %v1696 = vadd.f32 %v1535, %v1695
      %v1697 = vpop.f32.mrf.mxu0
      %v1698 = vpop.f32.mrf.mxu0
      %v1699 = vadd.f32 %v1538, %v1698
      %v1700 = vpop.f32.mrf.mxu0
      %1701 = vmatprep.mubr.bf16.mxu0 0
      %1702 = vmatmul.mubr.bf16.gmra.mxu0 %v730
      %v1703 = vpop.f32.mrf.mxu0
      %v1704 = vadd.f32 %v1543, %v1703
      %v1705 = vpop.f32.mrf.mxu0
      %v1706 = vpop.f32.mrf.mxu0
      %v1707 = vadd.f32 %v1546, %v1706
      %v1708 = vpop.f32.mrf.mxu0
      %1709 = vmatprep.mubr.bf16.mxu0 0
      %1710 = vmatmul.mubr.bf16.gmra.mxu0 %v731
      %v1711 = vpop.f32.mrf.mxu0
      %v1712 = vadd.f32 %v1551, %v1711
      %v1713 = vpop.f32.mrf.mxu0
      %v1714 = vpop.f32.mrf.mxu0
      %v1715 = vadd.f32 %v1554, %v1714
      %v1716 = vpop.f32.mrf.mxu0
      %1717 = vmatprep.mubr.bf16.mxu0 0
      %1718 = vmatmul.mubr.bf16.gmra.mxu0 %v732
      %v1719 = vpop.f32.mrf.mxu0
      %v1720 = vadd.f32 %v1559, %v1719
      %v1721 = vpop.f32.mrf.mxu0
      %v1722 = vpop.f32.mrf.mxu0
      %v1723 = vadd.f32 %v1562, %v1722
      %v1724 = vpop.f32.mrf.mxu0
      %1725 = vmatprep.mubr.bf16.mxu0 0
      %1726 = vmatmul.mubr.bf16.gmra.mxu0 %v733
      %v1727 = vpop.f32.mrf.mxu0
      %v1728 = vadd.f32 %v1567, %v1727
      %v1729 = vpop.f32.mrf.mxu0
      %v1730 = vpop.f32.mrf.mxu0
      %v1731 = vadd.f32 %v1570, %v1730
      %v1732 = vpop.f32.mrf.mxu0
      %1733 = vmatprep.mubr.bf16.mxu0 0
      %1734 = vmatmul.mubr.bf16.gmra.mxu0 %v734
      %v1735 = vpop.f32.mrf.mxu0
      %v1736 = vadd.f32 %v1575, %v1735
      %v1737 = vpop.f32.mrf.mxu0
      %v1738 = vpop.f32.mrf.mxu0
      %v1739 = vadd.f32 %v1578, %v1738
      %v1740 = vpop.f32.mrf.mxu0
      %1741 = vmatprep.mubr.bf16.mxu0 0
      %1742 = vmatmul.mubr.bf16.gmra.mxu0 %v735
      %v1743 = vpop.f32.mrf.mxu0
      %v1744 = vadd.f32 %v1583, %v1743
      %v1745 = vpop.f32.mrf.mxu0
      %v1746 = vpop.f32.mrf.mxu0
      %v1747 = vadd.f32 %v1586, %v1746
      %v1748 = vpop.f32.mrf.mxu0
      %1749 = vmatprep.mubr.bf16.mxu0 0
      %1750 = vmatmul.mubr.bf16.gmra.mxu0 %v736
      %v1751 = vpop.f32.mrf.mxu0
      %v1752 = vadd.f32 %v1591, %v1751
      %v1753 = vpop.f32.mrf.mxu0
      %v1754 = vpop.f32.mrf.mxu0
      %v1755 = vadd.f32 %v1594, %v1754
      %v1756 = vpop.f32.mrf.mxu0
      %1757 = vmatprep.mubr.bf16.mxu0 0
      %1758 = vmatmul.mubr.bf16.gmra.mxu0 %v737
      %v1759 = vpop.f32.mrf.mxu0
      %v1760 = vadd.f32 %v1599, %v1759
      %v1761 = vpop.f32.mrf.mxu0
      %v1762 = vpop.f32.mrf.mxu0
      %v1763 = vadd.f32 %v1602, %v1762
      %v1764 = vpop.f32.mrf.mxu0
      %1765 = vmatprep.mubr.bf16.mxu0 0
      %1766 = vmatmul.mubr.bf16.gmra.mxu0 %v738
      %v1767 = vpop.f32.mrf.mxu0
      %v1768 = vadd.f32 %v1607, %v1767
      %v1769 = vpop.f32.mrf.mxu0
      %v1770 = vpop.f32.mrf.mxu0
      %v1771 = vadd.f32 %v1610, %v1770
      %v1772 = vpop.f32.mrf.mxu0
      %1773 = vmatprep.mubr.bf16.mxu0 0
      %1774 = vmatmul.mubr.bf16.gmra.mxu0 %v739
      %v1775 = vpop.f32.mrf.mxu0
      %v1776 = vadd.f32 %v1615, %v1775
      %v1777 = vpop.f32.mrf.mxu0
      %v1778 = vpop.f32.mrf.mxu0
      %v1779 = vadd.f32 %v1618, %v1778
      %v1780 = vpop.f32.mrf.mxu0
      %1781 = vdwg.mxu0
      %s1782 = scalar_lea.vmem %s4, 384
      %v1783 = vld [vmem:[%s1782] sm:$0xf]
      %v1784 = vld [vmem:[%s1782 + $0x4] sm:$0xf]
      %v1785 = vld [vmem:[%s1782 + $0x8] sm:$0xf]
      %v1786 = vld [vmem:[%s1782 + $0xc] sm:$0xf]
      %v1787 = vld [vmem:[%s1782 + $0x10] sm:$0xf]
      %v1788 = vld [vmem:[%s1782 + $0x14] sm:$0xf]
      %v1789 = vld [vmem:[%s1782 + $0x18] sm:$0xf]
      %v1790 = vld [vmem:[%s1782 + $0x1c] sm:$0xf]
      %v1791 = vld [vmem:[%s1782 + $0x20] sm:$0xf]
      %v1792 = vld [vmem:[%s1782 + $0x24] sm:$0xf]
      %v1793 = vld [vmem:[%s1782 + $0x28] sm:$0xf]
      %v1794 = vld [vmem:[%s1782 + $0x2c] sm:$0xf]
      %v1795 = vld [vmem:[%s1782 + $0x30] sm:$0xf]
      %v1796 = vld [vmem:[%s1782 + $0x34] sm:$0xf]
      %v1797 = vld [vmem:[%s1782 + $0x38] sm:$0xf]
      %v1798 = vld [vmem:[%s1782 + $0x3c] sm:$0xf]
      %v1799 = vld [vmem:[%s1782 + $0x40] sm:$0xf]
      %v1800 = vld [vmem:[%s1782 + $0x44] sm:$0xf]
      %v1801 = vld [vmem:[%s1782 + $0x48] sm:$0xf]
      %v1802 = vld [vmem:[%s1782 + $0x4c] sm:$0xf]
      %v1803 = vld [vmem:[%s1782 + $0x50] sm:$0xf]
      %v1804 = vld [vmem:[%s1782 + $0x54] sm:$0xf]
      %v1805 = vld [vmem:[%s1782 + $0x58] sm:$0xf]
      %v1806 = vld [vmem:[%s1782 + $0x5c] sm:$0xf]
      %v1807 = vld [vmem:[%s1782 + $0x60] sm:$0xf]
      %v1808 = vld [vmem:[%s1782 + $0x64] sm:$0xf]
      %v1809 = vld [vmem:[%s1782 + $0x68] sm:$0xf]
      %v1810 = vld [vmem:[%s1782 + $0x6c] sm:$0xf]
      %v1811 = vld [vmem:[%s1782 + $0x70] sm:$0xf]
      %v1812 = vld [vmem:[%s1782 + $0x74] sm:$0xf]
      %v1813 = vld [vmem:[%s1782 + $0x78] sm:$0xf]
      %v1814 = vld [vmem:[%s1782 + $0x7c] sm:$0xf]
      %v1815 = vld [vmem:[%s1782 + $0x80] sm:$0xf]
      %v1816 = vld [vmem:[%s1782 + $0x84] sm:$0xf]
      %v1817 = vld [vmem:[%s1782 + $0x88] sm:$0xf]
      %v1818 = vld [vmem:[%s1782 + $0x8c] sm:$0xf]
      %v1819 = vld [vmem:[%s1782 + $0x90] sm:$0xf]
      %v1820 = vld [vmem:[%s1782 + $0x94] sm:$0xf]
      %v1821 = vld [vmem:[%s1782 + $0x98] sm:$0xf]
      %v1822 = vld [vmem:[%s1782 + $0x9c] sm:$0xf]
      %v1823 = vld [vmem:[%s1782 + $0xa0] sm:$0xf]
      %v1824 = vld [vmem:[%s1782 + $0xa4] sm:$0xf]
      %v1825 = vld [vmem:[%s1782 + $0xa8] sm:$0xf]
      %v1826 = vld [vmem:[%s1782 + $0xac] sm:$0xf]
      %v1827 = vld [vmem:[%s1782 + $0xb0] sm:$0xf]
      %v1828 = vld [vmem:[%s1782 + $0xb4] sm:$0xf]
      %v1829 = vld [vmem:[%s1782 + $0xb8] sm:$0xf]
      %v1830 = vld [vmem:[%s1782 + $0xbc] sm:$0xf]
      %v1879 = vunpack.c.l.b16 %v1783
      %v1880 = vunpack.c.l.b16 %v1784
      %v1881 = vunpack.c.l.b16 %v1785
      %v1882 = vunpack.c.l.b16 %v1786
      %v1883 = vunpack.c.l.b16 %v1787
      %v1884 = vunpack.c.l.b16 %v1788
      %v1885 = vunpack.c.l.b16 %v1789
      %v1886 = vunpack.c.l.b16 %v1790
      %v1887 = vunpack.c.l.b16 %v1791
      %v1888 = vunpack.c.l.b16 %v1792
      %v1889 = vunpack.c.l.b16 %v1793
      %v1890 = vunpack.c.l.b16 %v1794
      %v1891 = vunpack.c.l.b16 %v1795
      %v1892 = vunpack.c.l.b16 %v1796
      %v1893 = vunpack.c.l.b16 %v1797
      %v1894 = vunpack.c.l.b16 %v1798
      %v1895 = vunpack.c.l.b16 %v1799
      %v1896 = vunpack.c.l.b16 %v1800
      %v1897 = vunpack.c.l.b16 %v1801
      %v1898 = vunpack.c.l.b16 %v1802
      %v1899 = vunpack.c.l.b16 %v1803
      %v1900 = vunpack.c.l.b16 %v1804
      %v1901 = vunpack.c.l.b16 %v1805
      %v1902 = vunpack.c.l.b16 %v1806
      %v1903 = vunpack.c.l.b16 %v1807
      %v1904 = vunpack.c.l.b16 %v1808
      %v1905 = vunpack.c.l.b16 %v1809
      %v1906 = vunpack.c.l.b16 %v1810
      %v1907 = vunpack.c.l.b16 %v1811
      %v1908 = vunpack.c.l.b16 %v1812
      %v1909 = vunpack.c.l.b16 %v1813
      %v1910 = vunpack.c.l.b16 %v1814
      %v1911 = vunpack.c.l.b16 %v1815
      %v1912 = vunpack.c.l.b16 %v1816
      %v1913 = vunpack.c.l.b16 %v1817
      %v1914 = vunpack.c.l.b16 %v1818
      %v1915 = vunpack.c.l.b16 %v1819
      %v1916 = vunpack.c.l.b16 %v1820
      %v1917 = vunpack.c.l.b16 %v1821
      %v1918 = vunpack.c.l.b16 %v1822
      %v1919 = vunpack.c.l.b16 %v1823
      %v1920 = vunpack.c.l.b16 %v1824
      %v1921 = vunpack.c.l.b16 %v1825
      %v1922 = vunpack.c.l.b16 %v1826
      %v1923 = vunpack.c.l.b16 %v1827
      %v1924 = vunpack.c.l.b16 %v1828
      %v1925 = vunpack.c.l.b16 %v1829
      %v1926 = vunpack.c.l.b16 %v1830
      %v1927 = vpack.c.b16 %v1880, %v1879
      %v1928 = vpack.c.b16 %v1882, %v1881
      %v1929 = vpack.c.b16 %v1884, %v1883
      %v1930 = vpack.c.b16 %v1886, %v1885
      %v1931 = vpack.c.b16 %v1888, %v1887
      %v1932 = vpack.c.b16 %v1890, %v1889
      %v1933 = vpack.c.b16 %v1892, %v1891
      %v1934 = vpack.c.b16 %v1894, %v1893
      %v1935 = vpack.c.b16 %v1896, %v1895
      %v1936 = vpack.c.b16 %v1898, %v1897
      %v1937 = vpack.c.b16 %v1900, %v1899
      %v1938 = vpack.c.b16 %v1902, %v1901
      %v1939 = vpack.c.b16 %v1904, %v1903
      %v1940 = vpack.c.b16 %v1906, %v1905
      %v1941 = vpack.c.b16 %v1908, %v1907
      %v1942 = vpack.c.b16 %v1910, %v1909
      %v1943 = vpack.c.b16 %v1912, %v1911
      %v1944 = vpack.c.b16 %v1914, %v1913
      %v1945 = vpack.c.b16 %v1916, %v1915
      %v1946 = vpack.c.b16 %v1918, %v1917
      %v1947 = vpack.c.b16 %v1920, %v1919
      %v1948 = vpack.c.b16 %v1922, %v1921
      %v1949 = vpack.c.b16 %v1924, %v1923
      %v1950 = vpack.c.b16 %v1926, %v1925
      %1975 = vmatprep.subr.bf16.mxu0 0
      %1976 = vmatpush1.bf16.msra.mxu0 %v1934
      %1977 = vmatprep.subr.bf16.mxu0 0
      %1978 = vmatpush1.bf16.msra.mxu0 %v1933
      %1979 = vmatprep.subr.bf16.mxu0 0
      %1980 = vmatpush1.bf16.msra.mxu0 %v1932
      %1981 = vmatprep.subr.bf16.mxu0 0
      %1982 = vmatpush1.bf16.msra.mxu0 %v1931
      %1983 = vmatprep.subr.bf16.mxu0 0
      %1984 = vmatpush1.bf16.msra.mxu0 %v1930
      %1985 = vmatprep.subr.bf16.mxu0 0
      %1986 = vmatpush1.bf16.msra.mxu0 %v1929
      %1987 = vmatprep.subr.bf16.mxu0 0
      %1988 = vmatpush1.bf16.msra.mxu0 %v1928
      %1989 = vmatprep.subr.bf16.mxu0 0
      %1990 = vmatpush1.bf16.msra.mxu0 %v1927
      %1991 = vmatprep.subr.bf16.mxu0 0
      %1992 = vmatpush2.bf16.msra.mxu0 %v1942
      %1993 = vmatprep.subr.bf16.mxu0 0
      %1994 = vmatpush2.bf16.msra.mxu0 %v1941
      %1995 = vmatprep.subr.bf16.mxu0 0
      %1996 = vmatpush2.bf16.msra.mxu0 %v1940
      %1997 = vmatprep.subr.bf16.mxu0 0
      %1998 = vmatpush2.bf16.msra.mxu0 %v1939
      %1999 = vmatprep.subr.bf16.mxu0 0
      %2000 = vmatpush2.bf16.msra.mxu0 %v1938
      %2001 = vmatprep.subr.bf16.mxu0 0
      %2002 = vmatpush2.bf16.msra.mxu0 %v1937
      %2003 = vmatprep.subr.bf16.mxu0 0
      %2004 = vmatpush2.bf16.msra.mxu0 %v1936
      %2005 = vmatprep.subr.bf16.mxu0 0
      %2006 = vmatpush2.bf16.msra.mxu0 %v1935
      %2007 = vmatprep.mubr.bf16.mxu0 %v511
      %2008 = vmatmul.mubr.bf16.gmra.mxu0 %v659
      %v2009 = vpop.f32.mrf.mxu0
      %v2010 = vadd.f32 0.0, %v2009
      %v2011 = vpop.f32.mrf.mxu0
      %v2012 = vpop.f32.mrf.mxu0
      %v2013 = vadd.f32 0.0, %v2012
      %v2014 = vpop.f32.mrf.mxu0
      %2015 = vmatprep.mubr.bf16.mxu0 %v512
      %2016 = vmatmul.mubr.bf16.gmra.mxu0 %v660
      %v2017 = vpop.f32.mrf.mxu0
      %v2018 = vadd.f32 0.0, %v2017
      %v2019 = vpop.f32.mrf.mxu0
      %v2020 = vpop.f32.mrf.mxu0
      %v2021 = vadd.f32 0.0, %v2020
      %v2022 = vpop.f32.mrf.mxu0
      %2023 = vmatprep.mubr.bf16.mxu0 %v513
      %2024 = vmatmul.mubr.bf16.gmra.mxu0 %v661
      %v2025 = vpop.f32.mrf.mxu0
      %v2026 = vadd.f32 0.0, %v2025
      %v2027 = vpop.f32.mrf.mxu0
      %v2028 = vpop.f32.mrf.mxu0
      %v2029 = vadd.f32 0.0, %v2028
      %v2030 = vpop.f32.mrf.mxu0
      %2031 = vmatprep.mubr.bf16.mxu0 %v514
      %2032 = vmatmul.mubr.bf16.gmra.mxu0 %v662
      %v2033 = vpop.f32.mrf.mxu0
      %v2034 = vadd.f32 0.0, %v2033
      %v2035 = vpop.f32.mrf.mxu0
      %v2036 = vpop.f32.mrf.mxu0
      %v2037 = vadd.f32 0.0, %v2036
      %v2038 = vpop.f32.mrf.mxu0
      %2039 = vmatprep.mubr.bf16.mxu0 %v515
      %2040 = vmatmul.mubr.bf16.gmra.mxu0 %v663
      %v2041 = vpop.f32.mrf.mxu0
      %v2042 = vadd.f32 0.0, %v2041
      %v2043 = vpop.f32.mrf.mxu0
      %v2044 = vpop.f32.mrf.mxu0
      %v2045 = vadd.f32 0.0, %v2044
      %v2046 = vpop.f32.mrf.mxu0
      %2047 = vmatprep.mubr.bf16.mxu0 %v516
      %2048 = vmatmul.mubr.bf16.gmra.mxu0 %v664
      %v2049 = vpop.f32.mrf.mxu0
      %v2050 = vadd.f32 0.0, %v2049
      %v2051 = vpop.f32.mrf.mxu0
      %v2052 = vpop.f32.mrf.mxu0
      %v2053 = vadd.f32 0.0, %v2052
      %v2054 = vpop.f32.mrf.mxu0
      %2055 = vmatprep.mubr.bf16.mxu0 %v517
      %2056 = vmatmul.mubr.bf16.gmra.mxu0 %v665
      %v2057 = vpop.f32.mrf.mxu0
      %v2058 = vadd.f32 0.0, %v2057
      %v2059 = vpop.f32.mrf.mxu0
      %v2060 = vpop.f32.mrf.mxu0
      %v2061 = vadd.f32 0.0, %v2060
      %v2062 = vpop.f32.mrf.mxu0
      %2063 = vmatprep.mubr.bf16.mxu0 %v518
      %2064 = vmatmul.mubr.bf16.gmra.mxu0 %v666
      %v2065 = vpop.f32.mrf.mxu0
      %v2066 = vadd.f32 0.0, %v2065
      %v2067 = vpop.f32.mrf.mxu0
      %v2068 = vpop.f32.mrf.mxu0
      %v2069 = vadd.f32 0.0, %v2068
      %v2070 = vpop.f32.mrf.mxu0
      %2071 = vmatprep.mubr.bf16.mxu0 %v519
      %2072 = vmatmul.mubr.bf16.gmra.mxu0 %v667
      %v2073 = vpop.f32.mrf.mxu0
      %v2074 = vadd.f32 0.0, %v2073
      %v2075 = vpop.f32.mrf.mxu0
      %v2076 = vpop.f32.mrf.mxu0
      %v2077 = vadd.f32 0.0, %v2076
      %v2078 = vpop.f32.mrf.mxu0
      %2079 = vmatprep.mubr.bf16.mxu0 %v520
      %2080 = vmatmul.mubr.bf16.gmra.mxu0 %v668
      %v2081 = vpop.f32.mrf.mxu0
      %v2082 = vadd.f32 0.0, %v2081
      %v2083 = vpop.f32.mrf.mxu0
      %v2084 = vpop.f32.mrf.mxu0
      %v2085 = vadd.f32 0.0, %v2084
      %v2086 = vpop.f32.mrf.mxu0
      %2087 = vmatprep.mubr.bf16.mxu0 %v521
      %2088 = vmatmul.mubr.bf16.gmra.mxu0 %v669
      %v2089 = vpop.f32.mrf.mxu0
      %v2090 = vadd.f32 0.0, %v2089
      %v2091 = vpop.f32.mrf.mxu0
      %v2092 = vpop.f32.mrf.mxu0
      %v2093 = vadd.f32 0.0, %v2092
      %v2094 = vpop.f32.mrf.mxu0
      %2095 = vmatprep.mubr.bf16.mxu0 %v522
      %2096 = vmatmul.mubr.bf16.gmra.mxu0 %v670
      %v2097 = vpop.f32.mrf.mxu0
      %v2098 = vadd.f32 0.0, %v2097
      %v2099 = vpop.f32.mrf.mxu0
      %v2100 = vpop.f32.mrf.mxu0
      %v2101 = vadd.f32 0.0, %v2100
      %v2102 = vpop.f32.mrf.mxu0
      %2103 = vmatprep.mubr.bf16.mxu0 %v523
      %2104 = vmatmul.mubr.bf16.gmra.mxu0 %v671
      %v2105 = vpop.f32.mrf.mxu0
      %v2106 = vadd.f32 0.0, %v2105
      %v2107 = vpop.f32.mrf.mxu0
      %v2108 = vpop.f32.mrf.mxu0
      %v2109 = vadd.f32 0.0, %v2108
      %v2110 = vpop.f32.mrf.mxu0
      %2111 = vmatprep.mubr.bf16.mxu0 %v524
      %2112 = vmatmul.mubr.bf16.gmra.mxu0 %v672
      %v2113 = vpop.f32.mrf.mxu0
      %v2114 = vadd.f32 0.0, %v2113
      %v2115 = vpop.f32.mrf.mxu0
      %v2116 = vpop.f32.mrf.mxu0
      %v2117 = vadd.f32 0.0, %v2116
      %v2118 = vpop.f32.mrf.mxu0
      %2119 = vmatprep.mubr.bf16.mxu0 %v525
      %2120 = vmatmul.mubr.bf16.gmra.mxu0 %v796
      %v2121 = vpop.f32.mrf.mxu0
      %v2122 = vadd.f32 0.0, %v2121
      %v2123 = vpop.f32.mrf.mxu0
      %v2124 = vpop.f32.mrf.mxu0
      %v2125 = vadd.f32 0.0, %v2124
      %v2126 = vpop.f32.mrf.mxu0
      %2127 = vmatprep.mubr.bf16.mxu0 0
      %2128 = vmatmul.mubr.bf16.gmra.mxu0 %v657
      %v2129 = vpop.f32.mrf.mxu0
      %v2130 = vadd.f32 0.0, %v2129
      %v2131 = vpop.f32.mrf.mxu0
      %v2132 = vpop.f32.mrf.mxu0
      %v2133 = vadd.f32 0.0, %v2132
      %v2134 = vpop.f32.mrf.mxu0
      %2135 = vdwg.mxu0
      %2136 = vmatprep.subr.bf16.mxu0 0
      %2137 = vmatpush1.bf16.msra.mxu0 %v1950
      %2138 = vmatprep.subr.bf16.mxu0 0
      %2139 = vmatpush1.bf16.msra.mxu0 %v1949
      %2140 = vmatprep.subr.bf16.mxu0 0
      %2141 = vmatpush1.bf16.msra.mxu0 %v1948
      %2142 = vmatprep.subr.bf16.mxu0 0
      %2143 = vmatpush1.bf16.msra.mxu0 %v1947
      %2144 = vmatprep.subr.bf16.mxu0 0
      %2145 = vmatpush1.bf16.msra.mxu0 %v1946
      %2146 = vmatprep.subr.bf16.mxu0 0
      %2147 = vmatpush1.bf16.msra.mxu0 %v1945
      %2148 = vmatprep.subr.bf16.mxu0 0
      %2149 = vmatpush1.bf16.msra.mxu0 %v1944
      %2150 = vmatprep.subr.bf16.mxu0 0
      %2151 = vmatpush1.bf16.msra.mxu0 %v1943
      %2152 = vmatprep.subr.bf16.mxu0 0
      %2153 = vmatpush2.bf16.msra.mxu0 0
      %2154 = vmatprep.subr.bf16.mxu0 0
      %2155 = vmatpush2.bf16.msra.mxu0 0
      %2156 = vmatprep.subr.bf16.mxu0 0
      %2157 = vmatpush2.bf16.msra.mxu0 0
      %2158 = vmatprep.subr.bf16.mxu0 0
      %2159 = vmatpush2.bf16.msra.mxu0 0
      %2160 = vmatprep.subr.bf16.mxu0 0
      %2161 = vmatpush2.bf16.msra.mxu0 0
      %2162 = vmatprep.subr.bf16.mxu0 0
      %2163 = vmatpush2.bf16.msra.mxu0 0
      %2164 = vmatprep.subr.bf16.mxu0 0
      %2165 = vmatpush2.bf16.msra.mxu0 0
      %2166 = vmatprep.subr.bf16.mxu0 0
      %2167 = vmatpush2.bf16.msra.mxu0 0
      %2168 = vmatprep.mubr.bf16.mxu0 0
      %2169 = vmatmul.mubr.bf16.gmra.mxu0 %v726
      %v2170 = vpop.f32.mrf.mxu0
      %v2171 = vadd.f32 %v2010, %v2170
      %v2172 = vpop.f32.mrf.mxu0
      %v2173 = vpop.f32.mrf.mxu0
      %v2174 = vadd.f32 %v2013, %v2173
      %v2175 = vpop.f32.mrf.mxu0
      %2176 = vmatprep.mubr.bf16.mxu0 0
      %2177 = vmatmul.mubr.bf16.gmra.mxu0 %v727
      %v2178 = vpop.f32.mrf.mxu0
      %v2179 = vadd.f32 %v2018, %v2178
      %v2180 = vpop.f32.mrf.mxu0
      %v2181 = vpop.f32.mrf.mxu0
      %v2182 = vadd.f32 %v2021, %v2181
      %v2183 = vpop.f32.mrf.mxu0
      %2184 = vmatprep.mubr.bf16.mxu0 0
      %2185 = vmatmul.mubr.bf16.gmra.mxu0 %v728
      %v2186 = vpop.f32.mrf.mxu0
      %v2187 = vadd.f32 %v2026, %v2186
      %v2188 = vpop.f32.mrf.mxu0
      %v2189 = vpop.f32.mrf.mxu0
      %v2190 = vadd.f32 %v2029, %v2189
      %v2191 = vpop.f32.mrf.mxu0
      %2192 = vmatprep.mubr.bf16.mxu0 0
      %2193 = vmatmul.mubr.bf16.gmra.mxu0 %v729
      %v2194 = vpop.f32.mrf.mxu0
      %v2195 = vadd.f32 %v2034, %v2194
      %v2196 = vpop.f32.mrf.mxu0
      %v2197 = vpop.f32.mrf.mxu0
      %v2198 = vadd.f32 %v2037, %v2197
      %v2199 = vpop.f32.mrf.mxu0
      %2200 = vmatprep.mubr.bf16.mxu0 0
      %2201 = vmatmul.mubr.bf16.gmra.mxu0 %v730
      %v2202 = vpop.f32.mrf.mxu0
      %v2203 = vadd.f32 %v2042, %v2202
      %v2204 = vpop.f32.mrf.mxu0
      %v2205 = vpop.f32.mrf.mxu0
      %v2206 = vadd.f32 %v2045, %v2205
      %v2207 = vpop.f32.mrf.mxu0
      %2208 = vmatprep.mubr.bf16.mxu0 0
      %2209 = vmatmul.mubr.bf16.gmra.mxu0 %v731
      %v2210 = vpop.f32.mrf.mxu0
      %v2211 = vadd.f32 %v2050, %v2210
      %v2212 = vpop.f32.mrf.mxu0
      %v2213 = vpop.f32.mrf.mxu0
      %v2214 = vadd.f32 %v2053, %v2213
      %v2215 = vpop.f32.mrf.mxu0
      %2216 = vmatprep.mubr.bf16.mxu0 0
      %2217 = vmatmul.mubr.bf16.gmra.mxu0 %v732
      %v2218 = vpop.f32.mrf.mxu0
      %v2219 = vadd.f32 %v2058, %v2218
      %v2220 = vpop.f32.mrf.mxu0
      %v2221 = vpop.f32.mrf.mxu0
      %v2222 = vadd.f32 %v2061, %v2221
      %v2223 = vpop.f32.mrf.mxu0
      %2224 = vmatprep.mubr.bf16.mxu0 0
      %2225 = vmatmul.mubr.bf16.gmra.mxu0 %v733
      %v2226 = vpop.f32.mrf.mxu0
      %v2227 = vadd.f32 %v2066, %v2226
      %v2228 = vpop.f32.mrf.mxu0
      %v2229 = vpop.f32.mrf.mxu0
      %v2230 = vadd.f32 %v2069, %v2229
      %v2231 = vpop.f32.mrf.mxu0
      %2232 = vmatprep.mubr.bf16.mxu0 0
      %2233 = vmatmul.mubr.bf16.gmra.mxu0 %v734
      %v2234 = vpop.f32.mrf.mxu0
      %v2235 = vadd.f32 %v2074, %v2234
      %v2236 = vpop.f32.mrf.mxu0
      %v2237 = vpop.f32.mrf.mxu0
      %v2238 = vadd.f32 %v2077, %v2237
      %v2239 = vpop.f32.mrf.mxu0
      %2240 = vmatprep.mubr.bf16.mxu0 0
      %2241 = vmatmul.mubr.bf16.gmra.mxu0 %v735
      %v2242 = vpop.f32.mrf.mxu0
      %v2243 = vadd.f32 %v2082, %v2242
      %v2244 = vpop.f32.mrf.mxu0
      %v2245 = vpop.f32.mrf.mxu0
      %v2246 = vadd.f32 %v2085, %v2245
      %v2247 = vpop.f32.mrf.mxu0
      %2248 = vmatprep.mubr.bf16.mxu0 0
      %2249 = vmatmul.mubr.bf16.gmra.mxu0 %v736
      %v2250 = vpop.f32.mrf.mxu0
      %v2251 = vadd.f32 %v2090, %v2250
      %v2252 = vpop.f32.mrf.mxu0
      %v2253 = vpop.f32.mrf.mxu0
      %v2254 = vadd.f32 %v2093, %v2253
      %v2255 = vpop.f32.mrf.mxu0
      %2256 = vmatprep.mubr.bf16.mxu0 0
      %2257 = vmatmul.mubr.bf16.gmra.mxu0 %v737
      %v2258 = vpop.f32.mrf.mxu0
      %v2259 = vadd.f32 %v2098, %v2258
      %v2260 = vpop.f32.mrf.mxu0
      %v2261 = vpop.f32.mrf.mxu0
      %v2262 = vadd.f32 %v2101, %v2261
      %v2263 = vpop.f32.mrf.mxu0
      %2264 = vmatprep.mubr.bf16.mxu0 0
      %2265 = vmatmul.mubr.bf16.gmra.mxu0 %v738
      %v2266 = vpop.f32.mrf.mxu0
      %v2267 = vadd.f32 %v2106, %v2266
      %v2268 = vpop.f32.mrf.mxu0
      %v2269 = vpop.f32.mrf.mxu0
      %v2270 = vadd.f32 %v2109, %v2269
      %v2271 = vpop.f32.mrf.mxu0
      %2272 = vmatprep.mubr.bf16.mxu0 0
      %2273 = vmatmul.mubr.bf16.gmra.mxu0 %v739
      %v2274 = vpop.f32.mrf.mxu0
      %v2275 = vadd.f32 %v2114, %v2274
      %v2276 = vpop.f32.mrf.mxu0
      %v2277 = vpop.f32.mrf.mxu0
      %v2278 = vadd.f32 %v2117, %v2277
      %v2279 = vpop.f32.mrf.mxu0
      %2280 = vmatprep.mubr.bf16.mxu0 0
      %2281 = vmatmul.mubr.bf16.gmra.mxu0 %v800
      %v2282 = vpop.f32.mrf.mxu0
      %v2283 = vadd.f32 %v2122, %v2282
      %v2284 = vpop.f32.mrf.mxu0
      %v2285 = vpop.f32.mrf.mxu0
      %v2286 = vadd.f32 %v2125, %v2285
      %v2287 = vpop.f32.mrf.mxu0
      %2288 = vmatprep.mubr.bf16.mxu0 0
      %2289 = vmatmul.mubr.bf16.gmra.mxu0 %v724
      %v2290 = vpop.f32.mrf.mxu0
      %v2291 = vadd.f32 %v2130, %v2290
      %v2292 = vpop.f32.mrf.mxu0
      %v2293 = vpop.f32.mrf.mxu0
      %v2294 = vadd.f32 %v2133, %v2293
      %v2295 = vpop.f32.mrf.mxu0
      %2296 = vdwg.mxu0
      %v2297 = vadd.f32 %v1656, %v2171
      %v2298 = vadd.f32 %v1659, %v2174
      %v2299 = vadd.f32 %v1664, %v2179
      %v2300 = vadd.f32 %v1667, %v2182
      %v2301 = vadd.f32 %v1672, %v2187
      %v2302 = vadd.f32 %v1675, %v2190
      %v2303 = vadd.f32 %v1680, %v2195
      %v2304 = vadd.f32 %v1683, %v2198
      %v2305 = vadd.f32 %v1688, %v2203
      %v2306 = vadd.f32 %v1691, %v2206
      %v2307 = vadd.f32 %v1696, %v2211
      %v2308 = vadd.f32 %v1699, %v2214
      %v2309 = vadd.f32 %v1704, %v2219
      %v2310 = vadd.f32 %v1707, %v2222
      %v2311 = vadd.f32 %v1712, %v2227
      %v2312 = vadd.f32 %v1715, %v2230
      %v2313 = vadd.f32 %v1720, %v2235
      %v2314 = vadd.f32 %v1723, %v2238
      %v2315 = vadd.f32 %v1728, %v2243
      %v2316 = vadd.f32 %v1731, %v2246
      %v2317 = vadd.f32 %v1736, %v2251
      %v2318 = vadd.f32 %v1739, %v2254
      %v2319 = vadd.f32 %v1744, %v2259
      %v2320 = vadd.f32 %v1747, %v2262
      %v2321 = vadd.f32 %v1752, %v2267
      %v2322 = vadd.f32 %v1755, %v2270
      %v2323 = vadd.f32 %v1760, %v2275
      %v2324 = vadd.f32 %v1763, %v2278
      %v2325 = vadd.f32 %v1768, %v2283
      %v2326 = vadd.f32 %v1771, %v2286
      %v2327 = vadd.f32 %v1776, %v2291
      %v2328 = vadd.f32 %v1779, %v2294
      %v2329 = vld [vmem:[%s5] sm:$0x1]
      %v2331 = vlaneseq
      %v2332 = vshrl.u32 %v2331, 7
      %v2333 = vsub.s32 0, %v2332
      %v2334 = vrot.slane %v2329, %v2333
      %v2336 = vadd.f32 %v2297, %v2334
      %v2337 = vadd.f32 %v2298, %v2334
      %v2338 = vadd.f32 %v2299, %v2334
      %v2339 = vadd.f32 %v2300, %v2334
      %v2340 = vadd.f32 %v2301, %v2334
      %v2341 = vadd.f32 %v2302, %v2334
      %v2342 = vadd.f32 %v2303, %v2334
      %v2343 = vadd.f32 %v2304, %v2334
      %v2344 = vadd.f32 %v2305, %v2334
      %v2345 = vadd.f32 %v2306, %v2334
      %v2346 = vadd.f32 %v2307, %v2334
      %v2347 = vadd.f32 %v2308, %v2334
      %v2348 = vadd.f32 %v2309, %v2334
      %v2349 = vadd.f32 %v2310, %v2334
      %v2350 = vadd.f32 %v2311, %v2334
      %v2351 = vadd.f32 %v2312, %v2334
      %v2352 = vadd.f32 %v2313, %v2334
      %v2353 = vadd.f32 %v2314, %v2334
      %v2354 = vadd.f32 %v2315, %v2334
      %v2355 = vadd.f32 %v2316, %v2334
      %v2356 = vadd.f32 %v2317, %v2334
      %v2357 = vadd.f32 %v2318, %v2334
      %v2358 = vadd.f32 %v2319, %v2334
      %v2359 = vadd.f32 %v2320, %v2334
      %v2360 = vadd.f32 %v2321, %v2334
      %v2361 = vadd.f32 %v2322, %v2334
      %v2362 = vadd.f32 %v2323, %v2334
      %v2363 = vadd.f32 %v2324, %v2334
      %v2364 = vadd.f32 %v2325, %v2334
      %v2365 = vadd.f32 %v2326, %v2334
      %v2366 = vadd.f32 %v2327, %v2334
      %v2367 = vadd.f32 %v2328, %v2334
      %v2368 = vpack.c.bf16 %v2337, %v2336
      %v2369 = vpack.c.bf16 %v2339, %v2338
      %v2370 = vpack.c.bf16 %v2341, %v2340
      %v2371 = vpack.c.bf16 %v2343, %v2342
      %v2372 = vpack.c.bf16 %v2345, %v2344
      %v2373 = vpack.c.bf16 %v2347, %v2346
      %v2374 = vpack.c.bf16 %v2349, %v2348
      %v2375 = vpack.c.bf16 %v2351, %v2350
      %v2376 = vpack.c.bf16 %v2353, %v2352
      %v2377 = vpack.c.bf16 %v2355, %v2354
      %v2378 = vpack.c.bf16 %v2357, %v2356
      %v2379 = vpack.c.bf16 %v2359, %v2358
      %v2380 = vpack.c.bf16 %v2361, %v2360
      %v2381 = vpack.c.bf16 %v2363, %v2362
      %v2382 = vpack.c.bf16 %v2365, %v2364
      %v2383 = vpack.c.bf16 %v2367, %v2366
      %v2400 = vunpack.c.l.b16 %v2368
      %v2401 = vunpack.c.h.b16 %v2368
      %v2402 = vunpack.c.l.b16 %v2369
      %v2403 = vunpack.c.h.b16 %v2369
      %v2404 = vunpack.c.l.b16 %v2370
      %v2405 = vunpack.c.h.b16 %v2370
      %v2406 = vunpack.c.l.b16 %v2371
      %v2407 = vunpack.c.h.b16 %v2371
      %v2408 = vunpack.c.l.b16 %v2372
      %v2409 = vunpack.c.h.b16 %v2372
      %v2410 = vunpack.c.l.b16 %v2373
      %v2411 = vunpack.c.h.b16 %v2373
      %v2412 = vunpack.c.l.b16 %v2374
      %v2413 = vunpack.c.h.b16 %v2374
      %v2414 = vunpack.c.l.b16 %v2375
      %v2415 = vunpack.c.h.b16 %v2375
      %v2416 = vunpack.c.l.b16 %v2376
      %v2417 = vunpack.c.h.b16 %v2376
      %v2418 = vunpack.c.l.b16 %v2377
      %v2419 = vunpack.c.h.b16 %v2377
      %v2420 = vunpack.c.l.b16 %v2378
      %v2421 = vunpack.c.h.b16 %v2378
      %v2422 = vunpack.c.l.b16 %v2379
      %v2423 = vunpack.c.h.b16 %v2379
      %v2424 = vunpack.c.l.b16 %v2380
      %v2425 = vunpack.c.h.b16 %v2380
      %v2426 = vunpack.c.l.b16 %v2381
      %v2427 = vunpack.c.h.b16 %v2381
      %v2428 = vunpack.c.l.b16 %v2382
      %v2429 = vunpack.c.h.b16 %v2382
      %v2430 = vunpack.c.l.b16 %v2383
      %v2431 = vunpack.c.h.b16 %v2383
      %v2432 = vpack.c.b16 %v2400, %v2400
      %v2433 = vpack.c.b16 %v2401, %v2401
      %v2434 = vpack.c.b16 %v2402, %v2402
      %v2435 = vpack.c.b16 %v2403, %v2403
      %v2436 = vpack.c.b16 %v2404, %v2404
      %v2437 = vpack.c.b16 %v2405, %v2405
      %v2438 = vpack.c.b16 %v2406, %v2406
      %v2439 = vpack.c.b16 %v2407, %v2407
      %v2440 = vpack.c.b16 %v2408, %v2408
      %v2441 = vpack.c.b16 %v2409, %v2409
      %v2442 = vpack.c.b16 %v2410, %v2410
      %v2443 = vpack.c.b16 %v2411, %v2411
      %v2444 = vpack.c.b16 %v2412, %v2412
      %v2445 = vpack.c.b16 %v2413, %v2413
      %v2446 = vpack.c.b16 %v2414, %v2414
      %v2447 = vpack.c.b16 %v2415, %v2415
      %v2448 = vpack.c.b16 %v2416, %v2416
      %v2449 = vpack.c.b16 %v2417, %v2417
      %v2450 = vpack.c.b16 %v2418, %v2418
      %v2451 = vpack.c.b16 %v2419, %v2419
      %v2452 = vpack.c.b16 %v2420, %v2420
      %v2453 = vpack.c.b16 %v2421, %v2421
      %v2454 = vpack.c.b16 %v2422, %v2422
      %v2455 = vpack.c.b16 %v2423, %v2423
      %v2456 = vpack.c.b16 %v2424, %v2424
      %v2457 = vpack.c.b16 %v2425, %v2425
      %v2458 = vpack.c.b16 %v2426, %v2426
      %v2459 = vpack.c.b16 %v2427, %v2427
      %v2460 = vpack.c.b16 %v2428, %v2428
      %v2461 = vpack.c.b16 %v2429, %v2429
      %v2462 = vpack.c.b16 %v2430, %v2430
      %v2463 = vpack.c.b16 %v2431, %v2431
      %2496 = vst [vmem:[%s285] sm:$0xf] %v2432
      %2497 = vst [vmem:[%s285 + $0x4] sm:$0xf] %v2433
      %2498 = vst [vmem:[%s285 + $0x8] sm:$0xf] %v2434
      %2499 = vst [vmem:[%s285 + $0xc] sm:$0xf] %v2435
      %2500 = vst [vmem:[%s285 + $0x10] sm:$0xf] %v2436
      %2501 = vst [vmem:[%s285 + $0x14] sm:$0xf] %v2437
      %2502 = vst [vmem:[%s285 + $0x18] sm:$0xf] %v2438
      %2503 = vst [vmem:[%s285 + $0x1c] sm:$0xf] %v2439
      %2504 = vst [vmem:[%s285 + $0x20] sm:$0xf] %v2440
      %2505 = vst [vmem:[%s285 + $0x24] sm:$0xf] %v2441
      %2506 = vst [vmem:[%s285 + $0x28] sm:$0xf] %v2442
      %2507 = vst [vmem:[%s285 + $0x2c] sm:$0xf] %v2443
      %2508 = vst [vmem:[%s285 + $0x30] sm:$0xf] %v2444
      %2509 = vst [vmem:[%s285 + $0x34] sm:$0xf] %v2445
      %2510 = vst [vmem:[%s285 + $0x38] sm:$0xf] %v2446
      %2511 = vst [vmem:[%s285 + $0x3c] sm:$0xf] %v2447
      %2512 = vst [vmem:[%s285 + $0x40] sm:$0xf] %v2448
      %2513 = vst [vmem:[%s285 + $0x44] sm:$0xf] %v2449
      %2514 = vst [vmem:[%s285 + $0x48] sm:$0xf] %v2450
      %2515 = vst [vmem:[%s285 + $0x4c] sm:$0xf] %v2451
      %2516 = vst [vmem:[%s285 + $0x50] sm:$0xf] %v2452
      %2517 = vst [vmem:[%s285 + $0x54] sm:$0xf] %v2453
      %2518 = vst [vmem:[%s285 + $0x58] sm:$0xf] %v2454
      %2519 = vst [vmem:[%s285 + $0x5c] sm:$0xf] %v2455
      %2520 = vst [vmem:[%s285 + $0x60] sm:$0xf] %v2456
      %2521 = vst [vmem:[%s285 + $0x64] sm:$0xf] %v2457
      %2522 = vst [vmem:[%s285 + $0x68] sm:$0xf] %v2458
      %2523 = vst [vmem:[%s285 + $0x6c] sm:$0xf] %v2459
      %2524 = vst [vmem:[%s285 + $0x70] sm:$0xf] %v2460
      %2525 = vst [vmem:[%s285 + $0x74] sm:$0xf] %v2461
      %2526 = vst [vmem:[%s285 + $0x78] sm:$0xf] %v2462
      %2527 = vst [vmem:[%s285 + $0x7c] sm:$0xf] %v2463
      %v2528 = vadd.f32 %v2336, %v2337
      %v2529 = vadd.f32 %v2528, %v2338
      %v2530 = vadd.f32 %v2529, %v2339
      %v2531 = vadd.f32 %v2530, %v2340
      %v2532 = vadd.f32 %v2531, %v2341
      %v2533 = vadd.f32 %v2532, %v2342
      %v2534 = vadd.f32 %v2533, %v2343
      %v2535 = vadd.f32 %v2534, %v2344
      %v2536 = vadd.f32 %v2535, %v2345
      %v2537 = vadd.f32 %v2536, %v2346
      %v2538 = vadd.f32 %v2537, %v2347
      %v2539 = vadd.f32 %v2538, %v2348
      %v2540 = vadd.f32 %v2539, %v2349
      %v2541 = vadd.f32 %v2540, %v2350
      %v2542 = vadd.f32 %v2541, %v2351
      %v2543 = vadd.f32 %v2542, %v2352
      %v2544 = vadd.f32 %v2543, %v2353
      %v2545 = vadd.f32 %v2544, %v2354
      %v2546 = vadd.f32 %v2545, %v2355
      %v2547 = vadd.f32 %v2546, %v2356
      %v2548 = vadd.f32 %v2547, %v2357
      %v2549 = vadd.f32 %v2548, %v2358
      %v2550 = vadd.f32 %v2549, %v2359
      %v2551 = vadd.f32 %v2550, %v2360
      %v2552 = vadd.f32 %v2551, %v2361
      %v2553 = vadd.f32 %v2552, %v2362
      %v2554 = vadd.f32 %v2553, %v2363
      %v2555 = vadd.f32 %v2554, %v2364
      %v2556 = vadd.f32 %v2555, %v2365
      %v2557 = vadd.f32 %v2556, %v2366
      %v2558 = vadd.f32 %v2557, %v2367
      %v2559 = vrot.slane %v2558, 4
      %v2560 = vadd.f32 %v2558, %v2559
      %v2561 = vrot.slane %v2560, 2
      %v2562 = vadd.f32 %v2560, %v2561
      %v2563 = vrot.slane %v2562, 1
      %v2564 = vadd.f32 %v2562, %v2563
      %v2565 = vmul.f32 %v2564, 0.00390625
      %v2566 = vsub.f32 %v2336, %v2565
      %v2567 = vsub.f32 %v2337, %v2565
      %v2568 = vsub.f32 %v2338, %v2565
      %v2569 = vsub.f32 %v2339, %v2565
      %v2570 = vsub.f32 %v2340, %v2565
      %v2571 = vsub.f32 %v2341, %v2565
      %v2572 = vsub.f32 %v2342, %v2565
      %v2573 = vsub.f32 %v2343, %v2565
      %v2574 = vsub.f32 %v2344, %v2565
      %v2575 = vsub.f32 %v2345, %v2565
      %v2576 = vsub.f32 %v2346, %v2565
      %v2577 = vsub.f32 %v2347, %v2565
      %v2578 = vsub.f32 %v2348, %v2565
      %v2579 = vsub.f32 %v2349, %v2565
      %v2580 = vsub.f32 %v2350, %v2565
      %v2581 = vsub.f32 %v2351, %v2565
      %v2582 = vsub.f32 %v2352, %v2565
      %v2583 = vsub.f32 %v2353, %v2565
      %v2584 = vsub.f32 %v2354, %v2565
      %v2585 = vsub.f32 %v2355, %v2565
      %v2586 = vsub.f32 %v2356, %v2565
      %v2587 = vsub.f32 %v2357, %v2565
      %v2588 = vsub.f32 %v2358, %v2565
      %v2589 = vsub.f32 %v2359, %v2565
      %v2590 = vsub.f32 %v2360, %v2565
      %v2591 = vsub.f32 %v2361, %v2565
      %v2592 = vsub.f32 %v2362, %v2565
      %v2593 = vsub.f32 %v2363, %v2565
      %v2594 = vsub.f32 %v2364, %v2565
      %v2595 = vsub.f32 %v2365, %v2565
      %v2596 = vsub.f32 %v2366, %v2565
      %v2597 = vsub.f32 %v2367, %v2565
      %2598 = vst [vmem:[%s289] sm:$0x1] %v2564
      %v2599 = vmul.f32 %v2566, %v2566
      %v2600 = vmul.f32 %v2567, %v2567
      %v2601 = vmul.f32 %v2568, %v2568
      %v2602 = vmul.f32 %v2569, %v2569
      %v2603 = vmul.f32 %v2570, %v2570
      %v2604 = vmul.f32 %v2571, %v2571
      %v2605 = vmul.f32 %v2572, %v2572
      %v2606 = vmul.f32 %v2573, %v2573
      %v2607 = vmul.f32 %v2574, %v2574
      %v2608 = vmul.f32 %v2575, %v2575
      %v2609 = vmul.f32 %v2576, %v2576
      %v2610 = vmul.f32 %v2577, %v2577
      %v2611 = vmul.f32 %v2578, %v2578
      %v2612 = vmul.f32 %v2579, %v2579
      %v2613 = vmul.f32 %v2580, %v2580
      %v2614 = vmul.f32 %v2581, %v2581
      %v2615 = vmul.f32 %v2582, %v2582
      %v2616 = vmul.f32 %v2583, %v2583
      %v2617 = vmul.f32 %v2584, %v2584
      %v2618 = vmul.f32 %v2585, %v2585
      %v2619 = vmul.f32 %v2586, %v2586
      %v2620 = vmul.f32 %v2587, %v2587
      %v2621 = vmul.f32 %v2588, %v2588
      %v2622 = vmul.f32 %v2589, %v2589
      %v2623 = vmul.f32 %v2590, %v2590
      %v2624 = vmul.f32 %v2591, %v2591
      %v2625 = vmul.f32 %v2592, %v2592
      %v2626 = vmul.f32 %v2593, %v2593
      %v2627 = vmul.f32 %v2594, %v2594
      %v2628 = vmul.f32 %v2595, %v2595
      %v2629 = vmul.f32 %v2596, %v2596
      %v2630 = vmul.f32 %v2597, %v2597
      %v2631 = vadd.f32 %v2599, %v2600
      %v2632 = vadd.f32 %v2631, %v2601
      %v2633 = vadd.f32 %v2632, %v2602
      %v2634 = vadd.f32 %v2633, %v2603
      %v2635 = vadd.f32 %v2634, %v2604
      %v2636 = vadd.f32 %v2635, %v2605
      %v2637 = vadd.f32 %v2636, %v2606
      %v2638 = vadd.f32 %v2637, %v2607
      %v2639 = vadd.f32 %v2638, %v2608
      %v2640 = vadd.f32 %v2639, %v2609
      %v2641 = vadd.f32 %v2640, %v2610
      %v2642 = vadd.f32 %v2641, %v2611
      %v2643 = vadd.f32 %v2642, %v2612
      %v2644 = vadd.f32 %v2643, %v2613
      %v2645 = vadd.f32 %v2644, %v2614
      %v2646 = vadd.f32 %v2645, %v2615
      %v2647 = vadd.f32 %v2646, %v2616
      %v2648 = vadd.f32 %v2647, %v2617
      %v2649 = vadd.f32 %v2648, %v2618
      %v2650 = vadd.f32 %v2649, %v2619
      %v2651 = vadd.f32 %v2650, %v2620
      %v2652 = vadd.f32 %v2651, %v2621
      %v2653 = vadd.f32 %v2652, %v2622
      %v2654 = vadd.f32 %v2653, %v2623
      %v2655 = vadd.f32 %v2654, %v2624
      %v2656 = vadd.f32 %v2655, %v2625
      %v2657 = vadd.f32 %v2656, %v2626
      %v2658 = vadd.f32 %v2657, %v2627
      %v2659 = vadd.f32 %v2658, %v2628
      %v2660 = vadd.f32 %v2659, %v2629
      %v2661 = vadd.f32 %v2660, %v2630
      %v2662 = vrot.slane %v2661, 4
      %v2663 = vadd.f32 %v2661, %v2662
      %v2664 = vrot.slane %v2663, 2
      %v2665 = vadd.f32 %v2663, %v2664
      %v2666 = vrot.slane %v2665, 1
      %v2667 = vadd.f32 %v2665, %v2666
      %2668 = vst [vmem:[%s289 + $0x1] sm:$0x1] %v2667
      %p2669 = scmp.lt.s32.totalorder %s19, 1
      %s2670 = scalar_select %p2669, %s19, 1
      %s2671 = smul.addr %s2670, 32
      %s2672 = smul.addr %s2671, 4
      %s2673 = scalar_lea.vmem %s6, %s2672
      %p2674 = scmp.lt.s32.totalorder %s19, 1
      %s2675 = scalar_select %p2674, %s19, 1
      %s2676 = smul.addr %s2675, 2
      %s2677 = scalar_lea.vmem %s7, %s2676
      // Predicated region
      $region45: #{resblock_forward.4} parent=43 // pred_check
        %p2678 = pneg %p168
      $region46: #{resblock_forward.4} parent=43 // pred_check_branch
        %2680 = sbr.rel (%p2678) target = $region48
      $region47: #{resblock_forward.4} parent=43 // pred_region
        _
      $region48: #{resblock_forward.4} parent=43 // pred_fallthru
        _
      // Predicated region
      $region49: #{resblock_forward.4} parent=43 // pred_check
        %p2681 = pneg %p194
      $region50: #{resblock_forward.4} parent=43 // pred_check_branch
        %2683 = sbr.rel (%p2681) target = $region52
      $region51: #{resblock_forward.4} parent=43 // pred_region
        _
      $region52: #{resblock_forward.4} parent=43 // pred_fallthru
        _
    $region44: #{resblock_forward.4} parent=5 // pred_fallthru
      _
    %p2684 = scmp.le.s32.totalorder 2, %s14
    // Predicated region
    $region53: #{resblock_forward.4} parent=5 // pred_check
      %p2685 = pneg %p2684
    $region54: #{resblock_forward.4} parent=5 // pred_check_branch
      %2687 = sbr.rel (%p2685) target = $region56
    $region55: #{resblock_forward.4} parent=5 // pred_region
      %s2688 = ssub.s32 %s14, 2
      // Predicated region
      $region57: #{resblock_forward.4} parent=55 // pred_check
        %p2689 = pneg %p174
      $region58: #{resblock_forward.4} parent=55 // pred_check_branch
        %2691 = sbr.rel (%p2689) target = $region60
      $region59: #{resblock_forward.4} parent=55 // pred_region
        %p2692 = scmp.lt.s32.totalorder %s20, 1
        %s2693 = scalar_select %p2692, %s20, 1
        %s2694 = smul.addr %s2693, 32
        %s2695 = smul.addr %s2694, 4
        %s2696 = scalar_lea.vmem %s6, %s2695
      $region60: #{resblock_forward.4} parent=55 // pred_fallthru
        _
      // Predicated region
      $region61: #{resblock_forward.4} parent=55 // pred_check
        %p2697 = pneg %p200
      $region62: #{resblock_forward.4} parent=55 // pred_check_branch
        %2699 = sbr.rel (%p2697) target = $region64
      $region63: #{resblock_forward.4} parent=55 // pred_region
        %p2700 = scmp.lt.s32.totalorder %s20, 1
        %s2701 = scalar_select %p2700, %s20, 1
        %s2702 = smul.addr %s2701, 2
        %s2703 = scalar_lea.vmem %s7, %s2702
      $region64: #{resblock_forward.4} parent=55 // pred_fallthru
        _
    $region56: #{resblock_forward.4} parent=5 // pred_fallthru
      _
  $region6: #{resblock_forward.4} parent=0 // loop_footer
    %s18 = sadd.s32 1, %s14
  $region7: #{resblock_forward.4} parent=0 // loop_footer_branch
    %13 = sbr.rel target = $region3
  $region8: #{resblock_forward.4} parent=0 // loop_exit
    _

// kernel: resblock_forward.3
$region0: #{resblock_forward.3}
  #allocation0 [shape = 'u32[]', space=smem, size = 0x4, offset = 0x4, fixed_abs, tag = 'smem constant byte address 0x4 - core index']
  #allocation1 [shape = 'u32[144,128]{1,0:T(1,128)}', space=vmem, size = 0x12000, scoped, tag = 'internal scratch']
  %s0 = inlined_call_operand.vmem [shape: bf16[2,16,16,128], index: 0, kind: input, shape index: {}]
  %s1 = inlined_call_operand.vmem [shape: bf16[3,384,128], index: 1, kind: input, shape index: {}]
  %s2 = inlined_call_operand.vmem [shape: f32[1,128], index: 2, kind: input, shape index: {}]
  %s3 = inlined_call_operand.vmem [shape: bf16[128,128], index: 3, kind: input, shape index: {}]
  %s4 = inlined_call_operand.vmem [shape: f32[1,128], index: 4, kind: input, shape index: {}]
  %s5 = inlined_call_operand.vmem [shape: bf16[2,16,16,128], index: 5, kind: output, shape index: {0}]
  %s6 = inlined_call_operand.vmem [shape: bf16[2,16,16,128], index: 6, kind: output, shape index: {1}]
  %s7 = inlined_call_operand.vmem [shape: f32[2,2,128], index: 7, kind: output, shape index: {2}]
  %s8 = inlined_call_operand.vmem [shape: f32[2,2,128], index: 8, kind: output, shape index: {3}]
  %9 = xla_tuple %s5, %s6, %s7, %s8
  %s10 = sld [smem:[#allocation0]]
  $region77: #{resblock_forward.3} parent=0
    _
  %s12 = ssub.s32 1, %s10
  %s13 = scalar_select 0, %s12, %s10
  loop: start=0, step=1, limit=4
  $region2: #{resblock_forward.3} parent=0 // loop_pre_header
    _
  $region3: #{resblock_forward.3} parent=0 // loop_header
    %s15 = sphi 0, %s19
    %p16 = scmp.ge.s32.totalorder %s15, 4
    %s25 = sphi 0, %s27
    %s28 = sphi 0, %s25
    %s29 = sphi 0, %s28
    %s45 = sphi 0, %s29
    %s49 = sphi 0, %s49
    %s51 = sphi 0, %s49
    %s52 = sphi 0, %s51
    %s66 = sphi 0, %s52
    %s70 = sphi 0, %s70
    %s72 = sphi 0, %s70
    %s73 = sphi 0, %s72
    %s87 = sphi 0, %s73
    %s91 = sphi 0, %s91
    %s93 = sphi 0, %s91
    %s94 = sphi 0, %s93
    %s108 = sphi 0, %s94
    %s112 = sphi 0, %s112
    %s114 = sphi 0, %s112
    %s115 = sphi 0, %s114
    %s129 = sphi 0, %s115
    %s135 = sphi 0, %s137
    %s138 = sphi 0, %s135
    %s139 = sphi 0, %s138
    %s155 = sphi 0, %s139
    %s161 = sphi 0, %s163
    %s164 = sphi 0, %s161
    %s165 = sphi 0, %s164
    %s181 = sphi 0, %s165
    %s187 = sphi 0, %s189
    %s190 = sphi 0, %s187
    %s191 = sphi 0, %s190
    %s207 = sphi 0, %s191
    %s213 = sphi 0, %s215
    %s216 = sphi 0, %s213
    %s217 = sphi 0, %s216
    %s233 = sphi 0, %s217
  $region4: #{resblock_forward.3} parent=0 // loop_header_branch
    %18 = sbr.rel (%p16) target = $region8
  $region5: #{resblock_forward.3} parent=0 // loop_body
    %s20 = ssub.s32 %s15, 1
    %s21 = ssub.s32 %s15, 2
    %s22 = sadd.s32 %s15, 1
    %s23 = ssub.s32 %s15, %s22
    %p24 = scmp.eq.s32.totalorder %s23, 0
    %s26 = sadd.s32 %s25, 1
    %s27 = scalar_select %p24, %s25, %s26
    %p30 = pneg %p24
    %p31 = scmp.eq.s32.totalorder %s15, 1
    %p32 = por %p30, %p31
    %p33 = scmp.ne.s32.totalorder %s25, %s28
    %p34 = scmp.eq.s32.totalorder %s15, 0
    %p35 = por %p33, %p34
    %p36 = scmp.ne.s32.totalorder %s25, %s28
    %p37 = scmp.eq.s32.totalorder %s20, 1
    %p38 = por %p36, %p37
    %p39 = scmp.ne.s32.totalorder %s28, %s29
    %p40 = scmp.eq.s32.totalorder %s20, 0
    %p41 = por %p39, %p40
    %p42 = scmp.ne.s32.totalorder %s28, %s29
    %p43 = scmp.eq.s32.totalorder %s21, 1
    %p44 = por %p42, %p43
    %p46 = scmp.ne.s32.totalorder %s29, %s45
    %p47 = scmp.eq.s32.totalorder %s21, 0
    %p48 = por %p46, %p47
    %s50 = sadd.s32 %s49, 1
    %p53 = scmp.eq.s32.totalorder %s15, 1
    %p54 = scmp.ne.s32.totalorder %s49, %s51
    %p55 = scmp.eq.s32.totalorder %s15, 0
    %p56 = por %p54, %p55
    %p57 = scmp.ne.s32.totalorder %s49, %s51
    %p58 = scmp.eq.s32.totalorder %s20, 1
    %p59 = por %p57, %p58
    %p60 = scmp.ne.s32.totalorder %s51, %s52
    %p61 = scmp.eq.s32.totalorder %s20, 0
    %p62 = por %p60, %p61
    %p63 = scmp.ne.s32.totalorder %s51, %s52
    %p64 = scmp.eq.s32.totalorder %s21, 1
    %p65 = por %p63, %p64
    %p67 = scmp.ne.s32.totalorder %s52, %s66
    %p68 = scmp.eq.s32.totalorder %s21, 0
    %p69 = por %p67, %p68
    %s71 = sadd.s32 %s70, 1
    %p74 = scmp.eq.s32.totalorder %s15, 1
    %p75 = scmp.ne.s32.totalorder %s70, %s72
    %p76 = scmp.eq.s32.totalorder %s15, 0
    %p77 = por %p75, %p76
    %p78 = scmp.ne.s32.totalorder %s70, %s72
    %p79 = scmp.eq.s32.totalorder %s20, 1
    %p80 = por %p78, %p79
    %p81 = scmp.ne.s32.totalorder %s72, %s73
    %p82 = scmp.eq.s32.totalorder %s20, 0
    %p83 = por %p81, %p82
    %p84 = scmp.ne.s32.totalorder %s72, %s73
    %p85 = scmp.eq.s32.totalorder %s21, 1
    %p86 = por %p84, %p85
    %p88 = scmp.ne.s32.totalorder %s73, %s87
    %p89 = scmp.eq.s32.totalorder %s21, 0
    %p90 = por %p88, %p89
    %s92 = sadd.s32 %s91, 1
    %p95 = scmp.eq.s32.totalorder %s15, 1
    %p96 = scmp.ne.s32.totalorder %s91, %s93
    %p97 = scmp.eq.s32.totalorder %s15, 0
    %p98 = por %p96, %p97
    %p99 = scmp.ne.s32.totalorder %s91, %s93
    %p100 = scmp.eq.s32.totalorder %s20, 1
    %p101 = por %p99, %p100
    %p102 = scmp.ne.s32.totalorder %s93, %s94
    %p103 = scmp.eq.s32.totalorder %s20, 0
    %p104 = por %p102, %p103
    %p105 = scmp.ne.s32.totalorder %s93, %s94
    %p106 = scmp.eq.s32.totalorder %s21, 1
    %p107 = por %p105, %p106
    %p109 = scmp.ne.s32.totalorder %s94, %s108
    %p110 = scmp.eq.s32.totalorder %s21, 0
    %p111 = por %p109, %p110
    %s113 = sadd.s32 %s112, 1
    %p116 = scmp.eq.s32.totalorder %s15, 1
    %p117 = scmp.ne.s32.totalorder %s112, %s114
    %p118 = scmp.eq.s32.totalorder %s15, 0
    %p119 = por %p117, %p118
    %p120 = scmp.ne.s32.totalorder %s112, %s114
    %p121 = scmp.eq.s32.totalorder %s20, 1
    %p122 = por %p120, %p121
    %p123 = scmp.ne.s32.totalorder %s114, %s115
    %p124 = scmp.eq.s32.totalorder %s20, 0
    %p125 = por %p123, %p124
    %p126 = scmp.ne.s32.totalorder %s114, %s115
    %p127 = scmp.eq.s32.totalorder %s21, 1
    %p128 = por %p126, %p127
    %p130 = scmp.ne.s32.totalorder %s115, %s129
    %p131 = scmp.eq.s32.totalorder %s21, 0
    %p132 = por %p130, %p131
    %s133 = ssub.s32 %s15, %s22
    %p134 = scmp.eq.s32.totalorder %s133, 0
    %s136 = sadd.s32 %s135, 1
    %s137 = scalar_select %p134, %s135, %s136
    %p140 = pneg %p134
    %p141 = scmp.eq.s32.totalorder %s15, 1
    %p142 = por %p140, %p141
    %p143 = scmp.ne.s32.totalorder %s135, %s138
    %p144 = scmp.eq.s32.totalorder %s15, 0
    %p145 = por %p143, %p144
    %p146 = scmp.ne.s32.totalorder %s135, %s138
    %p147 = scmp.eq.s32.totalorder %s20, 1
    %p148 = por %p146, %p147
    %p149 = scmp.ne.s32.totalorder %s138, %s139
    %p150 = scmp.eq.s32.totalorder %s20, 0
    %p151 = por %p149, %p150
    %p152 = scmp.ne.s32.totalorder %s138, %s139
    %p153 = scmp.eq.s32.totalorder %s21, 1
    %p154 = por %p152, %p153
    %p156 = scmp.ne.s32.totalorder %s139, %s155
    %p157 = scmp.eq.s32.totalorder %s21, 0
    %p158 = por %p156, %p157
    %s159 = ssub.s32 %s15, %s22
    %p160 = scmp.eq.s32.totalorder %s159, 0
    %s162 = sadd.s32 %s161, 1
    %s163 = scalar_select %p160, %s161, %s162
    %p166 = pneg %p160
    %p167 = scmp.eq.s32.totalorder %s15, 1
    %p168 = por %p166, %p167
    %p169 = scmp.ne.s32.totalorder %s161, %s164
    %p170 = scmp.eq.s32.totalorder %s15, 0
    %p171 = por %p169, %p170
    %p172 = scmp.ne.s32.totalorder %s161, %s164
    %p173 = scmp.eq.s32.totalorder %s20, 1
    %p174 = por %p172, %p173
    %p175 = scmp.ne.s32.totalorder %s164, %s165
    %p176 = scmp.eq.s32.totalorder %s20, 0
    %p177 = por %p175, %p176
    %p178 = scmp.ne.s32.totalorder %s164, %s165
    %p179 = scmp.eq.s32.totalorder %s21, 1
    %p180 = por %p178, %p179
    %p182 = scmp.ne.s32.totalorder %s165, %s181
    %p183 = scmp.eq.s32.totalorder %s21, 0
    %p184 = por %p182, %p183
    %s185 = ssub.s32 %s15, %s22
    %p186 = scmp.eq.s32.totalorder %s185, 0
    %s188 = sadd.s32 %s187, 1
    %s189 = scalar_select %p186, %s187, %s188
    %p192 = pneg %p186
    %p193 = scmp.eq.s32.totalorder %s15, 1
    %p194 = por %p192, %p193
    %p195 = scmp.ne.s32.totalorder %s187, %s190
    %p196 = scmp.eq.s32.totalorder %s15, 0
    %p197 = por %p195, %p196
    %p198 = scmp.ne.s32.totalorder %s187, %s190
    %p199 = scmp.eq.s32.totalorder %s20, 1
    %p200 = por %p198, %p199
    %p201 = scmp.ne.s32.totalorder %s190, %s191
    %p202 = scmp.eq.s32.totalorder %s20, 0
    %p203 = por %p201, %p202
    %p204 = scmp.ne.s32.totalorder %s190, %s191
    %p205 = scmp.eq.s32.totalorder %s21, 1
    %p206 = por %p204, %p205
    %p208 = scmp.ne.s32.totalorder %s191, %s207
    %p209 = scmp.eq.s32.totalorder %s21, 0
    %p210 = por %p208, %p209
    %s211 = ssub.s32 %s15, %s22
    %p212 = scmp.eq.s32.totalorder %s211, 0
    %s214 = sadd.s32 %s213, 1
    %s215 = scalar_select %p212, %s213, %s214
    %p218 = pneg %p212
    %p219 = scmp.eq.s32.totalorder %s15, 1
    %p220 = por %p218, %p219
    %p221 = scmp.ne.s32.totalorder %s213, %s216
    %p222 = scmp.eq.s32.totalorder %s15, 0
    %p223 = por %p221, %p222
    %p224 = scmp.ne.s32.totalorder %s213, %s216
    %p225 = scmp.eq.s32.totalorder %s20, 1
    %p226 = por %p224, %p225
    %p227 = scmp.ne.s32.totalorder %s216, %s217
    %p228 = scmp.eq.s32.totalorder %s20, 0
    %p229 = por %p227, %p228
    %p230 = scmp.ne.s32.totalorder %s216, %s217
    %p231 = scmp.eq.s32.totalorder %s21, 1
    %p232 = por %p230, %p231
    %p234 = scmp.ne.s32.totalorder %s217, %s233
    %p235 = scmp.eq.s32.totalorder %s21, 0
    %p236 = por %p234, %p235
    %p237 = scmp.le.s32.totalorder 1, %s15
    %p238 = scmp.lt.s32.totalorder %s15, 3
    %p239 = pnand %p237, %p238
    %p240 = pneg %p239
    // Predicated region
    $region9: #{resblock_forward.3} parent=5 // pred_check
      _
    $region10: #{resblock_forward.3} parent=5 // pred_check_branch
      %242 = sbr.rel (%p239) target = $region12
    $region11: #{resblock_forward.3} parent=5 // pred_region
      %s243 = ssub.s32 %s15, 1
      // Predicated region
      $region13: #{resblock_forward.3} parent=11 // pred_check
        %p244 = pneg %p62
      $region14: #{resblock_forward.3} parent=11 // pred_check_branch
        %246 = sbr.rel (%p244) target = $region16
      $region15: #{resblock_forward.3} parent=11 // pred_region
        _
      $region16: #{resblock_forward.3} parent=11 // pred_fallthru
        _
      // Predicated region
      $region17: #{resblock_forward.3} parent=11 // pred_check
        %p247 = pneg %p83
      $region18: #{resblock_forward.3} parent=11 // pred_check_branch
        %249 = sbr.rel (%p247) target = $region20
      $region19: #{resblock_forward.3} parent=11 // pred_region
        _
      $region20: #{resblock_forward.3} parent=11 // pred_fallthru
        _
      // Predicated region
      $region21: #{resblock_forward.3} parent=11 // pred_check
        %p250 = pneg %p104
      $region22: #{resblock_forward.3} parent=11 // pred_check_branch
        %252 = sbr.rel (%p250) target = $region24
      $region23: #{resblock_forward.3} parent=11 // pred_region
        _
      $region24: #{resblock_forward.3} parent=11 // pred_fallthru
        _
      // Predicated region
      $region25: #{resblock_forward.3} parent=11 // pred_check
        %p253 = pneg %p125
      $region26: #{resblock_forward.3} parent=11 // pred_check_branch
        %255 = sbr.rel (%p253) target = $region28
      $region27: #{resblock_forward.3} parent=11 // pred_region
        _
      $region28: #{resblock_forward.3} parent=11 // pred_fallthru
        _
    $region12: #{resblock_forward.3} parent=5 // pred_fallthru
      _
    %p256 = scmp.lt.s32.totalorder %s15, 2
    // Predicated region
    $region29: #{resblock_forward.3} parent=5 // pred_check
      %p257 = pneg %p256
    $region30: #{resblock_forward.3} parent=5 // pred_check_branch
      %259 = sbr.rel (%p257) target = $region32
    $region31: #{resblock_forward.3} parent=5 // pred_region
      // Predicated region
      $region33: #{resblock_forward.3} parent=31 // pred_check
        %p260 = pneg %p35
      $region34: #{resblock_forward.3} parent=31 // pred_check_branch
        %262 = sbr.rel (%p260) target = $region36
      $region35: #{resblock_forward.3} parent=31 // pred_region
        %p263 = scmp.lt.s32.totalorder %s15, 1
        %s264 = scalar_select %p263, %s15, 1
        %s265 = smul.addr %s264, 32
        %s266 = smul.addr %s265, 4
        %s267 = scalar_lea.vmem %s0, %s266
      $region36: #{resblock_forward.3} parent=31 // pred_fallthru
        _
    $region32: #{resblock_forward.3} parent=5 // pred_fallthru
      _
    %p268 = scmp.le.s32.totalorder 1, %s15
    %p269 = scmp.lt.s32.totalorder %s15, 3
    %p270 = pnand %p268, %p269
    %p271 = pneg %p270
    // Predicated region
    $region37: #{resblock_forward.3} parent=5 // pred_check
      _
    $region38: #{resblock_forward.3} parent=5 // pred_check_branch
      %273 = sbr.rel (%p270) target = $region40
    $region39: #{resblock_forward.3} parent=5 // pred_region
      %s274 = ssub.s32 %s15, 1
      %p275 = scmp.lt.s32.totalorder %s20, 1
      %s276 = scalar_select %p275, %s20, 1
      %s277 = smul.addr %s276, 32
      %s278 = smul.addr %s277, 4
      %s279 = scalar_lea.vmem %s0, %s278
      %p280 = pneg %p41
      %p281 = pneg %p38
      %p282 = pneg %p62
      %p283 = pneg %p59
      %p284 = pneg %p83
      %p285 = pneg %p80
      %p286 = pneg %p104
      %p287 = pneg %p101
      %p288 = pneg %p125
      %p289 = pneg %p122
      %p290 = pneg %p151
      %p291 = pneg %p148
      %p292 = scmp.lt.s32.totalorder %s20, 1
      %s293 = scalar_select %p292, %s20, 1
      %s294 = smul.addr %s293, 32
      %s295 = smul.addr %s294, 4
      %s296 = scalar_lea.vmem %s5, %s295
      %p297 = pneg %p177
      %p298 = pneg %p174
      %p299 = scmp.lt.s32.totalorder %s20, 1
      %s300 = scalar_select %p299, %s20, 1
      %s301 = smul.addr %s300, 32
      %s302 = smul.addr %s301, 4
      %s303 = scalar_lea.vmem %s6, %s302
      %p304 = pneg %p203
      %p305 = pneg %p200
      %p306 = scmp.lt.s32.totalorder %s20, 1
      %s307 = scalar_select %p306, %s20, 1
      %s308 = smul.addr %s307, 2
      %s309 = scalar_lea.vmem %s7, %s308
      %p310 = pneg %p229
      %p311 = pneg %p226
      %p312 = scmp.lt.s32.totalorder %s20, 1
      %s313 = scalar_select %p312, %s20, 1
      %s314 = smul.addr %s313, 2
      %s315 = scalar_lea.vmem %s8, %s314
      %p316 = scmp.lt.s32.totalorder %s20, 1
      %s317 = scalar_select %p316, %s20, 1
      %s318 = smul.addr %s317, 32
      %s319 = smul.addr %s318, 4
      %s320 = scalar_lea.vmem %s0, %s319
      %p321 = scmp.lt.s32.totalorder %s20, 1
      %s322 = scalar_select %p321, %s20, 1
      %s323 = smul.addr %s322, 32
      %s324 = smul.addr %s323, 4
      %s325 = scalar_lea.vmem %s5, %s324
      %p326 = scmp.lt.s32.totalorder %s20, 1
      %s327 = scalar_select %p326, %s20, 1
      %s328 = smul.addr %s327, 32
      %s329 = smul.addr %s328, 4
      %s330 = scalar_lea.vmem %s6, %s329
      %p331 = scmp.lt.s32.totalorder %s20, 1
      %s332 = scalar_select %p331, %s20, 1
      %s333 = smul.addr %s332, 2
      %s334 = scalar_lea.vmem %s7, %s333
      %p335 = scmp.lt.s32.totalorder %s20, 1
      %s336 = scalar_select %p335, %s20, 1
      %s337 = smul.addr %s336, 2
      %s338 = scalar_lea.vmem %s8, %s337
      %v340 = vld [vmem:[%s320] sm:$0xf]
      %v341 = vld [vmem:[%s320 + $0x4] sm:$0xf]
      %v342 = vld [vmem:[%s320 + $0x8] sm:$0xf]
      %v343 = vld [vmem:[%s320 + $0xc] sm:$0xf]
      %v344 = vld [vmem:[%s320 + $0x10] sm:$0xf]
      %v345 = vld [vmem:[%s320 + $0x14] sm:$0xf]
      %v346 = vld [vmem:[%s320 + $0x18] sm:$0xf]
      %v347 = vld [vmem:[%s320 + $0x1c] sm:$0xf]
      %v348 = vld [vmem:[%s320 + $0x20] sm:$0xf]
      %v349 = vld [vmem:[%s320 + $0x24] sm:$0xf]
      %v350 = vld [vmem:[%s320 + $0x28] sm:$0xf]
      %v351 = vld [vmem:[%s320 + $0x2c] sm:$0xf]
      %v352 = vld [vmem:[%s320 + $0x30] sm:$0xf]
      %v353 = vld [vmem:[%s320 + $0x34] sm:$0xf]
      %v354 = vld [vmem:[%s320 + $0x38] sm:$0xf]
      %v355 = vld [vmem:[%s320 + $0x3c] sm:$0xf]
      %v356 = vld [vmem:[%s320 + $0x40] sm:$0xf]
      %v357 = vld [vmem:[%s320 + $0x44] sm:$0xf]
      %v358 = vld [vmem:[%s320 + $0x48] sm:$0xf]
      %v359 = vld [vmem:[%s320 + $0x4c] sm:$0xf]
      %v360 = vld [vmem:[%s320 + $0x50] sm:$0xf]
      %v361 = vld [vmem:[%s320 + $0x54] sm:$0xf]
      %v362 = vld [vmem:[%s320 + $0x58] sm:$0xf]
      %v363 = vld [vmem:[%s320 + $0x5c] sm:$0xf]
      %v364 = vld [vmem:[%s320 + $0x60] sm:$0xf]
      %v365 = vld [vmem:[%s320 + $0x64] sm:$0xf]
      %v366 = vld [vmem:[%s320 + $0x68] sm:$0xf]
      %v367 = vld [vmem:[%s320 + $0x6c] sm:$0xf]
      %v368 = vld [vmem:[%s320 + $0x70] sm:$0xf]
      %v369 = vld [vmem:[%s320 + $0x74] sm:$0xf]
      %v370 = vld [vmem:[%s320 + $0x78] sm:$0xf]
      %v371 = vld [vmem:[%s320 + $0x7c] sm:$0xf]
      %v402 = vunpack.c.l.b16 %v340
      %v403 = vunpack.c.l.b16 %v341
      %v404 = vunpack.c.l.b16 %v342
      %v405 = vunpack.c.l.b16 %v343
      %v406 = vunpack.c.l.b16 %v344
      %v407 = vunpack.c.l.b16 %v345
      %v408 = vunpack.c.l.b16 %v346
      %v409 = vunpack.c.l.b16 %v347
      %v410 = vunpack.c.l.b16 %v348
      %v411 = vunpack.c.l.b16 %v349
      %v412 = vunpack.c.l.b16 %v350
      %v413 = vunpack.c.l.b16 %v351
      %v414 = vunpack.c.l.b16 %v352
      %v415 = vunpack.c.l.b16 %v353
      %v416 = vunpack.c.l.b16 %v354
      %v417 = vunpack.c.l.b16 %v355
      %v418 = vunpack.c.l.b16 %v356
      %v419 = vunpack.c.l.b16 %v357
      %v420 = vunpack.c.l.b16 %v358
      %v421 = vunpack.c.l.b16 %v359
      %v422 = vunpack.c.l.b16 %v360
      %v423 = vunpack.c.l.b16 %v361
      %v424 = vunpack.c.l.b16 %v362
      %v425 = vunpack.c.l.b16 %v363
      %v426 = vunpack.c.l.b16 %v364
      %v427 = vunpack.c.l.b16 %v365
      %v428 = vunpack.c.l.b16 %v366
      %v429 = vunpack.c.l.b16 %v367
      %v430 = vunpack.c.l.b16 %v368
      %v431 = vunpack.c.l.b16 %v369
      %v432 = vpack.c.b16 %v403, %v402
      %v433 = vpack.c.b16 %v405, %v404
      %v434 = vpack.c.b16 %v407, %v406
      %v435 = vpack.c.b16 %v409, %v408
      %v436 = vpack.c.b16 %v411, %v410
      %v437 = vpack.c.b16 %v413, %v412
      %v438 = vpack.c.b16 %v415, %v414
      %v439 = vpack.c.b16 %v417, %v416
      %v440 = vpack.c.b16 %v419, %v418
      %v441 = vpack.c.b16 %v421, %v420
      %v442 = vpack.c.b16 %v423, %v422
      %v443 = vpack.c.b16 %v425, %v424
      %v444 = vpack.c.b16 %v427, %v426
      %v445 = vpack.c.b16 %v429, %v428
      %v446 = vpack.c.b16 %v431, %v430
      %v463 = vshrl.u32 0, 16
      %v465 = vrot.slane %v463, 7
      %v466 = vshll.u32 0, 16
      %v468 = vor.u32 %v465, %v466
      %v470 = vshrl.u32 %v432, 16
      %v472 = vrot.slane %v470, 7
      %v473 = vshll.u32 %v432, 16
      %v475 = vor.u32 %v472, %v473
      %v477 = vshrl.u32 %v433, 16
      %v479 = vrot.slane %v477, 7
      %v480 = vshll.u32 %v433, 16
      %v482 = vor.u32 %v479, %v480
      %v484 = vshrl.u32 %v434, 16
      %v486 = vrot.slane %v484, 7
      %v487 = vshll.u32 %v434, 16
      %v489 = vor.u32 %v486, %v487
      %v491 = vshrl.u32 %v435, 16
      %v493 = vrot.slane %v491, 7
      %v494 = vshll.u32 %v435, 16
      %v496 = vor.u32 %v493, %v494
      %v498 = vshrl.u32 %v436, 16
      %v500 = vrot.slane %v498, 7
      %v501 = vshll.u32 %v436, 16
      %v503 = vor.u32 %v500, %v501
      %v505 = vshrl.u32 %v437, 16
      %v507 = vrot.slane %v505, 7
      %v508 = vshll.u32 %v437, 16
      %v510 = vor.u32 %v507, %v508
      %v512 = vshrl.u32 %v438, 16
      %v514 = vrot.slane %v512, 7
      %v515 = vshll.u32 %v438, 16
      %v517 = vor.u32 %v514, %v515
      %v519 = vshrl.u32 %v439, 16
      %v521 = vrot.slane %v519, 7
      %v522 = vshll.u32 %v439, 16
      %v524 = vor.u32 %v521, %v522
      %v526 = vshrl.u32 %v440, 16
      %v528 = vrot.slane %v526, 7
      %v529 = vshll.u32 %v440, 16
      %v531 = vor.u32 %v528, %v529
      %v533 = vshrl.u32 %v441, 16
      %v535 = vrot.slane %v533, 7
      %v536 = vshll.u32 %v441, 16
      %v538 = vor.u32 %v535, %v536
      %v540 = vshrl.u32 %v442, 16
      %v542 = vrot.slane %v540, 7
      %v543 = vshll.u32 %v442, 16
      %v545 = vor.u32 %v542, %v543
      %v547 = vshrl.u32 %v443, 16
      %v549 = vrot.slane %v547, 7
      %v550 = vshll.u32 %v443, 16
      %v552 = vor.u32 %v549, %v550
      %v554 = vshrl.u32 %v444, 16
      %v556 = vrot.slane %v554, 7
      %v557 = vshll.u32 %v444, 16
      %v559 = vor.u32 %v556, %v557
      %v561 = vshrl.u32 %v445, 16
      %v563 = vrot.slane %v561, 7
      %v564 = vshll.u32 %v445, 16
      %v566 = vor.u32 %v563, %v564
      %v568 = vshrl.u32 %v446, 16
      %v570 = vrot.slane %v568, 7
      %v571 = vshll.u32 %v446, 16
      %v573 = vor.u32 %v570, %v571
      %vm590 = vcmask 1040384
      %vm591 = vsmask.f32 256
      %vm592 = vmand %vm590, %vm591
      %v593 = vsel %vm592, 0, %v468
      %v594 = vsel %vm592, 0, %v475
      %v595 = vsel %vm592, 0, %v482
      %v596 = vsel %vm592, 0, %v489
      %v597 = vsel %vm592, 0, %v496
      %v598 = vsel %vm592, 0, %v503
      %v599 = vsel %vm592, 0, %v510
      %v600 = vsel %vm592, 0, %v517
      %v601 = vsel %vm592, 0, %v524
      %v602 = vsel %vm592, 0, %v531
      %v603 = vsel %vm592, 0, %v538
      %v604 = vsel %vm592, 0, %v545
      %v605 = vsel %vm592, 0, %v552
      %v606 = vsel %vm592, 0, %v559
      %v607 = vsel %vm592, 0, %v566
      %v608 = vsel %vm592, 0, %v573
      %v609 = vrot.slane %v466, 1
      %v610 = vor.u32 %v463, %v609
      %v611 = vrot.slane %v473, 1
      %v612 = vor.u32 %v470, %v611
      %v613 = vrot.slane %v480, 1
      %v614 = vor.u32 %v477, %v613
      %v615 = vrot.slane %v487, 1
      %v616 = vor.u32 %v484, %v615
      %v617 = vrot.slane %v494, 1
      %v618 = vor.u32 %v491, %v617
      %v619 = vrot.slane %v501, 1
      %v620 = vor.u32 %v498, %v619
      %v621 = vrot.slane %v508, 1
      %v622 = vor.u32 %v505, %v621
      %v623 = vrot.slane %v515, 1
      %v624 = vor.u32 %v512, %v623
      %v625 = vrot.slane %v522, 1
      %v626 = vor.u32 %v519, %v625
      %v627 = vrot.slane %v529, 1
      %v628 = vor.u32 %v526, %v627
      %v629 = vrot.slane %v536, 1
      %v630 = vor.u32 %v533, %v629
      %v631 = vrot.slane %v543, 1
      %v632 = vor.u32 %v540, %v631
      %v633 = vrot.slane %v550, 1
      %v634 = vor.u32 %v547, %v633
      %v635 = vrot.slane %v557, 1
      %v636 = vor.u32 %v554, %v635
      %v637 = vrot.slane %v564, 1
      %v638 = vor.u32 %v561, %v637
      %v639 = vrot.slane %v571, 1
      %v640 = vor.u32 %v568, %v639
      %vm657 = vcmask 1047552
      %vm658 = vsmask.f32 7424
      %vm659 = vmand %vm657, %vm658
      %v660 = vsel %vm659, %v610, 0
      %v661 = vsel %vm659, %v612, 0
      %v662 = vsel %vm659, %v614, 0
      %v663 = vsel %vm659, %v616, 0
      %v664 = vsel %vm659, %v618, 0
      %v665 = vsel %vm659, %v620, 0
      %v666 = vsel %vm659, %v622, 0
      %v667 = vsel %vm659, %v624, 0
      %v668 = vsel %vm659, %v626, 0
      %v669 = vsel %vm659, %v628, 0
      %v670 = vsel %vm659, %v630, 0
      %v671 = vsel %vm659, %v632, 0
      %v672 = vsel %vm659, %v634, 0
      %v673 = vsel %vm659, %v636, 0
      %v674 = vsel %vm659, %v638, 0
      %v675 = vsel %vm659, %v640, 0
      %v676 = vld [vmem:[%s1] sm:$0xf]
      %v677 = vld [vmem:[%s1 + $0x4] sm:$0xf]
      %v678 = vld [vmem:[%s1 + $0x8] sm:$0xf]
      %v679 = vld [vmem:[%s1 + $0xc] sm:$0xf]
      %v680 = vld [vmem:[%s1 + $0x10] sm:$0xf]
      %v681 = vld [vmem:[%s1 + $0x14] sm:$0xf]
      %v682 = vld [vmem:[%s1 + $0x18] sm:$0xf]
      %v683 = vld [vmem:[%s1 + $0x1c] sm:$0xf]
      %v684 = vld [vmem:[%s1 + $0x20] sm:$0xf]
      %v685 = vld [vmem:[%s1 + $0x24] sm:$0xf]
      %v686 = vld [vmem:[%s1 + $0x28] sm:$0xf]
      %v687 = vld [vmem:[%s1 + $0x2c] sm:$0xf]
      %v688 = vld [vmem:[%s1 + $0x30] sm:$0xf]
      %v689 = vld [vmem:[%s1 + $0x34] sm:$0xf]
      %v690 = vld [vmem:[%s1 + $0x38] sm:$0xf]
      %v691 = vld [vmem:[%s1 + $0x3c] sm:$0xf]
      %v692 = vld [vmem:[%s1 + $0x40] sm:$0xf]
      %v693 = vld [vmem:[%s1 + $0x44] sm:$0xf]
      %v694 = vld [vmem:[%s1 + $0x48] sm:$0xf]
      %v695 = vld [vmem:[%s1 + $0x4c] sm:$0xf]
      %v696 = vld [vmem:[%s1 + $0x50] sm:$0xf]
      %v697 = vld [vmem:[%s1 + $0x54] sm:$0xf]
      %v698 = vld [vmem:[%s1 + $0x58] sm:$0xf]
      %v699 = vld [vmem:[%s1 + $0x5c] sm:$0xf]
      %v700 = vld [vmem:[%s1 + $0x60] sm:$0xf]
      %v701 = vld [vmem:[%s1 + $0x64] sm:$0xf]
      %v702 = vld [vmem:[%s1 + $0x68] sm:$0xf]
      %v703 = vld [vmem:[%s1 + $0x6c] sm:$0xf]
      %v704 = vld [vmem:[%s1 + $0x70] sm:$0xf]
      %v705 = vld [vmem:[%s1 + $0x74] sm:$0xf]
      %v706 = vld [vmem:[%s1 + $0x78] sm:$0xf]
      %v707 = vld [vmem:[%s1 + $0x7c] sm:$0xf]
      %v708 = vld [vmem:[%s1 + $0x80] sm:$0xf]
      %v709 = vld [vmem:[%s1 + $0x84] sm:$0xf]
      %v710 = vld [vmem:[%s1 + $0x88] sm:$0xf]
      %v711 = vld [vmem:[%s1 + $0x8c] sm:$0xf]
      %v712 = vld [vmem:[%s1 + $0x90] sm:$0xf]
      %v713 = vld [vmem:[%s1 + $0x94] sm:$0xf]
      %v714 = vld [vmem:[%s1 + $0x98] sm:$0xf]
      %v715 = vld [vmem:[%s1 + $0x9c] sm:$0xf]
      %v716 = vld [vmem:[%s1 + $0xa0] sm:$0xf]
      %v717 = vld [vmem:[%s1 + $0xa4] sm:$0xf]
      %v718 = vld [vmem:[%s1 + $0xa8] sm:$0xf]
      %v719 = vld [vmem:[%s1 + $0xac] sm:$0xf]
      %v720 = vld [vmem:[%s1 + $0xb0] sm:$0xf]
      %v721 = vld [vmem:[%s1 + $0xb4] sm:$0xf]
      %v722 = vld [vmem:[%s1 + $0xb8] sm:$0xf]
      %v723 = vld [vmem:[%s1 + $0xbc] sm:$0xf]
      %v726 = vunpack.c.l.b16 %v370
      %v727 = vunpack.c.l.b16 %v371
      %v728 = vpack.c.b16 %v727, %v726
      %v730 = vshrl.u32 %v728, 16
      %v732 = vrot.slane %v730, 7
      %v733 = vshll.u32 %v728, 16
      %v735 = vor.u32 %v732, %v733
      %v737 = vsel %vm592, 0, %v735
      %v738 = vrot.slane %v733, 1
      %v739 = vor.u32 %v730, %v738
      %v741 = vsel %vm659, %v739, 0
      %s743 = scalar_lea.vmem %s1, 192
      %v744 = vld [vmem:[%s743] sm:$0xf]
      %v745 = vld [vmem:[%s743 + $0x4] sm:$0xf]
      %v746 = vld [vmem:[%s743 + $0x8] sm:$0xf]
      %v747 = vld [vmem:[%s743 + $0xc] sm:$0xf]
      %v748 = vld [vmem:[%s743 + $0x10] sm:$0xf]
      %v749 = vld [vmem:[%s743 + $0x14] sm:$0xf]
      %v750 = vld [vmem:[%s743 + $0x18] sm:$0xf]
      %v751 = vld [vmem:[%s743 + $0x1c] sm:$0xf]
      %v752 = vld [vmem:[%s743 + $0x20] sm:$0xf]
      %v753 = vld [vmem:[%s743 + $0x24] sm:$0xf]
      %v754 = vld [vmem:[%s743 + $0x28] sm:$0xf]
      %v755 = vld [vmem:[%s743 + $0x2c] sm:$0xf]
      %v756 = vld [vmem:[%s743 + $0x30] sm:$0xf]
      %v757 = vld [vmem:[%s743 + $0x34] sm:$0xf]
      %v758 = vld [vmem:[%s743 + $0x38] sm:$0xf]
      %v759 = vld [vmem:[%s743 + $0x3c] sm:$0xf]
      %v760 = vld [vmem:[%s743 + $0x40] sm:$0xf]
      %v761 = vld [vmem:[%s743 + $0x44] sm:$0xf]
      %v762 = vld [vmem:[%s743 + $0x48] sm:$0xf]
      %v763 = vld [vmem:[%s743 + $0x4c] sm:$0xf]
      %v764 = vld [vmem:[%s743 + $0x50] sm:$0xf]
      %v765 = vld [vmem:[%s743 + $0x54] sm:$0xf]
      %v766 = vld [vmem:[%s743 + $0x58] sm:$0xf]
      %v767 = vld [vmem:[%s743 + $0x5c] sm:$0xf]
      %v768 = vld [vmem:[%s743 + $0x60] sm:$0xf]
      %v769 = vld [vmem:[%s743 + $0x64] sm:$0xf]
      %v770 = vld [vmem:[%s743 + $0x68] sm:$0xf]
      %v771 = vld [vmem:[%s743 + $0x6c] sm:$0xf]
      %v772 = vld [vmem:[%s743 + $0x70] sm:$0xf]
      %v773 = vld [vmem:[%s743 + $0x74] sm:$0xf]
      %v774 = vld [vmem:[%s743 + $0x78] sm:$0xf]
      %v775 = vld [vmem:[%s743 + $0x7c] sm:$0xf]
      %v776 = vld [vmem:[%s743 + $0x80] sm:$0xf]
      %v777 = vld [vmem:[%s743 + $0x84] sm:$0xf]
      %v778 = vld [vmem:[%s743 + $0x88] sm:$0xf]
      %v779 = vld [vmem:[%s743 + $0x8c] sm:$0xf]
      %v780 = vld [vmem:[%s743 + $0x90] sm:$0xf]
      %v781 = vld [vmem:[%s743 + $0x94] sm:$0xf]
      %v782 = vld [vmem:[%s743 + $0x98] sm:$0xf]
      %v783 = vld [vmem:[%s743 + $0x9c] sm:$0xf]
      %v784 = vld [vmem:[%s743 + $0xa0] sm:$0xf]
      %v785 = vld [vmem:[%s743 + $0xa4] sm:$0xf]
      %v786 = vld [vmem:[%s743 + $0xa8] sm:$0xf]
      %v787 = vld [vmem:[%s743 + $0xac] sm:$0xf]
      %v788 = vld [vmem:[%s743 + $0xb0] sm:$0xf]
      %v789 = vld [vmem:[%s743 + $0xb4] sm:$0xf]
      %v790 = vld [vmem:[%s743 + $0xb8] sm:$0xf]
      %v791 = vld [vmem:[%s743 + $0xbc] sm:$0xf]
      %v840 = vunpack.c.l.b16 %v744
      %v841 = vunpack.c.l.b16 %v745
      %v842 = vunpack.c.l.b16 %v746
      %v843 = vunpack.c.l.b16 %v747
      %v844 = vunpack.c.l.b16 %v748
      %v845 = vunpack.c.l.b16 %v749
      %v846 = vunpack.c.l.b16 %v750
      %v847 = vunpack.c.l.b16 %v751
      %v848 = vunpack.c.l.b16 %v752
      %v849 = vunpack.c.l.b16 %v753
      %v850 = vunpack.c.l.b16 %v754
      %v851 = vunpack.c.l.b16 %v755
      %v852 = vunpack.c.l.b16 %v756
      %v853 = vunpack.c.l.b16 %v757
      %v854 = vunpack.c.l.b16 %v758
      %v855 = vunpack.c.l.b16 %v759
      %v856 = vunpack.c.l.b16 %v760
      %v857 = vunpack.c.l.b16 %v761
      %v858 = vunpack.c.l.b16 %v762
      %v859 = vunpack.c.l.b16 %v763
      %v860 = vunpack.c.l.b16 %v764
      %v861 = vunpack.c.l.b16 %v765
      %v862 = vunpack.c.l.b16 %v766
      %v863 = vunpack.c.l.b16 %v767
      %v864 = vunpack.c.l.b16 %v768
      %v865 = vunpack.c.l.b16 %v769
      %v866 = vunpack.c.l.b16 %v770
      %v867 = vunpack.c.l.b16 %v771
      %v868 = vunpack.c.l.b16 %v772
      %v869 = vunpack.c.l.b16 %v773
      %v870 = vunpack.c.l.b16 %v774
      %v871 = vunpack.c.l.b16 %v775
      %v872 = vunpack.c.l.b16 %v776
      %v873 = vunpack.c.l.b16 %v777
      %v874 = vunpack.c.l.b16 %v778
      %v875 = vunpack.c.l.b16 %v779
      %v876 = vunpack.c.l.b16 %v780
      %v877 = vunpack.c.l.b16 %v781
      %v878 = vunpack.c.l.b16 %v782
      %v879 = vunpack.c.l.b16 %v783
      %v880 = vunpack.c.l.b16 %v784
      %v881 = vunpack.c.l.b16 %v785
      %v882 = vunpack.c.l.b16 %v786
      %v883 = vunpack.c.l.b16 %v787
      %v884 = vunpack.c.l.b16 %v788
      %v885 = vunpack.c.l.b16 %v789
      %v886 = vunpack.c.l.b16 %v790
      %v887 = vunpack.c.l.b16 %v791
      %v888 = vpack.c.b16 %v841, %v840
      %v889 = vpack.c.b16 %v843, %v842
      %v890 = vpack.c.b16 %v845, %v844
      %v891 = vpack.c.b16 %v847, %v846
      %v892 = vpack.c.b16 %v849, %v848
      %v893 = vpack.c.b16 %v851, %v850
      %v894 = vpack.c.b16 %v853, %v852
      %v895 = vpack.c.b16 %v855, %v854
      %v896 = vpack.c.b16 %v857, %v856
      %v897 = vpack.c.b16 %v859, %v858
      %v898 = vpack.c.b16 %v861, %v860
      %v899 = vpack.c.b16 %v863, %v862
      %v900 = vpack.c.b16 %v865, %v864
      %v901 = vpack.c.b16 %v867, %v866
      %v902 = vpack.c.b16 %v869, %v868
      %v903 = vpack.c.b16 %v871, %v870
      %v904 = vpack.c.b16 %v873, %v872
      %v905 = vpack.c.b16 %v875, %v874
      %v906 = vpack.c.b16 %v877, %v876
      %v907 = vpack.c.b16 %v879, %v878
      %v908 = vpack.c.b16 %v881, %v880
      %v909 = vpack.c.b16 %v883, %v882
      %v910 = vpack.c.b16 %v885, %v884
      %v911 = vpack.c.b16 %v887, %v886
      %936 = vmatprep.subr.bf16.mxu0 0
      %937 = vmatpush1.bf16.msra.mxu0 %v895
      %938 = vmatprep.subr.bf16.mxu0 0
      %939 = vmatpush1.bf16.msra.mxu0 %v894
      %940 = vmatprep.subr.bf16.mxu0 0
      %941 = vmatpush1.bf16.msra.mxu0 %v893
      %942 = vmatprep.subr.bf16.mxu0 0
      %943 = vmatpush1.bf16.msra.mxu0 %v892
      %944 = vmatprep.subr.bf16.mxu0 0
      %945 = vmatpush1.bf16.msra.mxu0 %v891
      %946 = vmatprep.subr.bf16.mxu0 0
      %947 = vmatpush1.bf16.msra.mxu0 %v890
      %948 = vmatprep.subr.bf16.mxu0 0
      %949 = vmatpush1.bf16.msra.mxu0 %v889
      %950 = vmatprep.subr.bf16.mxu0 0
      %951 = vmatpush1.bf16.msra.mxu0 %v888
      %952 = vmatprep.subr.bf16.mxu0 0
      %953 = vmatpush2.bf16.msra.mxu0 %v903
      %954 = vmatprep.subr.bf16.mxu0 0
      %955 = vmatpush2.bf16.msra.mxu0 %v902
      %956 = vmatprep.subr.bf16.mxu0 0
      %957 = vmatpush2.bf16.msra.mxu0 %v901
      %958 = vmatprep.subr.bf16.mxu0 0
      %959 = vmatpush2.bf16.msra.mxu0 %v900
      %960 = vmatprep.subr.bf16.mxu0 0
      %961 = vmatpush2.bf16.msra.mxu0 %v899
      %962 = vmatprep.subr.bf16.mxu0 0
      %963 = vmatpush2.bf16.msra.mxu0 %v898
      %964 = vmatprep.subr.bf16.mxu0 0
      %965 = vmatpush2.bf16.msra.mxu0 %v897
      %966 = vmatprep.subr.bf16.mxu0 0
      %967 = vmatpush2.bf16.msra.mxu0 %v896
      %968 = vmatprep.mubr.bf16.mxu0 %v432
      %969 = vmatmul.mubr.bf16.gmra.mxu0 %v594
      %v970 = vpop.f32.mrf.mxu0
      %v971 = vadd.f32 0.0, %v970
      %v972 = vpop.f32.mrf.mxu0
      %v973 = vpop.f32.mrf.mxu0
      %v974 = vadd.f32 0.0, %v973
      %v975 = vpop.f32.mrf.mxu0
      %976 = vmatprep.mubr.bf16.mxu0 %v433
      %977 = vmatmul.mubr.bf16.gmra.mxu0 %v595
      %v978 = vpop.f32.mrf.mxu0
      %v979 = vadd.f32 0.0, %v978
      %v980 = vpop.f32.mrf.mxu0
      %v981 = vpop.f32.mrf.mxu0
      %v982 = vadd.f32 0.0, %v981
      %v983 = vpop.f32.mrf.mxu0
      %984 = vmatprep.mubr.bf16.mxu0 %v434
      %985 = vmatmul.mubr.bf16.gmra.mxu0 %v596
      %v986 = vpop.f32.mrf.mxu0
      %v987 = vadd.f32 0.0, %v986
      %v988 = vpop.f32.mrf.mxu0
      %v989 = vpop.f32.mrf.mxu0
      %v990 = vadd.f32 0.0, %v989
      %v991 = vpop.f32.mrf.mxu0
      %992 = vmatprep.mubr.bf16.mxu0 %v435
      %993 = vmatmul.mubr.bf16.gmra.mxu0 %v597
      %v994 = vpop.f32.mrf.mxu0
      %v995 = vadd.f32 0.0, %v994
      %v996 = vpop.f32.mrf.mxu0
      %v997 = vpop.f32.mrf.mxu0
      %v998 = vadd.f32 0.0, %v997
      %v999 = vpop.f32.mrf.mxu0
      %1000 = vmatprep.mubr.bf16.mxu0 %v436
      %1001 = vmatmul.mubr.bf16.gmra.mxu0 %v598
      %v1002 = vpop.f32.mrf.mxu0
      %v1003 = vadd.f32 0.0, %v1002
      %v1004 = vpop.f32.mrf.mxu0
      %v1005 = vpop.f32.mrf.mxu0
      %v1006 = vadd.f32 0.0, %v1005
      %v1007 = vpop.f32.mrf.mxu0
      %1008 = vmatprep.mubr.bf16.mxu0 %v437
      %1009 = vmatmul.mubr.bf16.gmra.mxu0 %v599
      %v1010 = vpop.f32.mrf.mxu0
      %v1011 = vadd.f32 0.0, %v1010
      %v1012 = vpop.f32.mrf.mxu0
      %v1013 = vpop.f32.mrf.mxu0
      %v1014 = vadd.f32 0.0, %v1013
      %v1015 = vpop.f32.mrf.mxu0
      %1016 = vmatprep.mubr.bf16.mxu0 %v438
      %1017 = vmatmul.mubr.bf16.gmra.mxu0 %v600
      %v1018 = vpop.f32.mrf.mxu0
      %v1019 = vadd.f32 0.0, %v1018
      %v1020 = vpop.f32.mrf.mxu0
      %v1021 = vpop.f32.mrf.mxu0
      %v1022 = vadd.f32 0.0, %v1021
      %v1023 = vpop.f32.mrf.mxu0
      %1024 = vmatprep.mubr.bf16.mxu0 %v439
      %1025 = vmatmul.mubr.bf16.gmra.mxu0 %v601
      %v1026 = vpop.f32.mrf.mxu0
      %v1027 = vadd.f32 0.0, %v1026
      %v1028 = vpop.f32.mrf.mxu0
      %v1029 = vpop.f32.mrf.mxu0
      %v1030 = vadd.f32 0.0, %v1029
      %v1031 = vpop.f32.mrf.mxu0
      %1032 = vmatprep.mubr.bf16.mxu0 %v440
      %1033 = vmatmul.mubr.bf16.gmra.mxu0 %v602
      %v1034 = vpop.f32.mrf.mxu0
      %v1035 = vadd.f32 0.0, %v1034
      %v1036 = vpop.f32.mrf.mxu0
      %v1037 = vpop.f32.mrf.mxu0
      %v1038 = vadd.f32 0.0, %v1037
      %v1039 = vpop.f32.mrf.mxu0
      %1040 = vmatprep.mubr.bf16.mxu0 %v441
      %1041 = vmatmul.mubr.bf16.gmra.mxu0 %v603
      %v1042 = vpop.f32.mrf.mxu0
      %v1043 = vadd.f32 0.0, %v1042
      %v1044 = vpop.f32.mrf.mxu0
      %v1045 = vpop.f32.mrf.mxu0
      %v1046 = vadd.f32 0.0, %v1045
      %v1047 = vpop.f32.mrf.mxu0
      %1048 = vmatprep.mubr.bf16.mxu0 %v442
      %1049 = vmatmul.mubr.bf16.gmra.mxu0 %v604
      %v1050 = vpop.f32.mrf.mxu0
      %v1051 = vadd.f32 0.0, %v1050
      %v1052 = vpop.f32.mrf.mxu0
      %v1053 = vpop.f32.mrf.mxu0
      %v1054 = vadd.f32 0.0, %v1053
      %v1055 = vpop.f32.mrf.mxu0
      %1056 = vmatprep.mubr.bf16.mxu0 %v443
      %1057 = vmatmul.mubr.bf16.gmra.mxu0 %v605
      %v1058 = vpop.f32.mrf.mxu0
      %v1059 = vadd.f32 0.0, %v1058
      %v1060 = vpop.f32.mrf.mxu0
      %v1061 = vpop.f32.mrf.mxu0
      %v1062 = vadd.f32 0.0, %v1061
      %v1063 = vpop.f32.mrf.mxu0
      %1064 = vmatprep.mubr.bf16.mxu0 %v444
      %1065 = vmatmul.mubr.bf16.gmra.mxu0 %v606
      %v1066 = vpop.f32.mrf.mxu0
      %v1067 = vadd.f32 0.0, %v1066
      %v1068 = vpop.f32.mrf.mxu0
      %v1069 = vpop.f32.mrf.mxu0
      %v1070 = vadd.f32 0.0, %v1069
      %v1071 = vpop.f32.mrf.mxu0
      %1072 = vmatprep.mubr.bf16.mxu0 %v445
      %1073 = vmatmul.mubr.bf16.gmra.mxu0 %v607
      %v1074 = vpop.f32.mrf.mxu0
      %v1075 = vadd.f32 0.0, %v1074
      %v1076 = vpop.f32.mrf.mxu0
      %v1077 = vpop.f32.mrf.mxu0
      %v1078 = vadd.f32 0.0, %v1077
      %v1079 = vpop.f32.mrf.mxu0
      %1080 = vmatprep.mubr.bf16.mxu0 %v446
      %1081 = vmatmul.mubr.bf16.gmra.mxu0 %v608
      %v1082 = vpop.f32.mrf.mxu0
      %v1083 = vadd.f32 0.0, %v1082
      %v1084 = vpop.f32.mrf.mxu0
      %v1085 = vpop.f32.mrf.mxu0
      %v1086 = vadd.f32 0.0, %v1085
      %v1087 = vpop.f32.mrf.mxu0
      %1088 = vmatprep.mubr.bf16.mxu0 %v728
      %1089 = vmatmul.mubr.bf16.gmra.mxu0 %v737
      %v1090 = vpop.f32.mrf.mxu0
      %v1091 = vadd.f32 0.0, %v1090
      %v1092 = vpop.f32.mrf.mxu0
      %v1093 = vpop.f32.mrf.mxu0
      %v1094 = vadd.f32 0.0, %v1093
      %v1095 = vpop.f32.mrf.mxu0
      %1096 = vdwg.mxu0
      %1097 = vmatprep.subr.bf16.mxu0 0
      %1098 = vmatpush1.bf16.msra.mxu0 %v911
      %1099 = vmatprep.subr.bf16.mxu0 0
      %1100 = vmatpush1.bf16.msra.mxu0 %v910
      %1101 = vmatprep.subr.bf16.mxu0 0
      %1102 = vmatpush1.bf16.msra.mxu0 %v909
      %1103 = vmatprep.subr.bf16.mxu0 0
      %1104 = vmatpush1.bf16.msra.mxu0 %v908
      %1105 = vmatprep.subr.bf16.mxu0 0
      %1106 = vmatpush1.bf16.msra.mxu0 %v907
      %1107 = vmatprep.subr.bf16.mxu0 0
      %1108 = vmatpush1.bf16.msra.mxu0 %v906
      %1109 = vmatprep.subr.bf16.mxu0 0
      %1110 = vmatpush1.bf16.msra.mxu0 %v905
      %1111 = vmatprep.subr.bf16.mxu0 0
      %1112 = vmatpush1.bf16.msra.mxu0 %v904
      %1113 = vmatprep.subr.bf16.mxu0 0
      %1114 = vmatpush2.bf16.msra.mxu0 0
      %1115 = vmatprep.subr.bf16.mxu0 0
      %1116 = vmatpush2.bf16.msra.mxu0 0
      %1117 = vmatprep.subr.bf16.mxu0 0
      %1118 = vmatpush2.bf16.msra.mxu0 0
      %1119 = vmatprep.subr.bf16.mxu0 0
      %1120 = vmatpush2.bf16.msra.mxu0 0
      %1121 = vmatprep.subr.bf16.mxu0 0
      %1122 = vmatpush2.bf16.msra.mxu0 0
      %1123 = vmatprep.subr.bf16.mxu0 0
      %1124 = vmatpush2.bf16.msra.mxu0 0
      %1125 = vmatprep.subr.bf16.mxu0 0
      %1126 = vmatpush2.bf16.msra.mxu0 0
      %1127 = vmatprep.subr.bf16.mxu0 0
      %1128 = vmatpush2.bf16.msra.mxu0 0
      %1129 = vmatprep.mubr.bf16.mxu0 0
      %1130 = vmatmul.mubr.bf16.gmra.mxu0 %v661
      %v1131 = vpop.f32.mrf.mxu0
      %v1132 = vadd.f32 %v971, %v1131
      %v1133 = vpop.f32.mrf.mxu0
      %v1134 = vpop.f32.mrf.mxu0
      %v1135 = vadd.f32 %v974, %v1134
      %v1136 = vpop.f32.mrf.mxu0
      %1137 = vmatprep.mubr.bf16.mxu0 0
      %1138 = vmatmul.mubr.bf16.gmra.mxu0 %v662
      %v1139 = vpop.f32.mrf.mxu0
      %v1140 = vadd.f32 %v979, %v1139
      %v1141 = vpop.f32.mrf.mxu0
      %v1142 = vpop.f32.mrf.mxu0
      %v1143 = vadd.f32 %v982, %v1142
      %v1144 = vpop.f32.mrf.mxu0
      %1145 = vmatprep.mubr.bf16.mxu0 0
      %1146 = vmatmul.mubr.bf16.gmra.mxu0 %v663
      %v1147 = vpop.f32.mrf.mxu0
      %v1148 = vadd.f32 %v987, %v1147
      %v1149 = vpop.f32.mrf.mxu0
      %v1150 = vpop.f32.mrf.mxu0
      %v1151 = vadd.f32 %v990, %v1150
      %v1152 = vpop.f32.mrf.mxu0
      %1153 = vmatprep.mubr.bf16.mxu0 0
      %1154 = vmatmul.mubr.bf16.gmra.mxu0 %v664
      %v1155 = vpop.f32.mrf.mxu0
      %v1156 = vadd.f32 %v995, %v1155
      %v1157 = vpop.f32.mrf.mxu0
      %v1158 = vpop.f32.mrf.mxu0
      %v1159 = vadd.f32 %v998, %v1158
      %v1160 = vpop.f32.mrf.mxu0
      %1161 = vmatprep.mubr.bf16.mxu0 0
      %1162 = vmatmul.mubr.bf16.gmra.mxu0 %v665
      %v1163 = vpop.f32.mrf.mxu0
      %v1164 = vadd.f32 %v1003, %v1163
      %v1165 = vpop.f32.mrf.mxu0
      %v1166 = vpop.f32.mrf.mxu0
      %v1167 = vadd.f32 %v1006, %v1166
      %v1168 = vpop.f32.mrf.mxu0
      %1169 = vmatprep.mubr.bf16.mxu0 0
      %1170 = vmatmul.mubr.bf16.gmra.mxu0 %v666
      %v1171 = vpop.f32.mrf.mxu0
      %v1172 = vadd.f32 %v1011, %v1171
      %v1173 = vpop.f32.mrf.mxu0
      %v1174 = vpop.f32.mrf.mxu0
      %v1175 = vadd.f32 %v1014, %v1174
      %v1176 = vpop.f32.mrf.mxu0
      %1177 = vmatprep.mubr.bf16.mxu0 0
      %1178 = vmatmul.mubr.bf16.gmra.mxu0 %v667
      %v1179 = vpop.f32.mrf.mxu0
      %v1180 = vadd.f32 %v1019, %v1179
      %v1181 = vpop.f32.mrf.mxu0
      %v1182 = vpop.f32.mrf.mxu0
      %v1183 = vadd.f32 %v1022, %v1182
      %v1184 = vpop.f32.mrf.mxu0
      %1185 = vmatprep.mubr.bf16.mxu0 0
      %1186 = vmatmul.mubr.bf16.gmra.mxu0 %v668
      %v1187 = vpop.f32.mrf.mxu0
      %v1188 = vadd.f32 %v1027, %v1187
      %v1189 = vpop.f32.mrf.mxu0
      %v1190 = vpop.f32.mrf.mxu0
      %v1191 = vadd.f32 %v1030, %v1190
      %v1192 = vpop.f32.mrf.mxu0
      %1193 = vmatprep.mubr.bf16.mxu0 0
      %1194 = vmatmul.mubr.bf16.gmra.mxu0 %v669
      %v1195 = vpop.f32.mrf.mxu0
      %v1196 = vadd.f32 %v1035, %v1195
      %v1197 = vpop.f32.mrf.mxu0
      %v1198 = vpop.f32.mrf.mxu0
      %v1199 = vadd.f32 %v1038, %v1198
      %v1200 = vpop.f32.mrf.mxu0
      %1201 = vmatprep.mubr.bf16.mxu0 0
      %1202 = vmatmul.mubr.bf16.gmra.mxu0 %v670
      %v1203 = vpop.f32.mrf.mxu0
      %v1204 = vadd.f32 %v1043, %v1203
      %v1205 = vpop.f32.mrf.mxu0
      %v1206 = vpop.f32.mrf.mxu0
      %v1207 = vadd.f32 %v1046, %v1206
      %v1208 = vpop.f32.mrf.mxu0
      %1209 = vmatprep.mubr.bf16.mxu0 0
      %1210 = vmatmul.mubr.bf16.gmra.mxu0 %v671
      %v1211 = vpop.f32.mrf.mxu0
      %v1212 = vadd.f32 %v1051, %v1211
      %v1213 = vpop.f32.mrf.mxu0
      %v1214 = vpop.f32.mrf.mxu0
      %v1215 = vadd.f32 %v1054, %v1214
      %v1216 = vpop.f32.mrf.mxu0
      %1217 = vmatprep.mubr.bf16.mxu0 0
      %1218 = vmatmul.mubr.bf16.gmra.mxu0 %v672
      %v1219 = vpop.f32.mrf.mxu0
      %v1220 = vadd.f32 %v1059, %v1219
      %v1221 = vpop.f32.mrf.mxu0
      %v1222 = vpop.f32.mrf.mxu0
      %v1223 = vadd.f32 %v1062, %v1222
      %v1224 = vpop.f32.mrf.mxu0
      %1225 = vmatprep.mubr.bf16.mxu0 0
      %1226 = vmatmul.mubr.bf16.gmra.mxu0 %v673
      %v1227 = vpop.f32.mrf.mxu0
      %v1228 = vadd.f32 %v1067, %v1227
      %v1229 = vpop.f32.mrf.mxu0
      %v1230 = vpop.f32.mrf.mxu0
      %v1231 = vadd.f32 %v1070, %v1230
      %v1232 = vpop.f32.mrf.mxu0
      %1233 = vmatprep.mubr.bf16.mxu0 0
      %1234 = vmatmul.mubr.bf16.gmra.mxu0 %v674
      %v1235 = vpop.f32.mrf.mxu0
      %v1236 = vadd.f32 %v1075, %v1235
      %v1237 = vpop.f32.mrf.mxu0
      %v1238 = vpop.f32.mrf.mxu0
      %v1239 = vadd.f32 %v1078, %v1238
      %v1240 = vpop.f32.mrf.mxu0
      %1241 = vmatprep.mubr.bf16.mxu0 0
      %1242 = vmatmul.mubr.bf16.gmra.mxu0 %v675
      %v1243 = vpop.f32.mrf.mxu0
      %v1244 = vadd.f32 %v1083, %v1243
      %v1245 = vpop.f32.mrf.mxu0
      %v1246 = vpop.f32.mrf.mxu0
      %v1247 = vadd.f32 %v1086, %v1246
      %v1248 = vpop.f32.mrf.mxu0
      %1249 = vmatprep.mubr.bf16.mxu0 0
      %1250 = vmatmul.mubr.bf16.gmra.mxu0 %v741
      %v1251 = vpop.f32.mrf.mxu0
      %v1252 = vadd.f32 %v1091, %v1251
      %v1253 = vpop.f32.mrf.mxu0
      %v1254 = vpop.f32.mrf.mxu0
      %v1255 = vadd.f32 %v1094, %v1254
      %v1256 = vpop.f32.mrf.mxu0
      %1257 = vdwg.mxu0
      %v1306 = vunpack.c.l.b16 %v676
      %v1307 = vunpack.c.l.b16 %v677
      %v1308 = vunpack.c.l.b16 %v678
      %v1309 = vunpack.c.l.b16 %v679
      %v1310 = vunpack.c.l.b16 %v680
      %v1311 = vunpack.c.l.b16 %v681
      %v1312 = vunpack.c.l.b16 %v682
      %v1313 = vunpack.c.l.b16 %v683
      %v1314 = vunpack.c.l.b16 %v684
      %v1315 = vunpack.c.l.b16 %v685
      %v1316 = vunpack.c.l.b16 %v686
      %v1317 = vunpack.c.l.b16 %v687
      %v1318 = vunpack.c.l.b16 %v688
      %v1319 = vunpack.c.l.b16 %v689
      %v1320 = vunpack.c.l.b16 %v690
      %v1321 = vunpack.c.l.b16 %v691
      %v1322 = vunpack.c.l.b16 %v692
      %v1323 = vunpack.c.l.b16 %v693
      %v1324 = vunpack.c.l.b16 %v694
      %v1325 = vunpack.c.l.b16 %v695
      %v1326 = vunpack.c.l.b16 %v696
      %v1327 = vunpack.c.l.b16 %v697
      %v1328 = vunpack.c.l.b16 %v698
      %v1329 = vunpack.c.l.b16 %v699
      %v1330 = vunpack.c.l.b16 %v700
      %v1331 = vunpack.c.l.b16 %v701
      %v1332 = vunpack.c.l.b16 %v702
      %v1333 = vunpack.c.l.b16 %v703
      %v1334 = vunpack.c.l.b16 %v704
      %v1335 = vunpack.c.l.b16 %v705
      %v1336 = vunpack.c.l.b16 %v706
      %v1337 = vunpack.c.l.b16 %v707
      %v1338 = vunpack.c.l.b16 %v708
      %v1339 = vunpack.c.l.b16 %v709
      %v1340 = vunpack.c.l.b16 %v710
      %v1341 = vunpack.c.l.b16 %v711
      %v1342 = vunpack.c.l.b16 %v712
      %v1343 = vunpack.c.l.b16 %v713
      %v1344 = vunpack.c.l.b16 %v714
      %v1345 = vunpack.c.l.b16 %v715
      %v1346 = vunpack.c.l.b16 %v716
      %v1347 = vunpack.c.l.b16 %v717
      %v1348 = vunpack.c.l.b16 %v718
      %v1349 = vunpack.c.l.b16 %v719
      %v1350 = vunpack.c.l.b16 %v720
      %v1351 = vunpack.c.l.b16 %v721
      %v1352 = vunpack.c.l.b16 %v722
      %v1353 = vunpack.c.l.b16 %v723
      %v1354 = vpack.c.b16 %v1307, %v1306
      %v1355 = vpack.c.b16 %v1309, %v1308
      %v1356 = vpack.c.b16 %v1311, %v1310
      %v1357 = vpack.c.b16 %v1313, %v1312
      %v1358 = vpack.c.b16 %v1315, %v1314
      %v1359 = vpack.c.b16 %v1317, %v1316
      %v1360 = vpack.c.b16 %v1319, %v1318
      %v1361 = vpack.c.b16 %v1321, %v1320
      %v1362 = vpack.c.b16 %v1323, %v1322
      %v1363 = vpack.c.b16 %v1325, %v1324
      %v1364 = vpack.c.b16 %v1327, %v1326
      %v1365 = vpack.c.b16 %v1329, %v1328
      %v1366 = vpack.c.b16 %v1331, %v1330
      %v1367 = vpack.c.b16 %v1333, %v1332
      %v1368 = vpack.c.b16 %v1335, %v1334
      %v1369 = vpack.c.b16 %v1337, %v1336
      %v1370 = vpack.c.b16 %v1339, %v1338
      %v1371 = vpack.c.b16 %v1341, %v1340
      %v1372 = vpack.c.b16 %v1343, %v1342
      %v1373 = vpack.c.b16 %v1345, %v1344
      %v1374 = vpack.c.b16 %v1347, %v1346
      %v1375 = vpack.c.b16 %v1349, %v1348
      %v1376 = vpack.c.b16 %v1351, %v1350
      %v1377 = vpack.c.b16 %v1353, %v1352
      %1402 = vmatprep.subr.bf16.mxu0 0
      %1403 = vmatpush1.bf16.msra.mxu0 %v1361
      %1404 = vmatprep.subr.bf16.mxu0 0
      %1405 = vmatpush1.bf16.msra.mxu0 %v1360
      %1406 = vmatprep.subr.bf16.mxu0 0
      %1407 = vmatpush1.bf16.msra.mxu0 %v1359
      %1408 = vmatprep.subr.bf16.mxu0 0
      %1409 = vmatpush1.bf16.msra.mxu0 %v1358
      %1410 = vmatprep.subr.bf16.mxu0 0
      %1411 = vmatpush1.bf16.msra.mxu0 %v1357
      %1412 = vmatprep.subr.bf16.mxu0 0
      %1413 = vmatpush1.bf16.msra.mxu0 %v1356
      %1414 = vmatprep.subr.bf16.mxu0 0
      %1415 = vmatpush1.bf16.msra.mxu0 %v1355
      %1416 = vmatprep.subr.bf16.mxu0 0
      %1417 = vmatpush1.bf16.msra.mxu0 %v1354
      %1418 = vmatprep.subr.bf16.mxu0 0
      %1419 = vmatpush2.bf16.msra.mxu0 %v1369
      %1420 = vmatprep.subr.bf16.mxu0 0
      %1421 = vmatpush2.bf16.msra.mxu0 %v1368
      %1422 = vmatprep.subr.bf16.mxu0 0
      %1423 = vmatpush2.bf16.msra.mxu0 %v1367
      %1424 = vmatprep.subr.bf16.mxu0 0
      %1425 = vmatpush2.bf16.msra.mxu0 %v1366
      %1426 = vmatprep.subr.bf16.mxu0 0
      %1427 = vmatpush2.bf16.msra.mxu0 %v1365
      %1428 = vmatprep.subr.bf16.mxu0 0
      %1429 = vmatpush2.bf16.msra.mxu0 %v1364
      %1430 = vmatprep.subr.bf16.mxu0 0
      %1431 = vmatpush2.bf16.msra.mxu0 %v1363
      %1432 = vmatprep.subr.bf16.mxu0 0
      %1433 = vmatpush2.bf16.msra.mxu0 %v1362
      %1434 = vmatprep.mubr.bf16.mxu0 0
      %1435 = vmatmul.mubr.bf16.gmra.mxu0 %v593
      %v1436 = vpop.f32.mrf.mxu0
      %v1437 = vadd.f32 %v1132, %v1436
      %v1438 = vpop.f32.mrf.mxu0
      %v1439 = vpop.f32.mrf.mxu0
      %v1440 = vadd.f32 %v1135, %v1439
      %v1441 = vpop.f32.mrf.mxu0
      %1442 = vmatprep.mubr.bf16.mxu0 %v432
      %1443 = vmatmul.mubr.bf16.gmra.mxu0 %v594
      %v1444 = vpop.f32.mrf.mxu0
      %v1445 = vadd.f32 %v1140, %v1444
      %v1446 = vpop.f32.mrf.mxu0
      %v1447 = vpop.f32.mrf.mxu0
      %v1448 = vadd.f32 %v1143, %v1447
      %v1449 = vpop.f32.mrf.mxu0
      %1450 = vmatprep.mubr.bf16.mxu0 %v433
      %1451 = vmatmul.mubr.bf16.gmra.mxu0 %v595
      %v1452 = vpop.f32.mrf.mxu0
      %v1453 = vadd.f32 %v1148, %v1452
      %v1454 = vpop.f32.mrf.mxu0
      %v1455 = vpop.f32.mrf.mxu0
      %v1456 = vadd.f32 %v1151, %v1455
      %v1457 = vpop.f32.mrf.mxu0
      %1458 = vmatprep.mubr.bf16.mxu0 %v434
      %1459 = vmatmul.mubr.bf16.gmra.mxu0 %v596
      %v1460 = vpop.f32.mrf.mxu0
      %v1461 = vadd.f32 %v1156, %v1460
      %v1462 = vpop.f32.mrf.mxu0
      %v1463 = vpop.f32.mrf.mxu0
      %v1464 = vadd.f32 %v1159, %v1463
      %v1465 = vpop.f32.mrf.mxu0
      %1466 = vmatprep.mubr.bf16.mxu0 %v435
      %1467 = vmatmul.mubr.bf16.gmra.mxu0 %v597
      %v1468 = vpop.f32.mrf.mxu0
      %v1469 = vadd.f32 %v1164, %v1468
      %v1470 = vpop.f32.mrf.mxu0
      %v1471 = vpop.f32.mrf.mxu0
      %v1472 = vadd.f32 %v1167, %v1471
      %v1473 = vpop.f32.mrf.mxu0
      %1474 = vmatprep.mubr.bf16.mxu0 %v436
      %1475 = vmatmul.mubr.bf16.gmra.mxu0 %v598
      %v1476 = vpop.f32.mrf.mxu0
      %v1477 = vadd.f32 %v1172, %v1476
      %v1478 = vpop.f32.mrf.mxu0
      %v1479 = vpop.f32.mrf.mxu0
      %v1480 = vadd.f32 %v1175, %v1479
      %v1481 = vpop.f32.mrf.mxu0
      %1482 = vmatprep.mubr.bf16.mxu0 %v437
      %1483 = vmatmul.mubr.bf16.gmra.mxu0 %v599
      %v1484 = vpop.f32.mrf.mxu0
      %v1485 = vadd.f32 %v1180, %v1484
      %v1486 = vpop.f32.mrf.mxu0
      %v1487 = vpop.f32.mrf.mxu0
      %v1488 = vadd.f32 %v1183, %v1487
      %v1489 = vpop.f32.mrf.mxu0
      %1490 = vmatprep.mubr.bf16.mxu0 %v438
      %1491 = vmatmul.mubr.bf16.gmra.mxu0 %v600
      %v1492 = vpop.f32.mrf.mxu0
      %v1493 = vadd.f32 %v1188, %v1492
      %v1494 = vpop.f32.mrf.mxu0
      %v1495 = vpop.f32.mrf.mxu0
      %v1496 = vadd.f32 %v1191, %v1495
      %v1497 = vpop.f32.mrf.mxu0
      %1498 = vmatprep.mubr.bf16.mxu0 %v439
      %1499 = vmatmul.mubr.bf16.gmra.mxu0 %v601
      %v1500 = vpop.f32.mrf.mxu0
      %v1501 = vadd.f32 %v1196, %v1500
      %v1502 = vpop.f32.mrf.mxu0
      %v1503 = vpop.f32.mrf.mxu0
      %v1504 = vadd.f32 %v1199, %v1503
      %v1505 = vpop.f32.mrf.mxu0
      %1506 = vmatprep.mubr.bf16.mxu0 %v440
      %1507 = vmatmul.mubr.bf16.gmra.mxu0 %v602
      %v1508 = vpop.f32.mrf.mxu0
      %v1509 = vadd.f32 %v1204, %v1508
      %v1510 = vpop.f32.mrf.mxu0
      %v1511 = vpop.f32.mrf.mxu0
      %v1512 = vadd.f32 %v1207, %v1511
      %v1513 = vpop.f32.mrf.mxu0
      %1514 = vmatprep.mubr.bf16.mxu0 %v441
      %1515 = vmatmul.mubr.bf16.gmra.mxu0 %v603
      %v1516 = vpop.f32.mrf.mxu0
      %v1517 = vadd.f32 %v1212, %v1516
      %v1518 = vpop.f32.mrf.mxu0
      %v1519 = vpop.f32.mrf.mxu0
      %v1520 = vadd.f32 %v1215, %v1519
      %v1521 = vpop.f32.mrf.mxu0
      %1522 = vmatprep.mubr.bf16.mxu0 %v442
      %1523 = vmatmul.mubr.bf16.gmra.mxu0 %v604
      %v1524 = vpop.f32.mrf.mxu0
      %v1525 = vadd.f32 %v1220, %v1524
      %v1526 = vpop.f32.mrf.mxu0
      %v1527 = vpop.f32.mrf.mxu0
      %v1528 = vadd.f32 %v1223, %v1527
      %v1529 = vpop.f32.mrf.mxu0
      %1530 = vmatprep.mubr.bf16.mxu0 %v443
      %1531 = vmatmul.mubr.bf16.gmra.mxu0 %v605
      %v1532 = vpop.f32.mrf.mxu0
      %v1533 = vadd.f32 %v1228, %v1532
      %v1534 = vpop.f32.mrf.mxu0
      %v1535 = vpop.f32.mrf.mxu0
      %v1536 = vadd.f32 %v1231, %v1535
      %v1537 = vpop.f32.mrf.mxu0
      %1538 = vmatprep.mubr.bf16.mxu0 %v444
      %1539 = vmatmul.mubr.bf16.gmra.mxu0 %v606
      %v1540 = vpop.f32.mrf.mxu0
      %v1541 = vadd.f32 %v1236, %v1540
      %v1542 = vpop.f32.mrf.mxu0
      %v1543 = vpop.f32.mrf.mxu0
      %v1544 = vadd.f32 %v1239, %v1543
      %v1545 = vpop.f32.mrf.mxu0
      %1546 = vmatprep.mubr.bf16.mxu0 %v445
      %1547 = vmatmul.mubr.bf16.gmra.mxu0 %v607
      %v1548 = vpop.f32.mrf.mxu0
      %v1549 = vadd.f32 %v1244, %v1548
      %v1550 = vpop.f32.mrf.mxu0
      %v1551 = vpop.f32.mrf.mxu0
      %v1552 = vadd.f32 %v1247, %v1551
      %v1553 = vpop.f32.mrf.mxu0
      %1554 = vmatprep.mubr.bf16.mxu0 %v446
      %1555 = vmatmul.mubr.bf16.gmra.mxu0 %v608
      %v1556 = vpop.f32.mrf.mxu0
      %v1557 = vadd.f32 %v1252, %v1556
      %v1558 = vpop.f32.mrf.mxu0
      %v1559 = vpop.f32.mrf.mxu0
      %v1560 = vadd.f32 %v1255, %v1559
      %v1561 = vpop.f32.mrf.mxu0
      %1562 = vdwg.mxu0
      %1563 = vmatprep.subr.bf16.mxu0 0
      %1564 = vmatpush1.bf16.msra.mxu0 %v1377
      %1565 = vmatprep.subr.bf16.mxu0 0
      %1566 = vmatpush1.bf16.msra.mxu0 %v1376
      %1567 = vmatprep.subr.bf16.mxu0 0
      %1568 = vmatpush1.bf16.msra.mxu0 %v1375
      %1569 = vmatprep.subr.bf16.mxu0 0
      %1570 = vmatpush1.bf16.msra.mxu0 %v1374
      %1571 = vmatprep.subr.bf16.mxu0 0
      %1572 = vmatpush1.bf16.msra.mxu0 %v1373
      %1573 = vmatprep.subr.bf16.mxu0 0
      %1574 = vmatpush1.bf16.msra.mxu0 %v1372
      %1575 = vmatprep.subr.bf16.mxu0 0
      %1576 = vmatpush1.bf16.msra.mxu0 %v1371
      %1577 = vmatprep.subr.bf16.mxu0 0
      %1578 = vmatpush1.bf16.msra.mxu0 %v1370
      %1579 = vmatprep.subr.bf16.mxu0 0
      %1580 = vmatpush2.bf16.msra.mxu0 0
      %1581 = vmatprep.subr.bf16.mxu0 0
      %1582 = vmatpush2.bf16.msra.mxu0 0
      %1583 = vmatprep.subr.bf16.mxu0 0
      %1584 = vmatpush2.bf16.msra.mxu0 0
      %1585 = vmatprep.subr.bf16.mxu0 0
      %1586 = vmatpush2.bf16.msra.mxu0 0
      %1587 = vmatprep.subr.bf16.mxu0 0
      %1588 = vmatpush2.bf16.msra.mxu0 0
      %1589 = vmatprep.subr.bf16.mxu0 0
      %1590 = vmatpush2.bf16.msra.mxu0 0
      %1591 = vmatprep.subr.bf16.mxu0 0
      %1592 = vmatpush2.bf16.msra.mxu0 0
      %1593 = vmatprep.subr.bf16.mxu0 0
      %1594 = vmatpush2.bf16.msra.mxu0 0
      %1595 = vmatprep.mubr.bf16.mxu0 0
      %1596 = vmatmul.mubr.bf16.gmra.mxu0 %v660
      %v1597 = vpop.f32.mrf.mxu0
      %v1598 = vadd.f32 %v1437, %v1597
      %v1599 = vpop.f32.mrf.mxu0
      %v1600 = vpop.f32.mrf.mxu0
      %v1601 = vadd.f32 %v1440, %v1600
      %v1602 = vpop.f32.mrf.mxu0
      %1603 = vmatprep.mubr.bf16.mxu0 0
      %1604 = vmatmul.mubr.bf16.gmra.mxu0 %v661
      %v1605 = vpop.f32.mrf.mxu0
      %v1606 = vadd.f32 %v1445, %v1605
      %v1607 = vpop.f32.mrf.mxu0
      %v1608 = vpop.f32.mrf.mxu0
      %v1609 = vadd.f32 %v1448, %v1608
      %v1610 = vpop.f32.mrf.mxu0
      %1611 = vmatprep.mubr.bf16.mxu0 0
      %1612 = vmatmul.mubr.bf16.gmra.mxu0 %v662
      %v1613 = vpop.f32.mrf.mxu0
      %v1614 = vadd.f32 %v1453, %v1613
      %v1615 = vpop.f32.mrf.mxu0
      %v1616 = vpop.f32.mrf.mxu0
      %v1617 = vadd.f32 %v1456, %v1616
      %v1618 = vpop.f32.mrf.mxu0
      %1619 = vmatprep.mubr.bf16.mxu0 0
      %1620 = vmatmul.mubr.bf16.gmra.mxu0 %v663
      %v1621 = vpop.f32.mrf.mxu0
      %v1622 = vadd.f32 %v1461, %v1621
      %v1623 = vpop.f32.mrf.mxu0
      %v1624 = vpop.f32.mrf.mxu0
      %v1625 = vadd.f32 %v1464, %v1624
      %v1626 = vpop.f32.mrf.mxu0
      %1627 = vmatprep.mubr.bf16.mxu0 0
      %1628 = vmatmul.mubr.bf16.gmra.mxu0 %v664
      %v1629 = vpop.f32.mrf.mxu0
      %v1630 = vadd.f32 %v1469, %v1629
      %v1631 = vpop.f32.mrf.mxu0
      %v1632 = vpop.f32.mrf.mxu0
      %v1633 = vadd.f32 %v1472, %v1632
      %v1634 = vpop.f32.mrf.mxu0
      %1635 = vmatprep.mubr.bf16.mxu0 0
      %1636 = vmatmul.mubr.bf16.gmra.mxu0 %v665
      %v1637 = vpop.f32.mrf.mxu0
      %v1638 = vadd.f32 %v1477, %v1637
      %v1639 = vpop.f32.mrf.mxu0
      %v1640 = vpop.f32.mrf.mxu0
      %v1641 = vadd.f32 %v1480, %v1640
      %v1642 = vpop.f32.mrf.mxu0
      %1643 = vmatprep.mubr.bf16.mxu0 0
      %1644 = vmatmul.mubr.bf16.gmra.mxu0 %v666
      %v1645 = vpop.f32.mrf.mxu0
      %v1646 = vadd.f32 %v1485, %v1645
      %v1647 = vpop.f32.mrf.mxu0
      %v1648 = vpop.f32.mrf.mxu0
      %v1649 = vadd.f32 %v1488, %v1648
      %v1650 = vpop.f32.mrf.mxu0
      %1651 = vmatprep.mubr.bf16.mxu0 0
      %1652 = vmatmul.mubr.bf16.gmra.mxu0 %v667
      %v1653 = vpop.f32.mrf.mxu0
      %v1654 = vadd.f32 %v1493, %v1653
      %v1655 = vpop.f32.mrf.mxu0
      %v1656 = vpop.f32.mrf.mxu0
      %v1657 = vadd.f32 %v1496, %v1656
      %v1658 = vpop.f32.mrf.mxu0
      %1659 = vmatprep.mubr.bf16.mxu0 0
      %1660 = vmatmul.mubr.bf16.gmra.mxu0 %v668
      %v1661 = vpop.f32.mrf.mxu0
      %v1662 = vadd.f32 %v1501, %v1661
      %v1663 = vpop.f32.mrf.mxu0
      %v1664 = vpop.f32.mrf.mxu0
      %v1665 = vadd.f32 %v1504, %v1664
      %v1666 = vpop.f32.mrf.mxu0
      %1667 = vmatprep.mubr.bf16.mxu0 0
      %1668 = vmatmul.mubr.bf16.gmra.mxu0 %v669
      %v1669 = vpop.f32.mrf.mxu0
      %v1670 = vadd.f32 %v1509, %v1669
      %v1671 = vpop.f32.mrf.mxu0
      %v1672 = vpop.f32.mrf.mxu0
      %v1673 = vadd.f32 %v1512, %v1672
      %v1674 = vpop.f32.mrf.mxu0
      %1675 = vmatprep.mubr.bf16.mxu0 0
      %1676 = vmatmul.mubr.bf16.gmra.mxu0 %v670
      %v1677 = vpop.f32.mrf.mxu0
      %v1678 = vadd.f32 %v1517, %v1677
      %v1679 = vpop.f32.mrf.mxu0
      %v1680 = vpop.f32.mrf.mxu0
      %v1681 = vadd.f32 %v1520, %v1680
      %v1682 = vpop.f32.mrf.mxu0
      %1683 = vmatprep.mubr.bf16.mxu0 0
      %1684 = vmatmul.mubr.bf16.gmra.mxu0 %v671
      %v1685 = vpop.f32.mrf.mxu0
      %v1686 = vadd.f32 %v1525, %v1685
      %v1687 = vpop.f32.mrf.mxu0
      %v1688 = vpop.f32.mrf.mxu0
      %v1689 = vadd.f32 %v1528, %v1688
      %v1690 = vpop.f32.mrf.mxu0
      %1691 = vmatprep.mubr.bf16.mxu0 0
      %1692 = vmatmul.mubr.bf16.gmra.mxu0 %v672
      %v1693 = vpop.f32.mrf.mxu0
      %v1694 = vadd.f32 %v1533, %v1693
      %v1695 = vpop.f32.mrf.mxu0
      %v1696 = vpop.f32.mrf.mxu0
      %v1697 = vadd.f32 %v1536, %v1696
      %v1698 = vpop.f32.mrf.mxu0
      %1699 = vmatprep.mubr.bf16.mxu0 0
      %1700 = vmatmul.mubr.bf16.gmra.mxu0 %v673
      %v1701 = vpop.f32.mrf.mxu0
      %v1702 = vadd.f32 %v1541, %v1701
      %v1703 = vpop.f32.mrf.mxu0
      %v1704 = vpop.f32.mrf.mxu0
      %v1705 = vadd.f32 %v1544, %v1704
      %v1706 = vpop.f32.mrf.mxu0
      %1707 = vmatprep.mubr.bf16.mxu0 0
      %1708 = vmatmul.mubr.bf16.gmra.mxu0 %v674
      %v1709 = vpop.f32.mrf.mxu0
      %v1710 = vadd.f32 %v1549, %v1709
      %v1711 = vpop.f32.mrf.mxu0
      %v1712 = vpop.f32.mrf.mxu0
      %v1713 = vadd.f32 %v1552, %v1712
      %v1714 = vpop.f32.mrf.mxu0
      %1715 = vmatprep.mubr.bf16.mxu0 0
      %1716 = vmatmul.mubr.bf16.gmra.mxu0 %v675
      %v1717 = vpop.f32.mrf.mxu0
      %v1718 = vadd.f32 %v1557, %v1717
      %v1719 = vpop.f32.mrf.mxu0
      %v1720 = vpop.f32.mrf.mxu0
      %v1721 = vadd.f32 %v1560, %v1720
      %v1722 = vpop.f32.mrf.mxu0
      %1723 = vdwg.mxu0
      %v1725 = vunpack.c.l.b16 0
      %v1726 = vpack.c.b16 %v1725, %v1725
      %v1728 = vshrl.u32 %v1726, 16
      %v1730 = vrot.slane %v1728, 7
      %v1731 = vshll.u32 %v1726, 16
      %v1733 = vor.u32 %v1730, %v1731
      %v1735 = vsel %vm592, 0, %v1733
      %v1736 = vrot.slane %v1731, 1
      %v1737 = vor.u32 %v1728, %v1736
      %v1739 = vsel %vm659, %v1737, 0
      %s1741 = scalar_lea.vmem %s1, 384
      %v1742 = vld [vmem:[%s1741] sm:$0xf]
      %v1743 = vld [vmem:[%s1741 + $0x4] sm:$0xf]
      %v1744 = vld [vmem:[%s1741 + $0x8] sm:$0xf]
      %v1745 = vld [vmem:[%s1741 + $0xc] sm:$0xf]
      %v1746 = vld [vmem:[%s1741 + $0x10] sm:$0xf]
      %v1747 = vld [vmem:[%s1741 + $0x14] sm:$0xf]
      %v1748 = vld [vmem:[%s1741 + $0x18] sm:$0xf]
      %v1749 = vld [vmem:[%s1741 + $0x1c] sm:$0xf]
      %v1750 = vld [vmem:[%s1741 + $0x20] sm:$0xf]
      %v1751 = vld [vmem:[%s1741 + $0x24] sm:$0xf]
      %v1752 = vld [vmem:[%s1741 + $0x28] sm:$0xf]
      %v1753 = vld [vmem:[%s1741 + $0x2c] sm:$0xf]
      %v1754 = vld [vmem:[%s1741 + $0x30] sm:$0xf]
      %v1755 = vld [vmem:[%s1741 + $0x34] sm:$0xf]
      %v1756 = vld [vmem:[%s1741 + $0x38] sm:$0xf]
      %v1757 = vld [vmem:[%s1741 + $0x3c] sm:$0xf]
      %v1758 = vld [vmem:[%s1741 + $0x40] sm:$0xf]
      %v1759 = vld [vmem:[%s1741 + $0x44] sm:$0xf]
      %v1760 = vld [vmem:[%s1741 + $0x48] sm:$0xf]
      %v1761 = vld [vmem:[%s1741 + $0x4c] sm:$0xf]
      %v1762 = vld [vmem:[%s1741 + $0x50] sm:$0xf]
      %v1763 = vld [vmem:[%s1741 + $0x54] sm:$0xf]
      %v1764 = vld [vmem:[%s1741 + $0x58] sm:$0xf]
      %v1765 = vld [vmem:[%s1741 + $0x5c] sm:$0xf]
      %v1766 = vld [vmem:[%s1741 + $0x60] sm:$0xf]
      %v1767 = vld [vmem:[%s1741 + $0x64] sm:$0xf]
      %v1768 = vld [vmem:[%s1741 + $0x68] sm:$0xf]
      %v1769 = vld [vmem:[%s1741 + $0x6c] sm:$0xf]
      %v1770 = vld [vmem:[%s1741 + $0x70] sm:$0xf]
      %v1771 = vld [vmem:[%s1741 + $0x74] sm:$0xf]
      %v1772 = vld [vmem:[%s1741 + $0x78] sm:$0xf]
      %v1773 = vld [vmem:[%s1741 + $0x7c] sm:$0xf]
      %v1774 = vld [vmem:[%s1741 + $0x80] sm:$0xf]
      %v1775 = vld [vmem:[%s1741 + $0x84] sm:$0xf]
      %v1776 = vld [vmem:[%s1741 + $0x88] sm:$0xf]
      %v1777 = vld [vmem:[%s1741 + $0x8c] sm:$0xf]
      %v1778 = vld [vmem:[%s1741 + $0x90] sm:$0xf]
      %v1779 = vld [vmem:[%s1741 + $0x94] sm:$0xf]
      %v1780 = vld [vmem:[%s1741 + $0x98] sm:$0xf]
      %v1781 = vld [vmem:[%s1741 + $0x9c] sm:$0xf]
      %v1782 = vld [vmem:[%s1741 + $0xa0] sm:$0xf]
      %v1783 = vld [vmem:[%s1741 + $0xa4] sm:$0xf]
      %v1784 = vld [vmem:[%s1741 + $0xa8] sm:$0xf]
      %v1785 = vld [vmem:[%s1741 + $0xac] sm:$0xf]
      %v1786 = vld [vmem:[%s1741 + $0xb0] sm:$0xf]
      %v1787 = vld [vmem:[%s1741 + $0xb4] sm:$0xf]
      %v1788 = vld [vmem:[%s1741 + $0xb8] sm:$0xf]
      %v1789 = vld [vmem:[%s1741 + $0xbc] sm:$0xf]
      %v1838 = vunpack.c.l.b16 %v1742
      %v1839 = vunpack.c.l.b16 %v1743
      %v1840 = vunpack.c.l.b16 %v1744
      %v1841 = vunpack.c.l.b16 %v1745
      %v1842 = vunpack.c.l.b16 %v1746
      %v1843 = vunpack.c.l.b16 %v1747
      %v1844 = vunpack.c.l.b16 %v1748
      %v1845 = vunpack.c.l.b16 %v1749
      %v1846 = vunpack.c.l.b16 %v1750
      %v1847 = vunpack.c.l.b16 %v1751
      %v1848 = vunpack.c.l.b16 %v1752
      %v1849 = vunpack.c.l.b16 %v1753
      %v1850 = vunpack.c.l.b16 %v1754
      %v1851 = vunpack.c.l.b16 %v1755
      %v1852 = vunpack.c.l.b16 %v1756
      %v1853 = vunpack.c.l.b16 %v1757
      %v1854 = vunpack.c.l.b16 %v1758
      %v1855 = vunpack.c.l.b16 %v1759
      %v1856 = vunpack.c.l.b16 %v1760
      %v1857 = vunpack.c.l.b16 %v1761
      %v1858 = vunpack.c.l.b16 %v1762
      %v1859 = vunpack.c.l.b16 %v1763
      %v1860 = vunpack.c.l.b16 %v1764
      %v1861 = vunpack.c.l.b16 %v1765
      %v1862 = vunpack.c.l.b16 %v1766
      %v1863 = vunpack.c.l.b16 %v1767
      %v1864 = vunpack.c.l.b16 %v1768
      %v1865 = vunpack.c.l.b16 %v1769
      %v1866 = vunpack.c.l.b16 %v1770
      %v1867 = vunpack.c.l.b16 %v1771
      %v1868 = vunpack.c.l.b16 %v1772
      %v1869 = vunpack.c.l.b16 %v1773
      %v1870 = vunpack.c.l.b16 %v1774
      %v1871 = vunpack.c.l.b16 %v1775
      %v1872 = vunpack.c.l.b16 %v1776
      %v1873 = vunpack.c.l.b16 %v1777
      %v1874 = vunpack.c.l.b16 %v1778
      %v1875 = vunpack.c.l.b16 %v1779
      %v1876 = vunpack.c.l.b16 %v1780
      %v1877 = vunpack.c.l.b16 %v1781
      %v1878 = vunpack.c.l.b16 %v1782
      %v1879 = vunpack.c.l.b16 %v1783
      %v1880 = vunpack.c.l.b16 %v1784
      %v1881 = vunpack.c.l.b16 %v1785
      %v1882 = vunpack.c.l.b16 %v1786
      %v1883 = vunpack.c.l.b16 %v1787
      %v1884 = vunpack.c.l.b16 %v1788
      %v1885 = vunpack.c.l.b16 %v1789
      %v1886 = vpack.c.b16 %v1839, %v1838
      %v1887 = vpack.c.b16 %v1841, %v1840
      %v1888 = vpack.c.b16 %v1843, %v1842
      %v1889 = vpack.c.b16 %v1845, %v1844
      %v1890 = vpack.c.b16 %v1847, %v1846
      %v1891 = vpack.c.b16 %v1849, %v1848
      %v1892 = vpack.c.b16 %v1851, %v1850
      %v1893 = vpack.c.b16 %v1853, %v1852
      %v1894 = vpack.c.b16 %v1855, %v1854
      %v1895 = vpack.c.b16 %v1857, %v1856
      %v1896 = vpack.c.b16 %v1859, %v1858
      %v1897 = vpack.c.b16 %v1861, %v1860
      %v1898 = vpack.c.b16 %v1863, %v1862
      %v1899 = vpack.c.b16 %v1865, %v1864
      %v1900 = vpack.c.b16 %v1867, %v1866
      %v1901 = vpack.c.b16 %v1869, %v1868
      %v1902 = vpack.c.b16 %v1871, %v1870
      %v1903 = vpack.c.b16 %v1873, %v1872
      %v1904 = vpack.c.b16 %v1875, %v1874
      %v1905 = vpack.c.b16 %v1877, %v1876
      %v1906 = vpack.c.b16 %v1879, %v1878
      %v1907 = vpack.c.b16 %v1881, %v1880
      %v1908 = vpack.c.b16 %v1883, %v1882
      %v1909 = vpack.c.b16 %v1885, %v1884
      %1934 = vmatprep.subr.bf16.mxu0 0
      %1935 = vmatpush1.bf16.msra.mxu0 %v1893
      %1936 = vmatprep.subr.bf16.mxu0 0
      %1937 = vmatpush1.bf16.msra.mxu0 %v1892
      %1938 = vmatprep.subr.bf16.mxu0 0
      %1939 = vmatpush1.bf16.msra.mxu0 %v1891
      %1940 = vmatprep.subr.bf16.mxu0 0
      %1941 = vmatpush1.bf16.msra.mxu0 %v1890
      %1942 = vmatprep.subr.bf16.mxu0 0
      %1943 = vmatpush1.bf16.msra.mxu0 %v1889
      %1944 = vmatprep.subr.bf16.mxu0 0
      %1945 = vmatpush1.bf16.msra.mxu0 %v1888
      %1946 = vmatprep.subr.bf16.mxu0 0
      %1947 = vmatpush1.bf16.msra.mxu0 %v1887
      %1948 = vmatprep.subr.bf16.mxu0 0
      %1949 = vmatpush1.bf16.msra.mxu0 %v1886
      %1950 = vmatprep.subr.bf16.mxu0 0
      %1951 = vmatpush2.bf16.msra.mxu0 %v1901
      %1952 = vmatprep.subr.bf16.mxu0 0
      %1953 = vmatpush2.bf16.msra.mxu0 %v1900
      %1954 = vmatprep.subr.bf16.mxu0 0
      %1955 = vmatpush2.bf16.msra.mxu0 %v1899
      %1956 = vmatprep.subr.bf16.mxu0 0
      %1957 = vmatpush2.bf16.msra.mxu0 %v1898
      %1958 = vmatprep.subr.bf16.mxu0 0
      %1959 = vmatpush2.bf16.msra.mxu0 %v1897
      %1960 = vmatprep.subr.bf16.mxu0 0
      %1961 = vmatpush2.bf16.msra.mxu0 %v1896
      %1962 = vmatprep.subr.bf16.mxu0 0
      %1963 = vmatpush2.bf16.msra.mxu0 %v1895
      %1964 = vmatprep.subr.bf16.mxu0 0
      %1965 = vmatpush2.bf16.msra.mxu0 %v1894
      %1966 = vmatprep.mubr.bf16.mxu0 %v433
      %1967 = vmatmul.mubr.bf16.gmra.mxu0 %v595
      %v1968 = vpop.f32.mrf.mxu0
      %v1969 = vadd.f32 0.0, %v1968
      %v1970 = vpop.f32.mrf.mxu0
      %v1971 = vpop.f32.mrf.mxu0
      %v1972 = vadd.f32 0.0, %v1971
      %v1973 = vpop.f32.mrf.mxu0
      %1974 = vmatprep.mubr.bf16.mxu0 %v434
      %1975 = vmatmul.mubr.bf16.gmra.mxu0 %v596
      %v1976 = vpop.f32.mrf.mxu0
      %v1977 = vadd.f32 0.0, %v1976
      %v1978 = vpop.f32.mrf.mxu0
      %v1979 = vpop.f32.mrf.mxu0
      %v1980 = vadd.f32 0.0, %v1979
      %v1981 = vpop.f32.mrf.mxu0
      %1982 = vmatprep.mubr.bf16.mxu0 %v435
      %1983 = vmatmul.mubr.bf16.gmra.mxu0 %v597
      %v1984 = vpop.f32.mrf.mxu0
      %v1985 = vadd.f32 0.0, %v1984
      %v1986 = vpop.f32.mrf.mxu0
      %v1987 = vpop.f32.mrf.mxu0
      %v1988 = vadd.f32 0.0, %v1987
      %v1989 = vpop.f32.mrf.mxu0
      %1990 = vmatprep.mubr.bf16.mxu0 %v436
      %1991 = vmatmul.mubr.bf16.gmra.mxu0 %v598
      %v1992 = vpop.f32.mrf.mxu0
      %v1993 = vadd.f32 0.0, %v1992
      %v1994 = vpop.f32.mrf.mxu0
      %v1995 = vpop.f32.mrf.mxu0
      %v1996 = vadd.f32 0.0, %v1995
      %v1997 = vpop.f32.mrf.mxu0
      %1998 = vmatprep.mubr.bf16.mxu0 %v437
      %1999 = vmatmul.mubr.bf16.gmra.mxu0 %v599
      %v2000 = vpop.f32.mrf.mxu0
      %v2001 = vadd.f32 0.0, %v2000
      %v2002 = vpop.f32.mrf.mxu0
      %v2003 = vpop.f32.mrf.mxu0
      %v2004 = vadd.f32 0.0, %v2003
      %v2005 = vpop.f32.mrf.mxu0
      %2006 = vmatprep.mubr.bf16.mxu0 %v438
      %2007 = vmatmul.mubr.bf16.gmra.mxu0 %v600
      %v2008 = vpop.f32.mrf.mxu0
      %v2009 = vadd.f32 0.0, %v2008
      %v2010 = vpop.f32.mrf.mxu0
      %v2011 = vpop.f32.mrf.mxu0
      %v2012 = vadd.f32 0.0, %v2011
      %v2013 = vpop.f32.mrf.mxu0
      %2014 = vmatprep.mubr.bf16.mxu0 %v439
      %2015 = vmatmul.mubr.bf16.gmra.mxu0 %v601
      %v2016 = vpop.f32.mrf.mxu0
      %v2017 = vadd.f32 0.0, %v2016
      %v2018 = vpop.f32.mrf.mxu0
      %v2019 = vpop.f32.mrf.mxu0
      %v2020 = vadd.f32 0.0, %v2019
      %v2021 = vpop.f32.mrf.mxu0
      %2022 = vmatprep.mubr.bf16.mxu0 %v440
      %2023 = vmatmul.mubr.bf16.gmra.mxu0 %v602
      %v2024 = vpop.f32.mrf.mxu0
      %v2025 = vadd.f32 0.0, %v2024
      %v2026 = vpop.f32.mrf.mxu0
      %v2027 = vpop.f32.mrf.mxu0
      %v2028 = vadd.f32 0.0, %v2027
      %v2029 = vpop.f32.mrf.mxu0
      %2030 = vmatprep.mubr.bf16.mxu0 %v441
      %2031 = vmatmul.mubr.bf16.gmra.mxu0 %v603
      %v2032 = vpop.f32.mrf.mxu0
      %v2033 = vadd.f32 0.0, %v2032
      %v2034 = vpop.f32.mrf.mxu0
      %v2035 = vpop.f32.mrf.mxu0
      %v2036 = vadd.f32 0.0, %v2035
      %v2037 = vpop.f32.mrf.mxu0
      %2038 = vmatprep.mubr.bf16.mxu0 %v442
      %2039 = vmatmul.mubr.bf16.gmra.mxu0 %v604
      %v2040 = vpop.f32.mrf.mxu0
      %v2041 = vadd.f32 0.0, %v2040
      %v2042 = vpop.f32.mrf.mxu0
      %v2043 = vpop.f32.mrf.mxu0
      %v2044 = vadd.f32 0.0, %v2043
      %v2045 = vpop.f32.mrf.mxu0
      %2046 = vmatprep.mubr.bf16.mxu0 %v443
      %2047 = vmatmul.mubr.bf16.gmra.mxu0 %v605
      %v2048 = vpop.f32.mrf.mxu0
      %v2049 = vadd.f32 0.0, %v2048
      %v2050 = vpop.f32.mrf.mxu0
      %v2051 = vpop.f32.mrf.mxu0
      %v2052 = vadd.f32 0.0, %v2051
      %v2053 = vpop.f32.mrf.mxu0
      %2054 = vmatprep.mubr.bf16.mxu0 %v444
      %2055 = vmatmul.mubr.bf16.gmra.mxu0 %v606
      %v2056 = vpop.f32.mrf.mxu0
      %v2057 = vadd.f32 0.0, %v2056
      %v2058 = vpop.f32.mrf.mxu0
      %v2059 = vpop.f32.mrf.mxu0
      %v2060 = vadd.f32 0.0, %v2059
      %v2061 = vpop.f32.mrf.mxu0
      %2062 = vmatprep.mubr.bf16.mxu0 %v445
      %2063 = vmatmul.mubr.bf16.gmra.mxu0 %v607
      %v2064 = vpop.f32.mrf.mxu0
      %v2065 = vadd.f32 0.0, %v2064
      %v2066 = vpop.f32.mrf.mxu0
      %v2067 = vpop.f32.mrf.mxu0
      %v2068 = vadd.f32 0.0, %v2067
      %v2069 = vpop.f32.mrf.mxu0
      %2070 = vmatprep.mubr.bf16.mxu0 %v446
      %2071 = vmatmul.mubr.bf16.gmra.mxu0 %v608
      %v2072 = vpop.f32.mrf.mxu0
      %v2073 = vadd.f32 0.0, %v2072
      %v2074 = vpop.f32.mrf.mxu0
      %v2075 = vpop.f32.mrf.mxu0
      %v2076 = vadd.f32 0.0, %v2075
      %v2077 = vpop.f32.mrf.mxu0
      %2078 = vmatprep.mubr.bf16.mxu0 %v728
      %2079 = vmatmul.mubr.bf16.gmra.mxu0 %v737
      %v2080 = vpop.f32.mrf.mxu0
      %v2081 = vadd.f32 0.0, %v2080
      %v2082 = vpop.f32.mrf.mxu0
      %v2083 = vpop.f32.mrf.mxu0
      %v2084 = vadd.f32 0.0, %v2083
      %v2085 = vpop.f32.mrf.mxu0
      %2086 = vmatprep.mubr.bf16.mxu0 %v1726
      %2087 = vmatmul.mubr.bf16.gmra.mxu0 %v1735
      %v2088 = vpop.f32.mrf.mxu0
      %v2089 = vadd.f32 0.0, %v2088
      %v2090 = vpop.f32.mrf.mxu0
      %v2091 = vpop.f32.mrf.mxu0
      %v2092 = vadd.f32 0.0, %v2091
      %v2093 = vpop.f32.mrf.mxu0
      %2094 = vdwg.mxu0
      %2095 = vmatprep.subr.bf16.mxu0 0
      %2096 = vmatpush1.bf16.msra.mxu0 %v1909
      %2097 = vmatprep.subr.bf16.mxu0 0
      %2098 = vmatpush1.bf16.msra.mxu0 %v1908
      %2099 = vmatprep.subr.bf16.mxu0 0
      %2100 = vmatpush1.bf16.msra.mxu0 %v1907
      %2101 = vmatprep.subr.bf16.mxu0 0
      %2102 = vmatpush1.bf16.msra.mxu0 %v1906
      %2103 = vmatprep.subr.bf16.mxu0 0
      %2104 = vmatpush1.bf16.msra.mxu0 %v1905
      %2105 = vmatprep.subr.bf16.mxu0 0
      %2106 = vmatpush1.bf16.msra.mxu0 %v1904
      %2107 = vmatprep.subr.bf16.mxu0 0
      %2108 = vmatpush1.bf16.msra.mxu0 %v1903
      %2109 = vmatprep.subr.bf16.mxu0 0
      %2110 = vmatpush1.bf16.msra.mxu0 %v1902
      %2111 = vmatprep.subr.bf16.mxu0 0
      %2112 = vmatpush2.bf16.msra.mxu0 0
      %2113 = vmatprep.subr.bf16.mxu0 0
      %2114 = vmatpush2.bf16.msra.mxu0 0
      %2115 = vmatprep.subr.bf16.mxu0 0
      %2116 = vmatpush2.bf16.msra.mxu0 0
      %2117 = vmatprep.subr.bf16.mxu0 0
      %2118 = vmatpush2.bf16.msra.mxu0 0
      %2119 = vmatprep.subr.bf16.mxu0 0
      %2120 = vmatpush2.bf16.msra.mxu0 0
      %2121 = vmatprep.subr.bf16.mxu0 0
      %2122 = vmatpush2.bf16.msra.mxu0 0
      %2123 = vmatprep.subr.bf16.mxu0 0
      %2124 = vmatpush2.bf16.msra.mxu0 0
      %2125 = vmatprep.subr.bf16.mxu0 0
      %2126 = vmatpush2.bf16.msra.mxu0 0
      %2127 = vmatprep.mubr.bf16.mxu0 0
      %2128 = vmatmul.mubr.bf16.gmra.mxu0 %v662
      %v2129 = vpop.f32.mrf.mxu0
      %v2130 = vadd.f32 %v1969, %v2129
      %v2131 = vpop.f32.mrf.mxu0
      %v2132 = vpop.f32.mrf.mxu0
      %v2133 = vadd.f32 %v1972, %v2132
      %v2134 = vpop.f32.mrf.mxu0
      %2135 = vmatprep.mubr.bf16.mxu0 0
      %2136 = vmatmul.mubr.bf16.gmra.mxu0 %v663
      %v2137 = vpop.f32.mrf.mxu0
      %v2138 = vadd.f32 %v1977, %v2137
      %v2139 = vpop.f32.mrf.mxu0
      %v2140 = vpop.f32.mrf.mxu0
      %v2141 = vadd.f32 %v1980, %v2140
      %v2142 = vpop.f32.mrf.mxu0
      %2143 = vmatprep.mubr.bf16.mxu0 0
      %2144 = vmatmul.mubr.bf16.gmra.mxu0 %v664
      %v2145 = vpop.f32.mrf.mxu0
      %v2146 = vadd.f32 %v1985, %v2145
      %v2147 = vpop.f32.mrf.mxu0
      %v2148 = vpop.f32.mrf.mxu0
      %v2149 = vadd.f32 %v1988, %v2148
      %v2150 = vpop.f32.mrf.mxu0
      %2151 = vmatprep.mubr.bf16.mxu0 0
      %2152 = vmatmul.mubr.bf16.gmra.mxu0 %v665
      %v2153 = vpop.f32.mrf.mxu0
      %v2154 = vadd.f32 %v1993, %v2153
      %v2155 = vpop.f32.mrf.mxu0
      %v2156 = vpop.f32.mrf.mxu0
      %v2157 = vadd.f32 %v1996, %v2156
      %v2158 = vpop.f32.mrf.mxu0
      %2159 = vmatprep.mubr.bf16.mxu0 0
      %2160 = vmatmul.mubr.bf16.gmra.mxu0 %v666
      %v2161 = vpop.f32.mrf.mxu0
      %v2162 = vadd.f32 %v2001, %v2161
      %v2163 = vpop.f32.mrf.mxu0
      %v2164 = vpop.f32.mrf.mxu0
      %v2165 = vadd.f32 %v2004, %v2164
      %v2166 = vpop.f32.mrf.mxu0
      %2167 = vmatprep.mubr.bf16.mxu0 0
      %2168 = vmatmul.mubr.bf16.gmra.mxu0 %v667
      %v2169 = vpop.f32.mrf.mxu0
      %v2170 = vadd.f32 %v2009, %v2169
      %v2171 = vpop.f32.mrf.mxu0
      %v2172 = vpop.f32.mrf.mxu0
      %v2173 = vadd.f32 %v2012, %v2172
      %v2174 = vpop.f32.mrf.mxu0
      %2175 = vmatprep.mubr.bf16.mxu0 0
      %2176 = vmatmul.mubr.bf16.gmra.mxu0 %v668
      %v2177 = vpop.f32.mrf.mxu0
      %v2178 = vadd.f32 %v2017, %v2177
      %v2179 = vpop.f32.mrf.mxu0
      %v2180 = vpop.f32.mrf.mxu0
      %v2181 = vadd.f32 %v2020, %v2180
      %v2182 = vpop.f32.mrf.mxu0
      %2183 = vmatprep.mubr.bf16.mxu0 0
      %2184 = vmatmul.mubr.bf16.gmra.mxu0 %v669
      %v2185 = vpop.f32.mrf.mxu0
      %v2186 = vadd.f32 %v2025, %v2185
      %v2187 = vpop.f32.mrf.mxu0
      %v2188 = vpop.f32.mrf.mxu0
      %v2189 = vadd.f32 %v2028, %v2188
      %v2190 = vpop.f32.mrf.mxu0
      %2191 = vmatprep.mubr.bf16.mxu0 0
      %2192 = vmatmul.mubr.bf16.gmra.mxu0 %v670
      %v2193 = vpop.f32.mrf.mxu0
      %v2194 = vadd.f32 %v2033, %v2193
      %v2195 = vpop.f32.mrf.mxu0
      %v2196 = vpop.f32.mrf.mxu0
      %v2197 = vadd.f32 %v2036, %v2196
      %v2198 = vpop.f32.mrf.mxu0
      %2199 = vmatprep.mubr.bf16.mxu0 0
      %2200 = vmatmul.mubr.bf16.gmra.mxu0 %v671
      %v2201 = vpop.f32.mrf.mxu0
      %v2202 = vadd.f32 %v2041, %v2201
      %v2203 = vpop.f32.mrf.mxu0
      %v2204 = vpop.f32.mrf.mxu0
      %v2205 = vadd.f32 %v2044, %v2204
      %v2206 = vpop.f32.mrf.mxu0
      %2207 = vmatprep.mubr.bf16.mxu0 0
      %2208 = vmatmul.mubr.bf16.gmra.mxu0 %v672
      %v2209 = vpop.f32.mrf.mxu0
      %v2210 = vadd.f32 %v2049, %v2209
      %v2211 = vpop.f32.mrf.mxu0
      %v2212 = vpop.f32.mrf.mxu0
      %v2213 = vadd.f32 %v2052, %v2212
      %v2214 = vpop.f32.mrf.mxu0
      %2215 = vmatprep.mubr.bf16.mxu0 0
      %2216 = vmatmul.mubr.bf16.gmra.mxu0 %v673
      %v2217 = vpop.f32.mrf.mxu0
      %v2218 = vadd.f32 %v2057, %v2217
      %v2219 = vpop.f32.mrf.mxu0
      %v2220 = vpop.f32.mrf.mxu0
      %v2221 = vadd.f32 %v2060, %v2220
      %v2222 = vpop.f32.mrf.mxu0
      %2223 = vmatprep.mubr.bf16.mxu0 0
      %2224 = vmatmul.mubr.bf16.gmra.mxu0 %v674
      %v2225 = vpop.f32.mrf.mxu0
      %v2226 = vadd.f32 %v2065, %v2225
      %v2227 = vpop.f32.mrf.mxu0
      %v2228 = vpop.f32.mrf.mxu0
      %v2229 = vadd.f32 %v2068, %v2228
      %v2230 = vpop.f32.mrf.mxu0
      %2231 = vmatprep.mubr.bf16.mxu0 0
      %2232 = vmatmul.mubr.bf16.gmra.mxu0 %v675
      %v2233 = vpop.f32.mrf.mxu0
      %v2234 = vadd.f32 %v2073, %v2233
      %v2235 = vpop.f32.mrf.mxu0
      %v2236 = vpop.f32.mrf.mxu0
      %v2237 = vadd.f32 %v2076, %v2236
      %v2238 = vpop.f32.mrf.mxu0
      %2239 = vmatprep.mubr.bf16.mxu0 0
      %2240 = vmatmul.mubr.bf16.gmra.mxu0 %v741
      %v2241 = vpop.f32.mrf.mxu0
      %v2242 = vadd.f32 %v2081, %v2241
      %v2243 = vpop.f32.mrf.mxu0
      %v2244 = vpop.f32.mrf.mxu0
      %v2245 = vadd.f32 %v2084, %v2244
      %v2246 = vpop.f32.mrf.mxu0
      %2247 = vmatprep.mubr.bf16.mxu0 0
      %2248 = vmatmul.mubr.bf16.gmra.mxu0 %v1739
      %v2249 = vpop.f32.mrf.mxu0
      %v2250 = vadd.f32 %v2089, %v2249
      %v2251 = vpop.f32.mrf.mxu0
      %v2252 = vpop.f32.mrf.mxu0
      %v2253 = vadd.f32 %v2092, %v2252
      %v2254 = vpop.f32.mrf.mxu0
      %2255 = vdwg.mxu0
      %v2256 = vadd.f32 %v1598, %v2130
      %v2257 = vadd.f32 %v1601, %v2133
      %v2258 = vadd.f32 %v1606, %v2138
      %v2259 = vadd.f32 %v1609, %v2141
      %v2260 = vadd.f32 %v1614, %v2146
      %v2261 = vadd.f32 %v1617, %v2149
      %v2262 = vadd.f32 %v1622, %v2154
      %v2263 = vadd.f32 %v1625, %v2157
      %v2264 = vadd.f32 %v1630, %v2162
      %v2265 = vadd.f32 %v1633, %v2165
      %v2266 = vadd.f32 %v1638, %v2170
      %v2267 = vadd.f32 %v1641, %v2173
      %v2268 = vadd.f32 %v1646, %v2178
      %v2269 = vadd.f32 %v1649, %v2181
      %v2270 = vadd.f32 %v1654, %v2186
      %v2271 = vadd.f32 %v1657, %v2189
      %v2272 = vadd.f32 %v1662, %v2194
      %v2273 = vadd.f32 %v1665, %v2197
      %v2274 = vadd.f32 %v1670, %v2202
      %v2275 = vadd.f32 %v1673, %v2205
      %v2276 = vadd.f32 %v1678, %v2210
      %v2277 = vadd.f32 %v1681, %v2213
      %v2278 = vadd.f32 %v1686, %v2218
      %v2279 = vadd.f32 %v1689, %v2221
      %v2280 = vadd.f32 %v1694, %v2226
      %v2281 = vadd.f32 %v1697, %v2229
      %v2282 = vadd.f32 %v1702, %v2234
      %v2283 = vadd.f32 %v1705, %v2237
      %v2284 = vadd.f32 %v1710, %v2242
      %v2285 = vadd.f32 %v1713, %v2245
      %v2286 = vadd.f32 %v1718, %v2250
      %v2287 = vadd.f32 %v1721, %v2253
      %v2288 = vld [vmem:[%s2] sm:$0x1]
      %v2290 = vlaneseq
      %v2291 = vshrl.u32 %v2290, 7
      %v2292 = vsub.s32 0, %v2291
      %v2293 = vrot.slane %v2288, %v2292
      %v2295 = vadd.f32 %v2256, %v2293
      %v2296 = vadd.f32 %v2257, %v2293
      %v2297 = vadd.f32 %v2258, %v2293
      %v2298 = vadd.f32 %v2259, %v2293
      %v2299 = vadd.f32 %v2260, %v2293
      %v2300 = vadd.f32 %v2261, %v2293
      %v2301 = vadd.f32 %v2262, %v2293
      %v2302 = vadd.f32 %v2263, %v2293
      %v2303 = vadd.f32 %v2264, %v2293
      %v2304 = vadd.f32 %v2265, %v2293
      %v2305 = vadd.f32 %v2266, %v2293
      %v2306 = vadd.f32 %v2267, %v2293
      %v2307 = vadd.f32 %v2268, %v2293
      %v2308 = vadd.f32 %v2269, %v2293
      %v2309 = vadd.f32 %v2270, %v2293
      %v2310 = vadd.f32 %v2271, %v2293
      %v2311 = vadd.f32 %v2272, %v2293
      %v2312 = vadd.f32 %v2273, %v2293
      %v2313 = vadd.f32 %v2274, %v2293
      %v2314 = vadd.f32 %v2275, %v2293
      %v2315 = vadd.f32 %v2276, %v2293
      %v2316 = vadd.f32 %v2277, %v2293
      %v2317 = vadd.f32 %v2278, %v2293
      %v2318 = vadd.f32 %v2279, %v2293
      %v2319 = vadd.f32 %v2280, %v2293
      %v2320 = vadd.f32 %v2281, %v2293
      %v2321 = vadd.f32 %v2282, %v2293
      %v2322 = vadd.f32 %v2283, %v2293
      %v2323 = vadd.f32 %v2284, %v2293
      %v2324 = vadd.f32 %v2285, %v2293
      %v2325 = vadd.f32 %v2286, %v2293
      %v2326 = vadd.f32 %v2287, %v2293
      %v2327 = vpack.c.bf16 %v2296, %v2295
      %v2328 = vpack.c.bf16 %v2298, %v2297
      %v2329 = vpack.c.bf16 %v2300, %v2299
      %v2330 = vpack.c.bf16 %v2302, %v2301
      %v2331 = vpack.c.bf16 %v2304, %v2303
      %v2332 = vpack.c.bf16 %v2306, %v2305
      %v2333 = vpack.c.bf16 %v2308, %v2307
      %v2334 = vpack.c.bf16 %v2310, %v2309
      %v2335 = vpack.c.bf16 %v2312, %v2311
      %v2336 = vpack.c.bf16 %v2314, %v2313
      %v2337 = vpack.c.bf16 %v2316, %v2315
      %v2338 = vpack.c.bf16 %v2318, %v2317
      %v2339 = vpack.c.bf16 %v2320, %v2319
      %v2340 = vpack.c.bf16 %v2322, %v2321
      %v2341 = vpack.c.bf16 %v2324, %v2323
      %v2342 = vpack.c.bf16 %v2326, %v2325
      %v2359 = vunpack.c.l.b16 %v2327
      %v2360 = vunpack.c.h.b16 %v2327
      %v2361 = vunpack.c.l.b16 %v2328
      %v2362 = vunpack.c.h.b16 %v2328
      %v2363 = vunpack.c.l.b16 %v2329
      %v2364 = vunpack.c.h.b16 %v2329
      %v2365 = vunpack.c.l.b16 %v2330
      %v2366 = vunpack.c.h.b16 %v2330
      %v2367 = vunpack.c.l.b16 %v2331
      %v2368 = vunpack.c.h.b16 %v2331
      %v2369 = vunpack.c.l.b16 %v2332
      %v2370 = vunpack.c.h.b16 %v2332
      %v2371 = vunpack.c.l.b16 %v2333
      %v2372 = vunpack.c.h.b16 %v2333
      %v2373 = vunpack.c.l.b16 %v2334
      %v2374 = vunpack.c.h.b16 %v2334
      %v2375 = vunpack.c.l.b16 %v2335
      %v2376 = vunpack.c.h.b16 %v2335
      %v2377 = vunpack.c.l.b16 %v2336
      %v2378 = vunpack.c.h.b16 %v2336
      %v2379 = vunpack.c.l.b16 %v2337
      %v2380 = vunpack.c.h.b16 %v2337
      %v2381 = vunpack.c.l.b16 %v2338
      %v2382 = vunpack.c.h.b16 %v2338
      %v2383 = vunpack.c.l.b16 %v2339
      %v2384 = vunpack.c.h.b16 %v2339
      %v2385 = vunpack.c.l.b16 %v2340
      %v2386 = vunpack.c.h.b16 %v2340
      %v2387 = vunpack.c.l.b16 %v2341
      %v2388 = vunpack.c.h.b16 %v2341
      %v2389 = vunpack.c.l.b16 %v2342
      %v2390 = vunpack.c.h.b16 %v2342
      %v2391 = vpack.c.b16 %v2359, %v2359
      %v2392 = vpack.c.b16 %v2360, %v2360
      %v2393 = vpack.c.b16 %v2361, %v2361
      %v2394 = vpack.c.b16 %v2362, %v2362
      %v2395 = vpack.c.b16 %v2363, %v2363
      %v2396 = vpack.c.b16 %v2364, %v2364
      %v2397 = vpack.c.b16 %v2365, %v2365
      %v2398 = vpack.c.b16 %v2366, %v2366
      %v2399 = vpack.c.b16 %v2367, %v2367
      %v2400 = vpack.c.b16 %v2368, %v2368
      %v2401 = vpack.c.b16 %v2369, %v2369
      %v2402 = vpack.c.b16 %v2370, %v2370
      %v2403 = vpack.c.b16 %v2371, %v2371
      %v2404 = vpack.c.b16 %v2372, %v2372
      %v2405 = vpack.c.b16 %v2373, %v2373
      %v2406 = vpack.c.b16 %v2374, %v2374
      %v2407 = vpack.c.b16 %v2375, %v2375
      %v2408 = vpack.c.b16 %v2376, %v2376
      %v2409 = vpack.c.b16 %v2377, %v2377
      %v2410 = vpack.c.b16 %v2378, %v2378
      %v2411 = vpack.c.b16 %v2379, %v2379
      %v2412 = vpack.c.b16 %v2380, %v2380
      %v2413 = vpack.c.b16 %v2381, %v2381
      %v2414 = vpack.c.b16 %v2382, %v2382
      %v2415 = vpack.c.b16 %v2383, %v2383
      %v2416 = vpack.c.b16 %v2384, %v2384
      %v2417 = vpack.c.b16 %v2385, %v2385
      %v2418 = vpack.c.b16 %v2386, %v2386
      %v2419 = vpack.c.b16 %v2387, %v2387
      %v2420 = vpack.c.b16 %v2388, %v2388
      %v2421 = vpack.c.b16 %v2389, %v2389
      %v2422 = vpack.c.b16 %v2390, %v2390
      %2455 = vst [vmem:[%s325] sm:$0xf] %v2391
      %2456 = vst [vmem:[%s325 + $0x4] sm:$0xf] %v2392
      %2457 = vst [vmem:[%s325 + $0x8] sm:$0xf] %v2393
      %2458 = vst [vmem:[%s325 + $0xc] sm:$0xf] %v2394
      %2459 = vst [vmem:[%s325 + $0x10] sm:$0xf] %v2395
      %2460 = vst [vmem:[%s325 + $0x14] sm:$0xf] %v2396
      %2461 = vst [vmem:[%s325 + $0x18] sm:$0xf] %v2397
      %2462 = vst [vmem:[%s325 + $0x1c] sm:$0xf] %v2398
      %2463 = vst [vmem:[%s325 + $0x20] sm:$0xf] %v2399
      %2464 = vst [vmem:[%s325 + $0x24] sm:$0xf] %v2400
      %2465 = vst [vmem:[%s325 + $0x28] sm:$0xf] %v2401
      %2466 = vst [vmem:[%s325 + $0x2c] sm:$0xf] %v2402
      %2467 = vst [vmem:[%s325 + $0x30] sm:$0xf] %v2403
      %2468 = vst [vmem:[%s325 + $0x34] sm:$0xf] %v2404
      %2469 = vst [vmem:[%s325 + $0x38] sm:$0xf] %v2405
      %2470 = vst [vmem:[%s325 + $0x3c] sm:$0xf] %v2406
      %2471 = vst [vmem:[%s325 + $0x40] sm:$0xf] %v2407
      %2472 = vst [vmem:[%s325 + $0x44] sm:$0xf] %v2408
      %2473 = vst [vmem:[%s325 + $0x48] sm:$0xf] %v2409
      %2474 = vst [vmem:[%s325 + $0x4c] sm:$0xf] %v2410
      %2475 = vst [vmem:[%s325 + $0x50] sm:$0xf] %v2411
      %2476 = vst [vmem:[%s325 + $0x54] sm:$0xf] %v2412
      %2477 = vst [vmem:[%s325 + $0x58] sm:$0xf] %v2413
      %2478 = vst [vmem:[%s325 + $0x5c] sm:$0xf] %v2414
      %2479 = vst [vmem:[%s325 + $0x60] sm:$0xf] %v2415
      %2480 = vst [vmem:[%s325 + $0x64] sm:$0xf] %v2416
      %2481 = vst [vmem:[%s325 + $0x68] sm:$0xf] %v2417
      %2482 = vst [vmem:[%s325 + $0x6c] sm:$0xf] %v2418
      %2483 = vst [vmem:[%s325 + $0x70] sm:$0xf] %v2419
      %2484 = vst [vmem:[%s325 + $0x74] sm:$0xf] %v2420
      %2485 = vst [vmem:[%s325 + $0x78] sm:$0xf] %v2421
      %2486 = vst [vmem:[%s325 + $0x7c] sm:$0xf] %v2422
      %v2487 = vadd.f32 %v2295, %v2296
      %v2488 = vadd.f32 %v2487, %v2297
      %v2489 = vadd.f32 %v2488, %v2298
      %v2490 = vadd.f32 %v2489, %v2299
      %v2491 = vadd.f32 %v2490, %v2300
      %v2492 = vadd.f32 %v2491, %v2301
      %v2493 = vadd.f32 %v2492, %v2302
      %v2494 = vadd.f32 %v2493, %v2303
      %v2495 = vadd.f32 %v2494, %v2304
      %v2496 = vadd.f32 %v2495, %v2305
      %v2497 = vadd.f32 %v2496, %v2306
      %v2498 = vadd.f32 %v2497, %v2307
      %v2499 = vadd.f32 %v2498, %v2308
      %v2500 = vadd.f32 %v2499, %v2309
      %v2501 = vadd.f32 %v2500, %v2310
      %v2502 = vadd.f32 %v2501, %v2311
      %v2503 = vadd.f32 %v2502, %v2312
      %v2504 = vadd.f32 %v2503, %v2313
      %v2505 = vadd.f32 %v2504, %v2314
      %v2506 = vadd.f32 %v2505, %v2315
      %v2507 = vadd.f32 %v2506, %v2316
      %v2508 = vadd.f32 %v2507, %v2317
      %v2509 = vadd.f32 %v2508, %v2318
      %v2510 = vadd.f32 %v2509, %v2319
      %v2511 = vadd.f32 %v2510, %v2320
      %v2512 = vadd.f32 %v2511, %v2321
      %v2513 = vadd.f32 %v2512, %v2322
      %v2514 = vadd.f32 %v2513, %v2323
      %v2515 = vadd.f32 %v2514, %v2324
      %v2516 = vadd.f32 %v2515, %v2325
      %v2517 = vadd.f32 %v2516, %v2326
      %v2518 = vrot.slane %v2517, 4
      %v2519 = vadd.f32 %v2517, %v2518
      %v2520 = vrot.slane %v2519, 2
      %v2521 = vadd.f32 %v2519, %v2520
      %v2522 = vrot.slane %v2521, 1
      %v2523 = vadd.f32 %v2521, %v2522
      %v2524 = vmul.f32 %v2523, 0.00390625
      %v2525 = vsub.f32 %v2295, %v2524
      %v2526 = vsub.f32 %v2296, %v2524
      %v2527 = vsub.f32 %v2297, %v2524
      %v2528 = vsub.f32 %v2298, %v2524
      %v2529 = vsub.f32 %v2299, %v2524
      %v2530 = vsub.f32 %v2300, %v2524
      %v2531 = vsub.f32 %v2301, %v2524
      %v2532 = vsub.f32 %v2302, %v2524
      %v2533 = vsub.f32 %v2303, %v2524
      %v2534 = vsub.f32 %v2304, %v2524
      %v2535 = vsub.f32 %v2305, %v2524
      %v2536 = vsub.f32 %v2306, %v2524
      %v2537 = vsub.f32 %v2307, %v2524
      %v2538 = vsub.f32 %v2308, %v2524
      %v2539 = vsub.f32 %v2309, %v2524
      %v2540 = vsub.f32 %v2310, %v2524
      %v2541 = vsub.f32 %v2311, %v2524
      %v2542 = vsub.f32 %v2312, %v2524
      %v2543 = vsub.f32 %v2313, %v2524
      %v2544 = vsub.f32 %v2314, %v2524
      %v2545 = vsub.f32 %v2315, %v2524
      %v2546 = vsub.f32 %v2316, %v2524
      %v2547 = vsub.f32 %v2317, %v2524
      %v2548 = vsub.f32 %v2318, %v2524
      %v2549 = vsub.f32 %v2319, %v2524
      %v2550 = vsub.f32 %v2320, %v2524
      %v2551 = vsub.f32 %v2321, %v2524
      %v2552 = vsub.f32 %v2322, %v2524
      %v2553 = vsub.f32 %v2323, %v2524
      %v2554 = vsub.f32 %v2324, %v2524
      %v2555 = vsub.f32 %v2325, %v2524
      %v2556 = vsub.f32 %v2326, %v2524
      %2557 = vst [vmem:[%s334] sm:$0x1] %v2523
      %v2558 = vmul.f32 %v2525, %v2525
      %v2559 = vmul.f32 %v2526, %v2526
      %v2560 = vmul.f32 %v2527, %v2527
      %v2561 = vmul.f32 %v2528, %v2528
      %v2562 = vmul.f32 %v2529, %v2529
      %v2563 = vmul.f32 %v2530, %v2530
      %v2564 = vmul.f32 %v2531, %v2531
      %v2565 = vmul.f32 %v2532, %v2532
      %v2566 = vmul.f32 %v2533, %v2533
      %v2567 = vmul.f32 %v2534, %v2534
      %v2568 = vmul.f32 %v2535, %v2535
      %v2569 = vmul.f32 %v2536, %v2536
      %v2570 = vmul.f32 %v2537, %v2537
      %v2571 = vmul.f32 %v2538, %v2538
      %v2572 = vmul.f32 %v2539, %v2539
      %v2573 = vmul.f32 %v2540, %v2540
      %v2574 = vmul.f32 %v2541, %v2541
      %v2575 = vmul.f32 %v2542, %v2542
      %v2576 = vmul.f32 %v2543, %v2543
      %v2577 = vmul.f32 %v2544, %v2544
      %v2578 = vmul.f32 %v2545, %v2545
      %v2579 = vmul.f32 %v2546, %v2546
      %v2580 = vmul.f32 %v2547, %v2547
      %v2581 = vmul.f32 %v2548, %v2548
      %v2582 = vmul.f32 %v2549, %v2549
      %v2583 = vmul.f32 %v2550, %v2550
      %v2584 = vmul.f32 %v2551, %v2551
      %v2585 = vmul.f32 %v2552, %v2552
      %v2586 = vmul.f32 %v2553, %v2553
      %v2587 = vmul.f32 %v2554, %v2554
      %v2588 = vmul.f32 %v2555, %v2555
      %v2589 = vmul.f32 %v2556, %v2556
      %v2590 = vadd.f32 %v2558, %v2559
      %v2591 = vadd.f32 %v2590, %v2560
      %v2592 = vadd.f32 %v2591, %v2561
      %v2593 = vadd.f32 %v2592, %v2562
      %v2594 = vadd.f32 %v2593, %v2563
      %v2595 = vadd.f32 %v2594, %v2564
      %v2596 = vadd.f32 %v2595, %v2565
      %v2597 = vadd.f32 %v2596, %v2566
      %v2598 = vadd.f32 %v2597, %v2567
      %v2599 = vadd.f32 %v2598, %v2568
      %v2600 = vadd.f32 %v2599, %v2569
      %v2601 = vadd.f32 %v2600, %v2570
      %v2602 = vadd.f32 %v2601, %v2571
      %v2603 = vadd.f32 %v2602, %v2572
      %v2604 = vadd.f32 %v2603, %v2573
      %v2605 = vadd.f32 %v2604, %v2574
      %v2606 = vadd.f32 %v2605, %v2575
      %v2607 = vadd.f32 %v2606, %v2576
      %v2608 = vadd.f32 %v2607, %v2577
      %v2609 = vadd.f32 %v2608, %v2578
      %v2610 = vadd.f32 %v2609, %v2579
      %v2611 = vadd.f32 %v2610, %v2580
      %v2612 = vadd.f32 %v2611, %v2581
      %v2613 = vadd.f32 %v2612, %v2582
      %v2614 = vadd.f32 %v2613, %v2583
      %v2615 = vadd.f32 %v2614, %v2584
      %v2616 = vadd.f32 %v2615, %v2585
      %v2617 = vadd.f32 %v2616, %v2586
      %v2618 = vadd.f32 %v2617, %v2587
      %v2619 = vadd.f32 %v2618, %v2588
      %v2620 = vadd.f32 %v2619, %v2589
      %v2621 = vrot.slane %v2620, 4
      %v2622 = vadd.f32 %v2620, %v2621
      %v2623 = vrot.slane %v2622, 2
      %v2624 = vadd.f32 %v2622, %v2623
      %v2625 = vrot.slane %v2624, 1
      %v2626 = vadd.f32 %v2624, %v2625
      %2627 = vst [vmem:[%s334 + $0x1] sm:$0x1] %v2626
      %v2628 = vld [vmem:[%s3] sm:$0xf]
      %v2629 = vld [vmem:[%s3 + $0x4] sm:$0xf]
      %v2630 = vld [vmem:[%s3 + $0x8] sm:$0xf]
      %v2631 = vld [vmem:[%s3 + $0xc] sm:$0xf]
      %v2632 = vld [vmem:[%s3 + $0x10] sm:$0xf]
      %v2633 = vld [vmem:[%s3 + $0x14] sm:$0xf]
      %v2634 = vld [vmem:[%s3 + $0x18] sm:$0xf]
      %v2635 = vld [vmem:[%s3 + $0x1c] sm:$0xf]
      %v2636 = vld [vmem:[%s3 + $0x20] sm:$0xf]
      %v2637 = vld [vmem:[%s3 + $0x24] sm:$0xf]
      %v2638 = vld [vmem:[%s3 + $0x28] sm:$0xf]
      %v2639 = vld [vmem:[%s3 + $0x2c] sm:$0xf]
      %v2640 = vld [vmem:[%s3 + $0x30] sm:$0xf]
      %v2641 = vld [vmem:[%s3 + $0x34] sm:$0xf]
      %v2642 = vld [vmem:[%s3 + $0x38] sm:$0xf]
      %v2643 = vld [vmem:[%s3 + $0x3c] sm:$0xf]
      %v2644 = vld [vmem:[%s4] sm:$0x1]
      %v2646 = vlaneseq
      %v2647 = vshrl.u32 %v2646, 7
      %v2648 = vsub.s32 0, %v2647
      %v2649 = vrot.slane %v2644, %v2648
      %v2667 = vunpack.c.l.b16 %v2628
      %v2668 = vunpack.c.l.b16 %v2629
      %v2669 = vunpack.c.l.b16 %v2630
      %v2670 = vunpack.c.l.b16 %v2631
      %v2671 = vunpack.c.l.b16 %v2632
      %v2672 = vunpack.c.l.b16 %v2633
      %v2673 = vunpack.c.l.b16 %v2634
      %v2674 = vunpack.c.l.b16 %v2635
      %v2675 = vunpack.c.l.b16 %v2636
      %v2676 = vunpack.c.l.b16 %v2637
      %v2677 = vunpack.c.l.b16 %v2638
      %v2678 = vunpack.c.l.b16 %v2639
      %v2679 = vunpack.c.l.b16 %v2640
      %v2680 = vunpack.c.l.b16 %v2641
      %v2681 = vunpack.c.l.b16 %v2642
      %v2682 = vunpack.c.l.b16 %v2643
      %v2683 = vpack.c.b16 %v2668, %v2667
      %v2684 = vpack.c.b16 %v2670, %v2669
      %v2685 = vpack.c.b16 %v2672, %v2671
      %v2686 = vpack.c.b16 %v2674, %v2673
      %v2687 = vpack.c.b16 %v2676, %v2675
      %v2688 = vpack.c.b16 %v2678, %v2677
      %v2689 = vpack.c.b16 %v2680, %v2679
      %v2690 = vpack.c.b16 %v2682, %v2681
      %2699 = vmatprep.subr.bf16.mxu0 0
      %2700 = vmatpush1.bf16.msra.mxu0 %v2690
      %2701 = vmatprep.subr.bf16.mxu0 0
      %2702 = vmatpush1.bf16.msra.mxu0 %v2689
      %2703 = vmatprep.subr.bf16.mxu0 0
      %2704 = vmatpush1.bf16.msra.mxu0 %v2688
      %2705 = vmatprep.subr.bf16.mxu0 0
      %2706 = vmatpush1.bf16.msra.mxu0 %v2687
      %2707 = vmatprep.subr.bf16.mxu0 0
      %2708 = vmatpush1.bf16.msra.mxu0 %v2686
      %2709 = vmatprep.subr.bf16.mxu0 0
      %2710 = vmatpush1.bf16.msra.mxu0 %v2685
      %2711 = vmatprep.subr.bf16.mxu0 0
      %2712 = vmatpush1.bf16.msra.mxu0 %v2684
      %2713 = vmatprep.subr.bf16.mxu0 0
      %2714 = vmatpush1.bf16.msra.mxu0 %v2683
      %2715 = vmatprep.subr.bf16.mxu0 0
      %2716 = vmatpush2.bf16.msra.mxu0 0
      %2717 = vmatprep.subr.bf16.mxu0 0
      %2718 = vmatpush2.bf16.msra.mxu0 0
      %2719 = vmatprep.subr.bf16.mxu0 0
      %2720 = vmatpush2.bf16.msra.mxu0 0
      %2721 = vmatprep.subr.bf16.mxu0 0
      %2722 = vmatpush2.bf16.msra.mxu0 0
      %2723 = vmatprep.subr.bf16.mxu0 0
      %2724 = vmatpush2.bf16.msra.mxu0 0
      %2725 = vmatprep.subr.bf16.mxu0 0
      %2726 = vmatpush2.bf16.msra.mxu0 0
      %2727 = vmatprep.subr.bf16.mxu0 0
      %2728 = vmatpush2.bf16.msra.mxu0 0
      %2729 = vmatprep.subr.bf16.mxu0 0
      %2730 = vmatpush2.bf16.msra.mxu0 0
      %2731 = vmatprep.mubr.bf16.mxu0 0
      %2732 = vmatmul.mubr.bf16.gmra.mxu0 %v432
      %v2733 = vpop.f32.mrf.mxu0
      %v2734 = vadd.f32 %v2649, %v2733
      %v2735 = vpop.f32.mrf.mxu0
      %v2736 = vpop.f32.mrf.mxu0
      %v2737 = vadd.f32 %v2649, %v2736
      %v2738 = vpop.f32.mrf.mxu0
      %2739 = vmatprep.mubr.bf16.mxu0 0
      %2740 = vmatmul.mubr.bf16.gmra.mxu0 %v433
      %v2741 = vpop.f32.mrf.mxu0
      %v2742 = vadd.f32 %v2649, %v2741
      %v2743 = vpop.f32.mrf.mxu0
      %v2744 = vpop.f32.mrf.mxu0
      %v2745 = vadd.f32 %v2649, %v2744
      %v2746 = vpop.f32.mrf.mxu0
      %2747 = vmatprep.mubr.bf16.mxu0 0
      %2748 = vmatmul.mubr.bf16.gmra.mxu0 %v434
      %v2749 = vpop.f32.mrf.mxu0
      %v2750 = vadd.f32 %v2649, %v2749
      %v2751 = vpop.f32.mrf.mxu0
      %v2752 = vpop.f32.mrf.mxu0
      %v2753 = vadd.f32 %v2649, %v2752
      %v2754 = vpop.f32.mrf.mxu0
      %2755 = vmatprep.mubr.bf16.mxu0 0
      %2756 = vmatmul.mubr.bf16.gmra.mxu0 %v435
      %v2757 = vpop.f32.mrf.mxu0
      %v2758 = vadd.f32 %v2649, %v2757
      %v2759 = vpop.f32.mrf.mxu0
      %v2760 = vpop.f32.mrf.mxu0
      %v2761 = vadd.f32 %v2649, %v2760
      %v2762 = vpop.f32.mrf.mxu0
      %2763 = vmatprep.mubr.bf16.mxu0 0
      %2764 = vmatmul.mubr.bf16.gmra.mxu0 %v436
      %v2765 = vpop.f32.mrf.mxu0
      %v2766 = vadd.f32 %v2649, %v2765
      %v2767 = vpop.f32.mrf.mxu0
      %v2768 = vpop.f32.mrf.mxu0
      %v2769 = vadd.f32 %v2649, %v2768
      %v2770 = vpop.f32.mrf.mxu0
      %2771 = vmatprep.mubr.bf16.mxu0 0
      %2772 = vmatmul.mubr.bf16.gmra.mxu0 %v437
      %v2773 = vpop.f32.mrf.mxu0
      %v2774 = vadd.f32 %v2649, %v2773
      %v2775 = vpop.f32.mrf.mxu0
      %v2776 = vpop.f32.mrf.mxu0
      %v2777 = vadd.f32 %v2649, %v2776
      %v2778 = vpop.f32.mrf.mxu0
      %2779 = vmatprep.mubr.bf16.mxu0 0
      %2780 = vmatmul.mubr.bf16.gmra.mxu0 %v438
      %v2781 = vpop.f32.mrf.mxu0
      %v2782 = vadd.f32 %v2649, %v2781
      %v2783 = vpop.f32.mrf.mxu0
      %v2784 = vpop.f32.mrf.mxu0
      %v2785 = vadd.f32 %v2649, %v2784
      %v2786 = vpop.f32.mrf.mxu0
      %2787 = vmatprep.mubr.bf16.mxu0 0
      %2788 = vmatmul.mubr.bf16.gmra.mxu0 %v439
      %v2789 = vpop.f32.mrf.mxu0
      %v2790 = vadd.f32 %v2649, %v2789
      %v2791 = vpop.f32.mrf.mxu0
      %v2792 = vpop.f32.mrf.mxu0
      %v2793 = vadd.f32 %v2649, %v2792
      %v2794 = vpop.f32.mrf.mxu0
      %2795 = vmatprep.mubr.bf16.mxu0 0
      %2796 = vmatmul.mubr.bf16.gmra.mxu0 %v440
      %v2797 = vpop.f32.mrf.mxu0
      %v2798 = vadd.f32 %v2649, %v2797
      %v2799 = vpop.f32.mrf.mxu0
      %v2800 = vpop.f32.mrf.mxu0
      %v2801 = vadd.f32 %v2649, %v2800
      %v2802 = vpop.f32.mrf.mxu0
      %2803 = vmatprep.mubr.bf16.mxu0 0
      %2804 = vmatmul.mubr.bf16.gmra.mxu0 %v441
      %v2805 = vpop.f32.mrf.mxu0
      %v2806 = vadd.f32 %v2649, %v2805
      %v2807 = vpop.f32.mrf.mxu0
      %v2808 = vpop.f32.mrf.mxu0
      %v2809 = vadd.f32 %v2649, %v2808
      %v2810 = vpop.f32.mrf.mxu0
      %2811 = vmatprep.mubr.bf16.mxu0 0
      %2812 = vmatmul.mubr.bf16.gmra.mxu0 %v442
      %v2813 = vpop.f32.mrf.mxu0
      %v2814 = vadd.f32 %v2649, %v2813
      %v2815 = vpop.f32.mrf.mxu0
      %v2816 = vpop.f32.mrf.mxu0
      %v2817 = vadd.f32 %v2649, %v2816
      %v2818 = vpop.f32.mrf.mxu0
      %2819 = vmatprep.mubr.bf16.mxu0 0
      %2820 = vmatmul.mubr.bf16.gmra.mxu0 %v443
      %v2821 = vpop.f32.mrf.mxu0
      %v2822 = vadd.f32 %v2649, %v2821
      %v2823 = vpop.f32.mrf.mxu0
      %v2824 = vpop.f32.mrf.mxu0
      %v2825 = vadd.f32 %v2649, %v2824
      %v2826 = vpop.f32.mrf.mxu0
      %2827 = vmatprep.mubr.bf16.mxu0 0
      %2828 = vmatmul.mubr.bf16.gmra.mxu0 %v444
      %v2829 = vpop.f32.mrf.mxu0
      %v2830 = vadd.f32 %v2649, %v2829
      %v2831 = vpop.f32.mrf.mxu0
      %v2832 = vpop.f32.mrf.mxu0
      %v2833 = vadd.f32 %v2649, %v2832
      %v2834 = vpop.f32.mrf.mxu0
      %2835 = vmatprep.mubr.bf16.mxu0 0
      %2836 = vmatmul.mubr.bf16.gmra.mxu0 %v445
      %v2837 = vpop.f32.mrf.mxu0
      %v2838 = vadd.f32 %v2649, %v2837
      %v2839 = vpop.f32.mrf.mxu0
      %v2840 = vpop.f32.mrf.mxu0
      %v2841 = vadd.f32 %v2649, %v2840
      %v2842 = vpop.f32.mrf.mxu0
      %2843 = vmatprep.mubr.bf16.mxu0 0
      %2844 = vmatmul.mubr.bf16.gmra.mxu0 %v446
      %v2845 = vpop.f32.mrf.mxu0
      %v2846 = vadd.f32 %v2649, %v2845
      %v2847 = vpop.f32.mrf.mxu0
      %v2848 = vpop.f32.mrf.mxu0
      %v2849 = vadd.f32 %v2649, %v2848
      %v2850 = vpop.f32.mrf.mxu0
      %2851 = vmatprep.mubr.bf16.mxu0 0
      %2852 = vmatmul.mubr.bf16.gmra.mxu0 %v728
      %v2853 = vpop.f32.mrf.mxu0
      %v2854 = vadd.f32 %v2649, %v2853
      %v2855 = vpop.f32.mrf.mxu0
      %v2856 = vpop.f32.mrf.mxu0
      %v2857 = vadd.f32 %v2649, %v2856
      %v2858 = vpop.f32.mrf.mxu0
      %2859 = vdwg.mxu0
      %v2860 = vpack.c.bf16 %v2737, %v2734
      %v2861 = vpack.c.bf16 %v2745, %v2742
      %v2862 = vpack.c.bf16 %v2753, %v2750
      %v2863 = vpack.c.bf16 %v2761, %v2758
      %v2864 = vpack.c.bf16 %v2769, %v2766
      %v2865 = vpack.c.bf16 %v2777, %v2774
      %v2866 = vpack.c.bf16 %v2785, %v2782
      %v2867 = vpack.c.bf16 %v2793, %v2790
      %v2868 = vpack.c.bf16 %v2801, %v2798
      %v2869 = vpack.c.bf16 %v2809, %v2806
      %v2870 = vpack.c.bf16 %v2817, %v2814
      %v2871 = vpack.c.bf16 %v2825, %v2822
      %v2872 = vpack.c.bf16 %v2833, %v2830
      %v2873 = vpack.c.bf16 %v2841, %v2838
      %v2874 = vpack.c.bf16 %v2849, %v2846
      %v2875 = vpack.c.bf16 %v2857, %v2854
      %v2892 = vunpack.c.l.b16 %v2860
      %v2893 = vunpack.c.h.b16 %v2860
      %v2894 = vunpack.c.l.b16 %v2861
      %v2895 = vunpack.c.h.b16 %v2861
      %v2896 = vunpack.c.l.b16 %v2862
      %v2897 = vunpack.c.h.b16 %v2862
      %v2898 = vunpack.c.l.b16 %v2863
      %v2899 = vunpack.c.h.b16 %v2863
      %v2900 = vunpack.c.l.b16 %v2864
      %v2901 = vunpack.c.h.b16 %v2864
      %v2902 = vunpack.c.l.b16 %v2865
      %v2903 = vunpack.c.h.b16 %v2865
      %v2904 = vunpack.c.l.b16 %v2866
      %v2905 = vunpack.c.h.b16 %v2866
      %v2906 = vunpack.c.l.b16 %v2867
      %v2907 = vunpack.c.h.b16 %v2867
      %v2908 = vunpack.c.l.b16 %v2868
      %v2909 = vunpack.c.h.b16 %v2868
      %v2910 = vunpack.c.l.b16 %v2869
      %v2911 = vunpack.c.h.b16 %v2869
      %v2912 = vunpack.c.l.b16 %v2870
      %v2913 = vunpack.c.h.b16 %v2870
      %v2914 = vunpack.c.l.b16 %v2871
      %v2915 = vunpack.c.h.b16 %v2871
      %v2916 = vunpack.c.l.b16 %v2872
      %v2917 = vunpack.c.h.b16 %v2872
      %v2918 = vunpack.c.l.b16 %v2873
      %v2919 = vunpack.c.h.b16 %v2873
      %v2920 = vunpack.c.l.b16 %v2874
      %v2921 = vunpack.c.h.b16 %v2874
      %v2922 = vunpack.c.l.b16 %v2875
      %v2923 = vunpack.c.h.b16 %v2875
      %v2924 = vpack.c.b16 %v2892, %v2892
      %v2925 = vpack.c.b16 %v2893, %v2893
      %v2926 = vpack.c.b16 %v2894, %v2894
      %v2927 = vpack.c.b16 %v2895, %v2895
      %v2928 = vpack.c.b16 %v2896, %v2896
      %v2929 = vpack.c.b16 %v2897, %v2897
      %v2930 = vpack.c.b16 %v2898, %v2898
      %v2931 = vpack.c.b16 %v2899, %v2899
      %v2932 = vpack.c.b16 %v2900, %v2900
      %v2933 = vpack.c.b16 %v2901, %v2901
      %v2934 = vpack.c.b16 %v2902, %v2902
      %v2935 = vpack.c.b16 %v2903, %v2903
      %v2936 = vpack.c.b16 %v2904, %v2904
      %v2937 = vpack.c.b16 %v2905, %v2905
      %v2938 = vpack.c.b16 %v2906, %v2906
      %v2939 = vpack.c.b16 %v2907, %v2907
      %v2940 = vpack.c.b16 %v2908, %v2908
      %v2941 = vpack.c.b16 %v2909, %v2909
      %v2942 = vpack.c.b16 %v2910, %v2910
      %v2943 = vpack.c.b16 %v2911, %v2911
      %v2944 = vpack.c.b16 %v2912, %v2912
      %v2945 = vpack.c.b16 %v2913, %v2913
      %v2946 = vpack.c.b16 %v2914, %v2914
      %v2947 = vpack.c.b16 %v2915, %v2915
      %v2948 = vpack.c.b16 %v2916, %v2916
      %v2949 = vpack.c.b16 %v2917, %v2917
      %v2950 = vpack.c.b16 %v2918, %v2918
      %v2951 = vpack.c.b16 %v2919, %v2919
      %v2952 = vpack.c.b16 %v2920, %v2920
      %v2953 = vpack.c.b16 %v2921, %v2921
      %v2954 = vpack.c.b16 %v2922, %v2922
      %v2955 = vpack.c.b16 %v2923, %v2923
      %2988 = vst [vmem:[%s330] sm:$0xf] %v2924
      %2989 = vst [vmem:[%s330 + $0x4] sm:$0xf] %v2925
      %2990 = vst [vmem:[%s330 + $0x8] sm:$0xf] %v2926
      %2991 = vst [vmem:[%s330 + $0xc] sm:$0xf] %v2927
      %2992 = vst [vmem:[%s330 + $0x10] sm:$0xf] %v2928
      %2993 = vst [vmem:[%s330 + $0x14] sm:$0xf] %v2929
      %2994 = vst [vmem:[%s330 + $0x18] sm:$0xf] %v2930
      %2995 = vst [vmem:[%s330 + $0x1c] sm:$0xf] %v2931
      %2996 = vst [vmem:[%s330 + $0x20] sm:$0xf] %v2932
      %2997 = vst [vmem:[%s330 + $0x24] sm:$0xf] %v2933
      %2998 = vst [vmem:[%s330 + $0x28] sm:$0xf] %v2934
      %2999 = vst [vmem:[%s330 + $0x2c] sm:$0xf] %v2935
      %3000 = vst [vmem:[%s330 + $0x30] sm:$0xf] %v2936
      %3001 = vst [vmem:[%s330 + $0x34] sm:$0xf] %v2937
      %3002 = vst [vmem:[%s330 + $0x38] sm:$0xf] %v2938
      %3003 = vst [vmem:[%s330 + $0x3c] sm:$0xf] %v2939
      %3004 = vst [vmem:[%s330 + $0x40] sm:$0xf] %v2940
      %3005 = vst [vmem:[%s330 + $0x44] sm:$0xf] %v2941
      %3006 = vst [vmem:[%s330 + $0x48] sm:$0xf] %v2942
      %3007 = vst [vmem:[%s330 + $0x4c] sm:$0xf] %v2943
      %3008 = vst [vmem:[%s330 + $0x50] sm:$0xf] %v2944
      %3009 = vst [vmem:[%s330 + $0x54] sm:$0xf] %v2945
      %3010 = vst [vmem:[%s330 + $0x58] sm:$0xf] %v2946
      %3011 = vst [vmem:[%s330 + $0x5c] sm:$0xf] %v2947
      %3012 = vst [vmem:[%s330 + $0x60] sm:$0xf] %v2948
      %3013 = vst [vmem:[%s330 + $0x64] sm:$0xf] %v2949
      %3014 = vst [vmem:[%s330 + $0x68] sm:$0xf] %v2950
      %3015 = vst [vmem:[%s330 + $0x6c] sm:$0xf] %v2951
      %3016 = vst [vmem:[%s330 + $0x70] sm:$0xf] %v2952
      %3017 = vst [vmem:[%s330 + $0x74] sm:$0xf] %v2953
      %3018 = vst [vmem:[%s330 + $0x78] sm:$0xf] %v2954
      %3019 = vst [vmem:[%s330 + $0x7c] sm:$0xf] %v2955
      %v3020 = vadd.f32 %v2734, %v2737
      %v3021 = vadd.f32 %v3020, %v2742
      %v3022 = vadd.f32 %v3021, %v2745
      %v3023 = vadd.f32 %v3022, %v2750
      %v3024 = vadd.f32 %v3023, %v2753
      %v3025 = vadd.f32 %v3024, %v2758
      %v3026 = vadd.f32 %v3025, %v2761
      %v3027 = vadd.f32 %v3026, %v2766
      %v3028 = vadd.f32 %v3027, %v2769
      %v3029 = vadd.f32 %v3028, %v2774
      %v3030 = vadd.f32 %v3029, %v2777
      %v3031 = vadd.f32 %v3030, %v2782
      %v3032 = vadd.f32 %v3031, %v2785
      %v3033 = vadd.f32 %v3032, %v2790
      %v3034 = vadd.f32 %v3033, %v2793
      %v3035 = vadd.f32 %v3034, %v2798
      %v3036 = vadd.f32 %v3035, %v2801
      %v3037 = vadd.f32 %v3036, %v2806
      %v3038 = vadd.f32 %v3037, %v2809
      %v3039 = vadd.f32 %v3038, %v2814
      %v3040 = vadd.f32 %v3039, %v2817
      %v3041 = vadd.f32 %v3040, %v2822
      %v3042 = vadd.f32 %v3041, %v2825
      %v3043 = vadd.f32 %v3042, %v2830
      %v3044 = vadd.f32 %v3043, %v2833
      %v3045 = vadd.f32 %v3044, %v2838
      %v3046 = vadd.f32 %v3045, %v2841
      %v3047 = vadd.f32 %v3046, %v2846
      %v3048 = vadd.f32 %v3047, %v2849
      %v3049 = vadd.f32 %v3048, %v2854
      %v3050 = vadd.f32 %v3049, %v2857
      %v3051 = vrot.slane %v3050, 4
      %v3052 = vadd.f32 %v3050, %v3051
      %v3053 = vrot.slane %v3052, 2
      %v3054 = vadd.f32 %v3052, %v3053
      %v3055 = vrot.slane %v3054, 1
      %v3056 = vadd.f32 %v3054, %v3055
      %v3057 = vmul.f32 %v3056, 0.00390625
      %v3058 = vsub.f32 %v2734, %v3057
      %v3059 = vsub.f32 %v2737, %v3057
      %v3060 = vsub.f32 %v2742, %v3057
      %v3061 = vsub.f32 %v2745, %v3057
      %v3062 = vsub.f32 %v2750, %v3057
      %v3063 = vsub.f32 %v2753, %v3057
      %v3064 = vsub.f32 %v2758, %v3057
      %v3065 = vsub.f32 %v2761, %v3057
      %v3066 = vsub.f32 %v2766, %v3057
      %v3067 = vsub.f32 %v2769, %v3057
      %v3068 = vsub.f32 %v2774, %v3057
      %v3069 = vsub.f32 %v2777, %v3057
      %v3070 = vsub.f32 %v2782, %v3057
      %v3071 = vsub.f32 %v2785, %v3057
      %v3072 = vsub.f32 %v2790, %v3057
      %v3073 = vsub.f32 %v2793, %v3057
      %v3074 = vsub.f32 %v2798, %v3057
      %v3075 = vsub.f32 %v2801, %v3057
      %v3076 = vsub.f32 %v2806, %v3057
      %v3077 = vsub.f32 %v2809, %v3057
      %v3078 = vsub.f32 %v2814, %v3057
      %v3079 = vsub.f32 %v2817, %v3057
      %v3080 = vsub.f32 %v2822, %v3057
      %v3081 = vsub.f32 %v2825, %v3057
      %v3082 = vsub.f32 %v2830, %v3057
      %v3083 = vsub.f32 %v2833, %v3057
      %v3084 = vsub.f32 %v2838, %v3057
      %v3085 = vsub.f32 %v2841, %v3057
      %v3086 = vsub.f32 %v2846, %v3057
      %v3087 = vsub.f32 %v2849, %v3057
      %v3088 = vsub.f32 %v2854, %v3057
      %v3089 = vsub.f32 %v2857, %v3057
      %3090 = vst [vmem:[%s338] sm:$0x1] %v3056
      %v3091 = vmul.f32 %v3058, %v3058
      %v3092 = vmul.f32 %v3059, %v3059
      %v3093 = vmul.f32 %v3060, %v3060
      %v3094 = vmul.f32 %v3061, %v3061
      %v3095 = vmul.f32 %v3062, %v3062
      %v3096 = vmul.f32 %v3063, %v3063
      %v3097 = vmul.f32 %v3064, %v3064
      %v3098 = vmul.f32 %v3065, %v3065
      %v3099 = vmul.f32 %v3066, %v3066
      %v3100 = vmul.f32 %v3067, %v3067
      %v3101 = vmul.f32 %v3068, %v3068
      %v3102 = vmul.f32 %v3069, %v3069
      %v3103 = vmul.f32 %v3070, %v3070
      %v3104 = vmul.f32 %v3071, %v3071
      %v3105 = vmul.f32 %v3072, %v3072
      %v3106 = vmul.f32 %v3073, %v3073
      %v3107 = vmul.f32 %v3074, %v3074
      %v3108 = vmul.f32 %v3075, %v3075
      %v3109 = vmul.f32 %v3076, %v3076
      %v3110 = vmul.f32 %v3077, %v3077
      %v3111 = vmul.f32 %v3078, %v3078
      %v3112 = vmul.f32 %v3079, %v3079
      %v3113 = vmul.f32 %v3080, %v3080
      %v3114 = vmul.f32 %v3081, %v3081
      %v3115 = vmul.f32 %v3082, %v3082
      %v3116 = vmul.f32 %v3083, %v3083
      %v3117 = vmul.f32 %v3084, %v3084
      %v3118 = vmul.f32 %v3085, %v3085
      %v3119 = vmul.f32 %v3086, %v3086
      %v3120 = vmul.f32 %v3087, %v3087
      %v3121 = vmul.f32 %v3088, %v3088
      %v3122 = vmul.f32 %v3089, %v3089
      %v3123 = vadd.f32 %v3091, %v3092
      %v3124 = vadd.f32 %v3123, %v3093
      %v3125 = vadd.f32 %v3124, %v3094
      %v3126 = vadd.f32 %v3125, %v3095
      %v3127 = vadd.f32 %v3126, %v3096
      %v3128 = vadd.f32 %v3127, %v3097
      %v3129 = vadd.f32 %v3128, %v3098
      %v3130 = vadd.f32 %v3129, %v3099
      %v3131 = vadd.f32 %v3130, %v3100
      %v3132 = vadd.f32 %v3131, %v3101
      %v3133 = vadd.f32 %v3132, %v3102
      %v3134 = vadd.f32 %v3133, %v3103
      %v3135 = vadd.f32 %v3134, %v3104
      %v3136 = vadd.f32 %v3135, %v3105
      %v3137 = vadd.f32 %v3136, %v3106
      %v3138 = vadd.f32 %v3137, %v3107
      %v3139 = vadd.f32 %v3138, %v3108
      %v3140 = vadd.f32 %v3139, %v3109
      %v3141 = vadd.f32 %v3140, %v3110
      %v3142 = vadd.f32 %v3141, %v3111
      %v3143 = vadd.f32 %v3142, %v3112
      %v3144 = vadd.f32 %v3143, %v3113
      %v3145 = vadd.f32 %v3144, %v3114
      %v3146 = vadd.f32 %v3145, %v3115
      %v3147 = vadd.f32 %v3146, %v3116
      %v3148 = vadd.f32 %v3147, %v3117
      %v3149 = vadd.f32 %v3148, %v3118
      %v3150 = vadd.f32 %v3149, %v3119
      %v3151 = vadd.f32 %v3150, %v3120
      %v3152 = vadd.f32 %v3151, %v3121
      %v3153 = vadd.f32 %v3152, %v3122
      %v3154 = vrot.slane %v3153, 4
      %v3155 = vadd.f32 %v3153, %v3154
      %v3156 = vrot.slane %v3155, 2
      %v3157 = vadd.f32 %v3155, %v3156
      %v3158 = vrot.slane %v3157, 1
      %v3159 = vadd.f32 %v3157, %v3158
      %3160 = vst [vmem:[%s338 + $0x1] sm:$0x1] %v3159
      %p3161 = scmp.lt.s32.totalorder %s20, 1
      %s3162 = scalar_select %p3161, %s20, 1
      %s3163 = smul.addr %s3162, 32
      %s3164 = smul.addr %s3163, 4
      %s3165 = scalar_lea.vmem %s5, %s3164
      %p3166 = scmp.lt.s32.totalorder %s20, 1
      %s3167 = scalar_select %p3166, %s20, 1
      %s3168 = smul.addr %s3167, 32
      %s3169 = smul.addr %s3168, 4
      %s3170 = scalar_lea.vmem %s6, %s3169
      %p3171 = scmp.lt.s32.totalorder %s20, 1
      %s3172 = scalar_select %p3171, %s20, 1
      %s3173 = smul.addr %s3172, 2
      %s3174 = scalar_lea.vmem %s7, %s3173
      %p3175 = scmp.lt.s32.totalorder %s20, 1
      %s3176 = scalar_select %p3175, %s20, 1
      %s3177 = smul.addr %s3176, 2
      %s3178 = scalar_lea.vmem %s8, %s3177
      // Predicated region
      $region41: #{resblock_forward.3} parent=39 // pred_check
        %p3179 = pneg %p148
      $region42: #{resblock_forward.3} parent=39 // pred_check_branch
        %3181 = sbr.rel (%p3179) target = $region44
      $region43: #{resblock_forward.3} parent=39 // pred_region
        _
      $region44: #{resblock_forward.3} parent=39 // pred_fallthru
        _
      // Predicated region
      $region45: #{resblock_forward.3} parent=39 // pred_check
        %p3182 = pneg %p174
      $region46: #{resblock_forward.3} parent=39 // pred_check_branch
        %3184 = sbr.rel (%p3182) target = $region48
      $region47: #{resblock_forward.3} parent=39 // pred_region
        _
      $region48: #{resblock_forward.3} parent=39 // pred_fallthru
        _
      // Predicated region
      $region49: #{resblock_forward.3} parent=39 // pred_check
        %p3185 = pneg %p200
      $region50: #{resblock_forward.3} parent=39 // pred_check_branch
        %3187 = sbr.rel (%p3185) target = $region52
      $region51: #{resblock_forward.3} parent=39 // pred_region
        _
      $region52: #{resblock_forward.3} parent=39 // pred_fallthru
        _
      // Predicated region
      $region53: #{resblock_forward.3} parent=39 // pred_check
        %p3188 = pneg %p226
      $region54: #{resblock_forward.3} parent=39 // pred_check_branch
        %3190 = sbr.rel (%p3188) target = $region56
      $region55: #{resblock_forward.3} parent=39 // pred_region
        _
      $region56: #{resblock_forward.3} parent=39 // pred_fallthru
        _
    $region40: #{resblock_forward.3} parent=5 // pred_fallthru
      _
    %p3191 = scmp.le.s32.totalorder 2, %s15
    // Predicated region
    $region57: #{resblock_forward.3} parent=5 // pred_check
      %p3192 = pneg %p3191
    $region58: #{resblock_forward.3} parent=5 // pred_check_branch
      %3194 = sbr.rel (%p3192) target = $region60
    $region59: #{resblock_forward.3} parent=5 // pred_region
      %s3195 = ssub.s32 %s15, 2
      // Predicated region
      $region61: #{resblock_forward.3} parent=59 // pred_check
        %p3196 = pneg %p154
      $region62: #{resblock_forward.3} parent=59 // pred_check_branch
        %3198 = sbr.rel (%p3196) target = $region64
      $region63: #{resblock_forward.3} parent=59 // pred_region
        %p3199 = scmp.lt.s32.totalorder %s21, 1
        %s3200 = scalar_select %p3199, %s21, 1
        %s3201 = smul.addr %s3200, 32
        %s3202 = smul.addr %s3201, 4
        %s3203 = scalar_lea.vmem %s5, %s3202
      $region64: #{resblock_forward.3} parent=59 // pred_fallthru
        _
      // Predicated region
      $region65: #{resblock_forward.3} parent=59 // pred_check
        %p3204 = pneg %p180
      $region66: #{resblock_forward.3} parent=59 // pred_check_branch
        %3206 = sbr.rel (%p3204) target = $region68
      $region67: #{resblock_forward.3} parent=59 // pred_region
        %p3207 = scmp.lt.s32.totalorder %s21, 1
        %s3208 = scalar_select %p3207, %s21, 1
        %s3209 = smul.addr %s3208, 32
        %s3210 = smul.addr %s3209, 4
        %s3211 = scalar_lea.vmem %s6, %s3210
      $region68: #{resblock_forward.3} parent=59 // pred_fallthru
        _
      // Predicated region
      $region69: #{resblock_forward.3} parent=59 // pred_check
        %p3212 = pneg %p206
      $region70: #{resblock_forward.3} parent=59 // pred_check_branch
        %3214 = sbr.rel (%p3212) target = $region72
      $region71: #{resblock_forward.3} parent=59 // pred_region
        %p3215 = scmp.lt.s32.totalorder %s21, 1
        %s3216 = scalar_select %p3215, %s21, 1
        %s3217 = smul.addr %s3216, 2
        %s3218 = scalar_lea.vmem %s7, %s3217
      $region72: #{resblock_forward.3} parent=59 // pred_fallthru
        _
      // Predicated region
      $region73: #{resblock_forward.3} parent=59 // pred_check
        %p3219 = pneg %p232
      $region74: #{resblock_forward.3} parent=59 // pred_check_branch
        %3221 = sbr.rel (%p3219) target = $region76
      $region75: #{resblock_forward.3} parent=59 // pred_region
        %p3222 = scmp.lt.s32.totalorder %s21, 1
        %s3223 = scalar_select %p3222, %s21, 1
        %s3224 = smul.addr %s3223, 2
        %s3225 = scalar_lea.vmem %s8, %s3224
      $region76: #{resblock_forward.3} parent=59 // pred_fallthru
        _
    $region60: #{resblock_forward.3} parent=5 // pred_fallthru
      _
  $region6: #{resblock_forward.3} parent=0 // loop_footer
    %s19 = sadd.s32 1, %s15
  $region7: #{resblock_forward.3} parent=0 // loop_footer_branch
    %14 = sbr.rel target = $region3
  $region8: #{resblock_forward.3} parent=0 // loop_exit
    _

</llo_original>
